<compile_context>
chip_gen: v6e
topology: v6e:2x2x1
jax: 0.10.0
libtpu: 0.0.40
codegen_flags: <defaults>
</compile_context>

<pallas_src>
import functools
import math

import jax
import jax.numpy as jnp
from jax.experimental import pallas as pl
from jax.experimental.pallas import tpu as pltpu

EPS_BN = 1e-5
VMEM_SPEC = pl.BlockSpec(memory_space=pltpu.MemorySpace.VMEM)

# ---------------------------------------------------------------------------
# Small configuration (structurally identical to the PyTorch defaults).
# ---------------------------------------------------------------------------
CFG = dict(
    input_size=64,       # torch: 128
    out_size=64,         # torch: 128
    residual_size=128,   # torch: 512
    skip_size=128,       # torch: 512
    dilation_cycles=2,
    dilation_depth=3,    # torch: 4
    num_classes=16,      # torch: 41
    ext_kernel=8,        # torch: 1024
    ext_stride=4,        # torch: 512
)
BATCH = 2
T_SPEC = 16                                     # torch: 313 (== post depthwise kernel)
WAV_LEN = (T_SPEC - 1) * CFG["ext_stride"]      # extractor output length == T_SPEC


# ---------------------------------------------------------------------------
# Fused WaveNet trunk: input conv -> L residual layers -> post head.
# One grid step == one branch (tgram / spec); the whole trunk runs in-body.
# ---------------------------------------------------------------------------
def trunk_kernel(x_ref, w_in_ref, wfg_ref, wcomb_ref, bcomb_ref,
                 w_dw_ref, b_dw_ref, w_out_ref, b_out_ref,
                 feat_ref, res_ref, *, B, T, PAD, R, S, dilations):
    inv_bt = 1.0 / float(B * T)

    def bn_train(v, inv_n):
        # one-sweep training-mode BatchNorm1d (gamma=1, beta=0), per column
        m = jnp.sum(v, axis=0, keepdims=True) * inv_n
        q = jnp.sum(v * v, axis=0, keepdims=True) * inv_n
        var = jnp.maximum(q - m * m, 0.0)
        return (v - m) * jax.lax.rsqrt(var + EPS_BN)

    # ---- CausalConv1d(Cin -> R, kernel=2, no bias): two accumulating taps ---
    x = x_ref[0].astype(jnp.bfloat16)                           # (B, 1+T, Cin)
    x0 = x[:, 0:T, :].reshape(B * T, -1)                        # x(t-1)
    x1 = x[:, 1:T + 1, :].reshape(B * T, -1)                    # x(t)
    y_in = jnp.dot(x0, w_in_ref[0, 0], preferred_element_type=jnp.float32)
    y_in = y_in + jnp.dot(x1, w_in_ref[0, 1], preferred_element_type=jnp.float32)

    res_ref[:, 0:PAD, :] = jnp.zeros((B, PAD, R), jnp.float32)  # causal zeros
    res_ref[:, PAD:PAD + T, :] = y_in.reshape(B, T, R)

    skip = jnp.zeros((B * T, S), jnp.float32)

    # ---- L residual layers (static loop; dilations are compile-time) --------
    for l, d in enumerate(dilations):
        res_blk = res_ref[...]                                  # (B, PAD+T, R)
        res_bf = res_blk.astype(jnp.bfloat16)
        wfg_l = wfg_ref[0, l]                                   # (3R, 2R) bf16
        fg = None
        for k in range(3):                                      # tap k: shift (2-k)*d
            start = PAD - (2 - k) * d                           # static slice start
            xk = res_bf[:, start:start + T, :].reshape(B * T, R)
            part = jnp.dot(xk, wfg_l[k * R:(k + 1) * R, :],
                           preferred_element_type=jnp.float32)
            fg = part if fg is None else fg + part              # (B*T, 2R)

        fg_n = bn_train(fg, inv_bt)                             # BN(filter)||BN(gate)
        act = jnp.tanh(fg_n[:, :R]) * jax.nn.sigmoid(fg_n[:, R:])

        # fused fx + skip: act @ [wres | wres@wskip] + [bres | bres@wskip+bskip]
        y = jnp.dot(act.astype(jnp.bfloat16), wcomb_ref[0, l],
                    preferred_element_type=jnp.float32) + bcomb_ref[0, l]
        skip = skip + y[:, R:]                                  # skip sum over layers
        x_old = res_blk[:, PAD:PAD + T, :].reshape(B * T, R)
        res_ref[:, PAD:PAD + T, :] = (y[:, :R] + x_old).reshape(B, T, R)

    # ---- post head: BN -> ReLU -> depthwise conv over T -> BN -> 1x1 conv ---
    normed = jnp.maximum(bn_train(skip, inv_bt), 0.0)           # (B*T, S)
    y = jnp.sum(normed.reshape(B, T, S) * w_dw_ref[0][None, :, :],
                axis=1) + b_dw_ref[0]                           # (B, S)
    y_n = bn_train(y, 1.0 / float(B))
    feat_ref[0] = (jnp.dot(y_n.astype(jnp.bfloat16), w_out_ref[0],
                           preferred_element_type=jnp.float32) + b_out_ref[0])


def call_trunk(x_in, p, cfg):
    nb, B, T1, cin = x_in.shape
    T = T1 - 1
    R, S, O = cfg["residual_size"], cfg["skip_size"], cfg["out_size"]
    depth, cycles = cfg["dilation_depth"], cfg["dilation_cycles"]
    L = cycles * depth
    PAD = 2 * (2 ** (depth - 1))                    # = (k-1) * max_dilation
    dil = tuple(2 ** j for _ in range(cycles) for j in range(depth))
    kern = functools.partial(trunk_kernel, B=B, T=T, PAD=PAD, R=R, S=S,
                             dilations=dil)
    grid_spec = pltpu.PrefetchScalarGridSpec(
        num_scalar_prefetch=0,
        grid=(nb,),
        in_specs=[
            pl.BlockSpec((1, B, T1, cin), lambda br: (br, 0, 0, 0)),
            pl.BlockSpec((1, 2, cin, R), lambda br: (br, 0, 0, 0)),
            pl.BlockSpec((1, L, 3 * R, 2 * R), lambda br: (br, 0, 0, 0)),
            pl.BlockSpec((1, L, R, R + S), lambda br: (br, 0, 0, 0)),
            pl.BlockSpec((1, L, 1, R + S), lambda br: (br, 0, 0, 0)),
            pl.BlockSpec((1, T, S), lambda br: (br, 0, 0)),
            pl.BlockSpec((1, 1, S), lambda br: (br, 0, 0)),
            pl.BlockSpec((1, S, O), lambda br: (br, 0, 0)),
            pl.BlockSpec((1, 1, O), lambda br: (br, 0, 0)),
        ],
        out_specs=pl.BlockSpec((1, B, O), lambda br: (br, 0, 0)),
        scratch_shapes=[pltpu.VMEM((B, PAD + T, R), jnp.float32)],
    )
    # TODO(synk): on v7x use pltpu.CORE_PARALLEL on the branch axis to pin the
    # two branches onto the two TensorCores; "parallel" is kept for portability.
    return pl.pallas_call(
        kern,
        out_shape=jax.ShapeDtypeStruct((nb, B, O), jnp.float32),
        grid_spec=grid_spec,
        compiler_params=pltpu.CompilerParams(
            dimension_semantics=("parallel",)),
    )(x_in, p["w_in"], p["wfg"], p["wcomb"], p["bcomb"],
      p["w_dw"], p["b_dw"], p["w_out"], p["b_out"])


# ---------------------------------------------------------------------------
# Small helper kernels
# ---------------------------------------------------------------------------
def extractor_kernel(blk_ref, w_ref, o_ref, *, B, T, stride):
    """Conv1d(1, Cin, ke=2*stride, stride) as two bf16 tap matmuls over
    non-duplicated stride blocks (overlap built in-kernel)."""
    blk = blk_ref[...].astype(jnp.bfloat16)                     # (B, T+1, stride)
    x0 = blk[:, 0:T, :].reshape(B * T, stride)
    x1 = blk[:, 1:T + 1, :].reshape(B * T, stride)
    y = jnp.dot(x0, w_ref[0], preferred_element_type=jnp.float32)
    y = y + jnp.dot(x1, w_ref[1], preferred_element_type=jnp.float32)
    o_ref[...] = y.reshape(B, T, -1)


def conv_extractor(wav_bl, w_ext, ke, stride):
    """Conv1d(1, C, ke, stride, padding=ke//2, bias=False); ke == 2*stride, so
    each output frame is two adjacent stride blocks (no 2x-duplicated im2col)."""
    b, length = wav_bl.shape
    pad = ke // 2
    assert ke == 2 * stride and length % stride == 0
    blocks = jnp.pad(wav_bl, ((0, 0), (pad, pad))).reshape(b, -1, stride)
    t_out = blocks.shape[1] - 1
    cin = w_ext.shape[-1]
    kern = functools.partial(extractor_kernel, B=b, T=t_out, stride=stride)
    return pl.pallas_call(
        kern,
        out_shape=jax.ShapeDtypeStruct((b, t_out, cin), jnp.float32),
        in_specs=[VMEM_SPEC, VMEM_SPEC],
        out_specs=VMEM_SPEC,
    )(blocks, w_ext)                                            # (B, T, Cin)


def arcface_kernel(x_ref, w_ref, label_ref, out_ref, *, s, cos_m, sin_m, th, mm):
    """ArcMarginProduct.  x: (B, F), w: (NC, F), label: (B, 1) int32."""
    x = x_ref[...]
    w = w_ref[...]
    xn = x / jnp.maximum(jnp.sqrt(jnp.sum(x * x, axis=1, keepdims=True)), 1e-12)
    wn = w / jnp.maximum(jnp.sqrt(jnp.sum(w * w, axis=1, keepdims=True)), 1e-12)
    cosine = jax.lax.dot_general(xn, wn, (((1,), (1,)), ((), ())),
                                 preferred_element_type=jnp.float32)   # (B, NC)
    sine = jnp.sqrt(jnp.clip(1.0 - cosine * cosine, 0.0, 1.0))
    phi = cosine * cos_m - sine * sin_m
    phi = jnp.where(cosine - th > 0, phi, cosine - mm)   # easy_margin=False
    col = jax.lax.broadcasted_iota(jnp.int32, cosine.shape, 1)
    one_hot = (col == label_ref[...]).astype(jnp.float32)
    out_ref[...] = (one_hot * phi + (1.0 - one_hot) * cosine) * s


def call_arcface(feat, w, label, s, m):
    b = feat.shape[0]
    nc = w.shape[0]
    kern = functools.partial(arcface_kernel, s=s,
                             cos_m=math.cos(m), sin_m=math.sin(m),
                             th=math.cos(math.pi - m), mm=math.sin(math.pi - m) * m)
    lab2d = label.reshape(b, 1).astype(jnp.int32)
    return pl.pallas_call(
        kern,
        out_shape=jax.ShapeDtypeStruct((b, nc), jnp.float32),
        in_specs=[VMEM_SPEC, VMEM_SPEC, VMEM_SPEC],
        out_specs=VMEM_SPEC,
    )(feat, w, lab2d)


# ---------------------------------------------------------------------------
# Forward
# ---------------------------------------------------------------------------
def spec_wavenet_forward(x_spec, wav, label, params, cfg):
    # x_spec: torch NCW (B, C, T) -> (B, T, C)
    x_spec_btc = jnp.transpose(x_spec, (0, 2, 1))
    x_wav_btc = conv_extractor(wav[:, 0, :], params["w_ext"],
                               cfg["ext_kernel"], cfg["ext_stride"])
    # TODO(synk): tgramnet's own ArcMarginProduct output is discarded by
    # SpecWaveNet.forward (dead code), so it is not computed here.
    x_in = jnp.stack([x_wav_btc, x_spec_btc], axis=0)          # (2, B, T, Cin)
    x_in = jnp.pad(x_in, ((0, 0), (0, 0), (1, 0), (0, 0)))     # causal pad (k=2)
    feat2 = call_trunk(x_in, params, cfg)                      # (2, B, out_size)
    feature = jnp.concatenate([feat2[0], feat2[1]], axis=1)    # (B, 2*out_size)
    if label is None:
        return feature
    out = call_arcface(feature, params["arc_w"], label, s=30.0, m=0.7)
    return out, feature


# ---------------------------------------------------------------------------
# Deterministic parameter init (mirrors the module's init scheme) + packing
# ---------------------------------------------------------------------------
def conv_w(key, out_ch, in_ch, k):
    std = math.sqrt(2.0 / (k * out_ch))
    return std * jax.random.normal(key, (out_ch, in_ch, k), jnp.float32)


def conv_b(key, out_ch, fan_in):
    bound = 1.0 / math.sqrt(fan_in)
    return jax.random.uniform(key, (1, out_ch), jnp.float32, -bound, bound)


def init_branch(key, cfg, t_len):
    cin = cfg["input_size"]
    r, s, o = cfg["residual_size"], cfg["skip_size"], cfg["out_size"]
    n_layers = cfg["dilation_cycles"] * cfg["dilation_depth"]
    keys = iter(jax.random.split(key, 6 * n_layers + 5))

    w_in_t = conv_w(next(keys), r, cin, 2)                        # (R, Cin, 2)
    w_in = jnp.stack([w_in_t[:, :, 0].T, w_in_t[:, :, 1].T],
                     axis=0).astype(jnp.bfloat16)                 # (2, Cin, R)

    wfg, wcomb, bcomb = [], [], []
    for _ in range(n_layers):
        wf_t = conv_w(next(keys), r, r, 3)
        wg_t = conv_w(next(keys), r, r, 3)
        wres_t = conv_w(next(keys), r, r, 1)
        b_res = conv_b(next(keys), r, r)                          # (1, R)
        wskip_t = conv_w(next(keys), s, r, 1)
        b_skip = conv_b(next(keys), s, r)                         # (1, S)
        # packed taps x [filter | gate]: rows = [tap0; tap1; tap2], each (R, 2R)
        wfg.append(jnp.concatenate(
            [jnp.concatenate([wf_t[:, :, k].T, wg_t[:, :, k].T], axis=1)
             for k in range(3)], axis=0))                         # (3R, 2R)
        wres = wres_t[:, :, 0].T                                  # (R, R)
        wskip = wskip_t[:, :, 0].T                                # (R, S)
        # precompose skip path in f32: skip = fx@wskip+bskip, fx = act@wres+bres
        wcomb.append(jnp.concatenate([wres, wres @ wskip], axis=1))           # (R, R+S)
        bcomb.append(jnp.concatenate([b_res, b_res @ wskip + b_skip], axis=1))  # (1, R+S)

    w_dw_t = conv_w(next(keys), s, 1, t_len)                      # (S, 1, T)
    b_dw = conv_b(next(keys), s, t_len)
    w_out_t = conv_w(next(keys), o, s, 1)
    b_out = conv_b(next(keys), o, s)
    return dict(
        w_in=w_in,                                                # (2, Cin, R) bf16
        wfg=jnp.stack(wfg).astype(jnp.bfloat16),                  # (L, 3R, 2R) bf16
        wcomb=jnp.stack(wcomb).astype(jnp.bfloat16),              # (L, R, R+S) bf16
        bcomb=jnp.stack(bcomb),                                   # (L, 1, R+S) f32
        w_dw=w_dw_t[:, 0, :].T,                                   # (T, S) f32
        b_dw=b_dw,                                                # (1, S)
        w_out=w_out_t[:, :, 0].T.astype(jnp.bfloat16),            # (S, O) bf16
        b_out=b_out,                                              # (1, O)
    )


def init_params(key, cfg, t_len):
    k_tg, k_sp, k_ext, k_arc = jax.random.split(key, 4)
    tg = init_branch(k_tg, cfg, t_len)     # branch 0: tgram (wavegram)
    sp = init_branch(k_sp, cfg, t_len)     # branch 1: spectrogram
    params = {k: jnp.stack([tg[k], sp[k]], axis=0) for k in tg}
    ke, stride = cfg["ext_kernel"], cfg["ext_stride"]
    w_ext_t = conv_w(k_ext, cfg["input_size"], 1, ke)[:, 0, :].T  # (ke, Cin)
    params["w_ext"] = jnp.stack([w_ext_t[:stride], w_ext_t[stride:]],
                                axis=0).astype(jnp.bfloat16)      # (2, stride, Cin)
    fan_in = cfg["out_size"] * 2
    nc = cfg["num_classes"]
    a = math.sqrt(6.0 / (fan_in + nc))                            # xavier_uniform
    params["arc_w"] = jax.random.uniform(k_arc, (nc, fan_in), jnp.float32, -a, a)
    return params


# ---------------------------------------------------------------------------
if __name__ == "__main__":
    key = jax.random.PRNGKey(0)
    k_param, k_x, k_wav = jax.random.split(key, 3)

    params = init_params(k_param, CFG, T_SPEC)
    x = jax.random.normal(k_x, (BATCH, CFG["input_size"], T_SPEC), jnp.float32)
    wav = jax.random.normal(k_wav, (BATCH, 1, WAV_LEN), jnp.float32)
    label = jnp.array([1, 3], dtype=jnp.int32)

    fwd = jax.jit(lambda x_, w_, l_, p_: spec_wavenet_forward(x_, w_, l_, p_, CFG))
    out, feature = fwd(x, wav, label, params)
    jax.block_until_ready((out, feature))
    assert out.shape == (BATCH, CFG["num_classes"])
    assert feature.shape == (BATCH, CFG["out_size"] * 2)
    print("KERNEL_OK")
</pallas_src>

<mosaic_0001>
module attributes {stable_mosaic.version = 11 : i64} {
  func.func @extractor_kernel(%arg0: memref<2x17x4xf32, #tpu.memory_space<vmem>>, %arg1: memref<2x4x64xbf16, #tpu.memory_space<vmem>>, %arg2: memref<2x16x64xf32, #tpu.memory_space<vmem>>) attributes {dimension_semantics = [], scalar_prefetch = 0 : i64, scratch_operands = 0 : i64, tpu.core_type = #tpu.core_type<tc>} {
    %c0 = arith.constant 0 : index
    %c0_0 = arith.constant 0 : index
    %c0_1 = arith.constant 0 : index
    %0 = vector.load %arg0[%c0, %c0_0, %c0_1] : memref<2x17x4xf32, #tpu.memory_space<vmem>>, vector<2x17x4xf32>
    %1 = arith.truncf %0 : vector<2x17x4xf32> to vector<2x17x4xbf16>
    %2 = vector.extract_strided_slice %1 {offsets = [0, 0, 0], sizes = [2, 16, 4], strides = [1, 1, 1]} : vector<2x17x4xbf16> to vector<2x16x4xbf16>
    %3 = vector.shape_cast %2 : vector<2x16x4xbf16> to vector<32x4xbf16>
    %4 = vector.extract_strided_slice %1 {offsets = [0, 1, 0], sizes = [2, 16, 4], strides = [1, 1, 1]} : vector<2x17x4xbf16> to vector<2x16x4xbf16>
    %5 = vector.shape_cast %4 : vector<2x16x4xbf16> to vector<32x4xbf16>
    %c0_2 = arith.constant 0 : index
    %c0_3 = arith.constant 0 : index
    %c0_4 = arith.constant 0 : index
    %6 = vector.load %arg1[%c0_2, %c0_3, %c0_4] : memref<2x4x64xbf16, #tpu.memory_space<vmem>>, vector<1x4x64xbf16>
    %7 = vector.shape_cast %6 : vector<1x4x64xbf16> to vector<4x64xbf16>
    %cst = arith.constant dense<0.000000e+00> : vector<32x64xf32>
    %8 = tpu.matmul %3, %7, %cst {dimension_numbers = #tpu.dot_dimension_numbers<[1], [0], [0], [1], [0, 0, 1, 1], [], []>} : vector<32x4xbf16>, vector<4x64xbf16>, vector<32x64xf32> -> vector<32x64xf32>
    %c1 = arith.constant 1 : index
    %c0_5 = arith.constant 0 : index
    %c0_6 = arith.constant 0 : index
    %9 = vector.load %arg1[%c1, %c0_5, %c0_6] : memref<2x4x64xbf16, #tpu.memory_space<vmem>>, vector<1x4x64xbf16>
    %10 = vector.shape_cast %9 : vector<1x4x64xbf16> to vector<4x64xbf16>
    %cst_7 = arith.constant dense<0.000000e+00> : vector<32x64xf32>
    %11 = tpu.matmul %5, %10, %cst_7 {dimension_numbers = #tpu.dot_dimension_numbers<[1], [0], [0], [1], [0, 0, 1, 1], [], []>} : vector<32x4xbf16>, vector<4x64xbf16>, vector<32x64xf32> -> vector<32x64xf32>
    %12 = arith.addf %8, %11 : vector<32x64xf32>
    %13 = vector.shape_cast %12 : vector<32x64xf32> to vector<2x16x64xf32>
    %c0_8 = arith.constant 0 : index
    %c0_9 = arith.constant 0 : index
    %c0_10 = arith.constant 0 : index
    %14 = vector.load %arg2[%c0_8, %c0_9, %c0_10] : memref<2x16x64xf32, #tpu.memory_space<vmem>>, vector<2x16x64xf32>
    tpu.vector_store %arg2[%c0_8, %c0_9, %c0_10], %13 {strides = array<i32>} : memref<2x16x64xf32, #tpu.memory_space<vmem>>, vector<2x16x64xf32>,
    return
  }
}

module attributes {stable_mosaic.version = 11 : i64} {
  func.func @arcface_kernel(%arg0: memref<2x128xf32, #tpu.memory_space<vmem>>, %arg1: memref<16x128xf32, #tpu.memory_space<vmem>>, %arg2: memref<2x1xi32, #tpu.memory_space<vmem>>, %arg3: memref<2x16xf32, #tpu.memory_space<vmem>>) attributes {dimension_semantics = [], scalar_prefetch = 0 : i64, scratch_operands = 0 : i64, tpu.core_type = #tpu.core_type<tc>} {
    %c0 = arith.constant 0 : index
    %c0_0 = arith.constant 0 : index
    %0 = vector.load %arg0[%c0, %c0_0] : memref<2x128xf32, #tpu.memory_space<vmem>>, vector<2x128xf32>
    %c0_1 = arith.constant 0 : index
    %c0_2 = arith.constant 0 : index
    %1 = vector.load %arg1[%c0_1, %c0_2] : memref<16x128xf32, #tpu.memory_space<vmem>>, vector<16x128xf32>
    %2 = arith.mulf %0, %0 : vector<2x128xf32>
    %cst = arith.constant dense<0.000000e+00> : vector<2xf32>
    %3 = vector.multi_reduction <add>, %2, %cst [1] : vector<2x128xf32> to vector<2xf32>
    %4 = vector.shape_cast %3 : vector<2xf32> to vector<2x1xf32>
    %5 = math.sqrt %4 : vector<2x1xf32>
    %cst_3 = arith.constant 9.99999996E-13 : f32
    %6 = vector.broadcast %cst_3 : f32 to vector<2x1xf32>
    %7 = arith.maximumf %5, %6 : vector<2x1xf32>
    %8 = vector.broadcast %7 : vector<2x1xf32> to vector<2x128xf32>
    %9 = arith.divf %0, %8 : vector<2x128xf32>
    %10 = arith.mulf %1, %1 : vector<16x128xf32>
    %cst_4 = arith.constant dense<0.000000e+00> : vector<16xf32>
    %11 = vector.multi_reduction <add>, %10, %cst_4 [1] : vector<16x128xf32> to vector<16xf32>
    %12 = vector.shape_cast %11 : vector<16xf32> to vector<16x1xf32>
    %13 = math.sqrt %12 : vector<16x1xf32>
    %cst_5 = arith.constant 9.99999996E-13 : f32
    %14 = vector.broadcast %cst_5 : f32 to vector<16x1xf32>
    %15 = arith.maximumf %13, %14 : vector<16x1xf32>
    %16 = vector.broadcast %15 : vector<16x1xf32> to vector<16x128xf32>
    %17 = arith.divf %1, %16 : vector<16x128xf32>
    %cst_6 = arith.constant dense<0.000000e+00> : vector<2x16xf32>
    %18 = tpu.matmul %9, %17, %cst_6 {dimension_numbers = #tpu.dot_dimension_numbers<[1], [1], [0], [0], [0, 0, 1, 0], [], []>} : vector<2x128xf32>, vector<16x128xf32>, vector<2x16xf32> -> vector<2x16xf32>
    %19 = arith.mulf %18, %18 : vector<2x16xf32>
    %cst_7 = arith.constant 1.000000e+00 : f32
    %20 = vector.broadcast %cst_7 : f32 to vector<2x16xf32>
    %21 = arith.subf %20, %19 : vector<2x16xf32>
    %cst_8 = arith.constant 0.000000e+00 : f32
    %cst_9 = arith.constant 1.000000e+00 : f32
    %22 = vector.broadcast %cst_8 : f32 to vector<2x16xf32>
    %23 = arith.maximumf %22, %21 : vector<2x16xf32>
    %24 = vector.broadcast %cst_9 : f32 to vector<2x16xf32>
    %25 = arith.minimumf %24, %23 : vector<2x16xf32>
    %26 = math.sqrt %25 : vector<2x16xf32>
    %cst_10 = arith.constant 0.764842212 : f32
    %27 = vector.broadcast %cst_10 : f32 to vector<2x16xf32>
    %28 = arith.mulf %18, %27 : vector<2x16xf32>
    %cst_11 = arith.constant 0.644217669 : f32
    %29 = vector.broadcast %cst_11 : f32 to vector<2x16xf32>
    %30 = arith.mulf %26, %29 : vector<2x16xf32>
    %31 = arith.subf %28, %30 : vector<2x16xf32>
    %cst_12 = arith.constant -0.764842212 : f32
    %32 = vector.broadcast %cst_12 : f32 to vector<2x16xf32>
    %33 = arith.subf %18, %32 : vector<2x16xf32>
    %cst_13 = arith.constant 0.000000e+00 : f32
    %34 = vector.broadcast %cst_13 : f32 to vector<2x16xf32>
    %35 = arith.cmpf ogt, %33, %34 : vector<2x16xf32>
    %cst_14 = arith.constant 0.450952381 : f32
    %36 = vector.broadcast %cst_14 : f32 to vector<2x16xf32>
    %37 = arith.subf %18, %36 : vector<2x16xf32>
    %38 = arith.select %35, %31, %37 : vector<2x16xi1>, vector<2x16xf32>
    %39 = tpu.iota {dimensions = array<i32: 1>} : vector<2x16xi32>
    %c0_15 = arith.constant 0 : index
    %c0_16 = arith.constant 0 : index
    %40 = vector.load %arg2[%c0_15, %c0_16] : memref<2x1xi32, #tpu.memory_space<vmem>>, vector<2x1xi32>
    %41 = vector.broadcast %40 : vector<2x1xi32> to vector<2x16xi32>
    %42 = arith.cmpi eq, %39, %41 : vector<2x16xi32>
    %43 = arith.extui %42 : vector<2x16xi1> to vector<2x16xi32>
    %44 = arith.sitofp %43 : vector<2x16xi32> to vector<2x16xf32>
    %45 = arith.mulf %44, %38 : vector<2x16xf32>
    %cst_17 = arith.constant 1.000000e+00 : f32
    %46 = vector.broadcast %cst_17 : f32 to vector<2x16xf32>
    %47 = arith.subf %46, %44 : vector<2x16xf32>
    %48 = arith.mulf %47, %18 : vector<2x16xf32>
    %49 = arith.addf %45, %48 : vector<2x16xf32>
    %cst_18 = arith.constant 3.000000e+01 : f32
    %50 = vector.broadcast %cst_18 : f32 to vector<2x16xf32>
    %51 = arith.mulf %49, %50 : vector<2x16xf32>
    %c0_19 = arith.constant 0 : index
    %c0_20 = arith.constant 0 : index
    %52 = vector.load %arg3[%c0_19, %c0_20] : memref<2x16xf32, #tpu.memory_space<vmem>>, vector<2x16xf32>
    tpu.vector_store %arg3[%c0_19, %c0_20], %51 {strides = array<i32>} : memref<2x16xf32, #tpu.memory_space<vmem>>, vector<2x16xf32>,
    return
  }
}

module attributes {stable_mosaic.version = 11 : i64} {
  func.func @trunk_kernel(%arg0: i32, %arg1: memref<1x2x17x64xf32, #tpu.memory_space<vmem>>, %arg2: memref<1x2x64x128xbf16, #tpu.memory_space<vmem>>, %arg3: memref<1x6x384x256xbf16, #tpu.memory_space<vmem>>, %arg4: memref<1x6x128x256xbf16, #tpu.memory_space<vmem>>, %arg5: memref<1x6x1x256xf32, #tpu.memory_space<vmem>>, %arg6: memref<1x16x128xf32, #tpu.memory_space<vmem>>, %arg7: memref<1x1x128xf32, #tpu.memory_space<vmem>>, %arg8: memref<1x128x64xbf16, #tpu.memory_space<vmem>>, %arg9: memref<1x1x64xf32, #tpu.memory_space<vmem>>, %arg10: memref<1x2x64xf32, #tpu.memory_space<vmem>>, %arg11: memref<2x24x128xf32, #tpu.memory_space<vmem>>) attributes {dimension_semantics = [#tpu.dimension_semantics<parallel>], iteration_bounds = array<i64: 2>, scalar_prefetch = 0 : i64, scratch_operands = 1 : i64, tpu.core_type = #tpu.core_type<tc>, window_params = [{transform_indices = @transform_0, window_bounds = array<i64: 1, 2, 17, 64>}, {transform_indices = @transform_1, window_bounds = array<i64: 1, 2, 64, 128>}, {transform_indices = @transform_2, window_bounds = array<i64: 1, 6, 384, 256>}, {transform_indices = @transform_3, window_bounds = array<i64: 1, 6, 128, 256>}, {transform_indices = @transform_4, window_bounds = array<i64: 1, 6, 1, 256>}, {transform_indices = @transform_5, window_bounds = array<i64: 1, 16, 128>}, {transform_indices = @transform_6, window_bounds = array<i64: 1, 1, 128>}, {transform_indices = @transform_7, window_bounds = array<i64: 1, 128, 64>}, {transform_indices = @transform_8, window_bounds = array<i64: 1, 1, 64>}, {transform_indices = @transform_9, window_bounds = array<i64: 1, 2, 64>}]} {
    %c0 = arith.constant 0 : index
    %c0_0 = arith.constant 0 : index
    %c0_1 = arith.constant 0 : index
    %c0_2 = arith.constant 0 : index
    %0 = vector.load %arg1[%c0, %c0_0, %c0_1, %c0_2] : memref<1x2x17x64xf32, #tpu.memory_space<vmem>>, vector<1x2x17x64xf32>
    %1 = vector.shape_cast %0 : vector<1x2x17x64xf32> to vector<2x17x64xf32>
    %2 = arith.truncf %1 : vector<2x17x64xf32> to vector<2x17x64xbf16>
    %3 = vector.extract_strided_slice %2 {offsets = [0, 0, 0], sizes = [2, 16, 64], strides = [1, 1, 1]} : vector<2x17x64xbf16> to vector<2x16x64xbf16>
    %4 = vector.shape_cast %3 : vector<2x16x64xbf16> to vector<32x64xbf16>
    %5 = vector.extract_strided_slice %2 {offsets = [0, 1, 0], sizes = [2, 16, 64], strides = [1, 1, 1]} : vector<2x17x64xbf16> to vector<2x16x64xbf16>
    %6 = vector.shape_cast %5 : vector<2x16x64xbf16> to vector<32x64xbf16>
    %c0_3 = arith.constant 0 : index
    %c0_4 = arith.constant 0 : index
    %c0_5 = arith.constant 0 : index
    %c0_6 = arith.constant 0 : index
    %7 = vector.load %arg2[%c0_3, %c0_4, %c0_5, %c0_6] : memref<1x2x64x128xbf16, #tpu.memory_space<vmem>>, vector<1x1x64x128xbf16>
    %8 = vector.shape_cast %7 : vector<1x1x64x128xbf16> to vector<64x128xbf16>
    %cst = arith.constant dense<0.000000e+00> : vector<32x128xf32>
    %9 = tpu.matmul %4, %8, %cst {dimension_numbers = #tpu.dot_dimension_numbers<[1], [0], [0], [1], [0, 0, 1, 1], [], []>} : vector<32x64xbf16>, vector<64x128xbf16>, vector<32x128xf32> -> vector<32x128xf32>
    %c0_7 = arith.constant 0 : index
    %c1 = arith.constant 1 : index
    %c0_8 = arith.constant 0 : index
    %c0_9 = arith.constant 0 : index
    %10 = vector.load %arg2[%c0_7, %c1, %c0_8, %c0_9] : memref<1x2x64x128xbf16, #tpu.memory_space<vmem>>, vector<1x1x64x128xbf16>
    %11 = vector.shape_cast %10 : vector<1x1x64x128xbf16> to vector<64x128xbf16>
    %cst_10 = arith.constant dense<0.000000e+00> : vector<32x128xf32>
    %12 = tpu.matmul %6, %11, %cst_10 {dimension_numbers = #tpu.dot_dimension_numbers<[1], [0], [0], [1], [0, 0, 1, 1], [], []>} : vector<32x64xbf16>, vector<64x128xbf16>, vector<32x128xf32> -> vector<32x128xf32>
    %13 = arith.addf %9, %12 : vector<32x128xf32>
    %cst_11 = arith.constant 0.000000e+00 : f32
    %14 = vector.broadcast %cst_11 : f32 to vector<2x8x128xf32>
    %c0_12 = arith.constant 0 : index
    %c0_13 = arith.constant 0 : index
    %c0_14 = arith.constant 0 : index
    %15 = vector.load %arg11[%c0_12, %c0_13, %c0_14] : memref<2x24x128xf32, #tpu.memory_space<vmem>>, vector<2x8x128xf32>
    tpu.vector_store %arg11[%c0_12, %c0_13, %c0_14], %14 {strides = array<i32>} : memref<2x24x128xf32, #tpu.memory_space<vmem>>, vector<2x8x128xf32>,
    %16 = vector.shape_cast %13 : vector<32x128xf32> to vector<2x16x128xf32>
    %c0_15 = arith.constant 0 : index
    %c8 = arith.constant 8 : index
    %c0_16 = arith.constant 0 : index
    %17 = vector.load %arg11[%c0_15, %c8, %c0_16] : memref<2x24x128xf32, #tpu.memory_space<vmem>>, vector<2x16x128xf32>
    tpu.vector_store %arg11[%c0_15, %c8, %c0_16], %16 {strides = array<i32>} : memref<2x24x128xf32, #tpu.memory_space<vmem>>, vector<2x16x128xf32>,
    %cst_17 = arith.constant 0.000000e+00 : f32
    %18 = vector.broadcast %cst_17 : f32 to vector<32x128xf32>
    %c0_18 = arith.constant 0 : index
    %c0_19 = arith.constant 0 : index
    %c0_20 = arith.constant 0 : index
    %19 = vector.load %arg11[%c0_18, %c0_19, %c0_20] : memref<2x24x128xf32, #tpu.memory_space<vmem>>, vector<2x24x128xf32>
    %20 = arith.truncf %19 : vector<2x24x128xf32> to vector<2x24x128xbf16>
    %c0_21 = arith.constant 0 : index
    %c0_22 = arith.constant 0 : index
    %c0_23 = arith.constant 0 : index
    %c0_24 = arith.constant 0 : index
    %21 = vector.load %arg3[%c0_21, %c0_22, %c0_23, %c0_24] : memref<1x6x384x256xbf16, #tpu.memory_space<vmem>>, vector<1x1x384x256xbf16>
    %22 = vector.shape_cast %21 : vector<1x1x384x256xbf16> to vector<384x256xbf16>
    %23 = vector.extract_strided_slice %20 {offsets = [0, 6, 0], sizes = [2, 16, 128], strides = [1, 1, 1]} : vector<2x24x128xbf16> to vector<2x16x128xbf16>
    %24 = vector.shape_cast %23 : vector<2x16x128xbf16> to vector<32x128xbf16>
    %25 = vector.extract_strided_slice %22 {offsets = [0, 0], sizes = [128, 256], strides = [1, 1]} : vector<384x256xbf16> to vector<128x256xbf16>
    %cst_25 = arith.constant dense<0.000000e+00> : vector<32x256xf32>
    %26 = tpu.matmul %24, %25, %cst_25 {dimension_numbers = #tpu.dot_dimension_numbers<[1], [0], [0], [1], [0, 0, 1, 1], [], []>} : vector<32x128xbf16>, vector<128x256xbf16>, vector<32x256xf32> -> vector<32x256xf32>
    %27 = vector.extract_strided_slice %20 {offsets = [0, 7, 0], sizes = [2, 16, 128], strides = [1, 1, 1]} : vector<2x24x128xbf16> to vector<2x16x128xbf16>
    %28 = vector.shape_cast %27 : vector<2x16x128xbf16> to vector<32x128xbf16>
    %29 = vector.extract_strided_slice %22 {offsets = [128, 0], sizes = [128, 256], strides = [1, 1]} : vector<384x256xbf16> to vector<128x256xbf16>
    %cst_26 = arith.constant dense<0.000000e+00> : vector<32x256xf32>
    %30 = tpu.matmul %28, %29, %cst_26 {dimension_numbers = #tpu.dot_dimension_numbers<[1], [0], [0], [1], [0, 0, 1, 1], [], []>} : vector<32x128xbf16>, vector<128x256xbf16>, vector<32x256xf32> -> vector<32x256xf32>
    %31 = arith.addf %26, %30 : vector<32x256xf32>
    %32 = vector.extract_strided_slice %20 {offsets = [0, 8, 0], sizes = [2, 16, 128], strides = [1, 1, 1]} : vector<2x24x128xbf16> to vector<2x16x128xbf16>
    %33 = vector.shape_cast %32 : vector<2x16x128xbf16> to vector<32x128xbf16>
    %34 = vector.extract_strided_slice %22 {offsets = [256, 0], sizes = [128, 256], strides = [1, 1]} : vector<384x256xbf16> to vector<128x256xbf16>
    %cst_27 = arith.constant dense<0.000000e+00> : vector<32x256xf32>
    %35 = tpu.matmul %33, %34, %cst_27 {dimension_numbers = #tpu.dot_dimension_numbers<[1], [0], [0], [1], [0, 0, 1, 1], [], []>} : vector<32x128xbf16>, vector<128x256xbf16>, vector<32x256xf32> -> vector<32x256xf32>
    %36 = arith.addf %31, %35 : vector<32x256xf32>
    %cst_28 = arith.constant dense<0.000000e+00> : vector<256xf32>
    %37 = vector.multi_reduction <add>, %36, %cst_28 [0] : vector<32x256xf32> to vector<256xf32>
    %38 = vector.shape_cast %37 : vector<256xf32> to vector<1x256xf32>
    %cst_29 = arith.constant 3.125000e-02 : f32
    %39 = vector.broadcast %cst_29 : f32 to vector<1x256xf32>
    %40 = arith.mulf %38, %39 : vector<1x256xf32>
    %41 = arith.mulf %36, %36 : vector<32x256xf32>
    %cst_30 = arith.constant dense<0.000000e+00> : vector<256xf32>
    %42 = vector.multi_reduction <add>, %41, %cst_30 [0] : vector<32x256xf32> to vector<256xf32>
    %43 = vector.shape_cast %42 : vector<256xf32> to vector<1x256xf32>
    %cst_31 = arith.constant 3.125000e-02 : f32
    %44 = vector.broadcast %cst_31 : f32 to vector<1x256xf32>
    %45 = arith.mulf %43, %44 : vector<1x256xf32>
    %46 = arith.mulf %40, %40 : vector<1x256xf32>
    %47 = arith.subf %45, %46 : vector<1x256xf32>
    %cst_32 = arith.constant 0.000000e+00 : f32
    %48 = vector.broadcast %cst_32 : f32 to vector<1x256xf32>
    %49 = arith.maximumf %47, %48 : vector<1x256xf32>
    %50 = vector.broadcast %40 : vector<1x256xf32> to vector<32x256xf32>
    %51 = arith.subf %36, %50 : vector<32x256xf32>
    %cst_33 = arith.constant 9.99999974E-6 : f32
    %52 = vector.broadcast %cst_33 : f32 to vector<1x256xf32>
    %53 = arith.addf %49, %52 : vector<1x256xf32>
    %54 = math.rsqrt %53 : vector<1x256xf32>
    %55 = vector.broadcast %54 : vector<1x256xf32> to vector<32x256xf32>
    %56 = arith.mulf %51, %55 : vector<32x256xf32>
    %57 = vector.extract_strided_slice %56 {offsets = [0, 0], sizes = [32, 128], strides = [1, 1]} : vector<32x256xf32> to vector<32x128xf32>
    %58 = math.tanh %57 : vector<32x128xf32>
    %59 = vector.extract_strided_slice %56 {offsets = [0, 128], sizes = [32, 128], strides = [1, 1]} : vector<32x256xf32> to vector<32x128xf32>
    %60 = arith.negf %59 : vector<32x128xf32>
    %61 = math.exp %60 : vector<32x128xf32>
    %cst_34 = arith.constant 1.000000e+00 : f32
    %62 = vector.broadcast %cst_34 : f32 to vector<32x128xf32>
    %63 = arith.addf %62, %61 : vector<32x128xf32>
    %64 = arith.divf %62, %63 : vector<32x128xf32>
    %65 = arith.mulf %58, %64 : vector<32x128xf32>
    %66 = arith.truncf %65 : vector<32x128xf32> to vector<32x128xbf16>
    %c0_35 = arith.constant 0 : index
    %c0_36 = arith.constant 0 : index
    %c0_37 = arith.constant 0 : index
    %c0_38 = arith.constant 0 : index
    %67 = vector.load %arg4[%c0_35, %c0_36, %c0_37, %c0_38] : memref<1x6x128x256xbf16, #tpu.memory_space<vmem>>, vector<1x1x128x256xbf16>
    %68 = vector.shape_cast %67 : vector<1x1x128x256xbf16> to vector<128x256xbf16>
    %cst_39 = arith.constant dense<0.000000e+00> : vector<32x256xf32>
    %69 = tpu.matmul %66, %68, %cst_39 {dimension_numbers = #tpu.dot_dimension_numbers<[1], [0], [0], [1], [0, 0, 1, 1], [], []>} : vector<32x128xbf16>, vector<128x256xbf16>, vector<32x256xf32> -> vector<32x256xf32>
    %c0_40 = arith.constant 0 : index
    %c0_41 = arith.constant 0 : index
    %c0_42 = arith.constant 0 : index
    %c0_43 = arith.constant 0 : index
    %70 = vector.load %arg5[%c0_40, %c0_41, %c0_42, %c0_43] : memref<1x6x1x256xf32, #tpu.memory_space<vmem>>, vector<1x1x1x256xf32>
    %71 = vector.shape_cast %70 : vector<1x1x1x256xf32> to vector<1x256xf32>
    %72 = vector.broadcast %71 : vector<1x256xf32> to vector<32x256xf32>
    %73 = arith.addf %69, %72 : vector<32x256xf32>
    %74 = vector.extract_strided_slice %73 {offsets = [0, 128], sizes = [32, 128], strides = [1, 1]} : vector<32x256xf32> to vector<32x128xf32>
    %75 = arith.addf %18, %74 : vector<32x128xf32>
    %76 = vector.extract_strided_slice %19 {offsets = [0, 8, 0], sizes = [2, 16, 128], strides = [1, 1, 1]} : vector<2x24x128xf32> to vector<2x16x128xf32>
    %77 = vector.shape_cast %76 : vector<2x16x128xf32> to vector<32x128xf32>
    %78 = vector.extract_strided_slice %73 {offsets = [0, 0], sizes = [32, 128], strides = [1, 1]} : vector<32x256xf32> to vector<32x128xf32>
    %79 = arith.addf %78, %77 : vector<32x128xf32>
    %80 = vector.shape_cast %79 : vector<32x128xf32> to vector<2x16x128xf32>
    %c0_44 = arith.constant 0 : index
    %c8_45 = arith.constant 8 : index
    %c0_46 = arith.constant 0 : index
    %81 = vector.load %arg11[%c0_44, %c8_45, %c0_46] : memref<2x24x128xf32, #tpu.memory_space<vmem>>, vector<2x16x128xf32>
    tpu.vector_store %arg11[%c0_44, %c8_45, %c0_46], %80 {strides = array<i32>} : memref<2x24x128xf32, #tpu.memory_space<vmem>>, vector<2x16x128xf32>,
    %c0_47 = arith.constant 0 : index
    %c0_48 = arith.constant 0 : index
    %c0_49 = arith.constant 0 : index
    %82 = vector.load %arg11[%c0_47, %c0_48, %c0_49] : memref<2x24x128xf32, #tpu.memory_space<vmem>>, vector<2x24x128xf32>
    %83 = arith.truncf %82 : vector<2x24x128xf32> to vector<2x24x128xbf16>
    %c0_50 = arith.constant 0 : index
    %c1_51 = arith.constant 1 : index
    %c0_52 = arith.constant 0 : index
    %c0_53 = arith.constant 0 : index
    %84 = vector.load %arg3[%c0_50, %c1_51, %c0_52, %c0_53] : memref<1x6x384x256xbf16, #tpu.memory_space<vmem>>, vector<1x1x384x256xbf16>
    %85 = vector.shape_cast %84 : vector<1x1x384x256xbf16> to vector<384x256xbf16>
    %86 = vector.extract_strided_slice %83 {offsets = [0, 4, 0], sizes = [2, 16, 128], strides = [1, 1, 1]} : vector<2x24x128xbf16> to vector<2x16x128xbf16>
    %87 = vector.shape_cast %86 : vector<2x16x128xbf16> to vector<32x128xbf16>
    %88 = vector.extract_strided_slice %85 {offsets = [0, 0], sizes = [128, 256], strides = [1, 1]} : vector<384x256xbf16> to vector<128x256xbf16>
    %cst_54 = arith.constant dense<0.000000e+00> : vector<32x256xf32>
    %89 = tpu.matmul %87, %88, %cst_54 {dimension_numbers = #tpu.dot_dimension_numbers<[1], [0], [0], [1], [0, 0, 1, 1], [], []>} : vector<32x128xbf16>, vector<128x256xbf16>, vector<32x256xf32> -> vector<32x256xf32>
    %90 = vector.extract_strided_slice %83 {offsets = [0, 6, 0], sizes = [2, 16, 128], strides = [1, 1, 1]} : vector<2x24x128xbf16> to vector<2x16x128xbf16>
    %91 = vector.shape_cast %90 : vector<2x16x128xbf16> to vector<32x128xbf16>
    %92 = vector.extract_strided_slice %85 {offsets = [128, 0], sizes = [128, 256], strides = [1, 1]} : vector<384x256xbf16> to vector<128x256xbf16>
    %cst_55 = arith.constant dense<0.000000e+00> : vector<32x256xf32>
    %93 = tpu.matmul %91, %92, %cst_55 {dimension_numbers = #tpu.dot_dimension_numbers<[1], [0], [0], [1], [0, 0, 1, 1], [], []>} : vector<32x128xbf16>, vector<128x256xbf16>, vector<32x256xf32> -> vector<32x256xf32>
    %94 = arith.addf %89, %93 : vector<32x256xf32>
    %95 = vector.extract_strided_slice %83 {offsets = [0, 8, 0], sizes = [2, 16, 128], strides = [1, 1, 1]} : vector<2x24x128xbf16> to vector<2x16x128xbf16>
    %96 = vector.shape_cast %95 : vector<2x16x128xbf16> to vector<32x128xbf16>
    %97 = vector.extract_strided_slice %85 {offsets = [256, 0], sizes = [128, 256], strides = [1, 1]} : vector<384x256xbf16> to vector<128x256xbf16>
    %cst_56 = arith.constant dense<0.000000e+00> : vector<32x256xf32>
    %98 = tpu.matmul %96, %97, %cst_56 {dimension_numbers = #tpu.dot_dimension_numbers<[1], [0], [0], [1], [0, 0, 1, 1], [], []>} : vector<32x128xbf16>, vector<128x256xbf16>, vector<32x256xf32> -> vector<32x256xf32>
    %99 = arith.addf %94, %98 : vector<32x256xf32>
    %cst_57 = arith.constant dense<0.000000e+00> : vector<256xf32>
    %100 = vector.multi_reduction <add>, %99, %cst_57 [0] : vector<32x256xf32> to vector<256xf32>
    %101 = vector.shape_cast %100 : vector<256xf32> to vector<1x256xf32>
    %cst_58 = arith.constant 3.125000e-02 : f32
    %102 = vector.broadcast %cst_58 : f32 to vector<1x256xf32>
    %103 = arith.mulf %101, %102 : vector<1x256xf32>
    %104 = arith.mulf %99, %99 : vector<32x256xf32>
    %cst_59 = arith.constant dense<0.000000e+00> : vector<256xf32>
    %105 = vector.multi_reduction <add>, %104, %cst_59 [0] : vector<32x256xf32> to vector<256xf32>
    %106 = vector.shape_cast %105 : vector<256xf32> to vector<1x256xf32>
    %cst_60 = arith.constant 3.125000e-02 : f32
    %107 = vector.broadcast %cst_60 : f32 to vector<1x256xf32>
    %108 = arith.mulf %106, %107 : vector<1x256xf32>
    %109 = arith.mulf %103, %103 : vector<1x256xf32>
    %110 = arith.subf %108, %109 : vector<1x256xf32>
    %cst_61 = arith.constant 0.000000e+00 : f32
    %111 = vector.broadcast %cst_61 : f32 to vector<1x256xf32>
    %112 = arith.maximumf %110, %111 : vector<1x256xf32>
    %113 = vector.broadcast %103 : vector<1x256xf32> to vector<32x256xf32>
    %114 = arith.subf %99, %113 : vector<32x256xf32>
    %cst_62 = arith.constant 9.99999974E-6 : f32
    %115 = vector.broadcast %cst_62 : f32 to vector<1x256xf32>
    %116 = arith.addf %112, %115 : vector<1x256xf32>
    %117 = math.rsqrt %116 : vector<1x256xf32>
    %118 = vector.broadcast %117 : vector<1x256xf32> to vector<32x256xf32>
    %119 = arith.mulf %114, %118 : vector<32x256xf32>
    %120 = vector.extract_strided_slice %119 {offsets = [0, 0], sizes = [32, 128], strides = [1, 1]} : vector<32x256xf32> to vector<32x128xf32>
    %121 = math.tanh %120 : vector<32x128xf32>
    %122 = vector.extract_strided_slice %119 {offsets = [0, 128], sizes = [32, 128], strides = [1, 1]} : vector<32x256xf32> to vector<32x128xf32>
    %123 = arith.negf %122 : vector<32x128xf32>
    %124 = math.exp %123 : vector<32x128xf32>
    %cst_63 = arith.constant 1.000000e+00 : f32
    %125 = vector.broadcast %cst_63 : f32 to vector<32x128xf32>
    %126 = arith.addf %125, %124 : vector<32x128xf32>
    %127 = arith.divf %125, %126 : vector<32x128xf32>
    %128 = arith.mulf %121, %127 : vector<32x128xf32>
    %129 = arith.truncf %128 : vector<32x128xf32> to vector<32x128xbf16>
    %c0_64 = arith.constant 0 : index
    %c1_65 = arith.constant 1 : index
    %c0_66 = arith.constant 0 : index
    %c0_67 = arith.constant 0 : index
    %130 = vector.load %arg4[%c0_64, %c1_65, %c0_66, %c0_67] : memref<1x6x128x256xbf16, #tpu.memory_space<vmem>>, vector<1x1x128x256xbf16>
    %131 = vector.shape_cast %130 : vector<1x1x128x256xbf16> to vector<128x256xbf16>
    %cst_68 = arith.constant dense<0.000000e+00> : vector<32x256xf32>
    %132 = tpu.matmul %129, %131, %cst_68 {dimension_numbers = #tpu.dot_dimension_numbers<[1], [0], [0], [1], [0, 0, 1, 1], [], []>} : vector<32x128xbf16>, vector<128x256xbf16>, vector<32x256xf32> -> vector<32x256xf32>
    %c0_69 = arith.constant 0 : index
    %c1_70 = arith.constant 1 : index
    %c0_71 = arith.constant 0 : index
    %c0_72 = arith.constant 0 : index
    %133 = vector.load %arg5[%c0_69, %c1_70, %c0_71, %c0_72] : memref<1x6x1x256xf32, #tpu.memory_space<vmem>>, vector<1x1x1x256xf32>
    %134 = vector.shape_cast %133 : vector<1x1x1x256xf32> to vector<1x256xf32>
    %135 = vector.broadcast %134 : vector<1x256xf32> to vector<32x256xf32>
    %136 = arith.addf %132, %135 : vector<32x256xf32>
    %137 = vector.extract_strided_slice %136 {offsets = [0, 128], sizes = [32, 128], strides = [1, 1]} : vector<32x256xf32> to vector<32x128xf32>
    %138 = arith.addf %75, %137 : vector<32x128xf32>
    %139 = vector.extract_strided_slice %82 {offsets = [0, 8, 0], sizes = [2, 16, 128], strides = [1, 1, 1]} : vector<2x24x128xf32> to vector<2x16x128xf32>
    %140 = vector.shape_cast %139 : vector<2x16x128xf32> to vector<32x128xf32>
    %141 = vector.extract_strided_slice %136 {offsets = [0, 0], sizes = [32, 128], strides = [1, 1]} : vector<32x256xf32> to vector<32x128xf32>
    %142 = arith.addf %141, %140 : vector<32x128xf32>
    %143 = vector.shape_cast %142 : vector<32x128xf32> to vector<2x16x128xf32>
    %c0_73 = arith.constant 0 : index
    %c8_74 = arith.constant 8 : index
    %c0_75 = arith.constant 0 : index
    %144 = vector.load %arg11[%c0_73, %c8_74, %c0_75] : memref<2x24x128xf32, #tpu.memory_space<vmem>>, vector<2x16x128xf32>
    tpu.vector_store %arg11[%c0_73, %c8_74, %c0_75], %143 {strides = array<i32>} : memref<2x24x128xf32, #tpu.memory_space<vmem>>, vector<2x16x128xf32>,
    %c0_76 = arith.constant 0 : index
    %c0_77 = arith.constant 0 : index
    %c0_78 = arith.constant 0 : index
    %145 = vector.load %arg11[%c0_76, %c0_77, %c0_78] : memref<2x24x128xf32, #tpu.memory_space<vmem>>, vector<2x24x128xf32>
    %146 = arith.truncf %145 : vector<2x24x128xf32> to vector<2x24x128xbf16>
    %c0_79 = arith.constant 0 : index
    %c2 = arith.constant 2 : index
    %c0_80 = arith.constant 0 : index
    %c0_81 = arith.constant 0 : index
    %147 = vector.load %arg3[%c0_79, %c2, %c0_80, %c0_81] : memref<1x6x384x256xbf16, #tpu.memory_space<vmem>>, vector<1x1x384x256xbf16>
    %148 = vector.shape_cast %147 : vector<1x1x384x256xbf16> to vector<384x256xbf16>
    %149 = vector.extract_strided_slice %146 {offsets = [0, 0, 0], sizes = [2, 16, 128], strides = [1, 1, 1]} : vector<2x24x128xbf16> to vector<2x16x128xbf16>
    %150 = vector.shape_cast %149 : vector<2x16x128xbf16> to vector<32x128xbf16>
    %151 = vector.extract_strided_slice %148 {offsets = [0, 0], sizes = [128, 256], strides = [1, 1]} : vector<384x256xbf16> to vector<128x256xbf16>
    %cst_82 = arith.constant dense<0.000000e+00> : vector<32x256xf32>
    %152 = tpu.matmul %150, %151, %cst_82 {dimension_numbers = #tpu.dot_dimension_numbers<[1], [0], [0], [1], [0, 0, 1, 1], [], []>} : vector<32x128xbf16>, vector<128x256xbf16>, vector<32x256xf32> -> vector<32x256xf32>
    %153 = vector.extract_strided_slice %146 {offsets = [0, 4, 0], sizes = [2, 16, 128], strides = [1, 1, 1]} : vector<2x24x128xbf16> to vector<2x16x128xbf16>
    %154 = vector.shape_cast %153 : vector<2x16x128xbf16> to vector<32x128xbf16>
    %155 = vector.extract_strided_slice %148 {offsets = [128, 0], sizes = [128, 256], strides = [1, 1]} : vector<384x256xbf16> to vector<128x256xbf16>
    %cst_83 = arith.constant dense<0.000000e+00> : vector<32x256xf32>
    %156 = tpu.matmul %154, %155, %cst_83 {dimension_numbers = #tpu.dot_dimension_numbers<[1], [0], [0], [1], [0, 0, 1, 1], [], []>} : vector<32x128xbf16>, vector<128x256xbf16>, vector<32x256xf32> -> vector<32x256xf32>
    %157 = arith.addf %152, %156 : vector<32x256xf32>
    %158 = vector.extract_strided_slice %146 {offsets = [0, 8, 0], sizes = [2, 16, 128], strides = [1, 1, 1]} : vector<2x24x128xbf16> to vector<2x16x128xbf16>
    %159 = vector.shape_cast %158 : vector<2x16x128xbf16> to vector<32x128xbf16>
    %160 = vector.extract_strided_slice %148 {offsets = [256, 0], sizes = [128, 256], strides = [1, 1]} : vector<384x256xbf16> to vector<128x256xbf16>
    %cst_84 = arith.constant dense<0.000000e+00> : vector<32x256xf32>
    %161 = tpu.matmul %159, %160, %cst_84 {dimension_numbers = #tpu.dot_dimension_numbers<[1], [0], [0], [1], [0, 0, 1, 1], [], []>} : vector<32x128xbf16>, vector<128x256xbf16>, vector<32x256xf32> -> vector<32x256xf32>
    %162 = arith.addf %157, %161 : vector<32x256xf32>
    %cst_85 = arith.constant dense<0.000000e+00> : vector<256xf32>
    %163 = vector.multi_reduction <add>, %162, %cst_85 [0] : vector<32x256xf32> to vector<256xf32>
    %164 = vector.shape_cast %163 : vector<256xf32> to vector<1x256xf32>
    %cst_86 = arith.constant 3.125000e-02 : f32
    %165 = vector.broadcast %cst_86 : f32 to vector<1x256xf32>
    %166 = arith.mulf %164, %165 : vector<1x256xf32>
    %167 = arith.mulf %162, %162 : vector<32x256xf32>
    %cst_87 = arith.constant dense<0.000000e+00> : vector<256xf32>
    %168 = vector.multi_reduction <add>, %167, %cst_87 [0] : vector<32x256xf32> to vector<256xf32>
    %169 = vector.shape_cast %168 : vector<256xf32> to vector<1x256xf32>
    %cst_88 = arith.constant 3.125000e-02 : f32
    %170 = vector.broadcast %cst_88 : f32 to vector<1x256xf32>
    %171 = arith.mulf %169, %170 : vector<1x256xf32>
    %172 = arith.mulf %166, %166 : vector<1x256xf32>
    %173 = arith.subf %171, %172 : vector<1x256xf32>
    %cst_89 = arith.constant 0.000000e+00 : f32
    %174 = vector.broadcast %cst_89 : f32 to vector<1x256xf32>
    %175 = arith.maximumf %173, %174 : vector<1x256xf32>
    %176 = vector.broadcast %166 : vector<1x256xf32> to vector<32x256xf32>
    %177 = arith.subf %162, %176 : vector<32x256xf32>
    %cst_90 = arith.constant 9.99999974E-6 : f32
    %178 = vector.broadcast %cst_90 : f32 to vector<1x256xf32>
    %179 = arith.addf %175, %178 : vector<1x256xf32>
    %180 = math.rsqrt %179 : vector<1x256xf32>
    %181 = vector.broadcast %180 : vector<1x256xf32> to vector<32x256xf32>
    %182 = arith.mulf %177, %181 : vector<32x256xf32>
    %183 = vector.extract_strided_slice %182 {offsets = [0, 0], sizes = [32, 128], strides = [1, 1]} : vector<32x256xf32> to vector<32x128xf32>
    %184 = math.tanh %183 : vector<32x128xf32>
    %185 = vector.extract_strided_slice %182 {offsets = [0, 128], sizes = [32, 128], strides = [1, 1]} : vector<32x256xf32> to vector<32x128xf32>
    %186 = arith.negf %185 : vector<32x128xf32>
    %187 = math.exp %186 : vector<32x128xf32>
    %cst_91 = arith.constant 1.000000e+00 : f32
    %188 = vector.broadcast %cst_91 : f32 to vector<32x128xf32>
    %189 = arith.addf %188, %187 : vector<32x128xf32>
    %190 = arith.divf %188, %189 : vector<32x128xf32>
    %191 = arith.mulf %184, %190 : vector<32x128xf32>
    %192 = arith.truncf %191 : vector<32x128xf32> to vector<32x128xbf16>
    %c0_92 = arith.constant 0 : index
    %c2_93 = arith.constant 2 : index
    %c0_94 = arith.constant 0 : index
    %c0_95 = arith.constant 0 : index
    %193 = vector.load %arg4[%c0_92, %c2_93, %c0_94, %c0_95] : memref<1x6x128x256xbf16, #tpu.memory_space<vmem>>, vector<1x1x128x256xbf16>
    %194 = vector.shape_cast %193 : vector<1x1x128x256xbf16> to vector<128x256xbf16>
    %cst_96 = arith.constant dense<0.000000e+00> : vector<32x256xf32>
    %195 = tpu.matmul %192, %194, %cst_96 {dimension_numbers = #tpu.dot_dimension_numbers<[1], [0], [0], [1], [0, 0, 1, 1], [], []>} : vector<32x128xbf16>, vector<128x256xbf16>, vector<32x256xf32> -> vector<32x256xf32>
    %c0_97 = arith.constant 0 : index
    %c2_98 = arith.constant 2 : index
    %c0_99 = arith.constant 0 : index
    %c0_100 = arith.constant 0 : index
    %196 = vector.load %arg5[%c0_97, %c2_98, %c0_99, %c0_100] : memref<1x6x1x256xf32, #tpu.memory_space<vmem>>, vector<1x1x1x256xf32>
    %197 = vector.shape_cast %196 : vector<1x1x1x256xf32> to vector<1x256xf32>
    %198 = vector.broadcast %197 : vector<1x256xf32> to vector<32x256xf32>
    %199 = arith.addf %195, %198 : vector<32x256xf32>
    %200 = vector.extract_strided_slice %199 {offsets = [0, 128], sizes = [32, 128], strides = [1, 1]} : vector<32x256xf32> to vector<32x128xf32>
    %201 = arith.addf %138, %200 : vector<32x128xf32>
    %202 = vector.extract_strided_slice %145 {offsets = [0, 8, 0], sizes = [2, 16, 128], strides = [1, 1, 1]} : vector<2x24x128xf32> to vector<2x16x128xf32>
    %203 = vector.shape_cast %202 : vector<2x16x128xf32> to vector<32x128xf32>
    %204 = vector.extract_strided_slice %199 {offsets = [0, 0], sizes = [32, 128], strides = [1, 1]} : vector<32x256xf32> to vector<32x128xf32>
    %205 = arith.addf %204, %203 : vector<32x128xf32>
    %206 = vector.shape_cast %205 : vector<32x128xf32> to vector<2x16x128xf32>
    %c0_101 = arith.constant 0 : index
    %c8_102 = arith.constant 8 : index
    %c0_103 = arith.constant 0 : index
    %207 = vector.load %arg11[%c0_101, %c8_102, %c0_103] : memref<2x24x128xf32, #tpu.memory_space<vmem>>, vector<2x16x128xf32>
    tpu.vector_store %arg11[%c0_101, %c8_102, %c0_103], %206 {strides = array<i32>} : memref<2x24x128xf32, #tpu.memory_space<vmem>>, vector<2x16x128xf32>,
    %c0_104 = arith.constant 0 : index
    %c0_105 = arith.constant 0 : index
    %c0_106 = arith.constant 0 : index
    %208 = vector.load %arg11[%c0_104, %c0_105, %c0_106] : memref<2x24x128xf32, #tpu.memory_space<vmem>>, vector<2x24x128xf32>
    %209 = arith.truncf %208 : vector<2x24x128xf32> to vector<2x24x128xbf16>
    %c0_107 = arith.constant 0 : index
    %c3 = arith.constant 3 : index
    %c0_108 = arith.constant 0 : index
    %c0_109 = arith.constant 0 : index
    %210 = vector.load %arg3[%c0_107, %c3, %c0_108, %c0_109] : memref<1x6x384x256xbf16, #tpu.memory_space<vmem>>, vector<1x1x384x256xbf16>
    %211 = vector.shape_cast %210 : vector<1x1x384x256xbf16> to vector<384x256xbf16>
    %212 = vector.extract_strided_slice %209 {offsets = [0, 6, 0], sizes = [2, 16, 128], strides = [1, 1, 1]} : vector<2x24x128xbf16> to vector<2x16x128xbf16>
    %213 = vector.shape_cast %212 : vector<2x16x128xbf16> to vector<32x128xbf16>
    %214 = vector.extract_strided_slice %211 {offsets = [0, 0], sizes = [128, 256], strides = [1, 1]} : vector<384x256xbf16> to vector<128x256xbf16>
    %cst_110 = arith.constant dense<0.000000e+00> : vector<32x256xf32>
    %215 = tpu.matmul %213, %214, %cst_110 {dimension_numbers = #tpu.dot_dimension_numbers<[1], [0], [0], [1], [0, 0, 1, 1], [], []>} : vector<32x128xbf16>, vector<128x256xbf16>, vector<32x256xf32> -> vector<32x256xf32>
    %216 = vector.extract_strided_slice %209 {offsets = [0, 7, 0], sizes = [2, 16, 128], strides = [1, 1, 1]} : vector<2x24x128xbf16> to vector<2x16x128xbf16>
    %217 = vector.shape_cast %216 : vector<2x16x128xbf16> to vector<32x128xbf16>
    %218 = vector.extract_strided_slice %211 {offsets = [128, 0], sizes = [128, 256], strides = [1, 1]} : vector<384x256xbf16> to vector<128x256xbf16>
    %cst_111 = arith.constant dense<0.000000e+00> : vector<32x256xf32>
    %219 = tpu.matmul %217, %218, %cst_111 {dimension_numbers = #tpu.dot_dimension_numbers<[1], [0], [0], [1], [0, 0, 1, 1], [], []>} : vector<32x128xbf16>, vector<128x256xbf16>, vector<32x256xf32> -> vector<32x256xf32>
    %220 = arith.addf %215, %219 : vector<32x256xf32>
    %221 = vector.extract_strided_slice %209 {offsets = [0, 8, 0], sizes = [2, 16, 128], strides = [1, 1, 1]} : vector<2x24x128xbf16> to vector<2x16x128xbf16>
    %222 = vector.shape_cast %221 : vector<2x16x128xbf16> to vector<32x128xbf16>
    %223 = vector.extract_strided_slice %211 {offsets = [256, 0], sizes = [128, 256], strides = [1, 1]} : vector<384x256xbf16> to vector<128x256xbf16>
    %cst_112 = arith.constant dense<0.000000e+00> : vector<32x256xf32>
    %224 = tpu.matmul %222, %223, %cst_112 {dimension_numbers = #tpu.dot_dimension_numbers<[1], [0], [0], [1], [0, 0, 1, 1], [], []>} : vector<32x128xbf16>, vector<128x256xbf16>, vector<32x256xf32> -> vector<32x256xf32>
    %225 = arith.addf %220, %224 : vector<32x256xf32>
    %cst_113 = arith.constant dense<0.000000e+00> : vector<256xf32>
    %226 = vector.multi_reduction <add>, %225, %cst_113 [0] : vector<32x256xf32> to vector<256xf32>
    %227 = vector.shape_cast %226 : vector<256xf32> to vector<1x256xf32>
    %cst_114 = arith.constant 3.125000e-02 : f32
    %228 = vector.broadcast %cst_114 : f32 to vector<1x256xf32>
    %229 = arith.mulf %227, %228 : vector<1x256xf32>
    %230 = arith.mulf %225, %225 : vector<32x256xf32>
    %cst_115 = arith.constant dense<0.000000e+00> : vector<256xf32>
    %231 = vector.multi_reduction <add>, %230, %cst_115 [0] : vector<32x256xf32> to vector<256xf32>
    %232 = vector.shape_cast %231 : vector<256xf32> to vector<1x256xf32>
    %cst_116 = arith.constant 3.125000e-02 : f32
    %233 = vector.broadcast %cst_116 : f32 to vector<1x256xf32>
    %234 = arith.mulf %232, %233 : vector<1x256xf32>
    %235 = arith.mulf %229, %229 : vector<1x256xf32>
    %236 = arith.subf %234, %235 : vector<1x256xf32>
    %cst_117 = arith.constant 0.000000e+00 : f32
    %237 = vector.broadcast %cst_117 : f32 to vector<1x256xf32>
    %238 = arith.maximumf %236, %237 : vector<1x256xf32>
    %239 = vector.broadcast %229 : vector<1x256xf32> to vector<32x256xf32>
    %240 = arith.subf %225, %239 : vector<32x256xf32>
    %cst_118 = arith.constant 9.99999974E-6 : f32
    %241 = vector.broadcast %cst_118 : f32 to vector<1x256xf32>
    %242 = arith.addf %238, %241 : vector<1x256xf32>
    %243 = math.rsqrt %242 : vector<1x256xf32>
    %244 = vector.broadcast %243 : vector<1x256xf32> to vector<32x256xf32>
    %245 = arith.mulf %240, %244 : vector<32x256xf32>
    %246 = vector.extract_strided_slice %245 {offsets = [0, 0], sizes = [32, 128], strides = [1, 1]} : vector<32x256xf32> to vector<32x128xf32>
    %247 = math.tanh %246 : vector<32x128xf32>
    %248 = vector.extract_strided_slice %245 {offsets = [0, 128], sizes = [32, 128], strides = [1, 1]} : vector<32x256xf32> to vector<32x128xf32>
    %249 = arith.negf %248 : vector<32x128xf32>
    %250 = math.exp %249 : vector<32x128xf32>
    %cst_119 = arith.constant 1.000000e+00 : f32
    %251 = vector.broadcast %cst_119 : f32 to vector<32x128xf32>
    %252 = arith.addf %251, %250 : vector<32x128xf32>
    %253 = arith.divf %251, %252 : vector<32x128xf32>
    %254 = arith.mulf %247, %253 : vector<32x128xf32>
    %255 = arith.truncf %254 : vector<32x128xf32> to vector<32x128xbf16>
    %c0_120 = arith.constant 0 : index
    %c3_121 = arith.constant 3 : index
    %c0_122 = arith.constant 0 : index
    %c0_123 = arith.constant 0 : index
    %256 = vector.load %arg4[%c0_120, %c3_121, %c0_122, %c0_123] : memref<1x6x128x256xbf16, #tpu.memory_space<vmem>>, vector<1x1x128x256xbf16>
    %257 = vector.shape_cast %256 : vector<1x1x128x256xbf16> to vector<128x256xbf16>
    %cst_124 = arith.constant dense<0.000000e+00> : vector<32x256xf32>
    %258 = tpu.matmul %255, %257, %cst_124 {dimension_numbers = #tpu.dot_dimension_numbers<[1], [0], [0], [1], [0, 0, 1, 1], [], []>} : vector<32x128xbf16>, vector<128x256xbf16>, vector<32x256xf32> -> vector<32x256xf32>
    %c0_125 = arith.constant 0 : index
    %c3_126 = arith.constant 3 : index
    %c0_127 = arith.constant 0 : index
    %c0_128 = arith.constant 0 : index
    %259 = vector.load %arg5[%c0_125, %c3_126, %c0_127, %c0_128] : memref<1x6x1x256xf32, #tpu.memory_space<vmem>>, vector<1x1x1x256xf32>
    %260 = vector.shape_cast %259 : vector<1x1x1x256xf32> to vector<1x256xf32>
    %261 = vector.broadcast %260 : vector<1x256xf32> to vector<32x256xf32>
    %262 = arith.addf %258, %261 : vector<32x256xf32>
    %263 = vector.extract_strided_slice %262 {offsets = [0, 128], sizes = [32, 128], strides = [1, 1]} : vector<32x256xf32> to vector<32x128xf32>
    %264 = arith.addf %201, %263 : vector<32x128xf32>
    %265 = vector.extract_strided_slice %208 {offsets = [0, 8, 0], sizes = [2, 16, 128], strides = [1, 1, 1]} : vector<2x24x128xf32> to vector<2x16x128xf32>
    %266 = vector.shape_cast %265 : vector<2x16x128xf32> to vector<32x128xf32>
    %267 = vector.extract_strided_slice %262 {offsets = [0, 0], sizes = [32, 128], strides = [1, 1]} : vector<32x256xf32> to vector<32x128xf32>
    %268 = arith.addf %267, %266 : vector<32x128xf32>
    %269 = vector.shape_cast %268 : vector<32x128xf32> to vector<2x16x128xf32>
    %c0_129 = arith.constant 0 : index
    %c8_130 = arith.constant 8 : index
    %c0_131 = arith.constant 0 : index
    %270 = vector.load %arg11[%c0_129, %c8_130, %c0_131] : memref<2x24x128xf32, #tpu.memory_space<vmem>>, vector<2x16x128xf32>
    tpu.vector_store %arg11[%c0_129, %c8_130, %c0_131], %269 {strides = array<i32>} : memref<2x24x128xf32, #tpu.memory_space<vmem>>, vector<2x16x128xf32>,
    %c0_132 = arith.constant 0 : index
    %c0_133 = arith.constant 0 : index
    %c0_134 = arith.constant 0 : index
    %271 = vector.load %arg11[%c0_132, %c0_133, %c0_134] : memref<2x24x128xf32, #tpu.memory_space<vmem>>, vector<2x24x128xf32>
    %272 = arith.truncf %271 : vector<2x24x128xf32> to vector<2x24x128xbf16>
    %c0_135 = arith.constant 0 : index
    %c4 = arith.constant 4 : index
    %c0_136 = arith.constant 0 : index
    %c0_137 = arith.constant 0 : index
    %273 = vector.load %arg3[%c0_135, %c4, %c0_136, %c0_137] : memref<1x6x384x256xbf16, #tpu.memory_space<vmem>>, vector<1x1x384x256xbf16>
    %274 = vector.shape_cast %273 : vector<1x1x384x256xbf16> to vector<384x256xbf16>
    %275 = vector.extract_strided_slice %272 {offsets = [0, 4, 0], sizes = [2, 16, 128], strides = [1, 1, 1]} : vector<2x24x128xbf16> to vector<2x16x128xbf16>
    %276 = vector.shape_cast %275 : vector<2x16x128xbf16> to vector<32x128xbf16>
    %277 = vector.extract_strided_slice %274 {offsets = [0, 0], sizes = [128, 256], strides = [1, 1]} : vector<384x256xbf16> to vector<128x256xbf16>
    %cst_138 = arith.constant dense<0.000000e+00> : vector<32x256xf32>
    %278 = tpu.matmul %276, %277, %cst_138 {dimension_numbers = #tpu.dot_dimension_numbers<[1], [0], [0], [1], [0, 0, 1, 1], [], []>} : vector<32x128xbf16>, vector<128x256xbf16>, vector<32x256xf32> -> vector<32x256xf32>
    %279 = vector.extract_strided_slice %272 {offsets = [0, 6, 0], sizes = [2, 16, 128], strides = [1, 1, 1]} : vector<2x24x128xbf16> to vector<2x16x128xbf16>
    %280 = vector.shape_cast %279 : vector<2x16x128xbf16> to vector<32x128xbf16>
    %281 = vector.extract_strided_slice %274 {offsets = [128, 0], sizes = [128, 256], strides = [1, 1]} : vector<384x256xbf16> to vector<128x256xbf16>
    %cst_139 = arith.constant dense<0.000000e+00> : vector<32x256xf32>
    %282 = tpu.matmul %280, %281, %cst_139 {dimension_numbers = #tpu.dot_dimension_numbers<[1], [0], [0], [1], [0, 0, 1, 1], [], []>} : vector<32x128xbf16>, vector<128x256xbf16>, vector<32x256xf32> -> vector<32x256xf32>
    %283 = arith.addf %278, %282 : vector<32x256xf32>
    %284 = vector.extract_strided_slice %272 {offsets = [0, 8, 0], sizes = [2, 16, 128], strides = [1, 1, 1]} : vector<2x24x128xbf16> to vector<2x16x128xbf16>
    %285 = vector.shape_cast %284 : vector<2x16x128xbf16> to vector<32x128xbf16>
    %286 = vector.extract_strided_slice %274 {offsets = [256, 0], sizes = [128, 256], strides = [1, 1]} : vector<384x256xbf16> to vector<128x256xbf16>
    %cst_140 = arith.constant dense<0.000000e+00> : vector<32x256xf32>
    %287 = tpu.matmul %285, %286, %cst_140 {dimension_numbers = #tpu.dot_dimension_numbers<[1], [0], [0], [1], [0, 0, 1, 1], [], []>} : vector<32x128xbf16>, vector<128x256xbf16>, vector<32x256xf32> -> vector<32x256xf32>
    %288 = arith.addf %283, %287 : vector<32x256xf32>
    %cst_141 = arith.constant dense<0.000000e+00> : vector<256xf32>
    %289 = vector.multi_reduction <add>, %288, %cst_141 [0] : vector<32x256xf32> to vector<256xf32>
    %290 = vector.shape_cast %289 : vector<256xf32> to vector<1x256xf32>
    %cst_142 = arith.constant 3.125000e-02 : f32
    %291 = vector.broadcast %cst_142 : f32 to vector<1x256xf32>
    %292 = arith.mulf %290, %291 : vector<1x256xf32>
    %293 = arith.mulf %288, %288 : vector<32x256xf32>
    %cst_143 = arith.constant dense<0.000000e+00> : vector<256xf32>
    %294 = vector.multi_reduction <add>, %293, %cst_143 [0] : vector<32x256xf32> to vector<256xf32>
    %295 = vector.shape_cast %294 : vector<256xf32> to vector<1x256xf32>
    %cst_144 = arith.constant 3.125000e-02 : f32
    %296 = vector.broadcast %cst_144 : f32 to vector<1x256xf32>
    %297 = arith.mulf %295, %296 : vector<1x256xf32>
    %298 = arith.mulf %292, %292 : vector<1x256xf32>
    %299 = arith.subf %297, %298 : vector<1x256xf32>
    %cst_145 = arith.constant 0.000000e+00 : f32
    %300 = vector.broadcast %cst_145 : f32 to vector<1x256xf32>
    %301 = arith.maximumf %299, %300 : vector<1x256xf32>
    %302 = vector.broadcast %292 : vector<1x256xf32> to vector<32x256xf32>
    %303 = arith.subf %288, %302 : vector<32x256xf32>
    %cst_146 = arith.constant 9.99999974E-6 : f32
    %304 = vector.broadcast %cst_146 : f32 to vector<1x256xf32>
    %305 = arith.addf %301, %304 : vector<1x256xf32>
    %306 = math.rsqrt %305 : vector<1x256xf32>
    %307 = vector.broadcast %306 : vector<1x256xf32> to vector<32x256xf32>
    %308 = arith.mulf %303, %307 : vector<32x256xf32>
    %309 = vector.extract_strided_slice %308 {offsets = [0, 0], sizes = [32, 128], strides = [1, 1]} : vector<32x256xf32> to vector<32x128xf32>
    %310 = math.tanh %309 : vector<32x128xf32>
    %311 = vector.extract_strided_slice %308 {offsets = [0, 128], sizes = [32, 128], strides = [1, 1]} : vector<32x256xf32> to vector<32x128xf32>
    %312 = arith.negf %311 : vector<32x128xf32>
    %313 = math.exp %312 : vector<32x128xf32>
    %cst_147 = arith.constant 1.000000e+00 : f32
    %314 = vector.broadcast %cst_147 : f32 to vector<32x128xf32>
    %315 = arith.addf %314, %313 : vector<32x128xf32>
    %316 = arith.divf %314, %315 : vector<32x128xf32>
    %317 = arith.mulf %310, %316 : vector<32x128xf32>
    %318 = arith.truncf %317 : vector<32x128xf32> to vector<32x128xbf16>
    %c0_148 = arith.constant 0 : index
    %c4_149 = arith.constant 4 : index
    %c0_150 = arith.constant 0 : index
    %c0_151 = arith.constant 0 : index
    %319 = vector.load %arg4[%c0_148, %c4_149, %c0_150, %c0_151] : memref<1x6x128x256xbf16, #tpu.memory_space<vmem>>, vector<1x1x128x256xbf16>
    %320 = vector.shape_cast %319 : vector<1x1x128x256xbf16> to vector<128x256xbf16>
    %cst_152 = arith.constant dense<0.000000e+00> : vector<32x256xf32>
    %321 = tpu.matmul %318, %320, %cst_152 {dimension_numbers = #tpu.dot_dimension_numbers<[1], [0], [0], [1], [0, 0, 1, 1], [], []>} : vector<32x128xbf16>, vector<128x256xbf16>, vector<32x256xf32> -> vector<32x256xf32>
    %c0_153 = arith.constant 0 : index
    %c4_154 = arith.constant 4 : index
    %c0_155 = arith.constant 0 : index
    %c0_156 = arith.constant 0 : index
    %322 = vector.load %arg5[%c0_153, %c4_154, %c0_155, %c0_156] : memref<1x6x1x256xf32, #tpu.memory_space<vmem>>, vector<1x1x1x256xf32>
    %323 = vector.shape_cast %322 : vector<1x1x1x256xf32> to vector<1x256xf32>
    %324 = vector.broadcast %323 : vector<1x256xf32> to vector<32x256xf32>
    %325 = arith.addf %321, %324 : vector<32x256xf32>
    %326 = vector.extract_strided_slice %325 {offsets = [0, 128], sizes = [32, 128], strides = [1, 1]} : vector<32x256xf32> to vector<32x128xf32>
    %327 = arith.addf %264, %326 : vector<32x128xf32>
    %328 = vector.extract_strided_slice %271 {offsets = [0, 8, 0], sizes = [2, 16, 128], strides = [1, 1, 1]} : vector<2x24x128xf32> to vector<2x16x128xf32>
    %329 = vector.shape_cast %328 : vector<2x16x128xf32> to vector<32x128xf32>
    %330 = vector.extract_strided_slice %325 {offsets = [0, 0], sizes = [32, 128], strides = [1, 1]} : vector<32x256xf32> to vector<32x128xf32>
    %331 = arith.addf %330, %329 : vector<32x128xf32>
    %332 = vector.shape_cast %331 : vector<32x128xf32> to vector<2x16x128xf32>
    %c0_157 = arith.constant 0 : index
    %c8_158 = arith.constant 8 : index
    %c0_159 = arith.constant 0 : index
    %333 = vector.load %arg11[%c0_157, %c8_158, %c0_159] : memref<2x24x128xf32, #tpu.memory_space<vmem>>, vector<2x16x128xf32>
    tpu.vector_store %arg11[%c0_157, %c8_158, %c0_159], %332 {strides = array<i32>} : memref<2x24x128xf32, #tpu.memory_space<vmem>>, vector<2x16x128xf32>,
    %c0_160 = arith.constant 0 : index
    %c0_161 = arith.constant 0 : index
    %c0_162 = arith.constant 0 : index
    %334 = vector.load %arg11[%c0_160, %c0_161, %c0_162] : memref<2x24x128xf32, #tpu.memory_space<vmem>>, vector<2x24x128xf32>
    %335 = arith.truncf %334 : vector<2x24x128xf32> to vector<2x24x128xbf16>
    %c0_163 = arith.constant 0 : index
    %c5 = arith.constant 5 : index
    %c0_164 = arith.constant 0 : index
    %c0_165 = arith.constant 0 : index
    %336 = vector.load %arg3[%c0_163, %c5, %c0_164, %c0_165] : memref<1x6x384x256xbf16, #tpu.memory_space<vmem>>, vector<1x1x384x256xbf16>
    %337 = vector.shape_cast %336 : vector<1x1x384x256xbf16> to vector<384x256xbf16>
    %338 = vector.extract_strided_slice %335 {offsets = [0, 0, 0], sizes = [2, 16, 128], strides = [1, 1, 1]} : vector<2x24x128xbf16> to vector<2x16x128xbf16>
    %339 = vector.shape_cast %338 : vector<2x16x128xbf16> to vector<32x128xbf16>
    %340 = vector.extract_strided_slice %337 {offsets = [0, 0], sizes = [128, 256], strides = [1, 1]} : vector<384x256xbf16> to vector<128x256xbf16>
    %cst_166 = arith.constant dense<0.000000e+00> : vector<32x256xf32>
    %341 = tpu.matmul %339, %340, %cst_166 {dimension_numbers = #tpu.dot_dimension_numbers<[1], [0], [0], [1], [0, 0, 1, 1], [], []>} : vector<32x128xbf16>, vector<128x256xbf16>, vector<32x256xf32> -> vector<32x256xf32>
    %342 = vector.extract_strided_slice %335 {offsets = [0, 4, 0], sizes = [2, 16, 128], strides = [1, 1, 1]} : vector<2x24x128xbf16> to vector<2x16x128xbf16>
    %343 = vector.shape_cast %342 : vector<2x16x128xbf16> to vector<32x128xbf16>
    %344 = vector.extract_strided_slice %337 {offsets = [128, 0], sizes = [128, 256], strides = [1, 1]} : vector<384x256xbf16> to vector<128x256xbf16>
    %cst_167 = arith.constant dense<0.000000e+00> : vector<32x256xf32>
    %345 = tpu.matmul %343, %344, %cst_167 {dimension_numbers = #tpu.dot_dimension_numbers<[1], [0], [0], [1], [0, 0, 1, 1], [], []>} : vector<32x128xbf16>, vector<128x256xbf16>, vector<32x256xf32> -> vector<32x256xf32>
    %346 = arith.addf %341, %345 : vector<32x256xf32>
    %347 = vector.extract_strided_slice %335 {offsets = [0, 8, 0], sizes = [2, 16, 128], strides = [1, 1, 1]} : vector<2x24x128xbf16> to vector<2x16x128xbf16>
    %348 = vector.shape_cast %347 : vector<2x16x128xbf16> to vector<32x128xbf16>
    %349 = vector.extract_strided_slice %337 {offsets = [256, 0], sizes = [128, 256], strides = [1, 1]} : vector<384x256xbf16> to vector<128x256xbf16>
    %cst_168 = arith.constant dense<0.000000e+00> : vector<32x256xf32>
    %350 = tpu.matmul %348, %349, %cst_168 {dimension_numbers = #tpu.dot_dimension_numbers<[1], [0], [0], [1], [0, 0, 1, 1], [], []>} : vector<32x128xbf16>, vector<128x256xbf16>, vector<32x256xf32> -> vector<32x256xf32>
    %351 = arith.addf %346, %350 : vector<32x256xf32>
    %cst_169 = arith.constant dense<0.000000e+00> : vector<256xf32>
    %352 = vector.multi_reduction <add>, %351, %cst_169 [0] : vector<32x256xf32> to vector<256xf32>
    %353 = vector.shape_cast %352 : vector<256xf32> to vector<1x256xf32>
    %cst_170 = arith.constant 3.125000e-02 : f32
    %354 = vector.broadcast %cst_170 : f32 to vector<1x256xf32>
    %355 = arith.mulf %353, %354 : vector<1x256xf32>
    %356 = arith.mulf %351, %351 : vector<32x256xf32>
    %cst_171 = arith.constant dense<0.000000e+00> : vector<256xf32>
    %357 = vector.multi_reduction <add>, %356, %cst_171 [0] : vector<32x256xf32> to vector<256xf32>
    %358 = vector.shape_cast %357 : vector<256xf32> to vector<1x256xf32>
    %cst_172 = arith.constant 3.125000e-02 : f32
    %359 = vector.broadcast %cst_172 : f32 to vector<1x256xf32>
    %360 = arith.mulf %358, %359 : vector<1x256xf32>
    %361 = arith.mulf %355, %355 : vector<1x256xf32>
    %362 = arith.subf %360, %361 : vector<1x256xf32>
    %cst_173 = arith.constant 0.000000e+00 : f32
    %363 = vector.broadcast %cst_173 : f32 to vector<1x256xf32>
    %364 = arith.maximumf %362, %363 : vector<1x256xf32>
    %365 = vector.broadcast %355 : vector<1x256xf32> to vector<32x256xf32>
    %366 = arith.subf %351, %365 : vector<32x256xf32>
    %cst_174 = arith.constant 9.99999974E-6 : f32
    %367 = vector.broadcast %cst_174 : f32 to vector<1x256xf32>
    %368 = arith.addf %364, %367 : vector<1x256xf32>
    %369 = math.rsqrt %368 : vector<1x256xf32>
    %370 = vector.broadcast %369 : vector<1x256xf32> to vector<32x256xf32>
    %371 = arith.mulf %366, %370 : vector<32x256xf32>
    %372 = vector.extract_strided_slice %371 {offsets = [0, 0], sizes = [32, 128], strides = [1, 1]} : vector<32x256xf32> to vector<32x128xf32>
    %373 = math.tanh %372 : vector<32x128xf32>
    %374 = vector.extract_strided_slice %371 {offsets = [0, 128], sizes = [32, 128], strides = [1, 1]} : vector<32x256xf32> to vector<32x128xf32>
    %375 = arith.negf %374 : vector<32x128xf32>
    %376 = math.exp %375 : vector<32x128xf32>
    %cst_175 = arith.constant 1.000000e+00 : f32
    %377 = vector.broadcast %cst_175 : f32 to vector<32x128xf32>
    %378 = arith.addf %377, %376 : vector<32x128xf32>
    %379 = arith.divf %377, %378 : vector<32x128xf32>
    %380 = arith.mulf %373, %379 : vector<32x128xf32>
    %381 = arith.truncf %380 : vector<32x128xf32> to vector<32x128xbf16>
    %c0_176 = arith.constant 0 : index
    %c5_177 = arith.constant 5 : index
    %c0_178 = arith.constant 0 : index
    %c0_179 = arith.constant 0 : index
    %382 = vector.load %arg4[%c0_176, %c5_177, %c0_178, %c0_179] : memref<1x6x128x256xbf16, #tpu.memory_space<vmem>>, vector<1x1x128x256xbf16>
    %383 = vector.shape_cast %382 : vector<1x1x128x256xbf16> to vector<128x256xbf16>
    %cst_180 = arith.constant dense<0.000000e+00> : vector<32x256xf32>
    %384 = tpu.matmul %381, %383, %cst_180 {dimension_numbers = #tpu.dot_dimension_numbers<[1], [0], [0], [1], [0, 0, 1, 1], [], []>} : vector<32x128xbf16>, vector<128x256xbf16>, vector<32x256xf32> -> vector<32x256xf32>
    %c0_181 = arith.constant 0 : index
    %c5_182 = arith.constant 5 : index
    %c0_183 = arith.constant 0 : index
    %c0_184 = arith.constant 0 : index
    %385 = vector.load %arg5[%c0_181, %c5_182, %c0_183, %c0_184] : memref<1x6x1x256xf32, #tpu.memory_space<vmem>>, vector<1x1x1x256xf32>
    %386 = vector.shape_cast %385 : vector<1x1x1x256xf32> to vector<1x256xf32>
    %387 = vector.broadcast %386 : vector<1x256xf32> to vector<32x256xf32>
    %388 = arith.addf %384, %387 : vector<32x256xf32>
    %389 = vector.extract_strided_slice %388 {offsets = [0, 128], sizes = [32, 128], strides = [1, 1]} : vector<32x256xf32> to vector<32x128xf32>
    %390 = arith.addf %327, %389 : vector<32x128xf32>
    %391 = vector.extract_strided_slice %334 {offsets = [0, 8, 0], sizes = [2, 16, 128], strides = [1, 1, 1]} : vector<2x24x128xf32> to vector<2x16x128xf32>
    %392 = vector.shape_cast %391 : vector<2x16x128xf32> to vector<32x128xf32>
    %393 = vector.extract_strided_slice %388 {offsets = [0, 0], sizes = [32, 128], strides = [1, 1]} : vector<32x256xf32> to vector<32x128xf32>
    %394 = arith.addf %393, %392 : vector<32x128xf32>
    %395 = vector.shape_cast %394 : vector<32x128xf32> to vector<2x16x128xf32>
    %c0_185 = arith.constant 0 : index
    %c8_186 = arith.constant 8 : index
    %c0_187 = arith.constant 0 : index
    %396 = vector.load %arg11[%c0_185, %c8_186, %c0_187] : memref<2x24x128xf32, #tpu.memory_space<vmem>>, vector<2x16x128xf32>
    tpu.vector_store %arg11[%c0_185, %c8_186, %c0_187], %395 {strides = array<i32>} : memref<2x24x128xf32, #tpu.memory_space<vmem>>, vector<2x16x128xf32>,
    %cst_188 = arith.constant dense<0.000000e+00> : vector<128xf32>
    %397 = vector.multi_reduction <add>, %390, %cst_188 [0] : vector<32x128xf32> to vector<128xf32>
    %398 = vector.shape_cast %397 : vector<128xf32> to vector<1x128xf32>
    %cst_189 = arith.constant 3.125000e-02 : f32
    %399 = vector.broadcast %cst_189 : f32 to vector<1x128xf32>
    %400 = arith.mulf %398, %399 : vector<1x128xf32>
    %401 = arith.mulf %390, %390 : vector<32x128xf32>
    %cst_190 = arith.constant dense<0.000000e+00> : vector<128xf32>
    %402 = vector.multi_reduction <add>, %401, %cst_190 [0] : vector<32x128xf32> to vector<128xf32>
    %403 = vector.shape_cast %402 : vector<128xf32> to vector<1x128xf32>
    %cst_191 = arith.constant 3.125000e-02 : f32
    %404 = vector.broadcast %cst_191 : f32 to vector<1x128xf32>
    %405 = arith.mulf %403, %404 : vector<1x128xf32>
    %406 = arith.mulf %400, %400 : vector<1x128xf32>
    %407 = arith.subf %405, %406 : vector<1x128xf32>
    %cst_192 = arith.constant 0.000000e+00 : f32
    %408 = vector.broadcast %cst_192 : f32 to vector<1x128xf32>
    %409 = arith.maximumf %407, %408 : vector<1x128xf32>
    %410 = vector.broadcast %400 : vector<1x128xf32> to vector<32x128xf32>
    %411 = arith.subf %390, %410 : vector<32x128xf32>
    %cst_193 = arith.constant 9.99999974E-6 : f32
    %412 = vector.broadcast %cst_193 : f32 to vector<1x128xf32>
    %413 = arith.addf %409, %412 : vector<1x128xf32>
    %414 = math.rsqrt %413 : vector<1x128xf32>
    %415 = vector.broadcast %414 : vector<1x128xf32> to vector<32x128xf32>
    %416 = arith.mulf %411, %415 : vector<32x128xf32>
    %cst_194 = arith.constant 0.000000e+00 : f32
    %417 = vector.broadcast %cst_194 : f32 to vector<32x128xf32>
    %418 = arith.maximumf %416, %417 : vector<32x128xf32>
    %419 = vector.shape_cast %418 : vector<32x128xf32> to vector<2x16x128xf32>
    %c0_195 = arith.constant 0 : index
    %c0_196 = arith.constant 0 : index
    %c0_197 = arith.constant 0 : index
    %420 = vector.load %arg6[%c0_195, %c0_196, %c0_197] : memref<1x16x128xf32, #tpu.memory_space<vmem>>, vector<1x16x128xf32>
    %421 = vector.shape_cast %420 : vector<1x16x128xf32> to vector<16x128xf32>
    %422 = vector.shape_cast %421 : vector<16x128xf32> to vector<1x16x128xf32>
    %423 = vector.broadcast %422 : vector<1x16x128xf32> to vector<2x16x128xf32>
    %424 = arith.mulf %419, %423 : vector<2x16x128xf32>
    %cst_198 = arith.constant dense<0.000000e+00> : vector<2x128xf32>
    %425 = vector.multi_reduction <add>, %424, %cst_198 [1] : vector<2x16x128xf32> to vector<2x128xf32>
    %c0_199 = arith.constant 0 : index
    %c0_200 = arith.constant 0 : index
    %c0_201 = arith.constant 0 : index
    %426 = vector.load %arg7[%c0_199, %c0_200, %c0_201] : memref<1x1x128xf32, #tpu.memory_space<vmem>>, vector<1x1x128xf32>
    %427 = vector.shape_cast %426 : vector<1x1x128xf32> to vector<1x128xf32>
    %428 = vector.broadcast %427 : vector<1x128xf32> to vector<2x128xf32>
    %429 = arith.addf %425, %428 : vector<2x128xf32>
    %cst_202 = arith.constant dense<0.000000e+00> : vector<128xf32>
    %430 = vector.multi_reduction <add>, %429, %cst_202 [0] : vector<2x128xf32> to vector<128xf32>
    %431 = vector.shape_cast %430 : vector<128xf32> to vector<1x128xf32>
    %cst_203 = arith.constant 5.000000e-01 : f32
    %432 = vector.broadcast %cst_203 : f32 to vector<1x128xf32>
    %433 = arith.mulf %431, %432 : vector<1x128xf32>
    %434 = arith.mulf %429, %429 : vector<2x128xf32>
    %cst_204 = arith.constant dense<0.000000e+00> : vector<128xf32>
    %435 = vector.multi_reduction <add>, %434, %cst_204 [0] : vector<2x128xf32> to vector<128xf32>
    %436 = vector.shape_cast %435 : vector<128xf32> to vector<1x128xf32>
    %cst_205 = arith.constant 5.000000e-01 : f32
    %437 = vector.broadcast %cst_205 : f32 to vector<1x128xf32>
    %438 = arith.mulf %436, %437 : vector<1x128xf32>
    %439 = arith.mulf %433, %433 : vector<1x128xf32>
    %440 = arith.subf %438, %439 : vector<1x128xf32>
    %cst_206 = arith.constant 0.000000e+00 : f32
    %441 = vector.broadcast %cst_206 : f32 to vector<1x128xf32>
    %442 = arith.maximumf %440, %441 : vector<1x128xf32>
    %443 = vector.broadcast %433 : vector<1x128xf32> to vector<2x128xf32>
    %444 = arith.subf %429, %443 : vector<2x128xf32>
    %cst_207 = arith.constant 9.99999974E-6 : f32
    %445 = vector.broadcast %cst_207 : f32 to vector<1x128xf32>
    %446 = arith.addf %442, %445 : vector<1x128xf32>
    %447 = math.rsqrt %446 : vector<1x128xf32>
    %448 = vector.broadcast %447 : vector<1x128xf32> to vector<2x128xf32>
    %449 = arith.mulf %444, %448 : vector<2x128xf32>
    %450 = arith.truncf %449 : vector<2x128xf32> to vector<2x128xbf16>
    %c0_208 = arith.constant 0 : index
    %c0_209 = arith.constant 0 : index
    %c0_210 = arith.constant 0 : index
    %451 = vector.load %arg8[%c0_208, %c0_209, %c0_210] : memref<1x128x64xbf16, #tpu.memory_space<vmem>>, vector<1x128x64xbf16>
    %452 = vector.shape_cast %451 : vector<1x128x64xbf16> to vector<128x64xbf16>
    %cst_211 = arith.constant dense<0.000000e+00> : vector<2x64xf32>
    %453 = tpu.matmul %450, %452, %cst_211 {dimension_numbers = #tpu.dot_dimension_numbers<[1], [0], [0], [1], [0, 0, 1, 1], [], []>} : vector<2x128xbf16>, vector<128x64xbf16>, vector<2x64xf32> -> vector<2x64xf32>
    %c0_212 = arith.constant 0 : index
    %c0_213 = arith.constant 0 : index
    %c0_214 = arith.constant 0 : index
    %454 = vector.load %arg9[%c0_212, %c0_213, %c0_214] : memref<1x1x64xf32, #tpu.memory_space<vmem>>, vector<1x1x64xf32>
    %455 = vector.shape_cast %454 : vector<1x1x64xf32> to vector<1x64xf32>
    %456 = vector.broadcast %455 : vector<1x64xf32> to vector<2x64xf32>
    %457 = arith.addf %453, %456 : vector<2x64xf32>
    %c0_215 = arith.constant 0 : index
    %c0_216 = arith.constant 0 : index
    %c0_217 = arith.constant 0 : index
    %458 = vector.load %arg10[%c0_215, %c0_216, %c0_217] : memref<1x2x64xf32, #tpu.memory_space<vmem>>, vector<1x2x64xf32>
    %459 = vector.shape_cast %458 : vector<1x2x64xf32> to vector<2x64xf32>
    %460 = vector.shape_cast %457 : vector<2x64xf32> to vector<1x2x64xf32>
    tpu.vector_store %arg10[%c0_215, %c0_216, %c0_217], %460 {strides = array<i32>} : memref<1x2x64xf32, #tpu.memory_space<vmem>>, vector<1x2x64xf32>,
    return
  }
  func.func @transform_0(%arg0: i32) -> (i32, i32, i32, i32) {
    %c0_i32 = arith.constant 0 : i32
    %c0_i32_0 = arith.constant 0 : i32
    %c0_i32_1 = arith.constant 0 : i32
    %c0_i32_2 = arith.constant 0 : i32
    return %arg0, %c0_i32, %c0_i32_0, %c0_i32_1 : i32, i32, i32, i32
  }
  func.func @transform_1(%arg0: i32) -> (i32, i32, i32, i32) {
    %c0_i32 = arith.constant 0 : i32
    %c0_i32_0 = arith.constant 0 : i32
    %c0_i32_1 = arith.constant 0 : i32
    %c0_i32_2 = arith.constant 0 : i32
    return %arg0, %c0_i32, %c0_i32_0, %c0_i32_1 : i32, i32, i32, i32
  }
  func.func @transform_2(%arg0: i32) -> (i32, i32, i32, i32) {
    %c0_i32 = arith.constant 0 : i32
    %c0_i32_0 = arith.constant 0 : i32
    %c0_i32_1 = arith.constant 0 : i32
    %c0_i32_2 = arith.constant 0 : i32
    return %arg0, %c0_i32, %c0_i32_0, %c0_i32_1 : i32, i32, i32, i32
  }
  func.func @transform_3(%arg0: i32) -> (i32, i32, i32, i32) {
    %c0_i32 = arith.constant 0 : i32
    %c0_i32_0 = arith.constant 0 : i32
    %c0_i32_1 = arith.constant 0 : i32
    %c0_i32_2 = arith.constant 0 : i32
    return %arg0, %c0_i32, %c0_i32_0, %c0_i32_1 : i32, i32, i32, i32
  }
  func.func @transform_4(%arg0: i32) -> (i32, i32, i32, i32) {
    %c0_i32 = arith.constant 0 : i32
    %c0_i32_0 = arith.constant 0 : i32
    %c0_i32_1 = arith.constant 0 : i32
    %c0_i32_2 = arith.constant 0 : i32
    return %arg0, %c0_i32, %c0_i32_0, %c0_i32_1 : i32, i32, i32, i32
  }
  func.func @transform_5(%arg0: i32) -> (i32, i32, i32) {
    %c0_i32 = arith.constant 0 : i32
    %c0_i32_0 = arith.constant 0 : i32
    %c0_i32_1 = arith.constant 0 : i32
    return %arg0, %c0_i32, %c0_i32_0 : i32, i32, i32
  }
  func.func @transform_6(%arg0: i32) -> (i32, i32, i32) {
    %c0_i32 = arith.constant 0 : i32
    %c0_i32_0 = arith.constant 0 : i32
    %c0_i32_1 = arith.constant 0 : i32
    return %arg0, %c0_i32, %c0_i32_0 : i32, i32, i32
  }
  func.func @transform_7(%arg0: i32) -> (i32, i32, i32) {
    %c0_i32 = arith.constant 0 : i32
    %c0_i32_0 = arith.constant 0 : i32
    %c0_i32_1 = arith.constant 0 : i32
    return %arg0, %c0_i32, %c0_i32_0 : i32, i32, i32
  }
  func.func @transform_8(%arg0: i32) -> (i32, i32, i32) {
    %c0_i32 = arith.constant 0 : i32
    %c0_i32_0 = arith.constant 0 : i32
    %c0_i32_1 = arith.constant 0 : i32
    return %arg0, %c0_i32, %c0_i32_0 : i32, i32, i32
  }
  func.func @transform_9(%arg0: i32) -> (i32, i32, i32) {
    %c0_i32 = arith.constant 0 : i32
    %c0_i32_0 = arith.constant 0 : i32
    %c0_i32_1 = arith.constant 0 : i32
    return %arg0, %c0_i32, %c0_i32_0 : i32, i32, i32
  }
}

</mosaic_0001>

<llo_original>
// kernel: _lambda_.3
$region0: #{_lambda_.3}
  #allocation0 [shape = 'u32[]', space=smem, size = 0x4, offset = 0x4, fixed_abs, tag = 'smem constant byte address 0x4 - core index']
  #allocation1 [shape = 'u32[144,128]{1,0:T(1,128)}', space=vmem, size = 0x12000, scoped, tag = 'internal scratch']
  %s0 = inlined_call_operand.vmem [shape: f32[2,17,4], index: 0, kind: input, shape index: {}]
  %s1 = inlined_call_operand.hbm [shape: bf16[2,4,64], index: 1, kind: input, shape index: {}]
  %s2 = inlined_call_operand.vmem [shape: f32[2,16,64], index: 2, kind: output, shape index: {}]
  %s3 = sld [smem:[#allocation0]]
  $region22: #{_lambda_.3} parent=0
    _
  %s5 = ssub.s32 1, %s3
  %s6 = scalar_select 0, %s5, %s3
  $region1: #{_lambda_.3} parent=0
    #allocation2 [shape = 'u8[2048]{0}', space=vmem, size = 0x800, scoped, tag = 'input window, operand 1, single buffered']
    #allocation3 [shape = 's32[1]{0}', space=sflag, size = 0x4, scoped, tag = 'scoped memory for _lambda_.3']
    %7 = vsyncpa [#allocation3], 0
    // Predicated region
    $region2: #{_lambda_.3} parent=1 // pred_check
      _
    $region3: #{_lambda_.3} parent=1 // pred_check_branch
      %9 = sbr.rel (0) target = $region5
    $region4: #{_lambda_.3} parent=1 // pred_region
      _
    $region5: #{_lambda_.3} parent=1 // pred_fallthru
      _
    // Predicated region
    $region6: #{_lambda_.3} parent=1 // pred_check
      _
    $region7: #{_lambda_.3} parent=1 // pred_check_branch
      %11 = sbr.rel (0) target = $region9
    $region8: #{_lambda_.3} parent=1 // pred_region
      %s13 = ssub.s32 64, 64
      %14 = vsyncadd [#allocation3], %s13
      %s15 = sshll.u32 [#allocation2], 4
      %s16 = int_to_ptr.vmem [resolvable:$true] %s15
      %21 = dma.hbm_to_vmem [thread:$0]  %s1, 64, %s16, [#allocation3], 32, 32, 2
    $region9: #{_lambda_.3} parent=1 // pred_fallthru
      _
    // Predicated region
    $region10: #{_lambda_.3} parent=1 // pred_check
      _
    $region11: #{_lambda_.3} parent=1 // pred_check_branch
      %23 = sbr.rel (0) target = $region13
    $region12: #{_lambda_.3} parent=1 // pred_region
      %24 = dma.done [#allocation3], 64
    $region13: #{_lambda_.3} parent=1 // pred_fallthru
      _
    %v26 = vld [vmem:[%s0] sm:$0xff]
    %v27 = vld [vmem:[%s0 + $0x8] sm:$0xff]
    %v28 = vld [vmem:[%s0 + $0x10] sm:$0x1]
    %v29 = vld [vmem:[%s0 + $0x18] sm:$0xff]
    %v30 = vld [vmem:[%s0 + $0x20] sm:$0xff]
    %v31 = vld [vmem:[%s0 + $0x28] sm:$0x1]
    %v32 = vpack.c.bf16 %v27, %v26
    %v33 = vpack.c.bf16 %v28, %v28
    %v34 = vpack.c.bf16 %v30, %v29
    %v35 = vpack.c.bf16 %v31, %v31
    %vm36 = vsmask.f32 7424
    %v38 = vshrl.u32 %v32, 16
    %v40 = vshll.u32 %v32, 16
    %v42 = vrot.slane %v40, 1
    %v43 = vor.u32 %v38, %v42
    %v45 = vshll.u32 %v33, 16
    %v47 = vrot.slane %v45, 1
    %v48 = vsel %vm36, %v43, %v47
    %v50 = vshrl.u32 %v34, 16
    %v52 = vshll.u32 %v34, 16
    %v54 = vrot.slane %v52, 1
    %v55 = vor.u32 %v50, %v54
    %v57 = vshll.u32 %v35, 16
    %v59 = vrot.slane %v57, 1
    %v60 = vsel %vm36, %v55, %v59
    %v61 = vld [vmem:[#allocation2] sm:$0x3]
    %s62 = scalar_lea.vmem [#allocation2], 2
    %v63 = vld [vmem:[%s62] sm:$0x3]
    %vm64 = vcmask 31744
    %v66 = vsel %vm64, %v48, 0
    %v69 = vsel %vm64, %v60, 0
    %vm71 = vcmask 1041408
    %v73 = vsel %vm71, %v63, 0
    %75 = vmatprep.subr.bf16.mxu0 0
    %76 = vmatpush1.bf16.msra.mxu0 0
    %77 = vmatprep.subr.bf16.mxu0 0
    %78 = vmatpush1.bf16.msra.mxu0 0
    %79 = vmatprep.subr.bf16.mxu0 0
    %80 = vmatpush1.bf16.msra.mxu0 0
    %81 = vmatprep.subr.bf16.mxu0 0
    %82 = vmatpush1.bf16.msra.mxu0 0
    %83 = vmatprep.subr.bf16.mxu0 0
    %84 = vmatpush1.bf16.msra.mxu0 0
    %85 = vmatprep.subr.bf16.mxu0 0
    %86 = vmatpush1.bf16.msra.mxu0 0
    %87 = vmatprep.subr.bf16.mxu0 0
    %88 = vmatpush1.bf16.msra.mxu0 0
    %89 = vmatprep.subr.bf16.mxu0 0
    %90 = vmatpush1.bf16.msra.mxu0 %v73
    %91 = vmatprep.subr.bf16.mxu0 0
    %92 = vmatpush2.bf16.msra.mxu0 0
    %93 = vmatprep.subr.bf16.mxu0 0
    %94 = vmatpush2.bf16.msra.mxu0 0
    %95 = vmatprep.subr.bf16.mxu0 0
    %96 = vmatpush2.bf16.msra.mxu0 0
    %97 = vmatprep.subr.bf16.mxu0 0
    %98 = vmatpush2.bf16.msra.mxu0 0
    %99 = vmatprep.subr.bf16.mxu0 0
    %100 = vmatpush2.bf16.msra.mxu0 0
    %101 = vmatprep.subr.bf16.mxu0 0
    %102 = vmatpush2.bf16.msra.mxu0 0
    %103 = vmatprep.subr.bf16.mxu0 0
    %104 = vmatpush2.bf16.msra.mxu0 0
    %105 = vmatprep.subr.bf16.mxu0 0
    %106 = vmatpush2.bf16.msra.mxu0 0
    %107 = vmatprep.mubr.bf16.mxu0 0
    %108 = vmatmul.mubr.bf16.gmra.mxu0 %v66
    %v109 = vpop.f32.mrf.mxu0
    %v110 = vadd.f32 0.0, %v109
    %v111 = vpop.f32.mrf.mxu0
    %v112 = vpop.f32.mrf.mxu0
    %v113 = vadd.f32 0.0, %v112
    %v114 = vpop.f32.mrf.mxu0
    %115 = vmatprep.mubr.bf16.mxu0 0
    %116 = vmatmul.mubr.bf16.gmra.mxu0 %v69
    %v117 = vpop.f32.mrf.mxu0
    %v118 = vadd.f32 0.0, %v117
    %v119 = vpop.f32.mrf.mxu0
    %v120 = vpop.f32.mrf.mxu0
    %v121 = vadd.f32 0.0, %v120
    %v122 = vpop.f32.mrf.mxu0
    %123 = vdwg.mxu0
    %v124 = vsel %vm64, %v32, 0
    %v126 = vsel %vm64, %v34, 0
    %v129 = vsel %vm71, %v61, 0
    %131 = vmatprep.subr.bf16.mxu0 0
    %132 = vmatpush1.bf16.msra.mxu0 0
    %133 = vmatprep.subr.bf16.mxu0 0
    %134 = vmatpush1.bf16.msra.mxu0 0
    %135 = vmatprep.subr.bf16.mxu0 0
    %136 = vmatpush1.bf16.msra.mxu0 0
    %137 = vmatprep.subr.bf16.mxu0 0
    %138 = vmatpush1.bf16.msra.mxu0 0
    %139 = vmatprep.subr.bf16.mxu0 0
    %140 = vmatpush1.bf16.msra.mxu0 0
    %141 = vmatprep.subr.bf16.mxu0 0
    %142 = vmatpush1.bf16.msra.mxu0 0
    %143 = vmatprep.subr.bf16.mxu0 0
    %144 = vmatpush1.bf16.msra.mxu0 0
    %145 = vmatprep.subr.bf16.mxu0 0
    %146 = vmatpush1.bf16.msra.mxu0 %v129
    %147 = vmatprep.subr.bf16.mxu0 0
    %148 = vmatpush2.bf16.msra.mxu0 0
    %149 = vmatprep.subr.bf16.mxu0 0
    %150 = vmatpush2.bf16.msra.mxu0 0
    %151 = vmatprep.subr.bf16.mxu0 0
    %152 = vmatpush2.bf16.msra.mxu0 0
    %153 = vmatprep.subr.bf16.mxu0 0
    %154 = vmatpush2.bf16.msra.mxu0 0
    %155 = vmatprep.subr.bf16.mxu0 0
    %156 = vmatpush2.bf16.msra.mxu0 0
    %157 = vmatprep.subr.bf16.mxu0 0
    %158 = vmatpush2.bf16.msra.mxu0 0
    %159 = vmatprep.subr.bf16.mxu0 0
    %160 = vmatpush2.bf16.msra.mxu0 0
    %161 = vmatprep.subr.bf16.mxu0 0
    %162 = vmatpush2.bf16.msra.mxu0 0
    %163 = vmatprep.mubr.bf16.mxu0 0
    %164 = vmatmul.mubr.bf16.gmra.mxu0 %v124
    %v165 = vpop.f32.mrf.mxu0
    %v166 = vadd.f32 %v110, %v165
    %v167 = vpop.f32.mrf.mxu0
    %v168 = vpop.f32.mrf.mxu0
    %v169 = vadd.f32 %v113, %v168
    %v170 = vpop.f32.mrf.mxu0
    %171 = vmatprep.mubr.bf16.mxu0 0
    %172 = vmatmul.mubr.bf16.gmra.mxu0 %v126
    %v173 = vpop.f32.mrf.mxu0
    %v174 = vadd.f32 %v118, %v173
    %v175 = vpop.f32.mrf.mxu0
    %v176 = vpop.f32.mrf.mxu0
    %v177 = vadd.f32 %v121, %v176
    %v178 = vpop.f32.mrf.mxu0
    %179 = vdwg.mxu0
    %vm180 = vcmask 523264
    %181 = vst.msk [vmem:[%s2] sm:$0xff] %vm180, %v166
    %182 = vst.msk [vmem:[%s2 + $0x8] sm:$0xff] %vm180, %v169
    %183 = vst.msk [vmem:[%s2 + $0x10] sm:$0xff] %vm180, %v174
    %184 = vst.msk [vmem:[%s2 + $0x18] sm:$0xff] %vm180, %v177
    // Predicated region
    $region14: #{_lambda_.3} parent=1 // pred_check
      _
    $region15: #{_lambda_.3} parent=1 // pred_check_branch
      %186 = sbr.rel (0) target = $region17
    $region16: #{_lambda_.3} parent=1 // pred_region
      _
    $region17: #{_lambda_.3} parent=1 // pred_fallthru
      _
    // Predicated region
    $region18: #{_lambda_.3} parent=1 // pred_check
      _
    $region19: #{_lambda_.3} parent=1 // pred_check_branch
      %188 = sbr.rel (0) target = $region21
    $region20: #{_lambda_.3} parent=1 // pred_region
      _
    $region21: #{_lambda_.3} parent=1 // pred_fallthru
      _
    %189 = vsyncpa [#allocation3], 1

// kernel: _lambda_.5
$region0: #{_lambda_.5}
  #allocation0 [shape = 'u32[]', space=smem, size = 0x4, offset = 0x4, fixed_abs, tag = 'smem constant byte address 0x4 - core index']
  #allocation1 [shape = 'u32[144,128]{1,0:T(1,128)}', space=vmem, size = 0x12000, scoped, tag = 'internal scratch']
  %s0 = inlined_call_operand.vmem [shape: f32[2,128], index: 0, kind: input, shape index: {}]
  %s1 = inlined_call_operand.vmem [shape: f32[16,128], index: 1, kind: input, shape index: {}]
  %s2 = inlined_call_operand.vmem [shape: s32[2,1], index: 2, kind: input, shape index: {}]
  %s3 = inlined_call_operand.hbm [shape: f32[2,16], index: 3, kind: output, shape index: {}]
  %s4 = sld [smem:[#allocation0]]
  $region22: #{_lambda_.5} parent=0
    _
  %s6 = ssub.s32 1, %s4
  %s7 = scalar_select 0, %s6, %s4
  $region1: #{_lambda_.5} parent=0
    #allocation2 [shape = 'u8[1024]{0}', space=vmem, size = 0x400, scoped, tag = 'output window, operand 0, single buffered']
    #allocation3 [shape = 's32[1]{0}', space=sflag, size = 0x4, scoped, tag = 'scoped memory for _lambda_.5']
    %8 = vsyncpa [#allocation3], 0
    // Predicated region
    $region2: #{_lambda_.5} parent=1 // pred_check
      _
    $region3: #{_lambda_.5} parent=1 // pred_check_branch
      %10 = sbr.rel (0) target = $region5
    $region4: #{_lambda_.5} parent=1 // pred_region
      _
    $region5: #{_lambda_.5} parent=1 // pred_fallthru
      _
    // Predicated region
    $region6: #{_lambda_.5} parent=1 // pred_check
      _
    $region7: #{_lambda_.5} parent=1 // pred_check_branch
      %12 = sbr.rel (0) target = $region9
    $region8: #{_lambda_.5} parent=1 // pred_region
      _
    $region9: #{_lambda_.5} parent=1 // pred_fallthru
      _
    // Predicated region
    $region10: #{_lambda_.5} parent=1 // pred_check
      _
    $region11: #{_lambda_.5} parent=1 // pred_check_branch
      %14 = sbr.rel (0) target = $region13
    $region12: #{_lambda_.5} parent=1 // pred_region
      _
    $region13: #{_lambda_.5} parent=1 // pred_fallthru
      _
    %v15 = vld [vmem:[%s0] sm:$0x3]
    %v16 = vld [vmem:[%s1] sm:$0xff]
    %v17 = vld [vmem:[%s1 + $0x8] sm:$0xff]
    %v18 = vmul.f32 %v15, %v15
    %vm19 = vcmask 1041408
    %v20 = vsel %vm19, %v18, 0.0
    %21 = vadd.xlane.f32.xlu0 %v20
    %v22 = vpop.xlane.xlu0 %21
    %v23 = vrsqrt.pop %v22
    %v24 = vmul.f32 %v22, %v23
    %vm25 = vcmp.eq.f32.partialorder %v22, inf
    %v26 = vsel %vm25, %v22, %v24
    %vm27 = vcmp.eq.f32.partialorder %v22, 0.0
    %v28 = vand.u32 %v22, 2147483648
    %v29 = vsel %vm27, %v28, %v26
    %v30 = vmax.f32 %v29, 1e-12
    %v31 = vrcp.pop %v30
    %v32 = vmul.f32 %v15, %v31
    %v33 = vmul.f32 %v16, %v16
    %v34 = vmul.f32 %v17, %v17
    %35 = vadd.xlane.f32.xlu0 %v33
    %v36 = vpop.xlane.xlu0 %35
    %37 = vadd.xlane.f32.xlu0 %v34
    %v38 = vpop.xlane.xlu0 %37
    %v39 = vrsqrt.pop %v36
    %v40 = vmul.f32 %v36, %v39
    %vm41 = vcmp.eq.f32.partialorder %v36, inf
    %v42 = vsel %vm41, %v36, %v40
    %vm43 = vcmp.eq.f32.partialorder %v36, 0.0
    %v44 = vand.u32 %v36, 2147483648
    %v45 = vsel %vm43, %v44, %v42
    %v46 = vrsqrt.pop %v38
    %v47 = vmul.f32 %v38, %v46
    %vm48 = vcmp.eq.f32.partialorder %v38, inf
    %v49 = vsel %vm48, %v38, %v47
    %vm50 = vcmp.eq.f32.partialorder %v38, 0.0
    %v51 = vand.u32 %v38, 2147483648
    %v52 = vsel %vm50, %v51, %v49
    %v53 = vmax.f32 %v45, 1e-12
    %v54 = vmax.f32 %v52, 1e-12
    %v55 = vrcp.pop %v53
    %v56 = vmul.f32 %v16, %v55
    %v57 = vrcp.pop %v54
    %v58 = vmul.f32 %v17, %v57
    %59 = vmatprep.subr.mxu0 0.0
    %60 = vmatpush1.xpose.msra.mxu0 0.0
    %61 = vmatprep.subr.mxu0 0.0
    %62 = vmatpush1.xpose.msra.mxu0 0.0
    %63 = vmatprep.subr.mxu0 0.0
    %64 = vmatpush1.xpose.msra.mxu0 0.0
    %65 = vmatprep.subr.mxu0 0.0
    %66 = vmatpush1.xpose.msra.mxu0 0.0
    %67 = vmatprep.subr.mxu0 0.0
    %68 = vmatpush1.xpose.msra.mxu0 0.0
    %69 = vmatprep.subr.mxu0 0.0
    %70 = vmatpush1.xpose.msra.mxu0 0.0
    %71 = vmatprep.subr.mxu0 0.0
    %72 = vmatpush1.xpose.msra.mxu0 0.0
    %73 = vmatprep.subr.mxu0 0.0
    %74 = vmatpush1.xpose.msra.mxu0 0.0
    %75 = vmatprep.subr.mxu0 0.0
    %76 = vmatpush1.xpose.msra.mxu0 0.0
    %77 = vmatprep.subr.mxu0 0.0
    %78 = vmatpush1.xpose.msra.mxu0 0.0
    %79 = vmatprep.subr.mxu0 0.0
    %80 = vmatpush1.xpose.msra.mxu0 0.0
    %81 = vmatprep.subr.mxu0 0.0
    %82 = vmatpush1.xpose.msra.mxu0 0.0
    %83 = vmatprep.subr.mxu0 0.0
    %84 = vmatpush1.xpose.msra.mxu0 0.0
    %85 = vmatprep.subr.mxu0 0.0
    %86 = vmatpush1.xpose.msra.mxu0 0.0
    %87 = vmatprep.subr.mxu0 0.0
    %88 = vmatpush1.xpose.msra.mxu0 %v58
    %89 = vmatprep.subr.mxu0 0.0
    %90 = vmatpush1.xpose.msra.mxu0 %v56
    %91 = vmatprep.subr.mxu0 0.0
    %92 = vmatpush2.xpose.msra.mxu0 0.0
    %93 = vmatprep.subr.mxu0 0.0
    %94 = vmatpush2.xpose.msra.mxu0 0.0
    %95 = vmatprep.subr.mxu0 0.0
    %96 = vmatpush2.xpose.msra.mxu0 0.0
    %97 = vmatprep.subr.mxu0 0.0
    %98 = vmatpush2.xpose.msra.mxu0 0.0
    %99 = vmatprep.subr.mxu0 0.0
    %100 = vmatpush2.xpose.msra.mxu0 0.0
    %101 = vmatprep.subr.mxu0 0.0
    %102 = vmatpush2.xpose.msra.mxu0 0.0
    %103 = vmatprep.subr.mxu0 0.0
    %104 = vmatpush2.xpose.msra.mxu0 0.0
    %105 = vmatprep.subr.mxu0 0.0
    %106 = vmatpush2.xpose.msra.mxu0 0.0
    %107 = vmatprep.subr.mxu0 0.0
    %108 = vmatpush2.xpose.msra.mxu0 0.0
    %109 = vmatprep.subr.mxu0 0.0
    %110 = vmatpush2.xpose.msra.mxu0 0.0
    %111 = vmatprep.subr.mxu0 0.0
    %112 = vmatpush2.xpose.msra.mxu0 0.0
    %113 = vmatprep.subr.mxu0 0.0
    %114 = vmatpush2.xpose.msra.mxu0 0.0
    %115 = vmatprep.subr.mxu0 0.0
    %116 = vmatpush2.xpose.msra.mxu0 0.0
    %117 = vmatprep.subr.mxu0 0.0
    %118 = vmatpush2.xpose.msra.mxu0 0.0
    %119 = vmatprep.subr.mxu0 0.0
    %120 = vmatpush2.xpose.msra.mxu0 0.0
    %121 = vmatprep.subr.mxu0 0.0
    %122 = vmatpush2.xpose.msra.mxu0 0.0
    %123 = vmatprep.mubr.f32.mxu0 0.0
    %124 = vmatmul.mubr.f32.gmra.mxu0 %v32
    %v125 = vpop.f32.mrf.mxu0
    %v126 = vadd.f32 0.0, %v125
    %v127 = vpop.f32.mrf.mxu0
    %128 = vdwg.mxu0
    %v129 = vmul.f32 %v126, %v126
    %v130 = vsub.f32 1.0, %v129
    %v131 = vmax.f32 %v130, 0.0
    %v132 = vmin.f32 %v131, 1.0
    %v133 = vrsqrt.pop %v132
    %v134 = vmul.f32 %v132, %v133
    %vm135 = vcmp.eq.f32.partialorder %v132, inf
    %v136 = vsel %vm135, %v132, %v134
    %vm137 = vcmp.eq.f32.partialorder %v132, 0.0
    %v138 = vand.u32 %v132, 2147483648
    %v139 = vsel %vm137, %v138, %v136
    %v140 = vmul.f32 %v126, 0.7648422
    %v141 = vmul.f32 %v139, 0.64421767
    %v142 = vsub.f32 %v140, %v141
    %v143 = vsub.f32 %v126, -0.7648422
    %vm144 = vcmp.gt.f32.partialorder %v143, 0.0
    %v145 = vsub.f32 %v126, 0.45095238
    %v146 = vsel %vm144, %v142, %v145
    %v147 = vlaneseq
    %v148 = vand.u32 %v147, 127
    %v149 = vld [vmem:[%s2] sm:$0x3]
    %150 = vset.pattern.permute.xlu0 0
    %151 = vperm.xlu0 %150, %v149
    %v152 = vpop.permute.xlu0 %151
    %vm153 = vcmp.eq.s32.totalorder %v148, %v152
    %v154 = vsel %vm153, 1, 0
    %v155 = vcvt.s32.f32 %v154
    %v156 = vmul.f32 %v155, %v146
    %v157 = vsub.f32 1.0, %v155
    %v158 = vmul.f32 %v157, %v126
    %v159 = vadd.f32 %v156, %v158
    %v160 = vmul.f32 %v159, 30.0
    %vm161 = vcmask 123904
    %162 = vst.msk [vmem:[#allocation2] sm:$0x3] %vm161, %v160
    // Predicated region
    $region14: #{_lambda_.5} parent=1 // pred_check
      _
    $region15: #{_lambda_.5} parent=1 // pred_check_branch
      %164 = sbr.rel (0) target = $region17
    $region16: #{_lambda_.5} parent=1 // pred_region
      %s166 = ssub.s32 32, 32
      %167 = vsyncadd [#allocation3], %s166
      %s169 = sshll.u32 [#allocation2], 4
      %s170 = int_to_ptr.vmem [resolvable:$true] %s169
      %172 = dma.vmem_to_hbm [thread:$0]  %s170, 32, %s3, [#allocation3]
    $region17: #{_lambda_.5} parent=1 // pred_fallthru
      _
    // Predicated region
    $region18: #{_lambda_.5} parent=1 // pred_check
      _
    $region19: #{_lambda_.5} parent=1 // pred_check_branch
      %174 = sbr.rel (0) target = $region21
    $region20: #{_lambda_.5} parent=1 // pred_region
      %175 = dma.done [#allocation3], 32
    $region21: #{_lambda_.5} parent=1 // pred_fallthru
      _
    %176 = vsyncpa [#allocation3], 1

// kernel: _lambda_.4
$region0: #{_lambda_.4}
  #allocation0 [shape = 'u32[]', space=smem, size = 0x4, offset = 0x4, fixed_abs, tag = 'smem constant byte address 0x4 - core index']
  #allocation1 [shape = 'u32[144,128]{1,0:T(1,128)}', space=vmem, size = 0x12000, scoped, tag = 'internal scratch']
  #allocation2 [shape = 'f32[2,24,128]{2,1,0:T(8,128)}', space=vmem, size = 0x6000, scoped, tag = 'scratch operand']
  %s0 = inlined_call_operand.vmem [shape: f32[2,2,17,64], index: 0, kind: input, shape index: {}]
  %s1 = inlined_call_operand.hbm [shape: bf16[2,2,64,128], index: 1, kind: input, shape index: {}]
  %s2 = inlined_call_operand.hbm [shape: bf16[2,6,384,256], index: 2, kind: input, shape index: {}]
  %s3 = inlined_call_operand.hbm [shape: bf16[2,6,128,256], index: 3, kind: input, shape index: {}]
  %s4 = inlined_call_operand.hbm [shape: f32[2,6,1,256], index: 4, kind: input, shape index: {}]
  %s5 = inlined_call_operand.hbm [shape: f32[2,16,128], index: 5, kind: input, shape index: {}]
  %s6 = inlined_call_operand.hbm [shape: f32[2,1,128], index: 6, kind: input, shape index: {}]
  %s7 = inlined_call_operand.vmem [shape: bf16[2,128,64], index: 7, kind: input, shape index: {}]
  %s8 = inlined_call_operand.hbm [shape: f32[2,1,64], index: 8, kind: input, shape index: {}]
  %s9 = inlined_call_operand.vmem [shape: f32[2,2,64], index: 9, kind: output, shape index: {}]
  %s10 = sld [smem:[#allocation0]]
  $region97: #{_lambda_.4} parent=0
    _
  %s12 = ssub.s32 1, %s10
  %s13 = scalar_select 0, %s12, %s10
  $region1: #{_lambda_.4} parent=0
    #allocation3 [shape = 'u8[65536]{0}', space=vmem, size = 0x10000, scoped, tag = 'input window, operand 1']
    #allocation4 [shape = 's32[2]{0}', space=sflag, size = 0x8, scoped, tag = 'scoped memory for _lambda_.4']
    #allocation5 [shape = 'u8[2359296]{0}', space=vmem, size = 0x240000, scoped, tag = 'input window, operand 2']
    #allocation6 [shape = 's32[2]{0}', space=sflag, size = 0x8, scoped, tag = 'scoped memory for _lambda_.4']
    #allocation7 [shape = 'u8[786432]{0}', space=vmem, size = 0xc0000, scoped, tag = 'input window, operand 3']
    #allocation8 [shape = 'u8[12288]{0}', space=vmem, size = 0x3000, scoped, tag = 'input window, operand 4']
    #allocation9 [shape = 's32[2]{0}', space=sflag, size = 0x8, scoped, tag = 'scoped memory for _lambda_.4']
    #allocation10 [shape = 'u8[16384]{0}', space=vmem, size = 0x4000, scoped, tag = 'input window, operand 5']
    #allocation11 [shape = 'u8[1024]{0}', space=vmem, size = 0x400, scoped, tag = 'input window, operand 6']
    #allocation12 [shape = 's32[2]{0}', space=sflag, size = 0x8, scoped, tag = 'scoped memory for _lambda_.4']
    #allocation13 [shape = 'u8[1024]{0}', space=vmem, size = 0x400, scoped, tag = 'input window, operand 8']
    %14 = vsyncpa [#allocation4], 0
    %s15 = scalar_lea.sflag [#allocation4], 1
    %16 = vsyncpa %s15, 0
    %17 = vsyncpa [#allocation6], 0
    %s18 = scalar_lea.sflag [#allocation6], 1
    %19 = vsyncpa %s18, 0
    %20 = vsyncpa [#allocation9], 0
    %s21 = scalar_lea.sflag [#allocation9], 1
    %22 = vsyncpa %s21, 0
    %23 = vsyncpa [#allocation12], 0
    %s24 = scalar_lea.sflag [#allocation12], 1
    %25 = vsyncpa %s24, 0
    loop: start=0, step=1, limit=4
    $region2: #{_lambda_.4} parent=1 // loop_pre_header
      _
    $region3: #{_lambda_.4} parent=1 // loop_header
      %s27 = sphi 0, %s31
      %p28 = scmp.ge.s32.totalorder %s27, 4
      %s37 = sphi 0, %s39
      %s40 = sphi 0, %s37
      %s41 = sphi 0, %s40
      %s57 = sphi 0, %s41
      %s63 = sphi 0, %s65
      %s66 = sphi 0, %s63
      %s67 = sphi 0, %s66
      %s83 = sphi 0, %s67
      %s89 = sphi 0, %s91
      %s92 = sphi 0, %s89
      %s93 = sphi 0, %s92
      %s109 = sphi 0, %s93
      %s115 = sphi 0, %s117
      %s118 = sphi 0, %s115
      %s119 = sphi 0, %s118
      %s135 = sphi 0, %s119
      %s141 = sphi 0, %s143
      %s144 = sphi 0, %s141
      %s145 = sphi 0, %s144
      %s161 = sphi 0, %s145
      %s167 = sphi 0, %s169
      %s170 = sphi 0, %s167
      %s171 = sphi 0, %s170
      %s187 = sphi 0, %s171
      %s193 = sphi 0, %s195
      %s196 = sphi 0, %s193
      %s197 = sphi 0, %s196
      %s213 = sphi 0, %s197
      %s219 = sphi 0, %s221
      %s222 = sphi 0, %s219
      %s223 = sphi 0, %s222
      %s239 = sphi 0, %s223
      %s245 = sphi 0, %s247
      %s248 = sphi 0, %s245
      %s249 = sphi 0, %s248
      %s265 = sphi 0, %s249
      %s271 = sphi 0, %s273
      %s274 = sphi 0, %s271
      %s275 = sphi 0, %s274
      %s291 = sphi 0, %s275
    $region4: #{_lambda_.4} parent=1 // loop_header_branch
      %30 = sbr.rel (%p28) target = $region8
    $region5: #{_lambda_.4} parent=1 // loop_body
      %s32 = ssub.s32 %s27, 1
      %s33 = ssub.s32 %s27, 2
      %s34 = sadd.s32 %s27, 1
      %s35 = ssub.s32 %s27, %s34
      %p36 = scmp.eq.s32.totalorder %s35, 0
      %s38 = sadd.s32 %s37, 1
      %s39 = scalar_select %p36, %s37, %s38
      %p42 = pneg %p36
      %p43 = scmp.eq.s32.totalorder %s27, 1
      %p44 = por %p42, %p43
      %p45 = scmp.ne.s32.totalorder %s37, %s40
      %p46 = scmp.eq.s32.totalorder %s27, 0
      %p47 = por %p45, %p46
      %p48 = scmp.ne.s32.totalorder %s37, %s40
      %p49 = scmp.eq.s32.totalorder %s32, 1
      %p50 = por %p48, %p49
      %p51 = scmp.ne.s32.totalorder %s40, %s41
      %p52 = scmp.eq.s32.totalorder %s32, 0
      %p53 = por %p51, %p52
      %p54 = scmp.ne.s32.totalorder %s40, %s41
      %p55 = scmp.eq.s32.totalorder %s33, 1
      %p56 = por %p54, %p55
      %p58 = scmp.ne.s32.totalorder %s41, %s57
      %p59 = scmp.eq.s32.totalorder %s33, 0
      %p60 = por %p58, %p59
      %s61 = ssub.s32 %s27, %s34
      %p62 = scmp.eq.s32.totalorder %s61, 0
      %s64 = sadd.s32 %s63, 1
      %s65 = scalar_select %p62, %s63, %s64
      %p68 = pneg %p62
      %p69 = scmp.eq.s32.totalorder %s27, 1
      %p70 = por %p68, %p69
      %p71 = scmp.ne.s32.totalorder %s63, %s66
      %p72 = scmp.eq.s32.totalorder %s27, 0
      %p73 = por %p71, %p72
      %p74 = scmp.ne.s32.totalorder %s63, %s66
      %p75 = scmp.eq.s32.totalorder %s32, 1
      %p76 = por %p74, %p75
      %p77 = scmp.ne.s32.totalorder %s66, %s67
      %p78 = scmp.eq.s32.totalorder %s32, 0
      %p79 = por %p77, %p78
      %p80 = scmp.ne.s32.totalorder %s66, %s67
      %p81 = scmp.eq.s32.totalorder %s33, 1
      %p82 = por %p80, %p81
      %p84 = scmp.ne.s32.totalorder %s67, %s83
      %p85 = scmp.eq.s32.totalorder %s33, 0
      %p86 = por %p84, %p85
      %s87 = ssub.s32 %s27, %s34
      %p88 = scmp.eq.s32.totalorder %s87, 0
      %s90 = sadd.s32 %s89, 1
      %s91 = scalar_select %p88, %s89, %s90
      %p94 = pneg %p88
      %p95 = scmp.eq.s32.totalorder %s27, 1
      %p96 = por %p94, %p95
      %p97 = scmp.ne.s32.totalorder %s89, %s92
      %p98 = scmp.eq.s32.totalorder %s27, 0
      %p99 = por %p97, %p98
      %p100 = scmp.ne.s32.totalorder %s89, %s92
      %p101 = scmp.eq.s32.totalorder %s32, 1
      %p102 = por %p100, %p101
      %p103 = scmp.ne.s32.totalorder %s92, %s93
      %p104 = scmp.eq.s32.totalorder %s32, 0
      %p105 = por %p103, %p104
      %p106 = scmp.ne.s32.totalorder %s92, %s93
      %p107 = scmp.eq.s32.totalorder %s33, 1
      %p108 = por %p106, %p107
      %p110 = scmp.ne.s32.totalorder %s93, %s109
      %p111 = scmp.eq.s32.totalorder %s33, 0
      %p112 = por %p110, %p111
      %s113 = ssub.s32 %s27, %s34
      %p114 = scmp.eq.s32.totalorder %s113, 0
      %s116 = sadd.s32 %s115, 1
      %s117 = scalar_select %p114, %s115, %s116
      %p120 = pneg %p114
      %p121 = scmp.eq.s32.totalorder %s27, 1
      %p122 = por %p120, %p121
      %p123 = scmp.ne.s32.totalorder %s115, %s118
      %p124 = scmp.eq.s32.totalorder %s27, 0
      %p125 = por %p123, %p124
      %p126 = scmp.ne.s32.totalorder %s115, %s118
      %p127 = scmp.eq.s32.totalorder %s32, 1
      %p128 = por %p126, %p127
      %p129 = scmp.ne.s32.totalorder %s118, %s119
      %p130 = scmp.eq.s32.totalorder %s32, 0
      %p131 = por %p129, %p130
      %p132 = scmp.ne.s32.totalorder %s118, %s119
      %p133 = scmp.eq.s32.totalorder %s33, 1
      %p134 = por %p132, %p133
      %p136 = scmp.ne.s32.totalorder %s119, %s135
      %p137 = scmp.eq.s32.totalorder %s33, 0
      %p138 = por %p136, %p137
      %s139 = ssub.s32 %s27, %s34
      %p140 = scmp.eq.s32.totalorder %s139, 0
      %s142 = sadd.s32 %s141, 1
      %s143 = scalar_select %p140, %s141, %s142
      %p146 = pneg %p140
      %p147 = scmp.eq.s32.totalorder %s27, 1
      %p148 = por %p146, %p147
      %p149 = scmp.ne.s32.totalorder %s141, %s144
      %p150 = scmp.eq.s32.totalorder %s27, 0
      %p151 = por %p149, %p150
      %p152 = scmp.ne.s32.totalorder %s141, %s144
      %p153 = scmp.eq.s32.totalorder %s32, 1
      %p154 = por %p152, %p153
      %p155 = scmp.ne.s32.totalorder %s144, %s145
      %p156 = scmp.eq.s32.totalorder %s32, 0
      %p157 = por %p155, %p156
      %p158 = scmp.ne.s32.totalorder %s144, %s145
      %p159 = scmp.eq.s32.totalorder %s33, 1
      %p160 = por %p158, %p159
      %p162 = scmp.ne.s32.totalorder %s145, %s161
      %p163 = scmp.eq.s32.totalorder %s33, 0
      %p164 = por %p162, %p163
      %s165 = ssub.s32 %s27, %s34
      %p166 = scmp.eq.s32.totalorder %s165, 0
      %s168 = sadd.s32 %s167, 1
      %s169 = scalar_select %p166, %s167, %s168
      %p172 = pneg %p166
      %p173 = scmp.eq.s32.totalorder %s27, 1
      %p174 = por %p172, %p173
      %p175 = scmp.ne.s32.totalorder %s167, %s170
      %p176 = scmp.eq.s32.totalorder %s27, 0
      %p177 = por %p175, %p176
      %p178 = scmp.ne.s32.totalorder %s167, %s170
      %p179 = scmp.eq.s32.totalorder %s32, 1
      %p180 = por %p178, %p179
      %p181 = scmp.ne.s32.totalorder %s170, %s171
      %p182 = scmp.eq.s32.totalorder %s32, 0
      %p183 = por %p181, %p182
      %p184 = scmp.ne.s32.totalorder %s170, %s171
      %p185 = scmp.eq.s32.totalorder %s33, 1
      %p186 = por %p184, %p185
      %p188 = scmp.ne.s32.totalorder %s171, %s187
      %p189 = scmp.eq.s32.totalorder %s33, 0
      %p190 = por %p188, %p189
      %s191 = ssub.s32 %s27, %s34
      %p192 = scmp.eq.s32.totalorder %s191, 0
      %s194 = sadd.s32 %s193, 1
      %s195 = scalar_select %p192, %s193, %s194
      %p198 = pneg %p192
      %p199 = scmp.eq.s32.totalorder %s27, 1
      %p200 = por %p198, %p199
      %p201 = scmp.ne.s32.totalorder %s193, %s196
      %p202 = scmp.eq.s32.totalorder %s27, 0
      %p203 = por %p201, %p202
      %p204 = scmp.ne.s32.totalorder %s193, %s196
      %p205 = scmp.eq.s32.totalorder %s32, 1
      %p206 = por %p204, %p205
      %p207 = scmp.ne.s32.totalorder %s196, %s197
      %p208 = scmp.eq.s32.totalorder %s32, 0
      %p209 = por %p207, %p208
      %p210 = scmp.ne.s32.totalorder %s196, %s197
      %p211 = scmp.eq.s32.totalorder %s33, 1
      %p212 = por %p210, %p211
      %p214 = scmp.ne.s32.totalorder %s197, %s213
      %p215 = scmp.eq.s32.totalorder %s33, 0
      %p216 = por %p214, %p215
      %s217 = ssub.s32 %s27, %s34
      %p218 = scmp.eq.s32.totalorder %s217, 0
      %s220 = sadd.s32 %s219, 1
      %s221 = scalar_select %p218, %s219, %s220
      %p224 = pneg %p218
      %p225 = scmp.eq.s32.totalorder %s27, 1
      %p226 = por %p224, %p225
      %p227 = scmp.ne.s32.totalorder %s219, %s222
      %p228 = scmp.eq.s32.totalorder %s27, 0
      %p229 = por %p227, %p228
      %p230 = scmp.ne.s32.totalorder %s219, %s222
      %p231 = scmp.eq.s32.totalorder %s32, 1
      %p232 = por %p230, %p231
      %p233 = scmp.ne.s32.totalorder %s222, %s223
      %p234 = scmp.eq.s32.totalorder %s32, 0
      %p235 = por %p233, %p234
      %p236 = scmp.ne.s32.totalorder %s222, %s223
      %p237 = scmp.eq.s32.totalorder %s33, 1
      %p238 = por %p236, %p237
      %p240 = scmp.ne.s32.totalorder %s223, %s239
      %p241 = scmp.eq.s32.totalorder %s33, 0
      %p242 = por %p240, %p241
      %s243 = ssub.s32 %s27, %s34
      %p244 = scmp.eq.s32.totalorder %s243, 0
      %s246 = sadd.s32 %s245, 1
      %s247 = scalar_select %p244, %s245, %s246
      %p250 = pneg %p244
      %p251 = scmp.eq.s32.totalorder %s27, 1
      %p252 = por %p250, %p251
      %p253 = scmp.ne.s32.totalorder %s245, %s248
      %p254 = scmp.eq.s32.totalorder %s27, 0
      %p255 = por %p253, %p254
      %p256 = scmp.ne.s32.totalorder %s245, %s248
      %p257 = scmp.eq.s32.totalorder %s32, 1
      %p258 = por %p256, %p257
      %p259 = scmp.ne.s32.totalorder %s248, %s249
      %p260 = scmp.eq.s32.totalorder %s32, 0
      %p261 = por %p259, %p260
      %p262 = scmp.ne.s32.totalorder %s248, %s249
      %p263 = scmp.eq.s32.totalorder %s33, 1
      %p264 = por %p262, %p263
      %p266 = scmp.ne.s32.totalorder %s249, %s265
      %p267 = scmp.eq.s32.totalorder %s33, 0
      %p268 = por %p266, %p267
      %s269 = ssub.s32 %s27, %s34
      %p270 = scmp.eq.s32.totalorder %s269, 0
      %s272 = sadd.s32 %s271, 1
      %s273 = scalar_select %p270, %s271, %s272
      %p276 = pneg %p270
      %p277 = scmp.eq.s32.totalorder %s27, 1
      %p278 = por %p276, %p277
      %p279 = scmp.ne.s32.totalorder %s271, %s274
      %p280 = scmp.eq.s32.totalorder %s27, 0
      %p281 = por %p279, %p280
      %p282 = scmp.ne.s32.totalorder %s271, %s274
      %p283 = scmp.eq.s32.totalorder %s32, 1
      %p284 = por %p282, %p283
      %p285 = scmp.ne.s32.totalorder %s274, %s275
      %p286 = scmp.eq.s32.totalorder %s32, 0
      %p287 = por %p285, %p286
      %p288 = scmp.ne.s32.totalorder %s274, %s275
      %p289 = scmp.eq.s32.totalorder %s33, 1
      %p290 = por %p288, %p289
      %p292 = scmp.ne.s32.totalorder %s275, %s291
      %p293 = scmp.eq.s32.totalorder %s33, 0
      %p294 = por %p292, %p293
      %p295 = scmp.le.s32.totalorder 1, %s27
      %p296 = scmp.lt.s32.totalorder %s27, 3
      %p297 = pnand %p295, %p296
      %p298 = pneg %p297
      // Predicated region
      $region9: #{_lambda_.4} parent=5 // pred_check
        _
      $region10: #{_lambda_.4} parent=5 // pred_check_branch
        %300 = sbr.rel (%p297) target = $region12
      $region11: #{_lambda_.4} parent=5 // pred_region
        %s301 = ssub.s32 %s27, 1
      $region12: #{_lambda_.4} parent=5 // pred_fallthru
        _
      %p302 = scmp.lt.s32.totalorder %s27, 2
      // Predicated region
      $region13: #{_lambda_.4} parent=5 // pred_check
        %p303 = pneg %p302
      $region14: #{_lambda_.4} parent=5 // pred_check_branch
        %305 = sbr.rel (%p303) target = $region16
      $region15: #{_lambda_.4} parent=5 // pred_region
        // Predicated region
        $region17: #{_lambda_.4} parent=15 // pred_check
          %p306 = pneg %p47
        $region18: #{_lambda_.4} parent=15 // pred_check_branch
          %308 = sbr.rel (%p306) target = $region20
        $region19: #{_lambda_.4} parent=15 // pred_region
          %p309 = scmp.lt.s32.totalorder %s27, 1
          %s310 = scalar_select %p309, %s27, 1
          %s311 = smul.addr %s310, 6
          %s312 = smul.addr %s311, 8
          %s313 = scalar_lea.vmem %s0, %s312
        $region20: #{_lambda_.4} parent=15 // pred_fallthru
          _
        // Predicated region
        $region21: #{_lambda_.4} parent=15 // pred_check
          %p314 = pneg %p73
        $region22: #{_lambda_.4} parent=15 // pred_check_branch
          %316 = sbr.rel (%p314) target = $region24
        $region23: #{_lambda_.4} parent=15 // pred_region
          %s317 = sand.u32 %s63, 1
          %s318 = scalar_lea.sflag [#allocation4], %s317
          %s319 = sand.u32 %s63, 1
          %s320 = smul.addr %s319, 64
          %s321 = scalar_lea.vmem [#allocation3], %s320
          %s323 = ssub.s32 1024, 1024
          %324 = vsyncadd %s318, %s323
          %s325 = smul.addr %s27, 16
          %s326 = smul.addr %s325, 64
          %s327 = scalar_lea.hbm %s1, %s326
          %s328 = sshll.u32 %s321, 4
          %s329 = int_to_ptr.vmem [resolvable:$true] %s328
          %334 = dma.hbm_to_vmem [thread:$0]  %s327, 1024, %s329, %s318, 64, 64, 4
        $region24: #{_lambda_.4} parent=15 // pred_fallthru
          _
        // Predicated region
        $region25: #{_lambda_.4} parent=15 // pred_check
          %p335 = pneg %p99
        $region26: #{_lambda_.4} parent=15 // pred_check_branch
          %337 = sbr.rel (%p335) target = $region28
        $region27: #{_lambda_.4} parent=15 // pred_region
          %s338 = sand.u32 %s27, 1
          %s339 = scalar_lea.sflag [#allocation6], %s338
          %s340 = sand.u32 %s89, 1
          %s341 = smul.addr %s340, 2304
          %s342 = scalar_lea.vmem [#allocation5], %s341
          %s344 = ssub.s32 36864, 36864
          %345 = vsyncadd %s339, %s344
          %s346 = smul.addr %s27, 576
          %s347 = smul.addr %s346, 64
          %s348 = scalar_lea.hbm %s2, %s347
          %s349 = sshll.u32 %s342, 4
          %s350 = int_to_ptr.vmem [resolvable:$true] %s349
          %355 = dma.hbm_to_vmem [thread:$0]  %s348, 36864, %s350, %s339, 128, 128, 8
        $region28: #{_lambda_.4} parent=15 // pred_fallthru
          _
        // Predicated region
        $region29: #{_lambda_.4} parent=15 // pred_check
          %p356 = pneg %p125
        $region30: #{_lambda_.4} parent=15 // pred_check_branch
          %358 = sbr.rel (%p356) target = $region32
        $region31: #{_lambda_.4} parent=15 // pred_region
          %s359 = sand.u32 %s27, 1
          %s360 = scalar_lea.sflag [#allocation6], %s359
          %s361 = sand.u32 %s115, 1
          %s362 = smul.addr %s361, 768
          %s363 = scalar_lea.vmem [#allocation7], %s362
          %s365 = ssub.s32 12288, 12288
          %366 = vsyncadd %s360, %s365
          %s367 = smul.addr %s27, 192
          %s368 = smul.addr %s367, 64
          %s369 = scalar_lea.hbm %s3, %s368
          %s370 = sshll.u32 %s363, 4
          %s371 = int_to_ptr.vmem [resolvable:$true] %s370
          %376 = dma.hbm_to_vmem [thread:$0]  %s369, 12288, %s371, %s360, 128, 128, 8
        $region32: #{_lambda_.4} parent=15 // pred_fallthru
          _
        // Predicated region
        $region33: #{_lambda_.4} parent=15 // pred_check
          %p377 = pneg %p151
        $region34: #{_lambda_.4} parent=15 // pred_check_branch
          %379 = sbr.rel (%p377) target = $region36
        $region35: #{_lambda_.4} parent=15 // pred_region
          %s380 = sand.u32 %s27, 1
          %s381 = scalar_lea.sflag [#allocation9], %s380
          %s382 = sand.u32 %s141, 1
          %s383 = smul.addr %s382, 12
          %s384 = scalar_lea.vmem [#allocation8], %s383
          %s386 = ssub.s32 192, 192
          %387 = vsyncadd %s381, %s386
          %s388 = smul.addr %s27, 12
          %s389 = smul.addr %s388, 16
          %s390 = scalar_lea.hbm %s4, %s389
          %s391 = sshll.u32 %s384, 4
          %s392 = int_to_ptr.vmem [resolvable:$true] %s391
          %397 = dma.hbm_to_vmem [thread:$0]  %s390, 192, %s392, %s381, 32, 32, 2
        $region36: #{_lambda_.4} parent=15 // pred_fallthru
          _
        // Predicated region
        $region37: #{_lambda_.4} parent=15 // pred_check
          %p398 = pneg %p177
        $region38: #{_lambda_.4} parent=15 // pred_check_branch
          %400 = sbr.rel (%p398) target = $region40
        $region39: #{_lambda_.4} parent=15 // pred_region
          %s401 = sand.u32 %s27, 1
          %s402 = scalar_lea.sflag [#allocation9], %s401
          %s403 = sand.u32 %s167, 1
          %s404 = smul.addr %s403, 16
          %s405 = scalar_lea.vmem [#allocation10], %s404
          %s407 = ssub.s32 256, 256
          %408 = vsyncadd %s402, %s407
          %s409 = smul.addr %s27, 2
          %s410 = smul.addr %s409, 128
          %s411 = scalar_lea.hbm %s5, %s410
          %s412 = sshll.u32 %s405, 4
          %s413 = int_to_ptr.vmem [resolvable:$true] %s412
          %418 = dma.hbm_to_vmem [thread:$0]  %s411, 256, %s413, %s402, 128, 128, 8
        $region40: #{_lambda_.4} parent=15 // pred_fallthru
          _
        // Predicated region
        $region41: #{_lambda_.4} parent=15 // pred_check
          %p419 = pneg %p203
        $region42: #{_lambda_.4} parent=15 // pred_check_branch
          %421 = sbr.rel (%p419) target = $region44
        $region43: #{_lambda_.4} parent=15 // pred_region
          %s422 = sand.u32 %s27, 1
          %s423 = scalar_lea.sflag [#allocation12], %s422
          %s424 = sand.u32 %s193, 1
          %s425 = scalar_lea.vmem [#allocation11], %s424
          %s427 = ssub.s32 16, 16
          %428 = vsyncadd %s423, %s427
          %s429 = smul.addr %s27, 16
          %s430 = scalar_lea.hbm %s6, %s429
          %s432 = sshll.u32 %s425, 4
          %s433 = int_to_ptr.vmem [resolvable:$true] %s432
          %435 = dma.hbm_to_vmem [thread:$0]  %s430, 16, %s433, %s423
        $region44: #{_lambda_.4} parent=15 // pred_fallthru
          _
        // Predicated region
        $region45: #{_lambda_.4} parent=15 // pred_check
          %p436 = pneg %p229
        $region46: #{_lambda_.4} parent=15 // pred_check_branch
          %438 = sbr.rel (%p436) target = $region48
        $region47: #{_lambda_.4} parent=15 // pred_region
          %p439 = scmp.lt.s32.totalorder %s27, 1
          %s440 = scalar_select %p439, %s27, 1
          %s441 = smul.addr %s440, 16
          %s442 = smul.addr %s441, 4
          %s443 = scalar_lea.vmem %s7, %s442
        $region48: #{_lambda_.4} parent=15 // pred_fallthru
          _
        // Predicated region
        $region49: #{_lambda_.4} parent=15 // pred_check
          %p444 = pneg %p255
        $region50: #{_lambda_.4} parent=15 // pred_check_branch
          %446 = sbr.rel (%p444) target = $region52
        $region51: #{_lambda_.4} parent=15 // pred_region
          %s447 = sand.u32 %s27, 1
          %s448 = scalar_lea.sflag [#allocation12], %s447
          %s449 = sand.u32 %s245, 1
          %s450 = scalar_lea.vmem [#allocation13], %s449
          %s452 = ssub.s32 16, 16
          %453 = vsyncadd %s448, %s452
          %s454 = smul.addr %s27, 16
          %s455 = scalar_lea.hbm %s8, %s454
          %s457 = sshll.u32 %s450, 4
          %s458 = int_to_ptr.vmem [resolvable:$true] %s457
          %460 = dma.hbm_to_vmem [thread:$0]  %s455, 16, %s458, %s448
        $region52: #{_lambda_.4} parent=15 // pred_fallthru
          _
      $region16: #{_lambda_.4} parent=5 // pred_fallthru
        _
      %p461 = scmp.le.s32.totalorder 1, %s27
      %p462 = scmp.lt.s32.totalorder %s27, 3
      %p463 = pnand %p461, %p462
      %p464 = pneg %p463
      // Predicated region
      $region53: #{_lambda_.4} parent=5 // pred_check
        _
      $region54: #{_lambda_.4} parent=5 // pred_check_branch
        %466 = sbr.rel (%p463) target = $region56
      $region55: #{_lambda_.4} parent=5 // pred_region
        %s467 = ssub.s32 %s27, 1
        %s468 = sand.u32 %s66, 1
        %s469 = scalar_lea.sflag [#allocation4], %s468
        %s470 = sand.u32 %s66, 1
        %s471 = smul.addr %s470, 64
        %s472 = scalar_lea.vmem [#allocation3], %s471
        // Predicated region
        $region57: #{_lambda_.4} parent=55 // pred_check
          %p473 = pneg %p79
        $region58: #{_lambda_.4} parent=55 // pred_check_branch
          %475 = sbr.rel (%p473) target = $region60
        $region59: #{_lambda_.4} parent=55 // pred_region
          %476 = dma.done %s469, 1024
        $region60: #{_lambda_.4} parent=55 // pred_fallthru
          _
        %s477 = sand.u32 %s32, 1
        %s478 = scalar_lea.sflag [#allocation6], %s477
        %s479 = sand.u32 %s92, 1
        %s480 = smul.addr %s479, 2304
        %s481 = scalar_lea.vmem [#allocation5], %s480
        // Predicated region
        $region61: #{_lambda_.4} parent=55 // pred_check
          %p482 = pneg %p105
        $region62: #{_lambda_.4} parent=55 // pred_check_branch
          %484 = sbr.rel (%p482) target = $region64
        $region63: #{_lambda_.4} parent=55 // pred_region
          %485 = dma.done %s478, 36864
        $region64: #{_lambda_.4} parent=55 // pred_fallthru
          _
        %s486 = sand.u32 %s32, 1
        %s487 = scalar_lea.sflag [#allocation6], %s486
        %s488 = sand.u32 %s118, 1
        %s489 = smul.addr %s488, 768
        %s490 = scalar_lea.vmem [#allocation7], %s489
        // Predicated region
        $region65: #{_lambda_.4} parent=55 // pred_check
          %p491 = pneg %p131
        $region66: #{_lambda_.4} parent=55 // pred_check_branch
          %493 = sbr.rel (%p491) target = $region68
        $region67: #{_lambda_.4} parent=55 // pred_region
          %494 = dma.done %s487, 12288
        $region68: #{_lambda_.4} parent=55 // pred_fallthru
          _
        %s495 = sand.u32 %s32, 1
        %s496 = scalar_lea.sflag [#allocation9], %s495
        %s497 = sand.u32 %s144, 1
        %s498 = smul.addr %s497, 12
        %s499 = scalar_lea.vmem [#allocation8], %s498
        // Predicated region
        $region69: #{_lambda_.4} parent=55 // pred_check
          %p500 = pneg %p157
        $region70: #{_lambda_.4} parent=55 // pred_check_branch
          %502 = sbr.rel (%p500) target = $region72
        $region71: #{_lambda_.4} parent=55 // pred_region
          %503 = dma.done %s496, 192
        $region72: #{_lambda_.4} parent=55 // pred_fallthru
          _
        %s504 = sand.u32 %s32, 1
        %s505 = scalar_lea.sflag [#allocation9], %s504
        %s506 = sand.u32 %s170, 1
        %s507 = smul.addr %s506, 16
        %s508 = scalar_lea.vmem [#allocation10], %s507
        // Predicated region
        $region73: #{_lambda_.4} parent=55 // pred_check
          %p509 = pneg %p183
        $region74: #{_lambda_.4} parent=55 // pred_check_branch
          %511 = sbr.rel (%p509) target = $region76
        $region75: #{_lambda_.4} parent=55 // pred_region
          %512 = dma.done %s505, 256
        $region76: #{_lambda_.4} parent=55 // pred_fallthru
          _
        %s513 = sand.u32 %s32, 1
        %s514 = scalar_lea.sflag [#allocation12], %s513
        %s515 = sand.u32 %s196, 1
        %s516 = scalar_lea.vmem [#allocation11], %s515
        // Predicated region
        $region77: #{_lambda_.4} parent=55 // pred_check
          %p517 = pneg %p209
        $region78: #{_lambda_.4} parent=55 // pred_check_branch
          %519 = sbr.rel (%p517) target = $region80
        $region79: #{_lambda_.4} parent=55 // pred_region
          %520 = dma.done %s514, 16
        $region80: #{_lambda_.4} parent=55 // pred_fallthru
          _
        %s521 = sand.u32 %s32, 1
        %s522 = scalar_lea.sflag [#allocation12], %s521
        %s523 = sand.u32 %s248, 1
        %s524 = scalar_lea.vmem [#allocation13], %s523
        // Predicated region
        $region81: #{_lambda_.4} parent=55 // pred_check
          %p525 = pneg %p261
        $region82: #{_lambda_.4} parent=55 // pred_check_branch
          %527 = sbr.rel (%p525) target = $region84
        $region83: #{_lambda_.4} parent=55 // pred_region
          %528 = dma.done %s522, 16
        $region84: #{_lambda_.4} parent=55 // pred_fallthru
          _
        %p529 = scmp.lt.s32.totalorder %s32, 1
        %s530 = scalar_select %p529, %s32, 1
        %s531 = smul.addr %s530, 6
        %s532 = smul.addr %s531, 8
        %s533 = scalar_lea.vmem %s0, %s532
        %p534 = pneg %p53
        %p535 = pneg %p50
        %s536 = sand.u32 %s66, 1
        %s537 = scalar_lea.sflag [#allocation4], %s536
        %s538 = sand.u32 %s66, 1
        %s539 = smul.addr %s538, 64
        %s540 = scalar_lea.vmem [#allocation3], %s539
        %p541 = pneg %p79
        %p542 = pneg %p76
        %s543 = sand.u32 %s32, 1
        %s544 = scalar_lea.sflag [#allocation6], %s543
        %s545 = sand.u32 %s92, 1
        %s546 = smul.addr %s545, 2304
        %s547 = scalar_lea.vmem [#allocation5], %s546
        %p548 = pneg %p105
        %p549 = pneg %p102
        %s550 = sand.u32 %s32, 1
        %s551 = scalar_lea.sflag [#allocation6], %s550
        %s552 = sand.u32 %s118, 1
        %s553 = smul.addr %s552, 768
        %s554 = scalar_lea.vmem [#allocation7], %s553
        %p555 = pneg %p131
        %p556 = pneg %p128
        %s557 = sand.u32 %s32, 1
        %s558 = scalar_lea.sflag [#allocation9], %s557
        %s559 = sand.u32 %s144, 1
        %s560 = smul.addr %s559, 12
        %s561 = scalar_lea.vmem [#allocation8], %s560
        %p562 = pneg %p157
        %p563 = pneg %p154
        %s564 = sand.u32 %s32, 1
        %s565 = scalar_lea.sflag [#allocation9], %s564
        %s566 = sand.u32 %s170, 1
        %s567 = smul.addr %s566, 16
        %s568 = scalar_lea.vmem [#allocation10], %s567
        %p569 = pneg %p183
        %p570 = pneg %p180
        %s571 = sand.u32 %s32, 1
        %s572 = scalar_lea.sflag [#allocation12], %s571
        %s573 = sand.u32 %s196, 1
        %s574 = scalar_lea.vmem [#allocation11], %s573
        %p575 = pneg %p209
        %p576 = pneg %p206
        %p577 = scmp.lt.s32.totalorder %s32, 1
        %s578 = scalar_select %p577, %s32, 1
        %s579 = smul.addr %s578, 16
        %s580 = smul.addr %s579, 4
        %s581 = scalar_lea.vmem %s7, %s580
        %p582 = pneg %p235
        %p583 = pneg %p232
        %s584 = sand.u32 %s32, 1
        %s585 = scalar_lea.sflag [#allocation12], %s584
        %s586 = sand.u32 %s248, 1
        %s587 = scalar_lea.vmem [#allocation13], %s586
        %p588 = pneg %p261
        %p589 = pneg %p258
        %p590 = pneg %p287
        %p591 = pneg %p284
        %p592 = scmp.lt.s32.totalorder %s32, 1
        %s593 = scalar_select %p592, %s32, 1
        %s594 = smul.addr %s593, 2
        %s595 = scalar_lea.vmem %s9, %s594
        %p596 = scmp.lt.s32.totalorder %s32, 1
        %s597 = scalar_select %p596, %s32, 1
        %s598 = smul.addr %s597, 6
        %s599 = smul.addr %s598, 8
        %s600 = scalar_lea.vmem %s0, %s599
        %p601 = scmp.lt.s32.totalorder %s32, 1
        %s602 = scalar_select %p601, %s32, 1
        %s603 = smul.addr %s602, 16
        %s604 = smul.addr %s603, 4
        %s605 = scalar_lea.vmem %s7, %s604
        %p606 = scmp.lt.s32.totalorder %s32, 1
        %s607 = scalar_select %p606, %s32, 1
        %s608 = smul.addr %s607, 2
        %s609 = scalar_lea.vmem %s9, %s608
        %v611 = vld [vmem:[%s600] sm:$0xff]
        %v612 = vld [vmem:[%s600 + $0x8] sm:$0xff]
        %v613 = vld [vmem:[%s600 + $0x10] sm:$0x1]
        %v614 = vld [vmem:[%s600 + $0x18] sm:$0xff]
        %v615 = vld [vmem:[%s600 + $0x20] sm:$0xff]
        %v616 = vld [vmem:[%s600 + $0x28] sm:$0x1]
        %v617 = vpack.c.bf16 %v612, %v611
        %v618 = vpack.c.bf16 %v613, %v613
        %v619 = vpack.c.bf16 %v615, %v614
        %v620 = vpack.c.bf16 %v616, %v616
        %vm621 = vsmask.f32 7424
        %v623 = vshrl.u32 %v617, 16
        %v625 = vshll.u32 %v617, 16
        %v627 = vrot.slane %v625, 1
        %v628 = vor.u32 %v623, %v627
        %v630 = vshll.u32 %v618, 16
        %v632 = vrot.slane %v630, 1
        %v633 = vsel %vm621, %v628, %v632
        %v635 = vshrl.u32 %v619, 16
        %v637 = vshll.u32 %v619, 16
        %v639 = vrot.slane %v637, 1
        %v640 = vor.u32 %v635, %v639
        %v642 = vshll.u32 %v620, 16
        %v644 = vrot.slane %v642, 1
        %v645 = vsel %vm621, %v640, %v644
        %v646 = vld [vmem:[%s472] sm:$0xf]
        %v647 = vld [vmem:[%s472 + $0x4] sm:$0xf]
        %v648 = vld [vmem:[%s472 + $0x8] sm:$0xf]
        %v649 = vld [vmem:[%s472 + $0xc] sm:$0xf]
        %v650 = vld [vmem:[%s472 + $0x10] sm:$0xf]
        %v651 = vld [vmem:[%s472 + $0x14] sm:$0xf]
        %v652 = vld [vmem:[%s472 + $0x18] sm:$0xf]
        %v653 = vld [vmem:[%s472 + $0x1c] sm:$0xf]
        %s654 = scalar_lea.vmem %s472, 32 [#allocation3]
        %v655 = vld [vmem:[%s654] sm:$0xf]
        %v656 = vld [vmem:[%s654 + $0x4] sm:$0xf]
        %v657 = vld [vmem:[%s654 + $0x8] sm:$0xf]
        %v658 = vld [vmem:[%s654 + $0xc] sm:$0xf]
        %v659 = vld [vmem:[%s654 + $0x10] sm:$0xf]
        %v660 = vld [vmem:[%s654 + $0x14] sm:$0xf]
        %v661 = vld [vmem:[%s654 + $0x18] sm:$0xf]
        %v662 = vld [vmem:[%s654 + $0x1c] sm:$0xf]
        %v671 = vunpack.c.l.b16 %v655
        %v672 = vunpack.c.l.b16 %v656
        %v673 = vunpack.c.l.b16 %v657
        %v674 = vunpack.c.l.b16 %v658
        %v675 = vunpack.c.l.b16 %v659
        %v676 = vunpack.c.l.b16 %v660
        %v677 = vunpack.c.l.b16 %v661
        %v678 = vunpack.c.l.b16 %v662
        %v679 = vpack.c.b16 %v672, %v671
        %v680 = vpack.c.b16 %v674, %v673
        %v681 = vpack.c.b16 %v676, %v675
        %v682 = vpack.c.b16 %v678, %v677
        %vm687 = vcmask 523264
        %v689 = vsel %vm687, %v633, 0
        %v692 = vsel %vm687, %v645, 0
        %694 = vmatprep.subr.bf16.mxu0 0
        %695 = vmatpush1.bf16.msra.mxu0 0
        %696 = vmatprep.subr.bf16.mxu0 0
        %697 = vmatpush1.bf16.msra.mxu0 0
        %698 = vmatprep.subr.bf16.mxu0 0
        %699 = vmatpush1.bf16.msra.mxu0 0
        %700 = vmatprep.subr.bf16.mxu0 0
        %701 = vmatpush1.bf16.msra.mxu0 0
        %702 = vmatprep.subr.bf16.mxu0 0
        %703 = vmatpush1.bf16.msra.mxu0 %v682
        %704 = vmatprep.subr.bf16.mxu0 0
        %705 = vmatpush1.bf16.msra.mxu0 %v681
        %706 = vmatprep.subr.bf16.mxu0 0
        %707 = vmatpush1.bf16.msra.mxu0 %v680
        %708 = vmatprep.subr.bf16.mxu0 0
        %709 = vmatpush1.bf16.msra.mxu0 %v679
        %710 = vmatprep.subr.bf16.mxu0 0
        %711 = vmatpush2.bf16.msra.mxu0 0
        %712 = vmatprep.subr.bf16.mxu0 0
        %713 = vmatpush2.bf16.msra.mxu0 0
        %714 = vmatprep.subr.bf16.mxu0 0
        %715 = vmatpush2.bf16.msra.mxu0 0
        %716 = vmatprep.subr.bf16.mxu0 0
        %717 = vmatpush2.bf16.msra.mxu0 0
        %718 = vmatprep.subr.bf16.mxu0 0
        %719 = vmatpush2.bf16.msra.mxu0 0
        %720 = vmatprep.subr.bf16.mxu0 0
        %721 = vmatpush2.bf16.msra.mxu0 0
        %722 = vmatprep.subr.bf16.mxu0 0
        %723 = vmatpush2.bf16.msra.mxu0 0
        %724 = vmatprep.subr.bf16.mxu0 0
        %725 = vmatpush2.bf16.msra.mxu0 0
        %726 = vmatprep.mubr.bf16.mxu0 0
        %727 = vmatmul.mubr.bf16.gmra.mxu0 %v689
        %v728 = vpop.f32.mrf.mxu0
        %v729 = vadd.f32 0.0, %v728
        %v730 = vpop.f32.mrf.mxu0
        %v731 = vpop.f32.mrf.mxu0
        %v732 = vadd.f32 0.0, %v731
        %v733 = vpop.f32.mrf.mxu0
        %734 = vmatprep.mubr.bf16.mxu0 0
        %735 = vmatmul.mubr.bf16.gmra.mxu0 %v692
        %v736 = vpop.f32.mrf.mxu0
        %v737 = vadd.f32 0.0, %v736
        %v738 = vpop.f32.mrf.mxu0
        %v739 = vpop.f32.mrf.mxu0
        %v740 = vadd.f32 0.0, %v739
        %v741 = vpop.f32.mrf.mxu0
        %742 = vdwg.mxu0
        %v751 = vunpack.c.l.b16 %v646
        %v752 = vunpack.c.l.b16 %v647
        %v753 = vunpack.c.l.b16 %v648
        %v754 = vunpack.c.l.b16 %v649
        %v755 = vunpack.c.l.b16 %v650
        %v756 = vunpack.c.l.b16 %v651
        %v757 = vunpack.c.l.b16 %v652
        %v758 = vunpack.c.l.b16 %v653
        %v759 = vpack.c.b16 %v752, %v751
        %v760 = vpack.c.b16 %v754, %v753
        %v761 = vpack.c.b16 %v756, %v755
        %v762 = vpack.c.b16 %v758, %v757
        %v767 = vsel %vm687, %v617, 0
        %v769 = vsel %vm687, %v619, 0
        %771 = vmatprep.subr.bf16.mxu0 0
        %772 = vmatpush1.bf16.msra.mxu0 0
        %773 = vmatprep.subr.bf16.mxu0 0
        %774 = vmatpush1.bf16.msra.mxu0 0
        %775 = vmatprep.subr.bf16.mxu0 0
        %776 = vmatpush1.bf16.msra.mxu0 0
        %777 = vmatprep.subr.bf16.mxu0 0
        %778 = vmatpush1.bf16.msra.mxu0 0
        %779 = vmatprep.subr.bf16.mxu0 0
        %780 = vmatpush1.bf16.msra.mxu0 %v762
        %781 = vmatprep.subr.bf16.mxu0 0
        %782 = vmatpush1.bf16.msra.mxu0 %v761
        %783 = vmatprep.subr.bf16.mxu0 0
        %784 = vmatpush1.bf16.msra.mxu0 %v760
        %785 = vmatprep.subr.bf16.mxu0 0
        %786 = vmatpush1.bf16.msra.mxu0 %v759
        %787 = vmatprep.subr.bf16.mxu0 0
        %788 = vmatpush2.bf16.msra.mxu0 0
        %789 = vmatprep.subr.bf16.mxu0 0
        %790 = vmatpush2.bf16.msra.mxu0 0
        %791 = vmatprep.subr.bf16.mxu0 0
        %792 = vmatpush2.bf16.msra.mxu0 0
        %793 = vmatprep.subr.bf16.mxu0 0
        %794 = vmatpush2.bf16.msra.mxu0 0
        %795 = vmatprep.subr.bf16.mxu0 0
        %796 = vmatpush2.bf16.msra.mxu0 0
        %797 = vmatprep.subr.bf16.mxu0 0
        %798 = vmatpush2.bf16.msra.mxu0 0
        %799 = vmatprep.subr.bf16.mxu0 0
        %800 = vmatpush2.bf16.msra.mxu0 0
        %801 = vmatprep.subr.bf16.mxu0 0
        %802 = vmatpush2.bf16.msra.mxu0 0
        %803 = vmatprep.mubr.bf16.mxu0 0
        %804 = vmatmul.mubr.bf16.gmra.mxu0 %v767
        %v805 = vpop.f32.mrf.mxu0
        %v806 = vadd.f32 %v729, %v805
        %v807 = vpop.f32.mrf.mxu0
        %v808 = vpop.f32.mrf.mxu0
        %v809 = vadd.f32 %v732, %v808
        %v810 = vpop.f32.mrf.mxu0
        %811 = vmatprep.mubr.bf16.mxu0 0
        %812 = vmatmul.mubr.bf16.gmra.mxu0 %v769
        %v813 = vpop.f32.mrf.mxu0
        %v814 = vadd.f32 %v737, %v813
        %v815 = vpop.f32.mrf.mxu0
        %v816 = vpop.f32.mrf.mxu0
        %v817 = vadd.f32 %v740, %v816
        %v818 = vpop.f32.mrf.mxu0
        %819 = vdwg.mxu0
        %820 = vst [vmem:[#allocation2] sm:$0xff] 0.0
        %821 = vst [vmem:[#allocation2 + $0x18] sm:$0xff] 0.0
        %822 = vst [vmem:[#allocation2 + $0x8] sm:$0xff] %v806
        %823 = vst [vmem:[#allocation2 + $0x10] sm:$0xff] %v809
        %824 = vst [vmem:[#allocation2 + $0x20] sm:$0xff] %v814
        %825 = vst [vmem:[#allocation2 + $0x28] sm:$0xff] %v817
        %v826 = vld [vmem:[#allocation2] sm:$0xff]
        %v827 = vld [vmem:[#allocation2 + $0x8] sm:$0xff]
        %v828 = vld [vmem:[#allocation2 + $0x10] sm:$0xff]
        %v829 = vld [vmem:[#allocation2 + $0x18] sm:$0xff]
        %v830 = vld [vmem:[#allocation2 + $0x20] sm:$0xff]
        %v831 = vld [vmem:[#allocation2 + $0x28] sm:$0xff]
        %v832 = vpack.c.bf16 %v827, %v826
        %v833 = vpack.c.bf16 %v828, %v828
        %v834 = vpack.c.bf16 %v830, %v829
        %v835 = vpack.c.bf16 %v831, %v831
        %v836 = vld [vmem:[%s481] sm:$0xff]
        %v837 = vld [vmem:[%s481 + $0x8] sm:$0xff]
        %v838 = vld [vmem:[%s481 + $0x10] sm:$0xff]
        %v839 = vld [vmem:[%s481 + $0x18] sm:$0xff]
        %v840 = vld [vmem:[%s481 + $0x20] sm:$0xff]
        %v841 = vld [vmem:[%s481 + $0x28] sm:$0xff]
        %v842 = vld [vmem:[%s481 + $0x30] sm:$0xff]
        %v843 = vld [vmem:[%s481 + $0x38] sm:$0xff]
        %v844 = vld [vmem:[%s481 + $0x40] sm:$0xff]
        %v845 = vld [vmem:[%s481 + $0x48] sm:$0xff]
        %v846 = vld [vmem:[%s481 + $0x50] sm:$0xff]
        %v847 = vld [vmem:[%s481 + $0x58] sm:$0xff]
        %v848 = vld [vmem:[%s481 + $0x60] sm:$0xff]
        %v849 = vld [vmem:[%s481 + $0x68] sm:$0xff]
        %v850 = vld [vmem:[%s481 + $0x70] sm:$0xff]
        %v851 = vld [vmem:[%s481 + $0x78] sm:$0xff]
        %v852 = vld [vmem:[%s481 + $0x80] sm:$0xff]
        %v853 = vld [vmem:[%s481 + $0x88] sm:$0xff]
        %v854 = vld [vmem:[%s481 + $0x90] sm:$0xff]
        %v855 = vld [vmem:[%s481 + $0x98] sm:$0xff]
        %v856 = vld [vmem:[%s481 + $0xa0] sm:$0xff]
        %v857 = vld [vmem:[%s481 + $0xa8] sm:$0xff]
        %v858 = vld [vmem:[%s481 + $0xb0] sm:$0xff]
        %v859 = vld [vmem:[%s481 + $0xb8] sm:$0xff]
        %v860 = vld [vmem:[%s481 + $0xc0] sm:$0xff]
        %v861 = vld [vmem:[%s481 + $0xc8] sm:$0xff]
        %v862 = vld [vmem:[%s481 + $0xd0] sm:$0xff]
        %v863 = vld [vmem:[%s481 + $0xd8] sm:$0xff]
        %v864 = vld [vmem:[%s481 + $0xe0] sm:$0xff]
        %v865 = vld [vmem:[%s481 + $0xe8] sm:$0xff]
        %v866 = vld [vmem:[%s481 + $0xf0] sm:$0xff]
        %v867 = vld [vmem:[%s481 + $0xf8] sm:$0xff]
        %v868 = vld [vmem:[%s481 + $0x100] sm:$0xff]
        %v869 = vld [vmem:[%s481 + $0x108] sm:$0xff]
        %v870 = vld [vmem:[%s481 + $0x110] sm:$0xff]
        %v871 = vld [vmem:[%s481 + $0x118] sm:$0xff]
        %v872 = vld [vmem:[%s481 + $0x120] sm:$0xff]
        %v873 = vld [vmem:[%s481 + $0x128] sm:$0xff]
        %v874 = vld [vmem:[%s481 + $0x130] sm:$0xff]
        %v875 = vld [vmem:[%s481 + $0x138] sm:$0xff]
        %v876 = vld [vmem:[%s481 + $0x140] sm:$0xff]
        %v877 = vld [vmem:[%s481 + $0x148] sm:$0xff]
        %v878 = vld [vmem:[%s481 + $0x150] sm:$0xff]
        %v879 = vld [vmem:[%s481 + $0x158] sm:$0xff]
        %v880 = vld [vmem:[%s481 + $0x160] sm:$0xff]
        %v881 = vld [vmem:[%s481 + $0x168] sm:$0xff]
        %v882 = vld [vmem:[%s481 + $0x170] sm:$0xff]
        %v883 = vld [vmem:[%s481 + $0x178] sm:$0xff]
        %vm888 = vcmask 1044480
        %v889 = vrot.slane %v832, 3
        %v890 = vrot.slane %v833, 3
        %v891 = vsel %vm888, %v889, %v890
        %v892 = vrot.slane %v834, 3
        %v893 = vrot.slane %v835, 3
        %v894 = vsel %vm888, %v892, %v893
        %vm897 = vsmask.f32 4352
        %v899 = vshrl.u32 %v832, 16
        %v901 = vrot.slane %v899, 3
        %v902 = vshll.u32 %v832, 16
        %v904 = vrot.slane %v902, 4
        %v905 = vor.u32 %v901, %v904
        %v907 = vshrl.u32 %v833, 16
        %v909 = vrot.slane %v907, 3
        %v910 = vshll.u32 %v833, 16
        %v912 = vrot.slane %v910, 4
        %v913 = vor.u32 %v909, %v912
        %v914 = vsel %vm897, %v905, %v913
        %v916 = vshrl.u32 %v834, 16
        %v918 = vrot.slane %v916, 3
        %v919 = vshll.u32 %v834, 16
        %v921 = vrot.slane %v919, 4
        %v922 = vor.u32 %v918, %v921
        %v924 = vshrl.u32 %v835, 16
        %v926 = vrot.slane %v924, 3
        %v927 = vshll.u32 %v835, 16
        %v929 = vrot.slane %v927, 4
        %v930 = vor.u32 %v926, %v929
        %v931 = vsel %vm897, %v922, %v930
        %v950 = vunpack.c.l.b16 %v852
        %v951 = vunpack.c.h.b16 %v852
        %v952 = vunpack.c.l.b16 %v853
        %v953 = vunpack.c.h.b16 %v853
        %v954 = vunpack.c.l.b16 %v854
        %v955 = vunpack.c.h.b16 %v854
        %v956 = vunpack.c.l.b16 %v855
        %v957 = vunpack.c.h.b16 %v855
        %v958 = vunpack.c.l.b16 %v856
        %v959 = vunpack.c.h.b16 %v856
        %v960 = vunpack.c.l.b16 %v857
        %v961 = vunpack.c.h.b16 %v857
        %v962 = vunpack.c.l.b16 %v858
        %v963 = vunpack.c.h.b16 %v858
        %v964 = vunpack.c.l.b16 %v859
        %v965 = vunpack.c.h.b16 %v859
        %v966 = vunpack.c.l.b16 %v860
        %v967 = vunpack.c.h.b16 %v860
        %v968 = vunpack.c.l.b16 %v861
        %v969 = vunpack.c.h.b16 %v861
        %v970 = vunpack.c.l.b16 %v862
        %v971 = vunpack.c.h.b16 %v862
        %v972 = vunpack.c.l.b16 %v863
        %v973 = vunpack.c.h.b16 %v863
        %v974 = vunpack.c.l.b16 %v864
        %v975 = vunpack.c.h.b16 %v864
        %v976 = vunpack.c.l.b16 %v865
        %v977 = vunpack.c.h.b16 %v865
        %v978 = vunpack.c.l.b16 %v866
        %v979 = vunpack.c.h.b16 %v866
        %v980 = vunpack.c.l.b16 %v867
        %v981 = vunpack.c.h.b16 %v867
        %v982 = vpack.c.b16 %v952, %v950
        %v983 = vpack.c.b16 %v953, %v951
        %v984 = vpack.c.b16 %v956, %v954
        %v985 = vpack.c.b16 %v957, %v955
        %v986 = vpack.c.b16 %v960, %v958
        %v987 = vpack.c.b16 %v961, %v959
        %v988 = vpack.c.b16 %v964, %v962
        %v989 = vpack.c.b16 %v965, %v963
        %v990 = vpack.c.b16 %v968, %v966
        %v991 = vpack.c.b16 %v969, %v967
        %v992 = vpack.c.b16 %v972, %v970
        %v993 = vpack.c.b16 %v973, %v971
        %v994 = vpack.c.b16 %v976, %v974
        %v995 = vpack.c.b16 %v977, %v975
        %v996 = vpack.c.b16 %v980, %v978
        %v997 = vpack.c.b16 %v981, %v979
        %1014 = vmatprep.subr.bf16.mxu0 %v997
        %1015 = vmatpush1.bf16.msra.mxu0 %v996
        %1016 = vmatprep.subr.bf16.mxu0 %v995
        %1017 = vmatpush1.bf16.msra.mxu0 %v994
        %1018 = vmatprep.subr.bf16.mxu0 %v993
        %1019 = vmatpush1.bf16.msra.mxu0 %v992
        %1020 = vmatprep.subr.bf16.mxu0 %v991
        %1021 = vmatpush1.bf16.msra.mxu0 %v990
        %1022 = vmatprep.subr.bf16.mxu0 %v989
        %1023 = vmatpush1.bf16.msra.mxu0 %v988
        %1024 = vmatprep.subr.bf16.mxu0 %v987
        %1025 = vmatpush1.bf16.msra.mxu0 %v986
        %1026 = vmatprep.subr.bf16.mxu0 %v985
        %1027 = vmatpush1.bf16.msra.mxu0 %v984
        %1028 = vmatprep.subr.bf16.mxu0 %v983
        %1029 = vmatpush1.bf16.msra.mxu0 %v982
        %1030 = vmatprep.subr.bf16.mxu0 0
        %1031 = vmatpush2.bf16.msra.mxu0 0
        %1032 = vmatprep.subr.bf16.mxu0 0
        %1033 = vmatpush2.bf16.msra.mxu0 0
        %1034 = vmatprep.subr.bf16.mxu0 0
        %1035 = vmatpush2.bf16.msra.mxu0 0
        %1036 = vmatprep.subr.bf16.mxu0 0
        %1037 = vmatpush2.bf16.msra.mxu0 0
        %1038 = vmatprep.subr.bf16.mxu0 0
        %1039 = vmatpush2.bf16.msra.mxu0 0
        %1040 = vmatprep.subr.bf16.mxu0 0
        %1041 = vmatpush2.bf16.msra.mxu0 0
        %1042 = vmatprep.subr.bf16.mxu0 0
        %1043 = vmatpush2.bf16.msra.mxu0 0
        %1044 = vmatprep.subr.bf16.mxu0 0
        %1045 = vmatpush2.bf16.msra.mxu0 0
        %1046 = vmatprep.mubr.bf16.mxu0 0
        %1047 = vmatmul.mubr.bf16.gmra.mxu0 %v914
        %v1048 = vpop.f32.mrf.mxu0
        %v1049 = vadd.f32 0.0, %v1048
        %v1050 = vpop.f32.mrf.mxu0
        %v1051 = vadd.f32 0.0, %v1050
        %v1052 = vpop.f32.mrf.mxu0
        %v1053 = vadd.f32 0.0, %v1052
        %v1054 = vpop.f32.mrf.mxu0
        %v1055 = vadd.f32 0.0, %v1054
        %1056 = vmatprep.mubr.bf16.mxu0 0
        %1057 = vmatmul.mubr.bf16.gmra.mxu0 %v931
        %v1058 = vpop.f32.mrf.mxu0
        %v1059 = vadd.f32 0.0, %v1058
        %v1060 = vpop.f32.mrf.mxu0
        %v1061 = vadd.f32 0.0, %v1060
        %v1062 = vpop.f32.mrf.mxu0
        %v1063 = vadd.f32 0.0, %v1062
        %v1064 = vpop.f32.mrf.mxu0
        %v1065 = vadd.f32 0.0, %v1064
        %1066 = vdwg.mxu0
        %v1083 = vunpack.c.l.b16 %v836
        %v1084 = vunpack.c.h.b16 %v836
        %v1085 = vunpack.c.l.b16 %v837
        %v1086 = vunpack.c.h.b16 %v837
        %v1087 = vunpack.c.l.b16 %v838
        %v1088 = vunpack.c.h.b16 %v838
        %v1089 = vunpack.c.l.b16 %v839
        %v1090 = vunpack.c.h.b16 %v839
        %v1091 = vunpack.c.l.b16 %v840
        %v1092 = vunpack.c.h.b16 %v840
        %v1093 = vunpack.c.l.b16 %v841
        %v1094 = vunpack.c.h.b16 %v841
        %v1095 = vunpack.c.l.b16 %v842
        %v1096 = vunpack.c.h.b16 %v842
        %v1097 = vunpack.c.l.b16 %v843
        %v1098 = vunpack.c.h.b16 %v843
        %v1099 = vunpack.c.l.b16 %v844
        %v1100 = vunpack.c.h.b16 %v844
        %v1101 = vunpack.c.l.b16 %v845
        %v1102 = vunpack.c.h.b16 %v845
        %v1103 = vunpack.c.l.b16 %v846
        %v1104 = vunpack.c.h.b16 %v846
        %v1105 = vunpack.c.l.b16 %v847
        %v1106 = vunpack.c.h.b16 %v847
        %v1107 = vunpack.c.l.b16 %v848
        %v1108 = vunpack.c.h.b16 %v848
        %v1109 = vunpack.c.l.b16 %v849
        %v1110 = vunpack.c.h.b16 %v849
        %v1111 = vunpack.c.l.b16 %v850
        %v1112 = vunpack.c.h.b16 %v850
        %v1113 = vunpack.c.l.b16 %v851
        %v1114 = vunpack.c.h.b16 %v851
        %v1115 = vpack.c.b16 %v1085, %v1083
        %v1116 = vpack.c.b16 %v1086, %v1084
        %v1117 = vpack.c.b16 %v1089, %v1087
        %v1118 = vpack.c.b16 %v1090, %v1088
        %v1119 = vpack.c.b16 %v1093, %v1091
        %v1120 = vpack.c.b16 %v1094, %v1092
        %v1121 = vpack.c.b16 %v1097, %v1095
        %v1122 = vpack.c.b16 %v1098, %v1096
        %v1123 = vpack.c.b16 %v1101, %v1099
        %v1124 = vpack.c.b16 %v1102, %v1100
        %v1125 = vpack.c.b16 %v1105, %v1103
        %v1126 = vpack.c.b16 %v1106, %v1104
        %v1127 = vpack.c.b16 %v1109, %v1107
        %v1128 = vpack.c.b16 %v1110, %v1108
        %v1129 = vpack.c.b16 %v1113, %v1111
        %v1130 = vpack.c.b16 %v1114, %v1112
        %1147 = vmatprep.subr.bf16.mxu0 %v1130
        %1148 = vmatpush1.bf16.msra.mxu0 %v1129
        %1149 = vmatprep.subr.bf16.mxu0 %v1128
        %1150 = vmatpush1.bf16.msra.mxu0 %v1127
        %1151 = vmatprep.subr.bf16.mxu0 %v1126
        %1152 = vmatpush1.bf16.msra.mxu0 %v1125
        %1153 = vmatprep.subr.bf16.mxu0 %v1124
        %1154 = vmatpush1.bf16.msra.mxu0 %v1123
        %1155 = vmatprep.subr.bf16.mxu0 %v1122
        %1156 = vmatpush1.bf16.msra.mxu0 %v1121
        %1157 = vmatprep.subr.bf16.mxu0 %v1120
        %1158 = vmatpush1.bf16.msra.mxu0 %v1119
        %1159 = vmatprep.subr.bf16.mxu0 %v1118
        %1160 = vmatpush1.bf16.msra.mxu0 %v1117
        %1161 = vmatprep.subr.bf16.mxu0 %v1116
        %1162 = vmatpush1.bf16.msra.mxu0 %v1115
        %1163 = vmatprep.subr.bf16.mxu0 0
        %1164 = vmatpush2.bf16.msra.mxu0 0
        %1165 = vmatprep.subr.bf16.mxu0 0
        %1166 = vmatpush2.bf16.msra.mxu0 0
        %1167 = vmatprep.subr.bf16.mxu0 0
        %1168 = vmatpush2.bf16.msra.mxu0 0
        %1169 = vmatprep.subr.bf16.mxu0 0
        %1170 = vmatpush2.bf16.msra.mxu0 0
        %1171 = vmatprep.subr.bf16.mxu0 0
        %1172 = vmatpush2.bf16.msra.mxu0 0
        %1173 = vmatprep.subr.bf16.mxu0 0
        %1174 = vmatpush2.bf16.msra.mxu0 0
        %1175 = vmatprep.subr.bf16.mxu0 0
        %1176 = vmatpush2.bf16.msra.mxu0 0
        %1177 = vmatprep.subr.bf16.mxu0 0
        %1178 = vmatpush2.bf16.msra.mxu0 0
        %1179 = vmatprep.mubr.bf16.mxu0 0
        %1180 = vmatmul.mubr.bf16.gmra.mxu0 %v891
        %v1181 = vpop.f32.mrf.mxu0
        %v1182 = vadd.f32 %v1049, %v1181
        %v1183 = vpop.f32.mrf.mxu0
        %v1184 = vadd.f32 %v1051, %v1183
        %v1185 = vpop.f32.mrf.mxu0
        %v1186 = vadd.f32 %v1053, %v1185
        %v1187 = vpop.f32.mrf.mxu0
        %v1188 = vadd.f32 %v1055, %v1187
        %1189 = vmatprep.mubr.bf16.mxu0 0
        %1190 = vmatmul.mubr.bf16.gmra.mxu0 %v894
        %v1191 = vpop.f32.mrf.mxu0
        %v1192 = vadd.f32 %v1059, %v1191
        %v1193 = vpop.f32.mrf.mxu0
        %v1194 = vadd.f32 %v1061, %v1193
        %v1195 = vpop.f32.mrf.mxu0
        %v1196 = vadd.f32 %v1063, %v1195
        %v1197 = vpop.f32.mrf.mxu0
        %v1198 = vadd.f32 %v1065, %v1197
        %1199 = vdwg.mxu0
        %vm1200 = vcmask 1043456
        %v1201 = vrot.slane %v832, 4
        %v1202 = vrot.slane %v833, 4
        %v1203 = vsel %vm1200, %v1201, %v1202
        %v1204 = vrot.slane %v834, 4
        %v1205 = vrot.slane %v835, 4
        %v1206 = vsel %vm1200, %v1204, %v1205
        %v1225 = vunpack.c.l.b16 %v868
        %v1226 = vunpack.c.h.b16 %v868
        %v1227 = vunpack.c.l.b16 %v869
        %v1228 = vunpack.c.h.b16 %v869
        %v1229 = vunpack.c.l.b16 %v870
        %v1230 = vunpack.c.h.b16 %v870
        %v1231 = vunpack.c.l.b16 %v871
        %v1232 = vunpack.c.h.b16 %v871
        %v1233 = vunpack.c.l.b16 %v872
        %v1234 = vunpack.c.h.b16 %v872
        %v1235 = vunpack.c.l.b16 %v873
        %v1236 = vunpack.c.h.b16 %v873
        %v1237 = vunpack.c.l.b16 %v874
        %v1238 = vunpack.c.h.b16 %v874
        %v1239 = vunpack.c.l.b16 %v875
        %v1240 = vunpack.c.h.b16 %v875
        %v1241 = vunpack.c.l.b16 %v876
        %v1242 = vunpack.c.h.b16 %v876
        %v1243 = vunpack.c.l.b16 %v877
        %v1244 = vunpack.c.h.b16 %v877
        %v1245 = vunpack.c.l.b16 %v878
        %v1246 = vunpack.c.h.b16 %v878
        %v1247 = vunpack.c.l.b16 %v879
        %v1248 = vunpack.c.h.b16 %v879
        %v1249 = vunpack.c.l.b16 %v880
        %v1250 = vunpack.c.h.b16 %v880
        %v1251 = vunpack.c.l.b16 %v881
        %v1252 = vunpack.c.h.b16 %v881
        %v1253 = vunpack.c.l.b16 %v882
        %v1254 = vunpack.c.h.b16 %v882
        %v1255 = vunpack.c.l.b16 %v883
        %v1256 = vunpack.c.h.b16 %v883
        %v1257 = vpack.c.b16 %v1227, %v1225
        %v1258 = vpack.c.b16 %v1228, %v1226
        %v1259 = vpack.c.b16 %v1231, %v1229
        %v1260 = vpack.c.b16 %v1232, %v1230
        %v1261 = vpack.c.b16 %v1235, %v1233
        %v1262 = vpack.c.b16 %v1236, %v1234
        %v1263 = vpack.c.b16 %v1239, %v1237
        %v1264 = vpack.c.b16 %v1240, %v1238
        %v1265 = vpack.c.b16 %v1243, %v1241
        %v1266 = vpack.c.b16 %v1244, %v1242
        %v1267 = vpack.c.b16 %v1247, %v1245
        %v1268 = vpack.c.b16 %v1248, %v1246
        %v1269 = vpack.c.b16 %v1251, %v1249
        %v1270 = vpack.c.b16 %v1252, %v1250
        %v1271 = vpack.c.b16 %v1255, %v1253
        %v1272 = vpack.c.b16 %v1256, %v1254
        %1289 = vmatprep.subr.bf16.mxu0 %v1272
        %1290 = vmatpush1.bf16.msra.mxu0 %v1271
        %1291 = vmatprep.subr.bf16.mxu0 %v1270
        %1292 = vmatpush1.bf16.msra.mxu0 %v1269
        %1293 = vmatprep.subr.bf16.mxu0 %v1268
        %1294 = vmatpush1.bf16.msra.mxu0 %v1267
        %1295 = vmatprep.subr.bf16.mxu0 %v1266
        %1296 = vmatpush1.bf16.msra.mxu0 %v1265
        %1297 = vmatprep.subr.bf16.mxu0 %v1264
        %1298 = vmatpush1.bf16.msra.mxu0 %v1263
        %1299 = vmatprep.subr.bf16.mxu0 %v1262
        %1300 = vmatpush1.bf16.msra.mxu0 %v1261
        %1301 = vmatprep.subr.bf16.mxu0 %v1260
        %1302 = vmatpush1.bf16.msra.mxu0 %v1259
        %1303 = vmatprep.subr.bf16.mxu0 %v1258
        %1304 = vmatpush1.bf16.msra.mxu0 %v1257
        %1305 = vmatprep.subr.bf16.mxu0 0
        %1306 = vmatpush2.bf16.msra.mxu0 0
        %1307 = vmatprep.subr.bf16.mxu0 0
        %1308 = vmatpush2.bf16.msra.mxu0 0
        %1309 = vmatprep.subr.bf16.mxu0 0
        %1310 = vmatpush2.bf16.msra.mxu0 0
        %1311 = vmatprep.subr.bf16.mxu0 0
        %1312 = vmatpush2.bf16.msra.mxu0 0
        %1313 = vmatprep.subr.bf16.mxu0 0
        %1314 = vmatpush2.bf16.msra.mxu0 0
        %1315 = vmatprep.subr.bf16.mxu0 0
        %1316 = vmatpush2.bf16.msra.mxu0 0
        %1317 = vmatprep.subr.bf16.mxu0 0
        %1318 = vmatpush2.bf16.msra.mxu0 0
        %1319 = vmatprep.subr.bf16.mxu0 0
        %1320 = vmatpush2.bf16.msra.mxu0 0
        %1321 = vmatprep.mubr.bf16.mxu0 0
        %1322 = vmatmul.mubr.bf16.gmra.mxu0 %v1203
        %v1323 = vpop.f32.mrf.mxu0
        %v1324 = vadd.f32 0.0, %v1323
        %v1325 = vpop.f32.mrf.mxu0
        %v1326 = vadd.f32 0.0, %v1325
        %v1327 = vpop.f32.mrf.mxu0
        %v1328 = vadd.f32 0.0, %v1327
        %v1329 = vpop.f32.mrf.mxu0
        %v1330 = vadd.f32 0.0, %v1329
        %1331 = vmatprep.mubr.bf16.mxu0 0
        %1332 = vmatmul.mubr.bf16.gmra.mxu0 %v1206
        %v1333 = vpop.f32.mrf.mxu0
        %v1334 = vadd.f32 0.0, %v1333
        %v1335 = vpop.f32.mrf.mxu0
        %v1336 = vadd.f32 0.0, %v1335
        %v1337 = vpop.f32.mrf.mxu0
        %v1338 = vadd.f32 0.0, %v1337
        %v1339 = vpop.f32.mrf.mxu0
        %v1340 = vadd.f32 0.0, %v1339
        %1341 = vdwg.mxu0
        %v1342 = vadd.f32 %v1182, %v1324
        %v1343 = vadd.f32 %v1184, %v1326
        %v1344 = vadd.f32 %v1186, %v1328
        %v1345 = vadd.f32 %v1188, %v1330
        %v1346 = vadd.f32 %v1192, %v1334
        %v1347 = vadd.f32 %v1194, %v1336
        %v1348 = vadd.f32 %v1196, %v1338
        %v1349 = vadd.f32 %v1198, %v1340
        %v1350 = vadd.f32 %v1342, %v1344
        %v1351 = vadd.f32 %v1350, %v1346
        %v1352 = vadd.f32 %v1351, %v1348
        %v1353 = vrot.slane %v1352, 4
        %v1354 = vadd.f32 %v1352, %v1353
        %v1355 = vrot.slane %v1354, 2
        %v1356 = vadd.f32 %v1354, %v1355
        %v1357 = vrot.slane %v1356, 1
        %v1358 = vadd.f32 %v1356, %v1357
        %v1359 = vadd.f32 %v1343, %v1345
        %v1360 = vadd.f32 %v1359, %v1347
        %v1361 = vadd.f32 %v1360, %v1349
        %v1362 = vrot.slane %v1361, 4
        %v1363 = vadd.f32 %v1361, %v1362
        %v1364 = vrot.slane %v1363, 2
        %v1365 = vadd.f32 %v1363, %v1364
        %v1366 = vrot.slane %v1365, 1
        %v1367 = vadd.f32 %v1365, %v1366
        %v1368 = vmul.f32 %v1358, 0.03125
        %v1369 = vmul.f32 %v1367, 0.03125
        %v1370 = vmul.f32 %v1342, %v1342
        %v1371 = vmul.f32 %v1343, %v1343
        %v1372 = vmul.f32 %v1344, %v1344
        %v1373 = vmul.f32 %v1345, %v1345
        %v1374 = vmul.f32 %v1346, %v1346
        %v1375 = vmul.f32 %v1347, %v1347
        %v1376 = vmul.f32 %v1348, %v1348
        %v1377 = vmul.f32 %v1349, %v1349
        %v1378 = vadd.f32 %v1370, %v1372
        %v1379 = vadd.f32 %v1378, %v1374
        %v1380 = vadd.f32 %v1379, %v1376
        %v1381 = vrot.slane %v1380, 4
        %v1382 = vadd.f32 %v1380, %v1381
        %v1383 = vrot.slane %v1382, 2
        %v1384 = vadd.f32 %v1382, %v1383
        %v1385 = vrot.slane %v1384, 1
        %v1386 = vadd.f32 %v1384, %v1385
        %v1387 = vadd.f32 %v1371, %v1373
        %v1388 = vadd.f32 %v1387, %v1375
        %v1389 = vadd.f32 %v1388, %v1377
        %v1390 = vrot.slane %v1389, 4
        %v1391 = vadd.f32 %v1389, %v1390
        %v1392 = vrot.slane %v1391, 2
        %v1393 = vadd.f32 %v1391, %v1392
        %v1394 = vrot.slane %v1393, 1
        %v1395 = vadd.f32 %v1393, %v1394
        %v1396 = vmul.f32 %v1386, 0.03125
        %v1397 = vmul.f32 %v1395, 0.03125
        %v1398 = vmul.f32 %v1368, %v1368
        %v1399 = vmul.f32 %v1369, %v1369
        %v1400 = vsub.f32 %v1396, %v1398
        %v1401 = vsub.f32 %v1397, %v1399
        %v1402 = vmax.f32 %v1400, 0.0
        %v1403 = vmax.f32 %v1401, 0.0
        %v1404 = vsub.f32 %v1342, %v1368
        %v1405 = vsub.f32 %v1343, %v1369
        %v1406 = vsub.f32 %v1344, %v1368
        %v1407 = vsub.f32 %v1345, %v1369
        %v1408 = vsub.f32 %v1346, %v1368
        %v1409 = vsub.f32 %v1347, %v1369
        %v1410 = vsub.f32 %v1348, %v1368
        %v1411 = vsub.f32 %v1349, %v1369
        %v1412 = vadd.f32 %v1402, 1e-05
        %v1413 = vadd.f32 %v1403, 1e-05
        %v1414 = vrsqrt.pop %v1412
        %v1415 = vrsqrt.pop %v1413
        %v1416 = vmul.f32 %v1404, %v1414
        %v1417 = vmul.f32 %v1405, %v1415
        %v1418 = vmul.f32 %v1406, %v1414
        %v1419 = vmul.f32 %v1407, %v1415
        %v1420 = vmul.f32 %v1408, %v1414
        %v1421 = vmul.f32 %v1409, %v1415
        %v1422 = vmul.f32 %v1410, %v1414
        %v1423 = vmul.f32 %v1411, %v1415
        %v1424 = vtanh.pop %v1416
        %v1425 = vtanh.pop %v1418
        %v1426 = vtanh.pop %v1420
        %v1427 = vtanh.pop %v1422
        %v1428 = vxor.u32 %v1417, 2147483648
        %v1429 = vxor.u32 %v1419, 2147483648
        %v1430 = vxor.u32 %v1421, 2147483648
        %v1431 = vxor.u32 %v1423, 2147483648
        %v1432 = vmul.f32 %v1428, 1.442695
        %v1433 = vpow.pop %v1432
        %v1434 = vmul.f32 %v1429, 1.442695
        %v1435 = vpow.pop %v1434
        %v1436 = vmul.f32 %v1430, 1.442695
        %v1437 = vpow.pop %v1436
        %v1438 = vmul.f32 %v1431, 1.442695
        %v1439 = vpow.pop %v1438
        %v1440 = vadd.f32 %v1433, 1.0
        %v1441 = vadd.f32 %v1435, 1.0
        %v1442 = vadd.f32 %v1437, 1.0
        %v1443 = vadd.f32 %v1439, 1.0
        %v1444 = vrcp.pop %v1440
        %v1445 = vmul.f32 1.0, %v1444
        %v1446 = vrcp.pop %v1441
        %v1447 = vmul.f32 1.0, %v1446
        %v1448 = vrcp.pop %v1442
        %v1449 = vmul.f32 1.0, %v1448
        %v1450 = vrcp.pop %v1443
        %v1451 = vmul.f32 1.0, %v1450
        %v1452 = vmul.f32 %v1424, %v1445
        %v1453 = vmul.f32 %v1425, %v1447
        %v1454 = vmul.f32 %v1426, %v1449
        %v1455 = vmul.f32 %v1427, %v1451
        %v1456 = vpack.c.bf16 %v1453, %v1452
        %v1457 = vpack.c.bf16 %v1455, %v1454
        %v1458 = vld [vmem:[%s490] sm:$0xff]
        %v1459 = vld [vmem:[%s490 + $0x8] sm:$0xff]
        %v1460 = vld [vmem:[%s490 + $0x10] sm:$0xff]
        %v1461 = vld [vmem:[%s490 + $0x18] sm:$0xff]
        %v1462 = vld [vmem:[%s490 + $0x20] sm:$0xff]
        %v1463 = vld [vmem:[%s490 + $0x28] sm:$0xff]
        %v1464 = vld [vmem:[%s490 + $0x30] sm:$0xff]
        %v1465 = vld [vmem:[%s490 + $0x38] sm:$0xff]
        %v1466 = vld [vmem:[%s490 + $0x40] sm:$0xff]
        %v1467 = vld [vmem:[%s490 + $0x48] sm:$0xff]
        %v1468 = vld [vmem:[%s490 + $0x50] sm:$0xff]
        %v1469 = vld [vmem:[%s490 + $0x58] sm:$0xff]
        %v1470 = vld [vmem:[%s490 + $0x60] sm:$0xff]
        %v1471 = vld [vmem:[%s490 + $0x68] sm:$0xff]
        %v1472 = vld [vmem:[%s490 + $0x70] sm:$0xff]
        %v1473 = vld [vmem:[%s490 + $0x78] sm:$0xff]
        %v1474 = vld [vmem:[%s499] sm:$0x3]
        %v1476 = vlaneseq
        %v1477 = vshrl.u32 %v1476, 7
        %v1478 = vsub.s32 0, %v1477
        %v1479 = vrot.slane %v1474, %v1478
        %v1480 = vlaneseq
        %v1481 = vshrl.u32 %v1480, 7
        %v1482 = vsub.s32 1, %v1481
        %v1483 = vrot.slane %v1474, %v1482
        %v1502 = vunpack.c.l.b16 %v1458
        %v1503 = vunpack.c.h.b16 %v1458
        %v1504 = vunpack.c.l.b16 %v1459
        %v1505 = vunpack.c.h.b16 %v1459
        %v1506 = vunpack.c.l.b16 %v1460
        %v1507 = vunpack.c.h.b16 %v1460
        %v1508 = vunpack.c.l.b16 %v1461
        %v1509 = vunpack.c.h.b16 %v1461
        %v1510 = vunpack.c.l.b16 %v1462
        %v1511 = vunpack.c.h.b16 %v1462
        %v1512 = vunpack.c.l.b16 %v1463
        %v1513 = vunpack.c.h.b16 %v1463
        %v1514 = vunpack.c.l.b16 %v1464
        %v1515 = vunpack.c.h.b16 %v1464
        %v1516 = vunpack.c.l.b16 %v1465
        %v1517 = vunpack.c.h.b16 %v1465
        %v1518 = vunpack.c.l.b16 %v1466
        %v1519 = vunpack.c.h.b16 %v1466
        %v1520 = vunpack.c.l.b16 %v1467
        %v1521 = vunpack.c.h.b16 %v1467
        %v1522 = vunpack.c.l.b16 %v1468
        %v1523 = vunpack.c.h.b16 %v1468
        %v1524 = vunpack.c.l.b16 %v1469
        %v1525 = vunpack.c.h.b16 %v1469
        %v1526 = vunpack.c.l.b16 %v1470
        %v1527 = vunpack.c.h.b16 %v1470
        %v1528 = vunpack.c.l.b16 %v1471
        %v1529 = vunpack.c.h.b16 %v1471
        %v1530 = vunpack.c.l.b16 %v1472
        %v1531 = vunpack.c.h.b16 %v1472
        %v1532 = vunpack.c.l.b16 %v1473
        %v1533 = vunpack.c.h.b16 %v1473
        %v1534 = vpack.c.b16 %v1504, %v1502
        %v1535 = vpack.c.b16 %v1505, %v1503
        %v1536 = vpack.c.b16 %v1508, %v1506
        %v1537 = vpack.c.b16 %v1509, %v1507
        %v1538 = vpack.c.b16 %v1512, %v1510
        %v1539 = vpack.c.b16 %v1513, %v1511
        %v1540 = vpack.c.b16 %v1516, %v1514
        %v1541 = vpack.c.b16 %v1517, %v1515
        %v1542 = vpack.c.b16 %v1520, %v1518
        %v1543 = vpack.c.b16 %v1521, %v1519
        %v1544 = vpack.c.b16 %v1524, %v1522
        %v1545 = vpack.c.b16 %v1525, %v1523
        %v1546 = vpack.c.b16 %v1528, %v1526
        %v1547 = vpack.c.b16 %v1529, %v1527
        %v1548 = vpack.c.b16 %v1532, %v1530
        %v1549 = vpack.c.b16 %v1533, %v1531
        %1566 = vmatprep.subr.bf16.mxu0 %v1549
        %1567 = vmatpush1.bf16.msra.mxu0 %v1548
        %1568 = vmatprep.subr.bf16.mxu0 %v1547
        %1569 = vmatpush1.bf16.msra.mxu0 %v1546
        %1570 = vmatprep.subr.bf16.mxu0 %v1545
        %1571 = vmatpush1.bf16.msra.mxu0 %v1544
        %1572 = vmatprep.subr.bf16.mxu0 %v1543
        %1573 = vmatpush1.bf16.msra.mxu0 %v1542
        %1574 = vmatprep.subr.bf16.mxu0 %v1541
        %1575 = vmatpush1.bf16.msra.mxu0 %v1540
        %1576 = vmatprep.subr.bf16.mxu0 %v1539
        %1577 = vmatpush1.bf16.msra.mxu0 %v1538
        %1578 = vmatprep.subr.bf16.mxu0 %v1537
        %1579 = vmatpush1.bf16.msra.mxu0 %v1536
        %1580 = vmatprep.subr.bf16.mxu0 %v1535
        %1581 = vmatpush1.bf16.msra.mxu0 %v1534
        %1582 = vmatprep.subr.bf16.mxu0 0
        %1583 = vmatpush2.bf16.msra.mxu0 0
        %1584 = vmatprep.subr.bf16.mxu0 0
        %1585 = vmatpush2.bf16.msra.mxu0 0
        %1586 = vmatprep.subr.bf16.mxu0 0
        %1587 = vmatpush2.bf16.msra.mxu0 0
        %1588 = vmatprep.subr.bf16.mxu0 0
        %1589 = vmatpush2.bf16.msra.mxu0 0
        %1590 = vmatprep.subr.bf16.mxu0 0
        %1591 = vmatpush2.bf16.msra.mxu0 0
        %1592 = vmatprep.subr.bf16.mxu0 0
        %1593 = vmatpush2.bf16.msra.mxu0 0
        %1594 = vmatprep.subr.bf16.mxu0 0
        %1595 = vmatpush2.bf16.msra.mxu0 0
        %1596 = vmatprep.subr.bf16.mxu0 0
        %1597 = vmatpush2.bf16.msra.mxu0 0
        %1598 = vmatprep.mubr.bf16.mxu0 0
        %1599 = vmatmul.mubr.bf16.gmra.mxu0 %v1456
        %v1600 = vpop.f32.mrf.mxu0
        %v1601 = vadd.f32 %v1479, %v1600
        %v1602 = vpop.f32.mrf.mxu0
        %v1603 = vadd.f32 %v1483, %v1602
        %v1604 = vpop.f32.mrf.mxu0
        %v1605 = vadd.f32 %v1479, %v1604
        %v1606 = vpop.f32.mrf.mxu0
        %v1607 = vadd.f32 %v1483, %v1606
        %1608 = vmatprep.mubr.bf16.mxu0 0
        %1609 = vmatmul.mubr.bf16.gmra.mxu0 %v1457
        %v1610 = vpop.f32.mrf.mxu0
        %v1611 = vadd.f32 %v1479, %v1610
        %v1612 = vpop.f32.mrf.mxu0
        %v1613 = vadd.f32 %v1483, %v1612
        %v1614 = vpop.f32.mrf.mxu0
        %v1615 = vadd.f32 %v1479, %v1614
        %v1616 = vpop.f32.mrf.mxu0
        %v1617 = vadd.f32 %v1483, %v1616
        %1618 = vdwg.mxu0
        %v1619 = vadd.f32 %v1603, 0.0
        %v1620 = vadd.f32 %v1607, 0.0
        %v1621 = vadd.f32 %v1613, 0.0
        %v1622 = vadd.f32 %v1617, 0.0
        %v1623 = vadd.f32 %v1601, %v827
        %v1624 = vadd.f32 %v1605, %v828
        %v1625 = vadd.f32 %v1611, %v830
        %v1626 = vadd.f32 %v1615, %v831
        %1627 = vst [vmem:[#allocation2 + $0x8] sm:$0xff] %v1623
        %1628 = vst [vmem:[#allocation2 + $0x10] sm:$0xff] %v1624
        %1629 = vst [vmem:[#allocation2 + $0x20] sm:$0xff] %v1625
        %1630 = vst [vmem:[#allocation2 + $0x28] sm:$0xff] %v1626
        %v1631 = vld [vmem:[#allocation2] sm:$0xff]
        %v1632 = vld [vmem:[#allocation2 + $0x8] sm:$0xff]
        %v1633 = vld [vmem:[#allocation2 + $0x10] sm:$0xff]
        %v1634 = vld [vmem:[#allocation2 + $0x18] sm:$0xff]
        %v1635 = vld [vmem:[#allocation2 + $0x20] sm:$0xff]
        %v1636 = vld [vmem:[#allocation2 + $0x28] sm:$0xff]
        %v1637 = vpack.c.bf16 %v1632, %v1631
        %v1638 = vpack.c.bf16 %v1633, %v1633
        %v1639 = vpack.c.bf16 %v1635, %v1634
        %v1640 = vpack.c.bf16 %v1636, %v1636
        %s1641 = scalar_lea.vmem %s481, 384 [#allocation5]
        %v1642 = vld [vmem:[%s1641] sm:$0xff]
        %v1643 = vld [vmem:[%s1641 + $0x8] sm:$0xff]
        %v1644 = vld [vmem:[%s1641 + $0x10] sm:$0xff]
        %v1645 = vld [vmem:[%s1641 + $0x18] sm:$0xff]
        %v1646 = vld [vmem:[%s1641 + $0x20] sm:$0xff]
        %v1647 = vld [vmem:[%s1641 + $0x28] sm:$0xff]
        %v1648 = vld [vmem:[%s1641 + $0x30] sm:$0xff]
        %v1649 = vld [vmem:[%s1641 + $0x38] sm:$0xff]
        %v1650 = vld [vmem:[%s1641 + $0x40] sm:$0xff]
        %v1651 = vld [vmem:[%s1641 + $0x48] sm:$0xff]
        %v1652 = vld [vmem:[%s1641 + $0x50] sm:$0xff]
        %v1653 = vld [vmem:[%s1641 + $0x58] sm:$0xff]
        %v1654 = vld [vmem:[%s1641 + $0x60] sm:$0xff]
        %v1655 = vld [vmem:[%s1641 + $0x68] sm:$0xff]
        %v1656 = vld [vmem:[%s1641 + $0x70] sm:$0xff]
        %v1657 = vld [vmem:[%s1641 + $0x78] sm:$0xff]
        %v1658 = vld [vmem:[%s1641 + $0x80] sm:$0xff]
        %v1659 = vld [vmem:[%s1641 + $0x88] sm:$0xff]
        %v1660 = vld [vmem:[%s1641 + $0x90] sm:$0xff]
        %v1661 = vld [vmem:[%s1641 + $0x98] sm:$0xff]
        %v1662 = vld [vmem:[%s1641 + $0xa0] sm:$0xff]
        %v1663 = vld [vmem:[%s1641 + $0xa8] sm:$0xff]
        %v1664 = vld [vmem:[%s1641 + $0xb0] sm:$0xff]
        %v1665 = vld [vmem:[%s1641 + $0xb8] sm:$0xff]
        %v1666 = vld [vmem:[%s1641 + $0xc0] sm:$0xff]
        %v1667 = vld [vmem:[%s1641 + $0xc8] sm:$0xff]
        %v1668 = vld [vmem:[%s1641 + $0xd0] sm:$0xff]
        %v1669 = vld [vmem:[%s1641 + $0xd8] sm:$0xff]
        %v1670 = vld [vmem:[%s1641 + $0xe0] sm:$0xff]
        %v1671 = vld [vmem:[%s1641 + $0xe8] sm:$0xff]
        %v1672 = vld [vmem:[%s1641 + $0xf0] sm:$0xff]
        %v1673 = vld [vmem:[%s1641 + $0xf8] sm:$0xff]
        %v1674 = vld [vmem:[%s1641 + $0x100] sm:$0xff]
        %v1675 = vld [vmem:[%s1641 + $0x108] sm:$0xff]
        %v1676 = vld [vmem:[%s1641 + $0x110] sm:$0xff]
        %v1677 = vld [vmem:[%s1641 + $0x118] sm:$0xff]
        %v1678 = vld [vmem:[%s1641 + $0x120] sm:$0xff]
        %v1679 = vld [vmem:[%s1641 + $0x128] sm:$0xff]
        %v1680 = vld [vmem:[%s1641 + $0x130] sm:$0xff]
        %v1681 = vld [vmem:[%s1641 + $0x138] sm:$0xff]
        %v1682 = vld [vmem:[%s1641 + $0x140] sm:$0xff]
        %v1683 = vld [vmem:[%s1641 + $0x148] sm:$0xff]
        %v1684 = vld [vmem:[%s1641 + $0x150] sm:$0xff]
        %v1685 = vld [vmem:[%s1641 + $0x158] sm:$0xff]
        %v1686 = vld [vmem:[%s1641 + $0x160] sm:$0xff]
        %v1687 = vld [vmem:[%s1641 + $0x168] sm:$0xff]
        %v1688 = vld [vmem:[%s1641 + $0x170] sm:$0xff]
        %v1689 = vld [vmem:[%s1641 + $0x178] sm:$0xff]
        %vm1694 = vcmask 1045504
        %v1695 = vrot.slane %v1637, 2
        %v1696 = vrot.slane %v1638, 2
        %v1697 = vsel %vm1694, %v1695, %v1696
        %v1698 = vrot.slane %v1639, 2
        %v1699 = vrot.slane %v1640, 2
        %v1700 = vsel %vm1694, %v1698, %v1699
        %v1703 = vrot.slane %v1637, 3
        %v1704 = vrot.slane %v1638, 3
        %v1705 = vsel %vm888, %v1703, %v1704
        %v1706 = vrot.slane %v1639, 3
        %v1707 = vrot.slane %v1640, 3
        %v1708 = vsel %vm888, %v1706, %v1707
        %v1727 = vunpack.c.l.b16 %v1658
        %v1728 = vunpack.c.h.b16 %v1658
        %v1729 = vunpack.c.l.b16 %v1659
        %v1730 = vunpack.c.h.b16 %v1659
        %v1731 = vunpack.c.l.b16 %v1660
        %v1732 = vunpack.c.h.b16 %v1660
        %v1733 = vunpack.c.l.b16 %v1661
        %v1734 = vunpack.c.h.b16 %v1661
        %v1735 = vunpack.c.l.b16 %v1662
        %v1736 = vunpack.c.h.b16 %v1662
        %v1737 = vunpack.c.l.b16 %v1663
        %v1738 = vunpack.c.h.b16 %v1663
        %v1739 = vunpack.c.l.b16 %v1664
        %v1740 = vunpack.c.h.b16 %v1664
        %v1741 = vunpack.c.l.b16 %v1665
        %v1742 = vunpack.c.h.b16 %v1665
        %v1743 = vunpack.c.l.b16 %v1666
        %v1744 = vunpack.c.h.b16 %v1666
        %v1745 = vunpack.c.l.b16 %v1667
        %v1746 = vunpack.c.h.b16 %v1667
        %v1747 = vunpack.c.l.b16 %v1668
        %v1748 = vunpack.c.h.b16 %v1668
        %v1749 = vunpack.c.l.b16 %v1669
        %v1750 = vunpack.c.h.b16 %v1669
        %v1751 = vunpack.c.l.b16 %v1670
        %v1752 = vunpack.c.h.b16 %v1670
        %v1753 = vunpack.c.l.b16 %v1671
        %v1754 = vunpack.c.h.b16 %v1671
        %v1755 = vunpack.c.l.b16 %v1672
        %v1756 = vunpack.c.h.b16 %v1672
        %v1757 = vunpack.c.l.b16 %v1673
        %v1758 = vunpack.c.h.b16 %v1673
        %v1759 = vpack.c.b16 %v1729, %v1727
        %v1760 = vpack.c.b16 %v1730, %v1728
        %v1761 = vpack.c.b16 %v1733, %v1731
        %v1762 = vpack.c.b16 %v1734, %v1732
        %v1763 = vpack.c.b16 %v1737, %v1735
        %v1764 = vpack.c.b16 %v1738, %v1736
        %v1765 = vpack.c.b16 %v1741, %v1739
        %v1766 = vpack.c.b16 %v1742, %v1740
        %v1767 = vpack.c.b16 %v1745, %v1743
        %v1768 = vpack.c.b16 %v1746, %v1744
        %v1769 = vpack.c.b16 %v1749, %v1747
        %v1770 = vpack.c.b16 %v1750, %v1748
        %v1771 = vpack.c.b16 %v1753, %v1751
        %v1772 = vpack.c.b16 %v1754, %v1752
        %v1773 = vpack.c.b16 %v1757, %v1755
        %v1774 = vpack.c.b16 %v1758, %v1756
        %1791 = vmatprep.subr.bf16.mxu0 %v1774
        %1792 = vmatpush1.bf16.msra.mxu0 %v1773
        %1793 = vmatprep.subr.bf16.mxu0 %v1772
        %1794 = vmatpush1.bf16.msra.mxu0 %v1771
        %1795 = vmatprep.subr.bf16.mxu0 %v1770
        %1796 = vmatpush1.bf16.msra.mxu0 %v1769
        %1797 = vmatprep.subr.bf16.mxu0 %v1768
        %1798 = vmatpush1.bf16.msra.mxu0 %v1767
        %1799 = vmatprep.subr.bf16.mxu0 %v1766
        %1800 = vmatpush1.bf16.msra.mxu0 %v1765
        %1801 = vmatprep.subr.bf16.mxu0 %v1764
        %1802 = vmatpush1.bf16.msra.mxu0 %v1763
        %1803 = vmatprep.subr.bf16.mxu0 %v1762
        %1804 = vmatpush1.bf16.msra.mxu0 %v1761
        %1805 = vmatprep.subr.bf16.mxu0 %v1760
        %1806 = vmatpush1.bf16.msra.mxu0 %v1759
        %1807 = vmatprep.subr.bf16.mxu0 0
        %1808 = vmatpush2.bf16.msra.mxu0 0
        %1809 = vmatprep.subr.bf16.mxu0 0
        %1810 = vmatpush2.bf16.msra.mxu0 0
        %1811 = vmatprep.subr.bf16.mxu0 0
        %1812 = vmatpush2.bf16.msra.mxu0 0
        %1813 = vmatprep.subr.bf16.mxu0 0
        %1814 = vmatpush2.bf16.msra.mxu0 0
        %1815 = vmatprep.subr.bf16.mxu0 0
        %1816 = vmatpush2.bf16.msra.mxu0 0
        %1817 = vmatprep.subr.bf16.mxu0 0
        %1818 = vmatpush2.bf16.msra.mxu0 0
        %1819 = vmatprep.subr.bf16.mxu0 0
        %1820 = vmatpush2.bf16.msra.mxu0 0
        %1821 = vmatprep.subr.bf16.mxu0 0
        %1822 = vmatpush2.bf16.msra.mxu0 0
        %1823 = vmatprep.mubr.bf16.mxu0 0
        %1824 = vmatmul.mubr.bf16.gmra.mxu0 %v1705
        %v1825 = vpop.f32.mrf.mxu0
        %v1826 = vadd.f32 0.0, %v1825
        %v1827 = vpop.f32.mrf.mxu0
        %v1828 = vadd.f32 0.0, %v1827
        %v1829 = vpop.f32.mrf.mxu0
        %v1830 = vadd.f32 0.0, %v1829
        %v1831 = vpop.f32.mrf.mxu0
        %v1832 = vadd.f32 0.0, %v1831
        %1833 = vmatprep.mubr.bf16.mxu0 0
        %1834 = vmatmul.mubr.bf16.gmra.mxu0 %v1708
        %v1835 = vpop.f32.mrf.mxu0
        %v1836 = vadd.f32 0.0, %v1835
        %v1837 = vpop.f32.mrf.mxu0
        %v1838 = vadd.f32 0.0, %v1837
        %v1839 = vpop.f32.mrf.mxu0
        %v1840 = vadd.f32 0.0, %v1839
        %v1841 = vpop.f32.mrf.mxu0
        %v1842 = vadd.f32 0.0, %v1841
        %1843 = vdwg.mxu0
        %v1860 = vunpack.c.l.b16 %v1642
        %v1861 = vunpack.c.h.b16 %v1642
        %v1862 = vunpack.c.l.b16 %v1643
        %v1863 = vunpack.c.h.b16 %v1643
        %v1864 = vunpack.c.l.b16 %v1644
        %v1865 = vunpack.c.h.b16 %v1644
        %v1866 = vunpack.c.l.b16 %v1645
        %v1867 = vunpack.c.h.b16 %v1645
        %v1868 = vunpack.c.l.b16 %v1646
        %v1869 = vunpack.c.h.b16 %v1646
        %v1870 = vunpack.c.l.b16 %v1647
        %v1871 = vunpack.c.h.b16 %v1647
        %v1872 = vunpack.c.l.b16 %v1648
        %v1873 = vunpack.c.h.b16 %v1648
        %v1874 = vunpack.c.l.b16 %v1649
        %v1875 = vunpack.c.h.b16 %v1649
        %v1876 = vunpack.c.l.b16 %v1650
        %v1877 = vunpack.c.h.b16 %v1650
        %v1878 = vunpack.c.l.b16 %v1651
        %v1879 = vunpack.c.h.b16 %v1651
        %v1880 = vunpack.c.l.b16 %v1652
        %v1881 = vunpack.c.h.b16 %v1652
        %v1882 = vunpack.c.l.b16 %v1653
        %v1883 = vunpack.c.h.b16 %v1653
        %v1884 = vunpack.c.l.b16 %v1654
        %v1885 = vunpack.c.h.b16 %v1654
        %v1886 = vunpack.c.l.b16 %v1655
        %v1887 = vunpack.c.h.b16 %v1655
        %v1888 = vunpack.c.l.b16 %v1656
        %v1889 = vunpack.c.h.b16 %v1656
        %v1890 = vunpack.c.l.b16 %v1657
        %v1891 = vunpack.c.h.b16 %v1657
        %v1892 = vpack.c.b16 %v1862, %v1860
        %v1893 = vpack.c.b16 %v1863, %v1861
        %v1894 = vpack.c.b16 %v1866, %v1864
        %v1895 = vpack.c.b16 %v1867, %v1865
        %v1896 = vpack.c.b16 %v1870, %v1868
        %v1897 = vpack.c.b16 %v1871, %v1869
        %v1898 = vpack.c.b16 %v1874, %v1872
        %v1899 = vpack.c.b16 %v1875, %v1873
        %v1900 = vpack.c.b16 %v1878, %v1876
        %v1901 = vpack.c.b16 %v1879, %v1877
        %v1902 = vpack.c.b16 %v1882, %v1880
        %v1903 = vpack.c.b16 %v1883, %v1881
        %v1904 = vpack.c.b16 %v1886, %v1884
        %v1905 = vpack.c.b16 %v1887, %v1885
        %v1906 = vpack.c.b16 %v1890, %v1888
        %v1907 = vpack.c.b16 %v1891, %v1889
        %1924 = vmatprep.subr.bf16.mxu0 %v1907
        %1925 = vmatpush1.bf16.msra.mxu0 %v1906
        %1926 = vmatprep.subr.bf16.mxu0 %v1905
        %1927 = vmatpush1.bf16.msra.mxu0 %v1904
        %1928 = vmatprep.subr.bf16.mxu0 %v1903
        %1929 = vmatpush1.bf16.msra.mxu0 %v1902
        %1930 = vmatprep.subr.bf16.mxu0 %v1901
        %1931 = vmatpush1.bf16.msra.mxu0 %v1900
        %1932 = vmatprep.subr.bf16.mxu0 %v1899
        %1933 = vmatpush1.bf16.msra.mxu0 %v1898
        %1934 = vmatprep.subr.bf16.mxu0 %v1897
        %1935 = vmatpush1.bf16.msra.mxu0 %v1896
        %1936 = vmatprep.subr.bf16.mxu0 %v1895
        %1937 = vmatpush1.bf16.msra.mxu0 %v1894
        %1938 = vmatprep.subr.bf16.mxu0 %v1893
        %1939 = vmatpush1.bf16.msra.mxu0 %v1892
        %1940 = vmatprep.subr.bf16.mxu0 0
        %1941 = vmatpush2.bf16.msra.mxu0 0
        %1942 = vmatprep.subr.bf16.mxu0 0
        %1943 = vmatpush2.bf16.msra.mxu0 0
        %1944 = vmatprep.subr.bf16.mxu0 0
        %1945 = vmatpush2.bf16.msra.mxu0 0
        %1946 = vmatprep.subr.bf16.mxu0 0
        %1947 = vmatpush2.bf16.msra.mxu0 0
        %1948 = vmatprep.subr.bf16.mxu0 0
        %1949 = vmatpush2.bf16.msra.mxu0 0
        %1950 = vmatprep.subr.bf16.mxu0 0
        %1951 = vmatpush2.bf16.msra.mxu0 0
        %1952 = vmatprep.subr.bf16.mxu0 0
        %1953 = vmatpush2.bf16.msra.mxu0 0
        %1954 = vmatprep.subr.bf16.mxu0 0
        %1955 = vmatpush2.bf16.msra.mxu0 0
        %1956 = vmatprep.mubr.bf16.mxu0 0
        %1957 = vmatmul.mubr.bf16.gmra.mxu0 %v1697
        %v1958 = vpop.f32.mrf.mxu0
        %v1959 = vadd.f32 %v1826, %v1958
        %v1960 = vpop.f32.mrf.mxu0
        %v1961 = vadd.f32 %v1828, %v1960
        %v1962 = vpop.f32.mrf.mxu0
        %v1963 = vadd.f32 %v1830, %v1962
        %v1964 = vpop.f32.mrf.mxu0
        %v1965 = vadd.f32 %v1832, %v1964
        %1966 = vmatprep.mubr.bf16.mxu0 0
        %1967 = vmatmul.mubr.bf16.gmra.mxu0 %v1700
        %v1968 = vpop.f32.mrf.mxu0
        %v1969 = vadd.f32 %v1836, %v1968
        %v1970 = vpop.f32.mrf.mxu0
        %v1971 = vadd.f32 %v1838, %v1970
        %v1972 = vpop.f32.mrf.mxu0
        %v1973 = vadd.f32 %v1840, %v1972
        %v1974 = vpop.f32.mrf.mxu0
        %v1975 = vadd.f32 %v1842, %v1974
        %1976 = vdwg.mxu0
        %v1977 = vrot.slane %v1637, 4
        %v1978 = vrot.slane %v1638, 4
        %v1979 = vsel %vm1200, %v1977, %v1978
        %v1980 = vrot.slane %v1639, 4
        %v1981 = vrot.slane %v1640, 4
        %v1982 = vsel %vm1200, %v1980, %v1981
        %v2001 = vunpack.c.l.b16 %v1674
        %v2002 = vunpack.c.h.b16 %v1674
        %v2003 = vunpack.c.l.b16 %v1675
        %v2004 = vunpack.c.h.b16 %v1675
        %v2005 = vunpack.c.l.b16 %v1676
        %v2006 = vunpack.c.h.b16 %v1676
        %v2007 = vunpack.c.l.b16 %v1677
        %v2008 = vunpack.c.h.b16 %v1677
        %v2009 = vunpack.c.l.b16 %v1678
        %v2010 = vunpack.c.h.b16 %v1678
        %v2011 = vunpack.c.l.b16 %v1679
        %v2012 = vunpack.c.h.b16 %v1679
        %v2013 = vunpack.c.l.b16 %v1680
        %v2014 = vunpack.c.h.b16 %v1680
        %v2015 = vunpack.c.l.b16 %v1681
        %v2016 = vunpack.c.h.b16 %v1681
        %v2017 = vunpack.c.l.b16 %v1682
        %v2018 = vunpack.c.h.b16 %v1682
        %v2019 = vunpack.c.l.b16 %v1683
        %v2020 = vunpack.c.h.b16 %v1683
        %v2021 = vunpack.c.l.b16 %v1684
        %v2022 = vunpack.c.h.b16 %v1684
        %v2023 = vunpack.c.l.b16 %v1685
        %v2024 = vunpack.c.h.b16 %v1685
        %v2025 = vunpack.c.l.b16 %v1686
        %v2026 = vunpack.c.h.b16 %v1686
        %v2027 = vunpack.c.l.b16 %v1687
        %v2028 = vunpack.c.h.b16 %v1687
        %v2029 = vunpack.c.l.b16 %v1688
        %v2030 = vunpack.c.h.b16 %v1688
        %v2031 = vunpack.c.l.b16 %v1689
        %v2032 = vunpack.c.h.b16 %v1689
        %v2033 = vpack.c.b16 %v2003, %v2001
        %v2034 = vpack.c.b16 %v2004, %v2002
        %v2035 = vpack.c.b16 %v2007, %v2005
        %v2036 = vpack.c.b16 %v2008, %v2006
        %v2037 = vpack.c.b16 %v2011, %v2009
        %v2038 = vpack.c.b16 %v2012, %v2010
        %v2039 = vpack.c.b16 %v2015, %v2013
        %v2040 = vpack.c.b16 %v2016, %v2014
        %v2041 = vpack.c.b16 %v2019, %v2017
        %v2042 = vpack.c.b16 %v2020, %v2018
        %v2043 = vpack.c.b16 %v2023, %v2021
        %v2044 = vpack.c.b16 %v2024, %v2022
        %v2045 = vpack.c.b16 %v2027, %v2025
        %v2046 = vpack.c.b16 %v2028, %v2026
        %v2047 = vpack.c.b16 %v2031, %v2029
        %v2048 = vpack.c.b16 %v2032, %v2030
        %2065 = vmatprep.subr.bf16.mxu0 %v2048
        %2066 = vmatpush1.bf16.msra.mxu0 %v2047
        %2067 = vmatprep.subr.bf16.mxu0 %v2046
        %2068 = vmatpush1.bf16.msra.mxu0 %v2045
        %2069 = vmatprep.subr.bf16.mxu0 %v2044
        %2070 = vmatpush1.bf16.msra.mxu0 %v2043
        %2071 = vmatprep.subr.bf16.mxu0 %v2042
        %2072 = vmatpush1.bf16.msra.mxu0 %v2041
        %2073 = vmatprep.subr.bf16.mxu0 %v2040
        %2074 = vmatpush1.bf16.msra.mxu0 %v2039
        %2075 = vmatprep.subr.bf16.mxu0 %v2038
        %2076 = vmatpush1.bf16.msra.mxu0 %v2037
        %2077 = vmatprep.subr.bf16.mxu0 %v2036
        %2078 = vmatpush1.bf16.msra.mxu0 %v2035
        %2079 = vmatprep.subr.bf16.mxu0 %v2034
        %2080 = vmatpush1.bf16.msra.mxu0 %v2033
        %2081 = vmatprep.subr.bf16.mxu0 0
        %2082 = vmatpush2.bf16.msra.mxu0 0
        %2083 = vmatprep.subr.bf16.mxu0 0
        %2084 = vmatpush2.bf16.msra.mxu0 0
        %2085 = vmatprep.subr.bf16.mxu0 0
        %2086 = vmatpush2.bf16.msra.mxu0 0
        %2087 = vmatprep.subr.bf16.mxu0 0
        %2088 = vmatpush2.bf16.msra.mxu0 0
        %2089 = vmatprep.subr.bf16.mxu0 0
        %2090 = vmatpush2.bf16.msra.mxu0 0
        %2091 = vmatprep.subr.bf16.mxu0 0
        %2092 = vmatpush2.bf16.msra.mxu0 0
        %2093 = vmatprep.subr.bf16.mxu0 0
        %2094 = vmatpush2.bf16.msra.mxu0 0
        %2095 = vmatprep.subr.bf16.mxu0 0
        %2096 = vmatpush2.bf16.msra.mxu0 0
        %2097 = vmatprep.mubr.bf16.mxu0 0
        %2098 = vmatmul.mubr.bf16.gmra.mxu0 %v1979
        %v2099 = vpop.f32.mrf.mxu0
        %v2100 = vadd.f32 0.0, %v2099
        %v2101 = vpop.f32.mrf.mxu0
        %v2102 = vadd.f32 0.0, %v2101
        %v2103 = vpop.f32.mrf.mxu0
        %v2104 = vadd.f32 0.0, %v2103
        %v2105 = vpop.f32.mrf.mxu0
        %v2106 = vadd.f32 0.0, %v2105
        %2107 = vmatprep.mubr.bf16.mxu0 0
        %2108 = vmatmul.mubr.bf16.gmra.mxu0 %v1982
        %v2109 = vpop.f32.mrf.mxu0
        %v2110 = vadd.f32 0.0, %v2109
        %v2111 = vpop.f32.mrf.mxu0
        %v2112 = vadd.f32 0.0, %v2111
        %v2113 = vpop.f32.mrf.mxu0
        %v2114 = vadd.f32 0.0, %v2113
        %v2115 = vpop.f32.mrf.mxu0
        %v2116 = vadd.f32 0.0, %v2115
        %2117 = vdwg.mxu0
        %v2118 = vadd.f32 %v1959, %v2100
        %v2119 = vadd.f32 %v1961, %v2102
        %v2120 = vadd.f32 %v1963, %v2104
        %v2121 = vadd.f32 %v1965, %v2106
        %v2122 = vadd.f32 %v1969, %v2110
        %v2123 = vadd.f32 %v1971, %v2112
        %v2124 = vadd.f32 %v1973, %v2114
        %v2125 = vadd.f32 %v1975, %v2116
        %v2126 = vadd.f32 %v2118, %v2120
        %v2127 = vadd.f32 %v2126, %v2122
        %v2128 = vadd.f32 %v2127, %v2124
        %v2129 = vrot.slane %v2128, 4
        %v2130 = vadd.f32 %v2128, %v2129
        %v2131 = vrot.slane %v2130, 2
        %v2132 = vadd.f32 %v2130, %v2131
        %v2133 = vrot.slane %v2132, 1
        %v2134 = vadd.f32 %v2132, %v2133
        %v2135 = vadd.f32 %v2119, %v2121
        %v2136 = vadd.f32 %v2135, %v2123
        %v2137 = vadd.f32 %v2136, %v2125
        %v2138 = vrot.slane %v2137, 4
        %v2139 = vadd.f32 %v2137, %v2138
        %v2140 = vrot.slane %v2139, 2
        %v2141 = vadd.f32 %v2139, %v2140
        %v2142 = vrot.slane %v2141, 1
        %v2143 = vadd.f32 %v2141, %v2142
        %v2144 = vmul.f32 %v2134, 0.03125
        %v2145 = vmul.f32 %v2143, 0.03125
        %v2146 = vmul.f32 %v2118, %v2118
        %v2147 = vmul.f32 %v2119, %v2119
        %v2148 = vmul.f32 %v2120, %v2120
        %v2149 = vmul.f32 %v2121, %v2121
        %v2150 = vmul.f32 %v2122, %v2122
        %v2151 = vmul.f32 %v2123, %v2123
        %v2152 = vmul.f32 %v2124, %v2124
        %v2153 = vmul.f32 %v2125, %v2125
        %v2154 = vadd.f32 %v2146, %v2148
        %v2155 = vadd.f32 %v2154, %v2150
        %v2156 = vadd.f32 %v2155, %v2152
        %v2157 = vrot.slane %v2156, 4
        %v2158 = vadd.f32 %v2156, %v2157
        %v2159 = vrot.slane %v2158, 2
        %v2160 = vadd.f32 %v2158, %v2159
        %v2161 = vrot.slane %v2160, 1
        %v2162 = vadd.f32 %v2160, %v2161
        %v2163 = vadd.f32 %v2147, %v2149
        %v2164 = vadd.f32 %v2163, %v2151
        %v2165 = vadd.f32 %v2164, %v2153
        %v2166 = vrot.slane %v2165, 4
        %v2167 = vadd.f32 %v2165, %v2166
        %v2168 = vrot.slane %v2167, 2
        %v2169 = vadd.f32 %v2167, %v2168
        %v2170 = vrot.slane %v2169, 1
        %v2171 = vadd.f32 %v2169, %v2170
        %v2172 = vmul.f32 %v2162, 0.03125
        %v2173 = vmul.f32 %v2171, 0.03125
        %v2174 = vmul.f32 %v2144, %v2144
        %v2175 = vmul.f32 %v2145, %v2145
        %v2176 = vsub.f32 %v2172, %v2174
        %v2177 = vsub.f32 %v2173, %v2175
        %v2178 = vmax.f32 %v2176, 0.0
        %v2179 = vmax.f32 %v2177, 0.0
        %v2180 = vsub.f32 %v2118, %v2144
        %v2181 = vsub.f32 %v2119, %v2145
        %v2182 = vsub.f32 %v2120, %v2144
        %v2183 = vsub.f32 %v2121, %v2145
        %v2184 = vsub.f32 %v2122, %v2144
        %v2185 = vsub.f32 %v2123, %v2145
        %v2186 = vsub.f32 %v2124, %v2144
        %v2187 = vsub.f32 %v2125, %v2145
        %v2188 = vadd.f32 %v2178, 1e-05
        %v2189 = vadd.f32 %v2179, 1e-05
        %v2190 = vrsqrt.pop %v2188
        %v2191 = vrsqrt.pop %v2189
        %v2192 = vmul.f32 %v2180, %v2190
        %v2193 = vmul.f32 %v2181, %v2191
        %v2194 = vmul.f32 %v2182, %v2190
        %v2195 = vmul.f32 %v2183, %v2191
        %v2196 = vmul.f32 %v2184, %v2190
        %v2197 = vmul.f32 %v2185, %v2191
        %v2198 = vmul.f32 %v2186, %v2190
        %v2199 = vmul.f32 %v2187, %v2191
        %v2200 = vtanh.pop %v2192
        %v2201 = vtanh.pop %v2194
        %v2202 = vtanh.pop %v2196
        %v2203 = vtanh.pop %v2198
        %v2204 = vxor.u32 %v2193, 2147483648
        %v2205 = vxor.u32 %v2195, 2147483648
        %v2206 = vxor.u32 %v2197, 2147483648
        %v2207 = vxor.u32 %v2199, 2147483648
        %v2208 = vmul.f32 %v2204, 1.442695
        %v2209 = vpow.pop %v2208
        %v2210 = vmul.f32 %v2205, 1.442695
        %v2211 = vpow.pop %v2210
        %v2212 = vmul.f32 %v2206, 1.442695
        %v2213 = vpow.pop %v2212
        %v2214 = vmul.f32 %v2207, 1.442695
        %v2215 = vpow.pop %v2214
        %v2216 = vadd.f32 %v2209, 1.0
        %v2217 = vadd.f32 %v2211, 1.0
        %v2218 = vadd.f32 %v2213, 1.0
        %v2219 = vadd.f32 %v2215, 1.0
        %v2220 = vrcp.pop %v2216
        %v2221 = vmul.f32 1.0, %v2220
        %v2222 = vrcp.pop %v2217
        %v2223 = vmul.f32 1.0, %v2222
        %v2224 = vrcp.pop %v2218
        %v2225 = vmul.f32 1.0, %v2224
        %v2226 = vrcp.pop %v2219
        %v2227 = vmul.f32 1.0, %v2226
        %v2228 = vmul.f32 %v2200, %v2221
        %v2229 = vmul.f32 %v2201, %v2223
        %v2230 = vmul.f32 %v2202, %v2225
        %v2231 = vmul.f32 %v2203, %v2227
        %v2232 = vpack.c.bf16 %v2229, %v2228
        %v2233 = vpack.c.bf16 %v2231, %v2230
        %s2234 = scalar_lea.vmem %s490, 128 [#allocation7]
        %v2235 = vld [vmem:[%s2234] sm:$0xff]
        %v2236 = vld [vmem:[%s2234 + $0x8] sm:$0xff]
        %v2237 = vld [vmem:[%s2234 + $0x10] sm:$0xff]
        %v2238 = vld [vmem:[%s2234 + $0x18] sm:$0xff]
        %v2239 = vld [vmem:[%s2234 + $0x20] sm:$0xff]
        %v2240 = vld [vmem:[%s2234 + $0x28] sm:$0xff]
        %v2241 = vld [vmem:[%s2234 + $0x30] sm:$0xff]
        %v2242 = vld [vmem:[%s2234 + $0x38] sm:$0xff]
        %v2243 = vld [vmem:[%s2234 + $0x40] sm:$0xff]
        %v2244 = vld [vmem:[%s2234 + $0x48] sm:$0xff]
        %v2245 = vld [vmem:[%s2234 + $0x50] sm:$0xff]
        %v2246 = vld [vmem:[%s2234 + $0x58] sm:$0xff]
        %v2247 = vld [vmem:[%s2234 + $0x60] sm:$0xff]
        %v2248 = vld [vmem:[%s2234 + $0x68] sm:$0xff]
        %v2249 = vld [vmem:[%s2234 + $0x70] sm:$0xff]
        %v2250 = vld [vmem:[%s2234 + $0x78] sm:$0xff]
        %s2251 = scalar_lea.vmem %s499, 2 [#allocation8]
        %v2252 = vld [vmem:[%s2251] sm:$0x3]
        %v2254 = vlaneseq
        %v2255 = vshrl.u32 %v2254, 7
        %v2256 = vsub.s32 0, %v2255
        %v2257 = vrot.slane %v2252, %v2256
        %v2258 = vlaneseq
        %v2259 = vshrl.u32 %v2258, 7
        %v2260 = vsub.s32 1, %v2259
        %v2261 = vrot.slane %v2252, %v2260
        %v2280 = vunpack.c.l.b16 %v2235
        %v2281 = vunpack.c.h.b16 %v2235
        %v2282 = vunpack.c.l.b16 %v2236
        %v2283 = vunpack.c.h.b16 %v2236
        %v2284 = vunpack.c.l.b16 %v2237
        %v2285 = vunpack.c.h.b16 %v2237
        %v2286 = vunpack.c.l.b16 %v2238
        %v2287 = vunpack.c.h.b16 %v2238
        %v2288 = vunpack.c.l.b16 %v2239
        %v2289 = vunpack.c.h.b16 %v2239
        %v2290 = vunpack.c.l.b16 %v2240
        %v2291 = vunpack.c.h.b16 %v2240
        %v2292 = vunpack.c.l.b16 %v2241
        %v2293 = vunpack.c.h.b16 %v2241
        %v2294 = vunpack.c.l.b16 %v2242
        %v2295 = vunpack.c.h.b16 %v2242
        %v2296 = vunpack.c.l.b16 %v2243
        %v2297 = vunpack.c.h.b16 %v2243
        %v2298 = vunpack.c.l.b16 %v2244
        %v2299 = vunpack.c.h.b16 %v2244
        %v2300 = vunpack.c.l.b16 %v2245
        %v2301 = vunpack.c.h.b16 %v2245
        %v2302 = vunpack.c.l.b16 %v2246
        %v2303 = vunpack.c.h.b16 %v2246
        %v2304 = vunpack.c.l.b16 %v2247
        %v2305 = vunpack.c.h.b16 %v2247
        %v2306 = vunpack.c.l.b16 %v2248
        %v2307 = vunpack.c.h.b16 %v2248
        %v2308 = vunpack.c.l.b16 %v2249
        %v2309 = vunpack.c.h.b16 %v2249
        %v2310 = vunpack.c.l.b16 %v2250
        %v2311 = vunpack.c.h.b16 %v2250
        %v2312 = vpack.c.b16 %v2282, %v2280
        %v2313 = vpack.c.b16 %v2283, %v2281
        %v2314 = vpack.c.b16 %v2286, %v2284
        %v2315 = vpack.c.b16 %v2287, %v2285
        %v2316 = vpack.c.b16 %v2290, %v2288
        %v2317 = vpack.c.b16 %v2291, %v2289
        %v2318 = vpack.c.b16 %v2294, %v2292
        %v2319 = vpack.c.b16 %v2295, %v2293
        %v2320 = vpack.c.b16 %v2298, %v2296
        %v2321 = vpack.c.b16 %v2299, %v2297
        %v2322 = vpack.c.b16 %v2302, %v2300
        %v2323 = vpack.c.b16 %v2303, %v2301
        %v2324 = vpack.c.b16 %v2306, %v2304
        %v2325 = vpack.c.b16 %v2307, %v2305
        %v2326 = vpack.c.b16 %v2310, %v2308
        %v2327 = vpack.c.b16 %v2311, %v2309
        %2344 = vmatprep.subr.bf16.mxu0 %v2327
        %2345 = vmatpush1.bf16.msra.mxu0 %v2326
        %2346 = vmatprep.subr.bf16.mxu0 %v2325
        %2347 = vmatpush1.bf16.msra.mxu0 %v2324
        %2348 = vmatprep.subr.bf16.mxu0 %v2323
        %2349 = vmatpush1.bf16.msra.mxu0 %v2322
        %2350 = vmatprep.subr.bf16.mxu0 %v2321
        %2351 = vmatpush1.bf16.msra.mxu0 %v2320
        %2352 = vmatprep.subr.bf16.mxu0 %v2319
        %2353 = vmatpush1.bf16.msra.mxu0 %v2318
        %2354 = vmatprep.subr.bf16.mxu0 %v2317
        %2355 = vmatpush1.bf16.msra.mxu0 %v2316
        %2356 = vmatprep.subr.bf16.mxu0 %v2315
        %2357 = vmatpush1.bf16.msra.mxu0 %v2314
        %2358 = vmatprep.subr.bf16.mxu0 %v2313
        %2359 = vmatpush1.bf16.msra.mxu0 %v2312
        %2360 = vmatprep.subr.bf16.mxu0 0
        %2361 = vmatpush2.bf16.msra.mxu0 0
        %2362 = vmatprep.subr.bf16.mxu0 0
        %2363 = vmatpush2.bf16.msra.mxu0 0
        %2364 = vmatprep.subr.bf16.mxu0 0
        %2365 = vmatpush2.bf16.msra.mxu0 0
        %2366 = vmatprep.subr.bf16.mxu0 0
        %2367 = vmatpush2.bf16.msra.mxu0 0
        %2368 = vmatprep.subr.bf16.mxu0 0
        %2369 = vmatpush2.bf16.msra.mxu0 0
        %2370 = vmatprep.subr.bf16.mxu0 0
        %2371 = vmatpush2.bf16.msra.mxu0 0
        %2372 = vmatprep.subr.bf16.mxu0 0
        %2373 = vmatpush2.bf16.msra.mxu0 0
        %2374 = vmatprep.subr.bf16.mxu0 0
        %2375 = vmatpush2.bf16.msra.mxu0 0
        %2376 = vmatprep.mubr.bf16.mxu0 0
        %2377 = vmatmul.mubr.bf16.gmra.mxu0 %v2232
        %v2378 = vpop.f32.mrf.mxu0
        %v2379 = vadd.f32 %v2257, %v2378
        %v2380 = vpop.f32.mrf.mxu0
        %v2381 = vadd.f32 %v2261, %v2380
        %v2382 = vpop.f32.mrf.mxu0
        %v2383 = vadd.f32 %v2257, %v2382
        %v2384 = vpop.f32.mrf.mxu0
        %v2385 = vadd.f32 %v2261, %v2384
        %2386 = vmatprep.mubr.bf16.mxu0 0
        %2387 = vmatmul.mubr.bf16.gmra.mxu0 %v2233
        %v2388 = vpop.f32.mrf.mxu0
        %v2389 = vadd.f32 %v2257, %v2388
        %v2390 = vpop.f32.mrf.mxu0
        %v2391 = vadd.f32 %v2261, %v2390
        %v2392 = vpop.f32.mrf.mxu0
        %v2393 = vadd.f32 %v2257, %v2392
        %v2394 = vpop.f32.mrf.mxu0
        %v2395 = vadd.f32 %v2261, %v2394
        %2396 = vdwg.mxu0
        %v2397 = vadd.f32 %v1619, %v2381
        %v2398 = vadd.f32 %v1620, %v2385
        %v2399 = vadd.f32 %v1621, %v2391
        %v2400 = vadd.f32 %v1622, %v2395
        %v2401 = vadd.f32 %v2379, %v1632
        %v2402 = vadd.f32 %v2383, %v1633
        %v2403 = vadd.f32 %v2389, %v1635
        %v2404 = vadd.f32 %v2393, %v1636
        %2405 = vst [vmem:[#allocation2 + $0x8] sm:$0xff] %v2401
        %2406 = vst [vmem:[#allocation2 + $0x10] sm:$0xff] %v2402
        %2407 = vst [vmem:[#allocation2 + $0x20] sm:$0xff] %v2403
        %2408 = vst [vmem:[#allocation2 + $0x28] sm:$0xff] %v2404
        %v2409 = vld [vmem:[#allocation2] sm:$0xff]
        %v2410 = vld [vmem:[#allocation2 + $0x8] sm:$0xff]
        %v2411 = vld [vmem:[#allocation2 + $0x10] sm:$0xff]
        %v2412 = vld [vmem:[#allocation2 + $0x18] sm:$0xff]
        %v2413 = vld [vmem:[#allocation2 + $0x20] sm:$0xff]
        %v2414 = vld [vmem:[#allocation2 + $0x28] sm:$0xff]
        %v2415 = vpack.c.bf16 %v2410, %v2409
        %v2416 = vpack.c.bf16 %v2411, %v2411
        %v2417 = vpack.c.bf16 %v2413, %v2412
        %v2418 = vpack.c.bf16 %v2414, %v2414
        %s2419 = scalar_lea.vmem %s481, 768 [#allocation5]
        %v2420 = vld [vmem:[%s2419] sm:$0xff]
        %v2421 = vld [vmem:[%s2419 + $0x8] sm:$0xff]
        %v2422 = vld [vmem:[%s2419 + $0x10] sm:$0xff]
        %v2423 = vld [vmem:[%s2419 + $0x18] sm:$0xff]
        %v2424 = vld [vmem:[%s2419 + $0x20] sm:$0xff]
        %v2425 = vld [vmem:[%s2419 + $0x28] sm:$0xff]
        %v2426 = vld [vmem:[%s2419 + $0x30] sm:$0xff]
        %v2427 = vld [vmem:[%s2419 + $0x38] sm:$0xff]
        %v2428 = vld [vmem:[%s2419 + $0x40] sm:$0xff]
        %v2429 = vld [vmem:[%s2419 + $0x48] sm:$0xff]
        %v2430 = vld [vmem:[%s2419 + $0x50] sm:$0xff]
        %v2431 = vld [vmem:[%s2419 + $0x58] sm:$0xff]
        %v2432 = vld [vmem:[%s2419 + $0x60] sm:$0xff]
        %v2433 = vld [vmem:[%s2419 + $0x68] sm:$0xff]
        %v2434 = vld [vmem:[%s2419 + $0x70] sm:$0xff]
        %v2435 = vld [vmem:[%s2419 + $0x78] sm:$0xff]
        %v2436 = vld [vmem:[%s2419 + $0x80] sm:$0xff]
        %v2437 = vld [vmem:[%s2419 + $0x88] sm:$0xff]
        %v2438 = vld [vmem:[%s2419 + $0x90] sm:$0xff]
        %v2439 = vld [vmem:[%s2419 + $0x98] sm:$0xff]
        %v2440 = vld [vmem:[%s2419 + $0xa0] sm:$0xff]
        %v2441 = vld [vmem:[%s2419 + $0xa8] sm:$0xff]
        %v2442 = vld [vmem:[%s2419 + $0xb0] sm:$0xff]
        %v2443 = vld [vmem:[%s2419 + $0xb8] sm:$0xff]
        %v2444 = vld [vmem:[%s2419 + $0xc0] sm:$0xff]
        %v2445 = vld [vmem:[%s2419 + $0xc8] sm:$0xff]
        %v2446 = vld [vmem:[%s2419 + $0xd0] sm:$0xff]
        %v2447 = vld [vmem:[%s2419 + $0xd8] sm:$0xff]
        %v2448 = vld [vmem:[%s2419 + $0xe0] sm:$0xff]
        %v2449 = vld [vmem:[%s2419 + $0xe8] sm:$0xff]
        %v2450 = vld [vmem:[%s2419 + $0xf0] sm:$0xff]
        %v2451 = vld [vmem:[%s2419 + $0xf8] sm:$0xff]
        %v2452 = vld [vmem:[%s2419 + $0x100] sm:$0xff]
        %v2453 = vld [vmem:[%s2419 + $0x108] sm:$0xff]
        %v2454 = vld [vmem:[%s2419 + $0x110] sm:$0xff]
        %v2455 = vld [vmem:[%s2419 + $0x118] sm:$0xff]
        %v2456 = vld [vmem:[%s2419 + $0x120] sm:$0xff]
        %v2457 = vld [vmem:[%s2419 + $0x128] sm:$0xff]
        %v2458 = vld [vmem:[%s2419 + $0x130] sm:$0xff]
        %v2459 = vld [vmem:[%s2419 + $0x138] sm:$0xff]
        %v2460 = vld [vmem:[%s2419 + $0x140] sm:$0xff]
        %v2461 = vld [vmem:[%s2419 + $0x148] sm:$0xff]
        %v2462 = vld [vmem:[%s2419 + $0x150] sm:$0xff]
        %v2463 = vld [vmem:[%s2419 + $0x158] sm:$0xff]
        %v2464 = vld [vmem:[%s2419 + $0x160] sm:$0xff]
        %v2465 = vld [vmem:[%s2419 + $0x168] sm:$0xff]
        %v2466 = vld [vmem:[%s2419 + $0x170] sm:$0xff]
        %v2467 = vld [vmem:[%s2419 + $0x178] sm:$0xff]
        %v2472 = vrot.slane %v2415, 2
        %v2473 = vrot.slane %v2416, 2
        %v2474 = vsel %vm1694, %v2472, %v2473
        %v2475 = vrot.slane %v2417, 2
        %v2476 = vrot.slane %v2418, 2
        %v2477 = vsel %vm1694, %v2475, %v2476
        %v2496 = vunpack.c.l.b16 %v2436
        %v2497 = vunpack.c.h.b16 %v2436
        %v2498 = vunpack.c.l.b16 %v2437
        %v2499 = vunpack.c.h.b16 %v2437
        %v2500 = vunpack.c.l.b16 %v2438
        %v2501 = vunpack.c.h.b16 %v2438
        %v2502 = vunpack.c.l.b16 %v2439
        %v2503 = vunpack.c.h.b16 %v2439
        %v2504 = vunpack.c.l.b16 %v2440
        %v2505 = vunpack.c.h.b16 %v2440
        %v2506 = vunpack.c.l.b16 %v2441
        %v2507 = vunpack.c.h.b16 %v2441
        %v2508 = vunpack.c.l.b16 %v2442
        %v2509 = vunpack.c.h.b16 %v2442
        %v2510 = vunpack.c.l.b16 %v2443
        %v2511 = vunpack.c.h.b16 %v2443
        %v2512 = vunpack.c.l.b16 %v2444
        %v2513 = vunpack.c.h.b16 %v2444
        %v2514 = vunpack.c.l.b16 %v2445
        %v2515 = vunpack.c.h.b16 %v2445
        %v2516 = vunpack.c.l.b16 %v2446
        %v2517 = vunpack.c.h.b16 %v2446
        %v2518 = vunpack.c.l.b16 %v2447
        %v2519 = vunpack.c.h.b16 %v2447
        %v2520 = vunpack.c.l.b16 %v2448
        %v2521 = vunpack.c.h.b16 %v2448
        %v2522 = vunpack.c.l.b16 %v2449
        %v2523 = vunpack.c.h.b16 %v2449
        %v2524 = vunpack.c.l.b16 %v2450
        %v2525 = vunpack.c.h.b16 %v2450
        %v2526 = vunpack.c.l.b16 %v2451
        %v2527 = vunpack.c.h.b16 %v2451
        %v2528 = vpack.c.b16 %v2498, %v2496
        %v2529 = vpack.c.b16 %v2499, %v2497
        %v2530 = vpack.c.b16 %v2502, %v2500
        %v2531 = vpack.c.b16 %v2503, %v2501
        %v2532 = vpack.c.b16 %v2506, %v2504
        %v2533 = vpack.c.b16 %v2507, %v2505
        %v2534 = vpack.c.b16 %v2510, %v2508
        %v2535 = vpack.c.b16 %v2511, %v2509
        %v2536 = vpack.c.b16 %v2514, %v2512
        %v2537 = vpack.c.b16 %v2515, %v2513
        %v2538 = vpack.c.b16 %v2518, %v2516
        %v2539 = vpack.c.b16 %v2519, %v2517
        %v2540 = vpack.c.b16 %v2522, %v2520
        %v2541 = vpack.c.b16 %v2523, %v2521
        %v2542 = vpack.c.b16 %v2526, %v2524
        %v2543 = vpack.c.b16 %v2527, %v2525
        %2560 = vmatprep.subr.bf16.mxu0 %v2543
        %2561 = vmatpush1.bf16.msra.mxu0 %v2542
        %2562 = vmatprep.subr.bf16.mxu0 %v2541
        %2563 = vmatpush1.bf16.msra.mxu0 %v2540
        %2564 = vmatprep.subr.bf16.mxu0 %v2539
        %2565 = vmatpush1.bf16.msra.mxu0 %v2538
        %2566 = vmatprep.subr.bf16.mxu0 %v2537
        %2567 = vmatpush1.bf16.msra.mxu0 %v2536
        %2568 = vmatprep.subr.bf16.mxu0 %v2535
        %2569 = vmatpush1.bf16.msra.mxu0 %v2534
        %2570 = vmatprep.subr.bf16.mxu0 %v2533
        %2571 = vmatpush1.bf16.msra.mxu0 %v2532
        %2572 = vmatprep.subr.bf16.mxu0 %v2531
        %2573 = vmatpush1.bf16.msra.mxu0 %v2530
        %2574 = vmatprep.subr.bf16.mxu0 %v2529
        %2575 = vmatpush1.bf16.msra.mxu0 %v2528
        %2576 = vmatprep.subr.bf16.mxu0 0
        %2577 = vmatpush2.bf16.msra.mxu0 0
        %2578 = vmatprep.subr.bf16.mxu0 0
        %2579 = vmatpush2.bf16.msra.mxu0 0
        %2580 = vmatprep.subr.bf16.mxu0 0
        %2581 = vmatpush2.bf16.msra.mxu0 0
        %2582 = vmatprep.subr.bf16.mxu0 0
        %2583 = vmatpush2.bf16.msra.mxu0 0
        %2584 = vmatprep.subr.bf16.mxu0 0
        %2585 = vmatpush2.bf16.msra.mxu0 0
        %2586 = vmatprep.subr.bf16.mxu0 0
        %2587 = vmatpush2.bf16.msra.mxu0 0
        %2588 = vmatprep.subr.bf16.mxu0 0
        %2589 = vmatpush2.bf16.msra.mxu0 0
        %2590 = vmatprep.subr.bf16.mxu0 0
        %2591 = vmatpush2.bf16.msra.mxu0 0
        %2592 = vmatprep.mubr.bf16.mxu0 0
        %2593 = vmatmul.mubr.bf16.gmra.mxu0 %v2474
        %v2594 = vpop.f32.mrf.mxu0
        %v2595 = vadd.f32 0.0, %v2594
        %v2596 = vpop.f32.mrf.mxu0
        %v2597 = vadd.f32 0.0, %v2596
        %v2598 = vpop.f32.mrf.mxu0
        %v2599 = vadd.f32 0.0, %v2598
        %v2600 = vpop.f32.mrf.mxu0
        %v2601 = vadd.f32 0.0, %v2600
        %2602 = vmatprep.mubr.bf16.mxu0 0
        %2603 = vmatmul.mubr.bf16.gmra.mxu0 %v2477
        %v2604 = vpop.f32.mrf.mxu0
        %v2605 = vadd.f32 0.0, %v2604
        %v2606 = vpop.f32.mrf.mxu0
        %v2607 = vadd.f32 0.0, %v2606
        %v2608 = vpop.f32.mrf.mxu0
        %v2609 = vadd.f32 0.0, %v2608
        %v2610 = vpop.f32.mrf.mxu0
        %v2611 = vadd.f32 0.0, %v2610
        %2612 = vdwg.mxu0
        %v2629 = vunpack.c.l.b16 %v2420
        %v2630 = vunpack.c.h.b16 %v2420
        %v2631 = vunpack.c.l.b16 %v2421
        %v2632 = vunpack.c.h.b16 %v2421
        %v2633 = vunpack.c.l.b16 %v2422
        %v2634 = vunpack.c.h.b16 %v2422
        %v2635 = vunpack.c.l.b16 %v2423
        %v2636 = vunpack.c.h.b16 %v2423
        %v2637 = vunpack.c.l.b16 %v2424
        %v2638 = vunpack.c.h.b16 %v2424
        %v2639 = vunpack.c.l.b16 %v2425
        %v2640 = vunpack.c.h.b16 %v2425
        %v2641 = vunpack.c.l.b16 %v2426
        %v2642 = vunpack.c.h.b16 %v2426
        %v2643 = vunpack.c.l.b16 %v2427
        %v2644 = vunpack.c.h.b16 %v2427
        %v2645 = vunpack.c.l.b16 %v2428
        %v2646 = vunpack.c.h.b16 %v2428
        %v2647 = vunpack.c.l.b16 %v2429
        %v2648 = vunpack.c.h.b16 %v2429
        %v2649 = vunpack.c.l.b16 %v2430
        %v2650 = vunpack.c.h.b16 %v2430
        %v2651 = vunpack.c.l.b16 %v2431
        %v2652 = vunpack.c.h.b16 %v2431
        %v2653 = vunpack.c.l.b16 %v2432
        %v2654 = vunpack.c.h.b16 %v2432
        %v2655 = vunpack.c.l.b16 %v2433
        %v2656 = vunpack.c.h.b16 %v2433
        %v2657 = vunpack.c.l.b16 %v2434
        %v2658 = vunpack.c.h.b16 %v2434
        %v2659 = vunpack.c.l.b16 %v2435
        %v2660 = vunpack.c.h.b16 %v2435
        %v2661 = vpack.c.b16 %v2631, %v2629
        %v2662 = vpack.c.b16 %v2632, %v2630
        %v2663 = vpack.c.b16 %v2635, %v2633
        %v2664 = vpack.c.b16 %v2636, %v2634
        %v2665 = vpack.c.b16 %v2639, %v2637
        %v2666 = vpack.c.b16 %v2640, %v2638
        %v2667 = vpack.c.b16 %v2643, %v2641
        %v2668 = vpack.c.b16 %v2644, %v2642
        %v2669 = vpack.c.b16 %v2647, %v2645
        %v2670 = vpack.c.b16 %v2648, %v2646
        %v2671 = vpack.c.b16 %v2651, %v2649
        %v2672 = vpack.c.b16 %v2652, %v2650
        %v2673 = vpack.c.b16 %v2655, %v2653
        %v2674 = vpack.c.b16 %v2656, %v2654
        %v2675 = vpack.c.b16 %v2659, %v2657
        %v2676 = vpack.c.b16 %v2660, %v2658
        %2693 = vmatprep.subr.bf16.mxu0 %v2676
        %2694 = vmatpush1.bf16.msra.mxu0 %v2675
        %2695 = vmatprep.subr.bf16.mxu0 %v2674
        %2696 = vmatpush1.bf16.msra.mxu0 %v2673
        %2697 = vmatprep.subr.bf16.mxu0 %v2672
        %2698 = vmatpush1.bf16.msra.mxu0 %v2671
        %2699 = vmatprep.subr.bf16.mxu0 %v2670
        %2700 = vmatpush1.bf16.msra.mxu0 %v2669
        %2701 = vmatprep.subr.bf16.mxu0 %v2668
        %2702 = vmatpush1.bf16.msra.mxu0 %v2667
        %2703 = vmatprep.subr.bf16.mxu0 %v2666
        %2704 = vmatpush1.bf16.msra.mxu0 %v2665
        %2705 = vmatprep.subr.bf16.mxu0 %v2664
        %2706 = vmatpush1.bf16.msra.mxu0 %v2663
        %2707 = vmatprep.subr.bf16.mxu0 %v2662
        %2708 = vmatpush1.bf16.msra.mxu0 %v2661
        %2709 = vmatprep.subr.bf16.mxu0 0
        %2710 = vmatpush2.bf16.msra.mxu0 0
        %2711 = vmatprep.subr.bf16.mxu0 0
        %2712 = vmatpush2.bf16.msra.mxu0 0
        %2713 = vmatprep.subr.bf16.mxu0 0
        %2714 = vmatpush2.bf16.msra.mxu0 0
        %2715 = vmatprep.subr.bf16.mxu0 0
        %2716 = vmatpush2.bf16.msra.mxu0 0
        %2717 = vmatprep.subr.bf16.mxu0 0
        %2718 = vmatpush2.bf16.msra.mxu0 0
        %2719 = vmatprep.subr.bf16.mxu0 0
        %2720 = vmatpush2.bf16.msra.mxu0 0
        %2721 = vmatprep.subr.bf16.mxu0 0
        %2722 = vmatpush2.bf16.msra.mxu0 0
        %2723 = vmatprep.subr.bf16.mxu0 0
        %2724 = vmatpush2.bf16.msra.mxu0 0
        %2725 = vmatprep.mubr.bf16.mxu0 0
        %2726 = vmatmul.mubr.bf16.gmra.mxu0 %v2415
        %v2727 = vpop.f32.mrf.mxu0
        %v2728 = vadd.f32 %v2595, %v2727
        %v2729 = vpop.f32.mrf.mxu0
        %v2730 = vadd.f32 %v2597, %v2729
        %v2731 = vpop.f32.mrf.mxu0
        %v2732 = vadd.f32 %v2599, %v2731
        %v2733 = vpop.f32.mrf.mxu0
        %v2734 = vadd.f32 %v2601, %v2733
        %2735 = vmatprep.mubr.bf16.mxu0 0
        %2736 = vmatmul.mubr.bf16.gmra.mxu0 %v2417
        %v2737 = vpop.f32.mrf.mxu0
        %v2738 = vadd.f32 %v2605, %v2737
        %v2739 = vpop.f32.mrf.mxu0
        %v2740 = vadd.f32 %v2607, %v2739
        %v2741 = vpop.f32.mrf.mxu0
        %v2742 = vadd.f32 %v2609, %v2741
        %v2743 = vpop.f32.mrf.mxu0
        %v2744 = vadd.f32 %v2611, %v2743
        %2745 = vdwg.mxu0
        %v2746 = vrot.slane %v2415, 4
        %v2747 = vrot.slane %v2416, 4
        %v2748 = vsel %vm1200, %v2746, %v2747
        %v2749 = vrot.slane %v2417, 4
        %v2750 = vrot.slane %v2418, 4
        %v2751 = vsel %vm1200, %v2749, %v2750
        %v2770 = vunpack.c.l.b16 %v2452
        %v2771 = vunpack.c.h.b16 %v2452
        %v2772 = vunpack.c.l.b16 %v2453
        %v2773 = vunpack.c.h.b16 %v2453
        %v2774 = vunpack.c.l.b16 %v2454
        %v2775 = vunpack.c.h.b16 %v2454
        %v2776 = vunpack.c.l.b16 %v2455
        %v2777 = vunpack.c.h.b16 %v2455
        %v2778 = vunpack.c.l.b16 %v2456
        %v2779 = vunpack.c.h.b16 %v2456
        %v2780 = vunpack.c.l.b16 %v2457
        %v2781 = vunpack.c.h.b16 %v2457
        %v2782 = vunpack.c.l.b16 %v2458
        %v2783 = vunpack.c.h.b16 %v2458
        %v2784 = vunpack.c.l.b16 %v2459
        %v2785 = vunpack.c.h.b16 %v2459
        %v2786 = vunpack.c.l.b16 %v2460
        %v2787 = vunpack.c.h.b16 %v2460
        %v2788 = vunpack.c.l.b16 %v2461
        %v2789 = vunpack.c.h.b16 %v2461
        %v2790 = vunpack.c.l.b16 %v2462
        %v2791 = vunpack.c.h.b16 %v2462
        %v2792 = vunpack.c.l.b16 %v2463
        %v2793 = vunpack.c.h.b16 %v2463
        %v2794 = vunpack.c.l.b16 %v2464
        %v2795 = vunpack.c.h.b16 %v2464
        %v2796 = vunpack.c.l.b16 %v2465
        %v2797 = vunpack.c.h.b16 %v2465
        %v2798 = vunpack.c.l.b16 %v2466
        %v2799 = vunpack.c.h.b16 %v2466
        %v2800 = vunpack.c.l.b16 %v2467
        %v2801 = vunpack.c.h.b16 %v2467
        %v2802 = vpack.c.b16 %v2772, %v2770
        %v2803 = vpack.c.b16 %v2773, %v2771
        %v2804 = vpack.c.b16 %v2776, %v2774
        %v2805 = vpack.c.b16 %v2777, %v2775
        %v2806 = vpack.c.b16 %v2780, %v2778
        %v2807 = vpack.c.b16 %v2781, %v2779
        %v2808 = vpack.c.b16 %v2784, %v2782
        %v2809 = vpack.c.b16 %v2785, %v2783
        %v2810 = vpack.c.b16 %v2788, %v2786
        %v2811 = vpack.c.b16 %v2789, %v2787
        %v2812 = vpack.c.b16 %v2792, %v2790
        %v2813 = vpack.c.b16 %v2793, %v2791
        %v2814 = vpack.c.b16 %v2796, %v2794
        %v2815 = vpack.c.b16 %v2797, %v2795
        %v2816 = vpack.c.b16 %v2800, %v2798
        %v2817 = vpack.c.b16 %v2801, %v2799
        %2834 = vmatprep.subr.bf16.mxu0 %v2817
        %2835 = vmatpush1.bf16.msra.mxu0 %v2816
        %2836 = vmatprep.subr.bf16.mxu0 %v2815
        %2837 = vmatpush1.bf16.msra.mxu0 %v2814
        %2838 = vmatprep.subr.bf16.mxu0 %v2813
        %2839 = vmatpush1.bf16.msra.mxu0 %v2812
        %2840 = vmatprep.subr.bf16.mxu0 %v2811
        %2841 = vmatpush1.bf16.msra.mxu0 %v2810
        %2842 = vmatprep.subr.bf16.mxu0 %v2809
        %2843 = vmatpush1.bf16.msra.mxu0 %v2808
        %2844 = vmatprep.subr.bf16.mxu0 %v2807
        %2845 = vmatpush1.bf16.msra.mxu0 %v2806
        %2846 = vmatprep.subr.bf16.mxu0 %v2805
        %2847 = vmatpush1.bf16.msra.mxu0 %v2804
        %2848 = vmatprep.subr.bf16.mxu0 %v2803
        %2849 = vmatpush1.bf16.msra.mxu0 %v2802
        %2850 = vmatprep.subr.bf16.mxu0 0
        %2851 = vmatpush2.bf16.msra.mxu0 0
        %2852 = vmatprep.subr.bf16.mxu0 0
        %2853 = vmatpush2.bf16.msra.mxu0 0
        %2854 = vmatprep.subr.bf16.mxu0 0
        %2855 = vmatpush2.bf16.msra.mxu0 0
        %2856 = vmatprep.subr.bf16.mxu0 0
        %2857 = vmatpush2.bf16.msra.mxu0 0
        %2858 = vmatprep.subr.bf16.mxu0 0
        %2859 = vmatpush2.bf16.msra.mxu0 0
        %2860 = vmatprep.subr.bf16.mxu0 0
        %2861 = vmatpush2.bf16.msra.mxu0 0
        %2862 = vmatprep.subr.bf16.mxu0 0
        %2863 = vmatpush2.bf16.msra.mxu0 0
        %2864 = vmatprep.subr.bf16.mxu0 0
        %2865 = vmatpush2.bf16.msra.mxu0 0
        %2866 = vmatprep.mubr.bf16.mxu0 0
        %2867 = vmatmul.mubr.bf16.gmra.mxu0 %v2748
        %v2868 = vpop.f32.mrf.mxu0
        %v2869 = vadd.f32 0.0, %v2868
        %v2870 = vpop.f32.mrf.mxu0
        %v2871 = vadd.f32 0.0, %v2870
        %v2872 = vpop.f32.mrf.mxu0
        %v2873 = vadd.f32 0.0, %v2872
        %v2874 = vpop.f32.mrf.mxu0
        %v2875 = vadd.f32 0.0, %v2874
        %2876 = vmatprep.mubr.bf16.mxu0 0
        %2877 = vmatmul.mubr.bf16.gmra.mxu0 %v2751
        %v2878 = vpop.f32.mrf.mxu0
        %v2879 = vadd.f32 0.0, %v2878
        %v2880 = vpop.f32.mrf.mxu0
        %v2881 = vadd.f32 0.0, %v2880
        %v2882 = vpop.f32.mrf.mxu0
        %v2883 = vadd.f32 0.0, %v2882
        %v2884 = vpop.f32.mrf.mxu0
        %v2885 = vadd.f32 0.0, %v2884
        %2886 = vdwg.mxu0
        %v2887 = vadd.f32 %v2728, %v2869
        %v2888 = vadd.f32 %v2730, %v2871
        %v2889 = vadd.f32 %v2732, %v2873
        %v2890 = vadd.f32 %v2734, %v2875
        %v2891 = vadd.f32 %v2738, %v2879
        %v2892 = vadd.f32 %v2740, %v2881
        %v2893 = vadd.f32 %v2742, %v2883
        %v2894 = vadd.f32 %v2744, %v2885
        %v2895 = vadd.f32 %v2887, %v2889
        %v2896 = vadd.f32 %v2895, %v2891
        %v2897 = vadd.f32 %v2896, %v2893
        %v2898 = vrot.slane %v2897, 4
        %v2899 = vadd.f32 %v2897, %v2898
        %v2900 = vrot.slane %v2899, 2
        %v2901 = vadd.f32 %v2899, %v2900
        %v2902 = vrot.slane %v2901, 1
        %v2903 = vadd.f32 %v2901, %v2902
        %v2904 = vadd.f32 %v2888, %v2890
        %v2905 = vadd.f32 %v2904, %v2892
        %v2906 = vadd.f32 %v2905, %v2894
        %v2907 = vrot.slane %v2906, 4
        %v2908 = vadd.f32 %v2906, %v2907
        %v2909 = vrot.slane %v2908, 2
        %v2910 = vadd.f32 %v2908, %v2909
        %v2911 = vrot.slane %v2910, 1
        %v2912 = vadd.f32 %v2910, %v2911
        %v2913 = vmul.f32 %v2903, 0.03125
        %v2914 = vmul.f32 %v2912, 0.03125
        %v2915 = vmul.f32 %v2887, %v2887
        %v2916 = vmul.f32 %v2888, %v2888
        %v2917 = vmul.f32 %v2889, %v2889
        %v2918 = vmul.f32 %v2890, %v2890
        %v2919 = vmul.f32 %v2891, %v2891
        %v2920 = vmul.f32 %v2892, %v2892
        %v2921 = vmul.f32 %v2893, %v2893
        %v2922 = vmul.f32 %v2894, %v2894
        %v2923 = vadd.f32 %v2915, %v2917
        %v2924 = vadd.f32 %v2923, %v2919
        %v2925 = vadd.f32 %v2924, %v2921
        %v2926 = vrot.slane %v2925, 4
        %v2927 = vadd.f32 %v2925, %v2926
        %v2928 = vrot.slane %v2927, 2
        %v2929 = vadd.f32 %v2927, %v2928
        %v2930 = vrot.slane %v2929, 1
        %v2931 = vadd.f32 %v2929, %v2930
        %v2932 = vadd.f32 %v2916, %v2918
        %v2933 = vadd.f32 %v2932, %v2920
        %v2934 = vadd.f32 %v2933, %v2922
        %v2935 = vrot.slane %v2934, 4
        %v2936 = vadd.f32 %v2934, %v2935
        %v2937 = vrot.slane %v2936, 2
        %v2938 = vadd.f32 %v2936, %v2937
        %v2939 = vrot.slane %v2938, 1
        %v2940 = vadd.f32 %v2938, %v2939
        %v2941 = vmul.f32 %v2931, 0.03125
        %v2942 = vmul.f32 %v2940, 0.03125
        %v2943 = vmul.f32 %v2913, %v2913
        %v2944 = vmul.f32 %v2914, %v2914
        %v2945 = vsub.f32 %v2941, %v2943
        %v2946 = vsub.f32 %v2942, %v2944
        %v2947 = vmax.f32 %v2945, 0.0
        %v2948 = vmax.f32 %v2946, 0.0
        %v2949 = vsub.f32 %v2887, %v2913
        %v2950 = vsub.f32 %v2888, %v2914
        %v2951 = vsub.f32 %v2889, %v2913
        %v2952 = vsub.f32 %v2890, %v2914
        %v2953 = vsub.f32 %v2891, %v2913
        %v2954 = vsub.f32 %v2892, %v2914
        %v2955 = vsub.f32 %v2893, %v2913
        %v2956 = vsub.f32 %v2894, %v2914
        %v2957 = vadd.f32 %v2947, 1e-05
        %v2958 = vadd.f32 %v2948, 1e-05
        %v2959 = vrsqrt.pop %v2957
        %v2960 = vrsqrt.pop %v2958
        %v2961 = vmul.f32 %v2949, %v2959
        %v2962 = vmul.f32 %v2950, %v2960
        %v2963 = vmul.f32 %v2951, %v2959
        %v2964 = vmul.f32 %v2952, %v2960
        %v2965 = vmul.f32 %v2953, %v2959
        %v2966 = vmul.f32 %v2954, %v2960
        %v2967 = vmul.f32 %v2955, %v2959
        %v2968 = vmul.f32 %v2956, %v2960
        %v2969 = vtanh.pop %v2961
        %v2970 = vtanh.pop %v2963
        %v2971 = vtanh.pop %v2965
        %v2972 = vtanh.pop %v2967
        %v2973 = vxor.u32 %v2962, 2147483648
        %v2974 = vxor.u32 %v2964, 2147483648
        %v2975 = vxor.u32 %v2966, 2147483648
        %v2976 = vxor.u32 %v2968, 2147483648
        %v2977 = vmul.f32 %v2973, 1.442695
        %v2978 = vpow.pop %v2977
        %v2979 = vmul.f32 %v2974, 1.442695
        %v2980 = vpow.pop %v2979
        %v2981 = vmul.f32 %v2975, 1.442695
        %v2982 = vpow.pop %v2981
        %v2983 = vmul.f32 %v2976, 1.442695
        %v2984 = vpow.pop %v2983
        %v2985 = vadd.f32 %v2978, 1.0
        %v2986 = vadd.f32 %v2980, 1.0
        %v2987 = vadd.f32 %v2982, 1.0
        %v2988 = vadd.f32 %v2984, 1.0
        %v2989 = vrcp.pop %v2985
        %v2990 = vmul.f32 1.0, %v2989
        %v2991 = vrcp.pop %v2986
        %v2992 = vmul.f32 1.0, %v2991
        %v2993 = vrcp.pop %v2987
        %v2994 = vmul.f32 1.0, %v2993
        %v2995 = vrcp.pop %v2988
        %v2996 = vmul.f32 1.0, %v2995
        %v2997 = vmul.f32 %v2969, %v2990
        %v2998 = vmul.f32 %v2970, %v2992
        %v2999 = vmul.f32 %v2971, %v2994
        %v3000 = vmul.f32 %v2972, %v2996
        %v3001 = vpack.c.bf16 %v2998, %v2997
        %v3002 = vpack.c.bf16 %v3000, %v2999
        %s3003 = scalar_lea.vmem %s490, 256 [#allocation7]
        %v3004 = vld [vmem:[%s3003] sm:$0xff]
        %v3005 = vld [vmem:[%s3003 + $0x8] sm:$0xff]
        %v3006 = vld [vmem:[%s3003 + $0x10] sm:$0xff]
        %v3007 = vld [vmem:[%s3003 + $0x18] sm:$0xff]
        %v3008 = vld [vmem:[%s3003 + $0x20] sm:$0xff]
        %v3009 = vld [vmem:[%s3003 + $0x28] sm:$0xff]
        %v3010 = vld [vmem:[%s3003 + $0x30] sm:$0xff]
        %v3011 = vld [vmem:[%s3003 + $0x38] sm:$0xff]
        %v3012 = vld [vmem:[%s3003 + $0x40] sm:$0xff]
        %v3013 = vld [vmem:[%s3003 + $0x48] sm:$0xff]
        %v3014 = vld [vmem:[%s3003 + $0x50] sm:$0xff]
        %v3015 = vld [vmem:[%s3003 + $0x58] sm:$0xff]
        %v3016 = vld [vmem:[%s3003 + $0x60] sm:$0xff]
        %v3017 = vld [vmem:[%s3003 + $0x68] sm:$0xff]
        %v3018 = vld [vmem:[%s3003 + $0x70] sm:$0xff]
        %v3019 = vld [vmem:[%s3003 + $0x78] sm:$0xff]
        %s3020 = scalar_lea.vmem %s499, 4 [#allocation8]
        %v3021 = vld [vmem:[%s3020] sm:$0x3]
        %v3023 = vlaneseq
        %v3024 = vshrl.u32 %v3023, 7
        %v3025 = vsub.s32 0, %v3024
        %v3026 = vrot.slane %v3021, %v3025
        %v3027 = vlaneseq
        %v3028 = vshrl.u32 %v3027, 7
        %v3029 = vsub.s32 1, %v3028
        %v3030 = vrot.slane %v3021, %v3029
        %v3049 = vunpack.c.l.b16 %v3004
        %v3050 = vunpack.c.h.b16 %v3004
        %v3051 = vunpack.c.l.b16 %v3005
        %v3052 = vunpack.c.h.b16 %v3005
        %v3053 = vunpack.c.l.b16 %v3006
        %v3054 = vunpack.c.h.b16 %v3006
        %v3055 = vunpack.c.l.b16 %v3007
        %v3056 = vunpack.c.h.b16 %v3007
        %v3057 = vunpack.c.l.b16 %v3008
        %v3058 = vunpack.c.h.b16 %v3008
        %v3059 = vunpack.c.l.b16 %v3009
        %v3060 = vunpack.c.h.b16 %v3009
        %v3061 = vunpack.c.l.b16 %v3010
        %v3062 = vunpack.c.h.b16 %v3010
        %v3063 = vunpack.c.l.b16 %v3011
        %v3064 = vunpack.c.h.b16 %v3011
        %v3065 = vunpack.c.l.b16 %v3012
        %v3066 = vunpack.c.h.b16 %v3012
        %v3067 = vunpack.c.l.b16 %v3013
        %v3068 = vunpack.c.h.b16 %v3013
        %v3069 = vunpack.c.l.b16 %v3014
        %v3070 = vunpack.c.h.b16 %v3014
        %v3071 = vunpack.c.l.b16 %v3015
        %v3072 = vunpack.c.h.b16 %v3015
        %v3073 = vunpack.c.l.b16 %v3016
        %v3074 = vunpack.c.h.b16 %v3016
        %v3075 = vunpack.c.l.b16 %v3017
        %v3076 = vunpack.c.h.b16 %v3017
        %v3077 = vunpack.c.l.b16 %v3018
        %v3078 = vunpack.c.h.b16 %v3018
        %v3079 = vunpack.c.l.b16 %v3019
        %v3080 = vunpack.c.h.b16 %v3019
        %v3081 = vpack.c.b16 %v3051, %v3049
        %v3082 = vpack.c.b16 %v3052, %v3050
        %v3083 = vpack.c.b16 %v3055, %v3053
        %v3084 = vpack.c.b16 %v3056, %v3054
        %v3085 = vpack.c.b16 %v3059, %v3057
        %v3086 = vpack.c.b16 %v3060, %v3058
        %v3087 = vpack.c.b16 %v3063, %v3061
        %v3088 = vpack.c.b16 %v3064, %v3062
        %v3089 = vpack.c.b16 %v3067, %v3065
        %v3090 = vpack.c.b16 %v3068, %v3066
        %v3091 = vpack.c.b16 %v3071, %v3069
        %v3092 = vpack.c.b16 %v3072, %v3070
        %v3093 = vpack.c.b16 %v3075, %v3073
        %v3094 = vpack.c.b16 %v3076, %v3074
        %v3095 = vpack.c.b16 %v3079, %v3077
        %v3096 = vpack.c.b16 %v3080, %v3078
        %3113 = vmatprep.subr.bf16.mxu0 %v3096
        %3114 = vmatpush1.bf16.msra.mxu0 %v3095
        %3115 = vmatprep.subr.bf16.mxu0 %v3094
        %3116 = vmatpush1.bf16.msra.mxu0 %v3093
        %3117 = vmatprep.subr.bf16.mxu0 %v3092
        %3118 = vmatpush1.bf16.msra.mxu0 %v3091
        %3119 = vmatprep.subr.bf16.mxu0 %v3090
        %3120 = vmatpush1.bf16.msra.mxu0 %v3089
        %3121 = vmatprep.subr.bf16.mxu0 %v3088
        %3122 = vmatpush1.bf16.msra.mxu0 %v3087
        %3123 = vmatprep.subr.bf16.mxu0 %v3086
        %3124 = vmatpush1.bf16.msra.mxu0 %v3085
        %3125 = vmatprep.subr.bf16.mxu0 %v3084
        %3126 = vmatpush1.bf16.msra.mxu0 %v3083
        %3127 = vmatprep.subr.bf16.mxu0 %v3082
        %3128 = vmatpush1.bf16.msra.mxu0 %v3081
        %3129 = vmatprep.subr.bf16.mxu0 0
        %3130 = vmatpush2.bf16.msra.mxu0 0
        %3131 = vmatprep.subr.bf16.mxu0 0
        %3132 = vmatpush2.bf16.msra.mxu0 0
        %3133 = vmatprep.subr.bf16.mxu0 0
        %3134 = vmatpush2.bf16.msra.mxu0 0
        %3135 = vmatprep.subr.bf16.mxu0 0
        %3136 = vmatpush2.bf16.msra.mxu0 0
        %3137 = vmatprep.subr.bf16.mxu0 0
        %3138 = vmatpush2.bf16.msra.mxu0 0
        %3139 = vmatprep.subr.bf16.mxu0 0
        %3140 = vmatpush2.bf16.msra.mxu0 0
        %3141 = vmatprep.subr.bf16.mxu0 0
        %3142 = vmatpush2.bf16.msra.mxu0 0
        %3143 = vmatprep.subr.bf16.mxu0 0
        %3144 = vmatpush2.bf16.msra.mxu0 0
        %3145 = vmatprep.mubr.bf16.mxu0 0
        %3146 = vmatmul.mubr.bf16.gmra.mxu0 %v3001
        %v3147 = vpop.f32.mrf.mxu0
        %v3148 = vadd.f32 %v3026, %v3147
        %v3149 = vpop.f32.mrf.mxu0
        %v3150 = vadd.f32 %v3030, %v3149
        %v3151 = vpop.f32.mrf.mxu0
        %v3152 = vadd.f32 %v3026, %v3151
        %v3153 = vpop.f32.mrf.mxu0
        %v3154 = vadd.f32 %v3030, %v3153
        %3155 = vmatprep.mubr.bf16.mxu0 0
        %3156 = vmatmul.mubr.bf16.gmra.mxu0 %v3002
        %v3157 = vpop.f32.mrf.mxu0
        %v3158 = vadd.f32 %v3026, %v3157
        %v3159 = vpop.f32.mrf.mxu0
        %v3160 = vadd.f32 %v3030, %v3159
        %v3161 = vpop.f32.mrf.mxu0
        %v3162 = vadd.f32 %v3026, %v3161
        %v3163 = vpop.f32.mrf.mxu0
        %v3164 = vadd.f32 %v3030, %v3163
        %3165 = vdwg.mxu0
        %v3166 = vadd.f32 %v2397, %v3150
        %v3167 = vadd.f32 %v2398, %v3154
        %v3168 = vadd.f32 %v2399, %v3160
        %v3169 = vadd.f32 %v2400, %v3164
        %v3170 = vadd.f32 %v3148, %v2410
        %v3171 = vadd.f32 %v3152, %v2411
        %v3172 = vadd.f32 %v3158, %v2413
        %v3173 = vadd.f32 %v3162, %v2414
        %3174 = vst [vmem:[#allocation2 + $0x8] sm:$0xff] %v3170
        %3175 = vst [vmem:[#allocation2 + $0x10] sm:$0xff] %v3171
        %3176 = vst [vmem:[#allocation2 + $0x20] sm:$0xff] %v3172
        %3177 = vst [vmem:[#allocation2 + $0x28] sm:$0xff] %v3173
        %v3178 = vld [vmem:[#allocation2] sm:$0xff]
        %v3179 = vld [vmem:[#allocation2 + $0x8] sm:$0xff]
        %v3180 = vld [vmem:[#allocation2 + $0x10] sm:$0xff]
        %v3181 = vld [vmem:[#allocation2 + $0x18] sm:$0xff]
        %v3182 = vld [vmem:[#allocation2 + $0x20] sm:$0xff]
        %v3183 = vld [vmem:[#allocation2 + $0x28] sm:$0xff]
        %v3184 = vpack.c.bf16 %v3179, %v3178
        %v3185 = vpack.c.bf16 %v3180, %v3180
        %v3186 = vpack.c.bf16 %v3182, %v3181
        %v3187 = vpack.c.bf16 %v3183, %v3183
        %s3188 = scalar_lea.vmem %s481, 1152 [#allocation5]
        %v3189 = vld [vmem:[%s3188] sm:$0xff]
        %v3190 = vld [vmem:[%s3188 + $0x8] sm:$0xff]
        %v3191 = vld [vmem:[%s3188 + $0x10] sm:$0xff]
        %v3192 = vld [vmem:[%s3188 + $0x18] sm:$0xff]
        %v3193 = vld [vmem:[%s3188 + $0x20] sm:$0xff]
        %v3194 = vld [vmem:[%s3188 + $0x28] sm:$0xff]
        %v3195 = vld [vmem:[%s3188 + $0x30] sm:$0xff]
        %v3196 = vld [vmem:[%s3188 + $0x38] sm:$0xff]
        %v3197 = vld [vmem:[%s3188 + $0x40] sm:$0xff]
        %v3198 = vld [vmem:[%s3188 + $0x48] sm:$0xff]
        %v3199 = vld [vmem:[%s3188 + $0x50] sm:$0xff]
        %v3200 = vld [vmem:[%s3188 + $0x58] sm:$0xff]
        %v3201 = vld [vmem:[%s3188 + $0x60] sm:$0xff]
        %v3202 = vld [vmem:[%s3188 + $0x68] sm:$0xff]
        %v3203 = vld [vmem:[%s3188 + $0x70] sm:$0xff]
        %v3204 = vld [vmem:[%s3188 + $0x78] sm:$0xff]
        %v3205 = vld [vmem:[%s3188 + $0x80] sm:$0xff]
        %v3206 = vld [vmem:[%s3188 + $0x88] sm:$0xff]
        %v3207 = vld [vmem:[%s3188 + $0x90] sm:$0xff]
        %v3208 = vld [vmem:[%s3188 + $0x98] sm:$0xff]
        %v3209 = vld [vmem:[%s3188 + $0xa0] sm:$0xff]
        %v3210 = vld [vmem:[%s3188 + $0xa8] sm:$0xff]
        %v3211 = vld [vmem:[%s3188 + $0xb0] sm:$0xff]
        %v3212 = vld [vmem:[%s3188 + $0xb8] sm:$0xff]
        %v3213 = vld [vmem:[%s3188 + $0xc0] sm:$0xff]
        %v3214 = vld [vmem:[%s3188 + $0xc8] sm:$0xff]
        %v3215 = vld [vmem:[%s3188 + $0xd0] sm:$0xff]
        %v3216 = vld [vmem:[%s3188 + $0xd8] sm:$0xff]
        %v3217 = vld [vmem:[%s3188 + $0xe0] sm:$0xff]
        %v3218 = vld [vmem:[%s3188 + $0xe8] sm:$0xff]
        %v3219 = vld [vmem:[%s3188 + $0xf0] sm:$0xff]
        %v3220 = vld [vmem:[%s3188 + $0xf8] sm:$0xff]
        %v3221 = vld [vmem:[%s3188 + $0x100] sm:$0xff]
        %v3222 = vld [vmem:[%s3188 + $0x108] sm:$0xff]
        %v3223 = vld [vmem:[%s3188 + $0x110] sm:$0xff]
        %v3224 = vld [vmem:[%s3188 + $0x118] sm:$0xff]
        %v3225 = vld [vmem:[%s3188 + $0x120] sm:$0xff]
        %v3226 = vld [vmem:[%s3188 + $0x128] sm:$0xff]
        %v3227 = vld [vmem:[%s3188 + $0x130] sm:$0xff]
        %v3228 = vld [vmem:[%s3188 + $0x138] sm:$0xff]
        %v3229 = vld [vmem:[%s3188 + $0x140] sm:$0xff]
        %v3230 = vld [vmem:[%s3188 + $0x148] sm:$0xff]
        %v3231 = vld [vmem:[%s3188 + $0x150] sm:$0xff]
        %v3232 = vld [vmem:[%s3188 + $0x158] sm:$0xff]
        %v3233 = vld [vmem:[%s3188 + $0x160] sm:$0xff]
        %v3234 = vld [vmem:[%s3188 + $0x168] sm:$0xff]
        %v3235 = vld [vmem:[%s3188 + $0x170] sm:$0xff]
        %v3236 = vld [vmem:[%s3188 + $0x178] sm:$0xff]
        %v3241 = vrot.slane %v3184, 3
        %v3242 = vrot.slane %v3185, 3
        %v3243 = vsel %vm888, %v3241, %v3242
        %v3244 = vrot.slane %v3186, 3
        %v3245 = vrot.slane %v3187, 3
        %v3246 = vsel %vm888, %v3244, %v3245
        %v3250 = vshrl.u32 %v3184, 16
        %v3252 = vrot.slane %v3250, 3
        %v3253 = vshll.u32 %v3184, 16
        %v3255 = vrot.slane %v3253, 4
        %v3256 = vor.u32 %v3252, %v3255
        %v3258 = vshrl.u32 %v3185, 16
        %v3260 = vrot.slane %v3258, 3
        %v3261 = vshll.u32 %v3185, 16
        %v3263 = vrot.slane %v3261, 4
        %v3264 = vor.u32 %v3260, %v3263
        %v3265 = vsel %vm897, %v3256, %v3264
        %v3267 = vshrl.u32 %v3186, 16
        %v3269 = vrot.slane %v3267, 3
        %v3270 = vshll.u32 %v3186, 16
        %v3272 = vrot.slane %v3270, 4
        %v3273 = vor.u32 %v3269, %v3272
        %v3275 = vshrl.u32 %v3187, 16
        %v3277 = vrot.slane %v3275, 3
        %v3278 = vshll.u32 %v3187, 16
        %v3280 = vrot.slane %v3278, 4
        %v3281 = vor.u32 %v3277, %v3280
        %v3282 = vsel %vm897, %v3273, %v3281
        %v3301 = vunpack.c.l.b16 %v3205
        %v3302 = vunpack.c.h.b16 %v3205
        %v3303 = vunpack.c.l.b16 %v3206
        %v3304 = vunpack.c.h.b16 %v3206
        %v3305 = vunpack.c.l.b16 %v3207
        %v3306 = vunpack.c.h.b16 %v3207
        %v3307 = vunpack.c.l.b16 %v3208
        %v3308 = vunpack.c.h.b16 %v3208
        %v3309 = vunpack.c.l.b16 %v3209
        %v3310 = vunpack.c.h.b16 %v3209
        %v3311 = vunpack.c.l.b16 %v3210
        %v3312 = vunpack.c.h.b16 %v3210
        %v3313 = vunpack.c.l.b16 %v3211
        %v3314 = vunpack.c.h.b16 %v3211
        %v3315 = vunpack.c.l.b16 %v3212
        %v3316 = vunpack.c.h.b16 %v3212
        %v3317 = vunpack.c.l.b16 %v3213
        %v3318 = vunpack.c.h.b16 %v3213
        %v3319 = vunpack.c.l.b16 %v3214
        %v3320 = vunpack.c.h.b16 %v3214
        %v3321 = vunpack.c.l.b16 %v3215
        %v3322 = vunpack.c.h.b16 %v3215
        %v3323 = vunpack.c.l.b16 %v3216
        %v3324 = vunpack.c.h.b16 %v3216
        %v3325 = vunpack.c.l.b16 %v3217
        %v3326 = vunpack.c.h.b16 %v3217
        %v3327 = vunpack.c.l.b16 %v3218
        %v3328 = vunpack.c.h.b16 %v3218
        %v3329 = vunpack.c.l.b16 %v3219
        %v3330 = vunpack.c.h.b16 %v3219
        %v3331 = vunpack.c.l.b16 %v3220
        %v3332 = vunpack.c.h.b16 %v3220
        %v3333 = vpack.c.b16 %v3303, %v3301
        %v3334 = vpack.c.b16 %v3304, %v3302
        %v3335 = vpack.c.b16 %v3307, %v3305
        %v3336 = vpack.c.b16 %v3308, %v3306
        %v3337 = vpack.c.b16 %v3311, %v3309
        %v3338 = vpack.c.b16 %v3312, %v3310
        %v3339 = vpack.c.b16 %v3315, %v3313
        %v3340 = vpack.c.b16 %v3316, %v3314
        %v3341 = vpack.c.b16 %v3319, %v3317
        %v3342 = vpack.c.b16 %v3320, %v3318
        %v3343 = vpack.c.b16 %v3323, %v3321
        %v3344 = vpack.c.b16 %v3324, %v3322
        %v3345 = vpack.c.b16 %v3327, %v3325
        %v3346 = vpack.c.b16 %v3328, %v3326
        %v3347 = vpack.c.b16 %v3331, %v3329
        %v3348 = vpack.c.b16 %v3332, %v3330
        %3365 = vmatprep.subr.bf16.mxu0 %v3348
        %3366 = vmatpush1.bf16.msra.mxu0 %v3347
        %3367 = vmatprep.subr.bf16.mxu0 %v3346
        %3368 = vmatpush1.bf16.msra.mxu0 %v3345
        %3369 = vmatprep.subr.bf16.mxu0 %v3344
        %3370 = vmatpush1.bf16.msra.mxu0 %v3343
        %3371 = vmatprep.subr.bf16.mxu0 %v3342
        %3372 = vmatpush1.bf16.msra.mxu0 %v3341
        %3373 = vmatprep.subr.bf16.mxu0 %v3340
        %3374 = vmatpush1.bf16.msra.mxu0 %v3339
        %3375 = vmatprep.subr.bf16.mxu0 %v3338
        %3376 = vmatpush1.bf16.msra.mxu0 %v3337
        %3377 = vmatprep.subr.bf16.mxu0 %v3336
        %3378 = vmatpush1.bf16.msra.mxu0 %v3335
        %3379 = vmatprep.subr.bf16.mxu0 %v3334
        %3380 = vmatpush1.bf16.msra.mxu0 %v3333
        %3381 = vmatprep.subr.bf16.mxu0 0
        %3382 = vmatpush2.bf16.msra.mxu0 0
        %3383 = vmatprep.subr.bf16.mxu0 0
        %3384 = vmatpush2.bf16.msra.mxu0 0
        %3385 = vmatprep.subr.bf16.mxu0 0
        %3386 = vmatpush2.bf16.msra.mxu0 0
        %3387 = vmatprep.subr.bf16.mxu0 0
        %3388 = vmatpush2.bf16.msra.mxu0 0
        %3389 = vmatprep.subr.bf16.mxu0 0
        %3390 = vmatpush2.bf16.msra.mxu0 0
        %3391 = vmatprep.subr.bf16.mxu0 0
        %3392 = vmatpush2.bf16.msra.mxu0 0
        %3393 = vmatprep.subr.bf16.mxu0 0
        %3394 = vmatpush2.bf16.msra.mxu0 0
        %3395 = vmatprep.subr.bf16.mxu0 0
        %3396 = vmatpush2.bf16.msra.mxu0 0
        %3397 = vmatprep.mubr.bf16.mxu0 0
        %3398 = vmatmul.mubr.bf16.gmra.mxu0 %v3265
        %v3399 = vpop.f32.mrf.mxu0
        %v3400 = vadd.f32 0.0, %v3399
        %v3401 = vpop.f32.mrf.mxu0
        %v3402 = vadd.f32 0.0, %v3401
        %v3403 = vpop.f32.mrf.mxu0
        %v3404 = vadd.f32 0.0, %v3403
        %v3405 = vpop.f32.mrf.mxu0
        %v3406 = vadd.f32 0.0, %v3405
        %3407 = vmatprep.mubr.bf16.mxu0 0
        %3408 = vmatmul.mubr.bf16.gmra.mxu0 %v3282
        %v3409 = vpop.f32.mrf.mxu0
        %v3410 = vadd.f32 0.0, %v3409
        %v3411 = vpop.f32.mrf.mxu0
        %v3412 = vadd.f32 0.0, %v3411
        %v3413 = vpop.f32.mrf.mxu0
        %v3414 = vadd.f32 0.0, %v3413
        %v3415 = vpop.f32.mrf.mxu0
        %v3416 = vadd.f32 0.0, %v3415
        %3417 = vdwg.mxu0
        %v3434 = vunpack.c.l.b16 %v3189
        %v3435 = vunpack.c.h.b16 %v3189
        %v3436 = vunpack.c.l.b16 %v3190
        %v3437 = vunpack.c.h.b16 %v3190
        %v3438 = vunpack.c.l.b16 %v3191
        %v3439 = vunpack.c.h.b16 %v3191
        %v3440 = vunpack.c.l.b16 %v3192
        %v3441 = vunpack.c.h.b16 %v3192
        %v3442 = vunpack.c.l.b16 %v3193
        %v3443 = vunpack.c.h.b16 %v3193
        %v3444 = vunpack.c.l.b16 %v3194
        %v3445 = vunpack.c.h.b16 %v3194
        %v3446 = vunpack.c.l.b16 %v3195
        %v3447 = vunpack.c.h.b16 %v3195
        %v3448 = vunpack.c.l.b16 %v3196
        %v3449 = vunpack.c.h.b16 %v3196
        %v3450 = vunpack.c.l.b16 %v3197
        %v3451 = vunpack.c.h.b16 %v3197
        %v3452 = vunpack.c.l.b16 %v3198
        %v3453 = vunpack.c.h.b16 %v3198
        %v3454 = vunpack.c.l.b16 %v3199
        %v3455 = vunpack.c.h.b16 %v3199
        %v3456 = vunpack.c.l.b16 %v3200
        %v3457 = vunpack.c.h.b16 %v3200
        %v3458 = vunpack.c.l.b16 %v3201
        %v3459 = vunpack.c.h.b16 %v3201
        %v3460 = vunpack.c.l.b16 %v3202
        %v3461 = vunpack.c.h.b16 %v3202
        %v3462 = vunpack.c.l.b16 %v3203
        %v3463 = vunpack.c.h.b16 %v3203
        %v3464 = vunpack.c.l.b16 %v3204
        %v3465 = vunpack.c.h.b16 %v3204
        %v3466 = vpack.c.b16 %v3436, %v3434
        %v3467 = vpack.c.b16 %v3437, %v3435
        %v3468 = vpack.c.b16 %v3440, %v3438
        %v3469 = vpack.c.b16 %v3441, %v3439
        %v3470 = vpack.c.b16 %v3444, %v3442
        %v3471 = vpack.c.b16 %v3445, %v3443
        %v3472 = vpack.c.b16 %v3448, %v3446
        %v3473 = vpack.c.b16 %v3449, %v3447
        %v3474 = vpack.c.b16 %v3452, %v3450
        %v3475 = vpack.c.b16 %v3453, %v3451
        %v3476 = vpack.c.b16 %v3456, %v3454
        %v3477 = vpack.c.b16 %v3457, %v3455
        %v3478 = vpack.c.b16 %v3460, %v3458
        %v3479 = vpack.c.b16 %v3461, %v3459
        %v3480 = vpack.c.b16 %v3464, %v3462
        %v3481 = vpack.c.b16 %v3465, %v3463
        %3498 = vmatprep.subr.bf16.mxu0 %v3481
        %3499 = vmatpush1.bf16.msra.mxu0 %v3480
        %3500 = vmatprep.subr.bf16.mxu0 %v3479
        %3501 = vmatpush1.bf16.msra.mxu0 %v3478
        %3502 = vmatprep.subr.bf16.mxu0 %v3477
        %3503 = vmatpush1.bf16.msra.mxu0 %v3476
        %3504 = vmatprep.subr.bf16.mxu0 %v3475
        %3505 = vmatpush1.bf16.msra.mxu0 %v3474
        %3506 = vmatprep.subr.bf16.mxu0 %v3473
        %3507 = vmatpush1.bf16.msra.mxu0 %v3472
        %3508 = vmatprep.subr.bf16.mxu0 %v3471
        %3509 = vmatpush1.bf16.msra.mxu0 %v3470
        %3510 = vmatprep.subr.bf16.mxu0 %v3469
        %3511 = vmatpush1.bf16.msra.mxu0 %v3468
        %3512 = vmatprep.subr.bf16.mxu0 %v3467
        %3513 = vmatpush1.bf16.msra.mxu0 %v3466
        %3514 = vmatprep.subr.bf16.mxu0 0
        %3515 = vmatpush2.bf16.msra.mxu0 0
        %3516 = vmatprep.subr.bf16.mxu0 0
        %3517 = vmatpush2.bf16.msra.mxu0 0
        %3518 = vmatprep.subr.bf16.mxu0 0
        %3519 = vmatpush2.bf16.msra.mxu0 0
        %3520 = vmatprep.subr.bf16.mxu0 0
        %3521 = vmatpush2.bf16.msra.mxu0 0
        %3522 = vmatprep.subr.bf16.mxu0 0
        %3523 = vmatpush2.bf16.msra.mxu0 0
        %3524 = vmatprep.subr.bf16.mxu0 0
        %3525 = vmatpush2.bf16.msra.mxu0 0
        %3526 = vmatprep.subr.bf16.mxu0 0
        %3527 = vmatpush2.bf16.msra.mxu0 0
        %3528 = vmatprep.subr.bf16.mxu0 0
        %3529 = vmatpush2.bf16.msra.mxu0 0
        %3530 = vmatprep.mubr.bf16.mxu0 0
        %3531 = vmatmul.mubr.bf16.gmra.mxu0 %v3243
        %v3532 = vpop.f32.mrf.mxu0
        %v3533 = vadd.f32 %v3400, %v3532
        %v3534 = vpop.f32.mrf.mxu0
        %v3535 = vadd.f32 %v3402, %v3534
        %v3536 = vpop.f32.mrf.mxu0
        %v3537 = vadd.f32 %v3404, %v3536
        %v3538 = vpop.f32.mrf.mxu0
        %v3539 = vadd.f32 %v3406, %v3538
        %3540 = vmatprep.mubr.bf16.mxu0 0
        %3541 = vmatmul.mubr.bf16.gmra.mxu0 %v3246
        %v3542 = vpop.f32.mrf.mxu0
        %v3543 = vadd.f32 %v3410, %v3542
        %v3544 = vpop.f32.mrf.mxu0
        %v3545 = vadd.f32 %v3412, %v3544
        %v3546 = vpop.f32.mrf.mxu0
        %v3547 = vadd.f32 %v3414, %v3546
        %v3548 = vpop.f32.mrf.mxu0
        %v3549 = vadd.f32 %v3416, %v3548
        %3550 = vdwg.mxu0
        %v3551 = vrot.slane %v3184, 4
        %v3552 = vrot.slane %v3185, 4
        %v3553 = vsel %vm1200, %v3551, %v3552
        %v3554 = vrot.slane %v3186, 4
        %v3555 = vrot.slane %v3187, 4
        %v3556 = vsel %vm1200, %v3554, %v3555
        %v3575 = vunpack.c.l.b16 %v3221
        %v3576 = vunpack.c.h.b16 %v3221
        %v3577 = vunpack.c.l.b16 %v3222
        %v3578 = vunpack.c.h.b16 %v3222
        %v3579 = vunpack.c.l.b16 %v3223
        %v3580 = vunpack.c.h.b16 %v3223
        %v3581 = vunpack.c.l.b16 %v3224
        %v3582 = vunpack.c.h.b16 %v3224
        %v3583 = vunpack.c.l.b16 %v3225
        %v3584 = vunpack.c.h.b16 %v3225
        %v3585 = vunpack.c.l.b16 %v3226
        %v3586 = vunpack.c.h.b16 %v3226
        %v3587 = vunpack.c.l.b16 %v3227
        %v3588 = vunpack.c.h.b16 %v3227
        %v3589 = vunpack.c.l.b16 %v3228
        %v3590 = vunpack.c.h.b16 %v3228
        %v3591 = vunpack.c.l.b16 %v3229
        %v3592 = vunpack.c.h.b16 %v3229
        %v3593 = vunpack.c.l.b16 %v3230
        %v3594 = vunpack.c.h.b16 %v3230
        %v3595 = vunpack.c.l.b16 %v3231
        %v3596 = vunpack.c.h.b16 %v3231
        %v3597 = vunpack.c.l.b16 %v3232
        %v3598 = vunpack.c.h.b16 %v3232
        %v3599 = vunpack.c.l.b16 %v3233
        %v3600 = vunpack.c.h.b16 %v3233
        %v3601 = vunpack.c.l.b16 %v3234
        %v3602 = vunpack.c.h.b16 %v3234
        %v3603 = vunpack.c.l.b16 %v3235
        %v3604 = vunpack.c.h.b16 %v3235
        %v3605 = vunpack.c.l.b16 %v3236
        %v3606 = vunpack.c.h.b16 %v3236
        %v3607 = vpack.c.b16 %v3577, %v3575
        %v3608 = vpack.c.b16 %v3578, %v3576
        %v3609 = vpack.c.b16 %v3581, %v3579
        %v3610 = vpack.c.b16 %v3582, %v3580
        %v3611 = vpack.c.b16 %v3585, %v3583
        %v3612 = vpack.c.b16 %v3586, %v3584
        %v3613 = vpack.c.b16 %v3589, %v3587
        %v3614 = vpack.c.b16 %v3590, %v3588
        %v3615 = vpack.c.b16 %v3593, %v3591
        %v3616 = vpack.c.b16 %v3594, %v3592
        %v3617 = vpack.c.b16 %v3597, %v3595
        %v3618 = vpack.c.b16 %v3598, %v3596
        %v3619 = vpack.c.b16 %v3601, %v3599
        %v3620 = vpack.c.b16 %v3602, %v3600
        %v3621 = vpack.c.b16 %v3605, %v3603
        %v3622 = vpack.c.b16 %v3606, %v3604
        %3639 = vmatprep.subr.bf16.mxu0 %v3622
        %3640 = vmatpush1.bf16.msra.mxu0 %v3621
        %3641 = vmatprep.subr.bf16.mxu0 %v3620
        %3642 = vmatpush1.bf16.msra.mxu0 %v3619
        %3643 = vmatprep.subr.bf16.mxu0 %v3618
        %3644 = vmatpush1.bf16.msra.mxu0 %v3617
        %3645 = vmatprep.subr.bf16.mxu0 %v3616
        %3646 = vmatpush1.bf16.msra.mxu0 %v3615
        %3647 = vmatprep.subr.bf16.mxu0 %v3614
        %3648 = vmatpush1.bf16.msra.mxu0 %v3613
        %3649 = vmatprep.subr.bf16.mxu0 %v3612
        %3650 = vmatpush1.bf16.msra.mxu0 %v3611
        %3651 = vmatprep.subr.bf16.mxu0 %v3610
        %3652 = vmatpush1.bf16.msra.mxu0 %v3609
        %3653 = vmatprep.subr.bf16.mxu0 %v3608
        %3654 = vmatpush1.bf16.msra.mxu0 %v3607
        %3655 = vmatprep.subr.bf16.mxu0 0
        %3656 = vmatpush2.bf16.msra.mxu0 0
        %3657 = vmatprep.subr.bf16.mxu0 0
        %3658 = vmatpush2.bf16.msra.mxu0 0
        %3659 = vmatprep.subr.bf16.mxu0 0
        %3660 = vmatpush2.bf16.msra.mxu0 0
        %3661 = vmatprep.subr.bf16.mxu0 0
        %3662 = vmatpush2.bf16.msra.mxu0 0
        %3663 = vmatprep.subr.bf16.mxu0 0
        %3664 = vmatpush2.bf16.msra.mxu0 0
        %3665 = vmatprep.subr.bf16.mxu0 0
        %3666 = vmatpush2.bf16.msra.mxu0 0
        %3667 = vmatprep.subr.bf16.mxu0 0
        %3668 = vmatpush2.bf16.msra.mxu0 0
        %3669 = vmatprep.subr.bf16.mxu0 0
        %3670 = vmatpush2.bf16.msra.mxu0 0
        %3671 = vmatprep.mubr.bf16.mxu0 0
        %3672 = vmatmul.mubr.bf16.gmra.mxu0 %v3553
        %v3673 = vpop.f32.mrf.mxu0
        %v3674 = vadd.f32 0.0, %v3673
        %v3675 = vpop.f32.mrf.mxu0
        %v3676 = vadd.f32 0.0, %v3675
        %v3677 = vpop.f32.mrf.mxu0
        %v3678 = vadd.f32 0.0, %v3677
        %v3679 = vpop.f32.mrf.mxu0
        %v3680 = vadd.f32 0.0, %v3679
        %3681 = vmatprep.mubr.bf16.mxu0 0
        %3682 = vmatmul.mubr.bf16.gmra.mxu0 %v3556
        %v3683 = vpop.f32.mrf.mxu0
        %v3684 = vadd.f32 0.0, %v3683
        %v3685 = vpop.f32.mrf.mxu0
        %v3686 = vadd.f32 0.0, %v3685
        %v3687 = vpop.f32.mrf.mxu0
        %v3688 = vadd.f32 0.0, %v3687
        %v3689 = vpop.f32.mrf.mxu0
        %v3690 = vadd.f32 0.0, %v3689
        %3691 = vdwg.mxu0
        %v3692 = vadd.f32 %v3533, %v3674
        %v3693 = vadd.f32 %v3535, %v3676
        %v3694 = vadd.f32 %v3537, %v3678
        %v3695 = vadd.f32 %v3539, %v3680
        %v3696 = vadd.f32 %v3543, %v3684
        %v3697 = vadd.f32 %v3545, %v3686
        %v3698 = vadd.f32 %v3547, %v3688
        %v3699 = vadd.f32 %v3549, %v3690
        %v3700 = vadd.f32 %v3692, %v3694
        %v3701 = vadd.f32 %v3700, %v3696
        %v3702 = vadd.f32 %v3701, %v3698
        %v3703 = vrot.slane %v3702, 4
        %v3704 = vadd.f32 %v3702, %v3703
        %v3705 = vrot.slane %v3704, 2
        %v3706 = vadd.f32 %v3704, %v3705
        %v3707 = vrot.slane %v3706, 1
        %v3708 = vadd.f32 %v3706, %v3707
        %v3709 = vadd.f32 %v3693, %v3695
        %v3710 = vadd.f32 %v3709, %v3697
        %v3711 = vadd.f32 %v3710, %v3699
        %v3712 = vrot.slane %v3711, 4
        %v3713 = vadd.f32 %v3711, %v3712
        %v3714 = vrot.slane %v3713, 2
        %v3715 = vadd.f32 %v3713, %v3714
        %v3716 = vrot.slane %v3715, 1
        %v3717 = vadd.f32 %v3715, %v3716
        %v3718 = vmul.f32 %v3708, 0.03125
        %v3719 = vmul.f32 %v3717, 0.03125
        %v3720 = vmul.f32 %v3692, %v3692
        %v3721 = vmul.f32 %v3693, %v3693
        %v3722 = vmul.f32 %v3694, %v3694
        %v3723 = vmul.f32 %v3695, %v3695
        %v3724 = vmul.f32 %v3696, %v3696
        %v3725 = vmul.f32 %v3697, %v3697
        %v3726 = vmul.f32 %v3698, %v3698
        %v3727 = vmul.f32 %v3699, %v3699
        %v3728 = vadd.f32 %v3720, %v3722
        %v3729 = vadd.f32 %v3728, %v3724
        %v3730 = vadd.f32 %v3729, %v3726
        %v3731 = vrot.slane %v3730, 4
        %v3732 = vadd.f32 %v3730, %v3731
        %v3733 = vrot.slane %v3732, 2
        %v3734 = vadd.f32 %v3732, %v3733
        %v3735 = vrot.slane %v3734, 1
        %v3736 = vadd.f32 %v3734, %v3735
        %v3737 = vadd.f32 %v3721, %v3723
        %v3738 = vadd.f32 %v3737, %v3725
        %v3739 = vadd.f32 %v3738, %v3727
        %v3740 = vrot.slane %v3739, 4
        %v3741 = vadd.f32 %v3739, %v3740
        %v3742 = vrot.slane %v3741, 2
        %v3743 = vadd.f32 %v3741, %v3742
        %v3744 = vrot.slane %v3743, 1
        %v3745 = vadd.f32 %v3743, %v3744
        %v3746 = vmul.f32 %v3736, 0.03125
        %v3747 = vmul.f32 %v3745, 0.03125
        %v3748 = vmul.f32 %v3718, %v3718
        %v3749 = vmul.f32 %v3719, %v3719
        %v3750 = vsub.f32 %v3746, %v3748
        %v3751 = vsub.f32 %v3747, %v3749
        %v3752 = vmax.f32 %v3750, 0.0
        %v3753 = vmax.f32 %v3751, 0.0
        %v3754 = vsub.f32 %v3692, %v3718
        %v3755 = vsub.f32 %v3693, %v3719
        %v3756 = vsub.f32 %v3694, %v3718
        %v3757 = vsub.f32 %v3695, %v3719
        %v3758 = vsub.f32 %v3696, %v3718
        %v3759 = vsub.f32 %v3697, %v3719
        %v3760 = vsub.f32 %v3698, %v3718
        %v3761 = vsub.f32 %v3699, %v3719
        %v3762 = vadd.f32 %v3752, 1e-05
        %v3763 = vadd.f32 %v3753, 1e-05
        %v3764 = vrsqrt.pop %v3762
        %v3765 = vrsqrt.pop %v3763
        %v3766 = vmul.f32 %v3754, %v3764
        %v3767 = vmul.f32 %v3755, %v3765
        %v3768 = vmul.f32 %v3756, %v3764
        %v3769 = vmul.f32 %v3757, %v3765
        %v3770 = vmul.f32 %v3758, %v3764
        %v3771 = vmul.f32 %v3759, %v3765
        %v3772 = vmul.f32 %v3760, %v3764
        %v3773 = vmul.f32 %v3761, %v3765
        %v3774 = vtanh.pop %v3766
        %v3775 = vtanh.pop %v3768
        %v3776 = vtanh.pop %v3770
        %v3777 = vtanh.pop %v3772
        %v3778 = vxor.u32 %v3767, 2147483648
        %v3779 = vxor.u32 %v3769, 2147483648
        %v3780 = vxor.u32 %v3771, 2147483648
        %v3781 = vxor.u32 %v3773, 2147483648
        %v3782 = vmul.f32 %v3778, 1.442695
        %v3783 = vpow.pop %v3782
        %v3784 = vmul.f32 %v3779, 1.442695
        %v3785 = vpow.pop %v3784
        %v3786 = vmul.f32 %v3780, 1.442695
        %v3787 = vpow.pop %v3786
        %v3788 = vmul.f32 %v3781, 1.442695
        %v3789 = vpow.pop %v3788
        %v3790 = vadd.f32 %v3783, 1.0
        %v3791 = vadd.f32 %v3785, 1.0
        %v3792 = vadd.f32 %v3787, 1.0
        %v3793 = vadd.f32 %v3789, 1.0
        %v3794 = vrcp.pop %v3790
        %v3795 = vmul.f32 1.0, %v3794
        %v3796 = vrcp.pop %v3791
        %v3797 = vmul.f32 1.0, %v3796
        %v3798 = vrcp.pop %v3792
        %v3799 = vmul.f32 1.0, %v3798
        %v3800 = vrcp.pop %v3793
        %v3801 = vmul.f32 1.0, %v3800
        %v3802 = vmul.f32 %v3774, %v3795
        %v3803 = vmul.f32 %v3775, %v3797
        %v3804 = vmul.f32 %v3776, %v3799
        %v3805 = vmul.f32 %v3777, %v3801
        %v3806 = vpack.c.bf16 %v3803, %v3802
        %v3807 = vpack.c.bf16 %v3805, %v3804
        %s3808 = scalar_lea.vmem %s490, 384 [#allocation7]
        %v3809 = vld [vmem:[%s3808] sm:$0xff]
        %v3810 = vld [vmem:[%s3808 + $0x8] sm:$0xff]
        %v3811 = vld [vmem:[%s3808 + $0x10] sm:$0xff]
        %v3812 = vld [vmem:[%s3808 + $0x18] sm:$0xff]
        %v3813 = vld [vmem:[%s3808 + $0x20] sm:$0xff]
        %v3814 = vld [vmem:[%s3808 + $0x28] sm:$0xff]
        %v3815 = vld [vmem:[%s3808 + $0x30] sm:$0xff]
        %v3816 = vld [vmem:[%s3808 + $0x38] sm:$0xff]
        %v3817 = vld [vmem:[%s3808 + $0x40] sm:$0xff]
        %v3818 = vld [vmem:[%s3808 + $0x48] sm:$0xff]
        %v3819 = vld [vmem:[%s3808 + $0x50] sm:$0xff]
        %v3820 = vld [vmem:[%s3808 + $0x58] sm:$0xff]
        %v3821 = vld [vmem:[%s3808 + $0x60] sm:$0xff]
        %v3822 = vld [vmem:[%s3808 + $0x68] sm:$0xff]
        %v3823 = vld [vmem:[%s3808 + $0x70] sm:$0xff]
        %v3824 = vld [vmem:[%s3808 + $0x78] sm:$0xff]
        %s3825 = scalar_lea.vmem %s499, 6 [#allocation8]
        %v3826 = vld [vmem:[%s3825] sm:$0x3]
        %v3828 = vlaneseq
        %v3829 = vshrl.u32 %v3828, 7
        %v3830 = vsub.s32 0, %v3829
        %v3831 = vrot.slane %v3826, %v3830
        %v3832 = vlaneseq
        %v3833 = vshrl.u32 %v3832, 7
        %v3834 = vsub.s32 1, %v3833
        %v3835 = vrot.slane %v3826, %v3834
        %v3854 = vunpack.c.l.b16 %v3809
        %v3855 = vunpack.c.h.b16 %v3809
        %v3856 = vunpack.c.l.b16 %v3810
        %v3857 = vunpack.c.h.b16 %v3810
        %v3858 = vunpack.c.l.b16 %v3811
        %v3859 = vunpack.c.h.b16 %v3811
        %v3860 = vunpack.c.l.b16 %v3812
        %v3861 = vunpack.c.h.b16 %v3812
        %v3862 = vunpack.c.l.b16 %v3813
        %v3863 = vunpack.c.h.b16 %v3813
        %v3864 = vunpack.c.l.b16 %v3814
        %v3865 = vunpack.c.h.b16 %v3814
        %v3866 = vunpack.c.l.b16 %v3815
        %v3867 = vunpack.c.h.b16 %v3815
        %v3868 = vunpack.c.l.b16 %v3816
        %v3869 = vunpack.c.h.b16 %v3816
        %v3870 = vunpack.c.l.b16 %v3817
        %v3871 = vunpack.c.h.b16 %v3817
        %v3872 = vunpack.c.l.b16 %v3818
        %v3873 = vunpack.c.h.b16 %v3818
        %v3874 = vunpack.c.l.b16 %v3819
        %v3875 = vunpack.c.h.b16 %v3819
        %v3876 = vunpack.c.l.b16 %v3820
        %v3877 = vunpack.c.h.b16 %v3820
        %v3878 = vunpack.c.l.b16 %v3821
        %v3879 = vunpack.c.h.b16 %v3821
        %v3880 = vunpack.c.l.b16 %v3822
        %v3881 = vunpack.c.h.b16 %v3822
        %v3882 = vunpack.c.l.b16 %v3823
        %v3883 = vunpack.c.h.b16 %v3823
        %v3884 = vunpack.c.l.b16 %v3824
        %v3885 = vunpack.c.h.b16 %v3824
        %v3886 = vpack.c.b16 %v3856, %v3854
        %v3887 = vpack.c.b16 %v3857, %v3855
        %v3888 = vpack.c.b16 %v3860, %v3858
        %v3889 = vpack.c.b16 %v3861, %v3859
        %v3890 = vpack.c.b16 %v3864, %v3862
        %v3891 = vpack.c.b16 %v3865, %v3863
        %v3892 = vpack.c.b16 %v3868, %v3866
        %v3893 = vpack.c.b16 %v3869, %v3867
        %v3894 = vpack.c.b16 %v3872, %v3870
        %v3895 = vpack.c.b16 %v3873, %v3871
        %v3896 = vpack.c.b16 %v3876, %v3874
        %v3897 = vpack.c.b16 %v3877, %v3875
        %v3898 = vpack.c.b16 %v3880, %v3878
        %v3899 = vpack.c.b16 %v3881, %v3879
        %v3900 = vpack.c.b16 %v3884, %v3882
        %v3901 = vpack.c.b16 %v3885, %v3883
        %3918 = vmatprep.subr.bf16.mxu0 %v3901
        %3919 = vmatpush1.bf16.msra.mxu0 %v3900
        %3920 = vmatprep.subr.bf16.mxu0 %v3899
        %3921 = vmatpush1.bf16.msra.mxu0 %v3898
        %3922 = vmatprep.subr.bf16.mxu0 %v3897
        %3923 = vmatpush1.bf16.msra.mxu0 %v3896
        %3924 = vmatprep.subr.bf16.mxu0 %v3895
        %3925 = vmatpush1.bf16.msra.mxu0 %v3894
        %3926 = vmatprep.subr.bf16.mxu0 %v3893
        %3927 = vmatpush1.bf16.msra.mxu0 %v3892
        %3928 = vmatprep.subr.bf16.mxu0 %v3891
        %3929 = vmatpush1.bf16.msra.mxu0 %v3890
        %3930 = vmatprep.subr.bf16.mxu0 %v3889
        %3931 = vmatpush1.bf16.msra.mxu0 %v3888
        %3932 = vmatprep.subr.bf16.mxu0 %v3887
        %3933 = vmatpush1.bf16.msra.mxu0 %v3886
        %3934 = vmatprep.subr.bf16.mxu0 0
        %3935 = vmatpush2.bf16.msra.mxu0 0
        %3936 = vmatprep.subr.bf16.mxu0 0
        %3937 = vmatpush2.bf16.msra.mxu0 0
        %3938 = vmatprep.subr.bf16.mxu0 0
        %3939 = vmatpush2.bf16.msra.mxu0 0
        %3940 = vmatprep.subr.bf16.mxu0 0
        %3941 = vmatpush2.bf16.msra.mxu0 0
        %3942 = vmatprep.subr.bf16.mxu0 0
        %3943 = vmatpush2.bf16.msra.mxu0 0
        %3944 = vmatprep.subr.bf16.mxu0 0
        %3945 = vmatpush2.bf16.msra.mxu0 0
        %3946 = vmatprep.subr.bf16.mxu0 0
        %3947 = vmatpush2.bf16.msra.mxu0 0
        %3948 = vmatprep.subr.bf16.mxu0 0
        %3949 = vmatpush2.bf16.msra.mxu0 0
        %3950 = vmatprep.mubr.bf16.mxu0 0
        %3951 = vmatmul.mubr.bf16.gmra.mxu0 %v3806
        %v3952 = vpop.f32.mrf.mxu0
        %v3953 = vadd.f32 %v3831, %v3952
        %v3954 = vpop.f32.mrf.mxu0
        %v3955 = vadd.f32 %v3835, %v3954
        %v3956 = vpop.f32.mrf.mxu0
        %v3957 = vadd.f32 %v3831, %v3956
        %v3958 = vpop.f32.mrf.mxu0
        %v3959 = vadd.f32 %v3835, %v3958
        %3960 = vmatprep.mubr.bf16.mxu0 0
        %3961 = vmatmul.mubr.bf16.gmra.mxu0 %v3807
        %v3962 = vpop.f32.mrf.mxu0
        %v3963 = vadd.f32 %v3831, %v3962
        %v3964 = vpop.f32.mrf.mxu0
        %v3965 = vadd.f32 %v3835, %v3964
        %v3966 = vpop.f32.mrf.mxu0
        %v3967 = vadd.f32 %v3831, %v3966
        %v3968 = vpop.f32.mrf.mxu0
        %v3969 = vadd.f32 %v3835, %v3968
        %3970 = vdwg.mxu0
        %v3971 = vadd.f32 %v3166, %v3955
        %v3972 = vadd.f32 %v3167, %v3959
        %v3973 = vadd.f32 %v3168, %v3965
        %v3974 = vadd.f32 %v3169, %v3969
        %v3975 = vadd.f32 %v3953, %v3179
        %v3976 = vadd.f32 %v3957, %v3180
        %v3977 = vadd.f32 %v3963, %v3182
        %v3978 = vadd.f32 %v3967, %v3183
        %3979 = vst [vmem:[#allocation2 + $0x8] sm:$0xff] %v3975
        %3980 = vst [vmem:[#allocation2 + $0x10] sm:$0xff] %v3976
        %3981 = vst [vmem:[#allocation2 + $0x20] sm:$0xff] %v3977
        %3982 = vst [vmem:[#allocation2 + $0x28] sm:$0xff] %v3978
        %v3983 = vld [vmem:[#allocation2] sm:$0xff]
        %v3984 = vld [vmem:[#allocation2 + $0x8] sm:$0xff]
        %v3985 = vld [vmem:[#allocation2 + $0x10] sm:$0xff]
        %v3986 = vld [vmem:[#allocation2 + $0x18] sm:$0xff]
        %v3987 = vld [vmem:[#allocation2 + $0x20] sm:$0xff]
        %v3988 = vld [vmem:[#allocation2 + $0x28] sm:$0xff]
        %v3989 = vpack.c.bf16 %v3984, %v3983
        %v3990 = vpack.c.bf16 %v3985, %v3985
        %v3991 = vpack.c.bf16 %v3987, %v3986
        %v3992 = vpack.c.bf16 %v3988, %v3988
        %s3993 = scalar_lea.vmem %s481, 1536 [#allocation5]
        %v3994 = vld [vmem:[%s3993] sm:$0xff]
        %v3995 = vld [vmem:[%s3993 + $0x8] sm:$0xff]
        %v3996 = vld [vmem:[%s3993 + $0x10] sm:$0xff]
        %v3997 = vld [vmem:[%s3993 + $0x18] sm:$0xff]
        %v3998 = vld [vmem:[%s3993 + $0x20] sm:$0xff]
        %v3999 = vld [vmem:[%s3993 + $0x28] sm:$0xff]
        %v4000 = vld [vmem:[%s3993 + $0x30] sm:$0xff]
        %v4001 = vld [vmem:[%s3993 + $0x38] sm:$0xff]
        %v4002 = vld [vmem:[%s3993 + $0x40] sm:$0xff]
        %v4003 = vld [vmem:[%s3993 + $0x48] sm:$0xff]
        %v4004 = vld [vmem:[%s3993 + $0x50] sm:$0xff]
        %v4005 = vld [vmem:[%s3993 + $0x58] sm:$0xff]
        %v4006 = vld [vmem:[%s3993 + $0x60] sm:$0xff]
        %v4007 = vld [vmem:[%s3993 + $0x68] sm:$0xff]
        %v4008 = vld [vmem:[%s3993 + $0x70] sm:$0xff]
        %v4009 = vld [vmem:[%s3993 + $0x78] sm:$0xff]
        %v4010 = vld [vmem:[%s3993 + $0x80] sm:$0xff]
        %v4011 = vld [vmem:[%s3993 + $0x88] sm:$0xff]
        %v4012 = vld [vmem:[%s3993 + $0x90] sm:$0xff]
        %v4013 = vld [vmem:[%s3993 + $0x98] sm:$0xff]
        %v4014 = vld [vmem:[%s3993 + $0xa0] sm:$0xff]
        %v4015 = vld [vmem:[%s3993 + $0xa8] sm:$0xff]
        %v4016 = vld [vmem:[%s3993 + $0xb0] sm:$0xff]
        %v4017 = vld [vmem:[%s3993 + $0xb8] sm:$0xff]
        %v4018 = vld [vmem:[%s3993 + $0xc0] sm:$0xff]
        %v4019 = vld [vmem:[%s3993 + $0xc8] sm:$0xff]
        %v4020 = vld [vmem:[%s3993 + $0xd0] sm:$0xff]
        %v4021 = vld [vmem:[%s3993 + $0xd8] sm:$0xff]
        %v4022 = vld [vmem:[%s3993 + $0xe0] sm:$0xff]
        %v4023 = vld [vmem:[%s3993 + $0xe8] sm:$0xff]
        %v4024 = vld [vmem:[%s3993 + $0xf0] sm:$0xff]
        %v4025 = vld [vmem:[%s3993 + $0xf8] sm:$0xff]
        %v4026 = vld [vmem:[%s3993 + $0x100] sm:$0xff]
        %v4027 = vld [vmem:[%s3993 + $0x108] sm:$0xff]
        %v4028 = vld [vmem:[%s3993 + $0x110] sm:$0xff]
        %v4029 = vld [vmem:[%s3993 + $0x118] sm:$0xff]
        %v4030 = vld [vmem:[%s3993 + $0x120] sm:$0xff]
        %v4031 = vld [vmem:[%s3993 + $0x128] sm:$0xff]
        %v4032 = vld [vmem:[%s3993 + $0x130] sm:$0xff]
        %v4033 = vld [vmem:[%s3993 + $0x138] sm:$0xff]
        %v4034 = vld [vmem:[%s3993 + $0x140] sm:$0xff]
        %v4035 = vld [vmem:[%s3993 + $0x148] sm:$0xff]
        %v4036 = vld [vmem:[%s3993 + $0x150] sm:$0xff]
        %v4037 = vld [vmem:[%s3993 + $0x158] sm:$0xff]
        %v4038 = vld [vmem:[%s3993 + $0x160] sm:$0xff]
        %v4039 = vld [vmem:[%s3993 + $0x168] sm:$0xff]
        %v4040 = vld [vmem:[%s3993 + $0x170] sm:$0xff]
        %v4041 = vld [vmem:[%s3993 + $0x178] sm:$0xff]
        %v4046 = vrot.slane %v3989, 2
        %v4047 = vrot.slane %v3990, 2
        %v4048 = vsel %vm1694, %v4046, %v4047
        %v4049 = vrot.slane %v3991, 2
        %v4050 = vrot.slane %v3992, 2
        %v4051 = vsel %vm1694, %v4049, %v4050
        %v4054 = vrot.slane %v3989, 3
        %v4055 = vrot.slane %v3990, 3
        %v4056 = vsel %vm888, %v4054, %v4055
        %v4057 = vrot.slane %v3991, 3
        %v4058 = vrot.slane %v3992, 3
        %v4059 = vsel %vm888, %v4057, %v4058
        %v4078 = vunpack.c.l.b16 %v4010
        %v4079 = vunpack.c.h.b16 %v4010
        %v4080 = vunpack.c.l.b16 %v4011
        %v4081 = vunpack.c.h.b16 %v4011
        %v4082 = vunpack.c.l.b16 %v4012
        %v4083 = vunpack.c.h.b16 %v4012
        %v4084 = vunpack.c.l.b16 %v4013
        %v4085 = vunpack.c.h.b16 %v4013
        %v4086 = vunpack.c.l.b16 %v4014
        %v4087 = vunpack.c.h.b16 %v4014
        %v4088 = vunpack.c.l.b16 %v4015
        %v4089 = vunpack.c.h.b16 %v4015
        %v4090 = vunpack.c.l.b16 %v4016
        %v4091 = vunpack.c.h.b16 %v4016
        %v4092 = vunpack.c.l.b16 %v4017
        %v4093 = vunpack.c.h.b16 %v4017
        %v4094 = vunpack.c.l.b16 %v4018
        %v4095 = vunpack.c.h.b16 %v4018
        %v4096 = vunpack.c.l.b16 %v4019
        %v4097 = vunpack.c.h.b16 %v4019
        %v4098 = vunpack.c.l.b16 %v4020
        %v4099 = vunpack.c.h.b16 %v4020
        %v4100 = vunpack.c.l.b16 %v4021
        %v4101 = vunpack.c.h.b16 %v4021
        %v4102 = vunpack.c.l.b16 %v4022
        %v4103 = vunpack.c.h.b16 %v4022
        %v4104 = vunpack.c.l.b16 %v4023
        %v4105 = vunpack.c.h.b16 %v4023
        %v4106 = vunpack.c.l.b16 %v4024
        %v4107 = vunpack.c.h.b16 %v4024
        %v4108 = vunpack.c.l.b16 %v4025
        %v4109 = vunpack.c.h.b16 %v4025
        %v4110 = vpack.c.b16 %v4080, %v4078
        %v4111 = vpack.c.b16 %v4081, %v4079
        %v4112 = vpack.c.b16 %v4084, %v4082
        %v4113 = vpack.c.b16 %v4085, %v4083
        %v4114 = vpack.c.b16 %v4088, %v4086
        %v4115 = vpack.c.b16 %v4089, %v4087
        %v4116 = vpack.c.b16 %v4092, %v4090
        %v4117 = vpack.c.b16 %v4093, %v4091
        %v4118 = vpack.c.b16 %v4096, %v4094
        %v4119 = vpack.c.b16 %v4097, %v4095
        %v4120 = vpack.c.b16 %v4100, %v4098
        %v4121 = vpack.c.b16 %v4101, %v4099
        %v4122 = vpack.c.b16 %v4104, %v4102
        %v4123 = vpack.c.b16 %v4105, %v4103
        %v4124 = vpack.c.b16 %v4108, %v4106
        %v4125 = vpack.c.b16 %v4109, %v4107
        %4142 = vmatprep.subr.bf16.mxu0 %v4125
        %4143 = vmatpush1.bf16.msra.mxu0 %v4124
        %4144 = vmatprep.subr.bf16.mxu0 %v4123
        %4145 = vmatpush1.bf16.msra.mxu0 %v4122
        %4146 = vmatprep.subr.bf16.mxu0 %v4121
        %4147 = vmatpush1.bf16.msra.mxu0 %v4120
        %4148 = vmatprep.subr.bf16.mxu0 %v4119
        %4149 = vmatpush1.bf16.msra.mxu0 %v4118
        %4150 = vmatprep.subr.bf16.mxu0 %v4117
        %4151 = vmatpush1.bf16.msra.mxu0 %v4116
        %4152 = vmatprep.subr.bf16.mxu0 %v4115
        %4153 = vmatpush1.bf16.msra.mxu0 %v4114
        %4154 = vmatprep.subr.bf16.mxu0 %v4113
        %4155 = vmatpush1.bf16.msra.mxu0 %v4112
        %4156 = vmatprep.subr.bf16.mxu0 %v4111
        %4157 = vmatpush1.bf16.msra.mxu0 %v4110
        %4158 = vmatprep.subr.bf16.mxu0 0
        %4159 = vmatpush2.bf16.msra.mxu0 0
        %4160 = vmatprep.subr.bf16.mxu0 0
        %4161 = vmatpush2.bf16.msra.mxu0 0
        %4162 = vmatprep.subr.bf16.mxu0 0
        %4163 = vmatpush2.bf16.msra.mxu0 0
        %4164 = vmatprep.subr.bf16.mxu0 0
        %4165 = vmatpush2.bf16.msra.mxu0 0
        %4166 = vmatprep.subr.bf16.mxu0 0
        %4167 = vmatpush2.bf16.msra.mxu0 0
        %4168 = vmatprep.subr.bf16.mxu0 0
        %4169 = vmatpush2.bf16.msra.mxu0 0
        %4170 = vmatprep.subr.bf16.mxu0 0
        %4171 = vmatpush2.bf16.msra.mxu0 0
        %4172 = vmatprep.subr.bf16.mxu0 0
        %4173 = vmatpush2.bf16.msra.mxu0 0
        %4174 = vmatprep.mubr.bf16.mxu0 0
        %4175 = vmatmul.mubr.bf16.gmra.mxu0 %v4056
        %v4176 = vpop.f32.mrf.mxu0
        %v4177 = vadd.f32 0.0, %v4176
        %v4178 = vpop.f32.mrf.mxu0
        %v4179 = vadd.f32 0.0, %v4178
        %v4180 = vpop.f32.mrf.mxu0
        %v4181 = vadd.f32 0.0, %v4180
        %v4182 = vpop.f32.mrf.mxu0
        %v4183 = vadd.f32 0.0, %v4182
        %4184 = vmatprep.mubr.bf16.mxu0 0
        %4185 = vmatmul.mubr.bf16.gmra.mxu0 %v4059
        %v4186 = vpop.f32.mrf.mxu0
        %v4187 = vadd.f32 0.0, %v4186
        %v4188 = vpop.f32.mrf.mxu0
        %v4189 = vadd.f32 0.0, %v4188
        %v4190 = vpop.f32.mrf.mxu0
        %v4191 = vadd.f32 0.0, %v4190
        %v4192 = vpop.f32.mrf.mxu0
        %v4193 = vadd.f32 0.0, %v4192
        %4194 = vdwg.mxu0
        %v4211 = vunpack.c.l.b16 %v3994
        %v4212 = vunpack.c.h.b16 %v3994
        %v4213 = vunpack.c.l.b16 %v3995
        %v4214 = vunpack.c.h.b16 %v3995
        %v4215 = vunpack.c.l.b16 %v3996
        %v4216 = vunpack.c.h.b16 %v3996
        %v4217 = vunpack.c.l.b16 %v3997
        %v4218 = vunpack.c.h.b16 %v3997
        %v4219 = vunpack.c.l.b16 %v3998
        %v4220 = vunpack.c.h.b16 %v3998
        %v4221 = vunpack.c.l.b16 %v3999
        %v4222 = vunpack.c.h.b16 %v3999
        %v4223 = vunpack.c.l.b16 %v4000
        %v4224 = vunpack.c.h.b16 %v4000
        %v4225 = vunpack.c.l.b16 %v4001
        %v4226 = vunpack.c.h.b16 %v4001
        %v4227 = vunpack.c.l.b16 %v4002
        %v4228 = vunpack.c.h.b16 %v4002
        %v4229 = vunpack.c.l.b16 %v4003
        %v4230 = vunpack.c.h.b16 %v4003
        %v4231 = vunpack.c.l.b16 %v4004
        %v4232 = vunpack.c.h.b16 %v4004
        %v4233 = vunpack.c.l.b16 %v4005
        %v4234 = vunpack.c.h.b16 %v4005
        %v4235 = vunpack.c.l.b16 %v4006
        %v4236 = vunpack.c.h.b16 %v4006
        %v4237 = vunpack.c.l.b16 %v4007
        %v4238 = vunpack.c.h.b16 %v4007
        %v4239 = vunpack.c.l.b16 %v4008
        %v4240 = vunpack.c.h.b16 %v4008
        %v4241 = vunpack.c.l.b16 %v4009
        %v4242 = vunpack.c.h.b16 %v4009
        %v4243 = vpack.c.b16 %v4213, %v4211
        %v4244 = vpack.c.b16 %v4214, %v4212
        %v4245 = vpack.c.b16 %v4217, %v4215
        %v4246 = vpack.c.b16 %v4218, %v4216
        %v4247 = vpack.c.b16 %v4221, %v4219
        %v4248 = vpack.c.b16 %v4222, %v4220
        %v4249 = vpack.c.b16 %v4225, %v4223
        %v4250 = vpack.c.b16 %v4226, %v4224
        %v4251 = vpack.c.b16 %v4229, %v4227
        %v4252 = vpack.c.b16 %v4230, %v4228
        %v4253 = vpack.c.b16 %v4233, %v4231
        %v4254 = vpack.c.b16 %v4234, %v4232
        %v4255 = vpack.c.b16 %v4237, %v4235
        %v4256 = vpack.c.b16 %v4238, %v4236
        %v4257 = vpack.c.b16 %v4241, %v4239
        %v4258 = vpack.c.b16 %v4242, %v4240
        %4275 = vmatprep.subr.bf16.mxu0 %v4258
        %4276 = vmatpush1.bf16.msra.mxu0 %v4257
        %4277 = vmatprep.subr.bf16.mxu0 %v4256
        %4278 = vmatpush1.bf16.msra.mxu0 %v4255
        %4279 = vmatprep.subr.bf16.mxu0 %v4254
        %4280 = vmatpush1.bf16.msra.mxu0 %v4253
        %4281 = vmatprep.subr.bf16.mxu0 %v4252
        %4282 = vmatpush1.bf16.msra.mxu0 %v4251
        %4283 = vmatprep.subr.bf16.mxu0 %v4250
        %4284 = vmatpush1.bf16.msra.mxu0 %v4249
        %4285 = vmatprep.subr.bf16.mxu0 %v4248
        %4286 = vmatpush1.bf16.msra.mxu0 %v4247
        %4287 = vmatprep.subr.bf16.mxu0 %v4246
        %4288 = vmatpush1.bf16.msra.mxu0 %v4245
        %4289 = vmatprep.subr.bf16.mxu0 %v4244
        %4290 = vmatpush1.bf16.msra.mxu0 %v4243
        %4291 = vmatprep.subr.bf16.mxu0 0
        %4292 = vmatpush2.bf16.msra.mxu0 0
        %4293 = vmatprep.subr.bf16.mxu0 0
        %4294 = vmatpush2.bf16.msra.mxu0 0
        %4295 = vmatprep.subr.bf16.mxu0 0
        %4296 = vmatpush2.bf16.msra.mxu0 0
        %4297 = vmatprep.subr.bf16.mxu0 0
        %4298 = vmatpush2.bf16.msra.mxu0 0
        %4299 = vmatprep.subr.bf16.mxu0 0
        %4300 = vmatpush2.bf16.msra.mxu0 0
        %4301 = vmatprep.subr.bf16.mxu0 0
        %4302 = vmatpush2.bf16.msra.mxu0 0
        %4303 = vmatprep.subr.bf16.mxu0 0
        %4304 = vmatpush2.bf16.msra.mxu0 0
        %4305 = vmatprep.subr.bf16.mxu0 0
        %4306 = vmatpush2.bf16.msra.mxu0 0
        %4307 = vmatprep.mubr.bf16.mxu0 0
        %4308 = vmatmul.mubr.bf16.gmra.mxu0 %v4048
        %v4309 = vpop.f32.mrf.mxu0
        %v4310 = vadd.f32 %v4177, %v4309
        %v4311 = vpop.f32.mrf.mxu0
        %v4312 = vadd.f32 %v4179, %v4311
        %v4313 = vpop.f32.mrf.mxu0
        %v4314 = vadd.f32 %v4181, %v4313
        %v4315 = vpop.f32.mrf.mxu0
        %v4316 = vadd.f32 %v4183, %v4315
        %4317 = vmatprep.mubr.bf16.mxu0 0
        %4318 = vmatmul.mubr.bf16.gmra.mxu0 %v4051
        %v4319 = vpop.f32.mrf.mxu0
        %v4320 = vadd.f32 %v4187, %v4319
        %v4321 = vpop.f32.mrf.mxu0
        %v4322 = vadd.f32 %v4189, %v4321
        %v4323 = vpop.f32.mrf.mxu0
        %v4324 = vadd.f32 %v4191, %v4323
        %v4325 = vpop.f32.mrf.mxu0
        %v4326 = vadd.f32 %v4193, %v4325
        %4327 = vdwg.mxu0
        %v4328 = vrot.slane %v3989, 4
        %v4329 = vrot.slane %v3990, 4
        %v4330 = vsel %vm1200, %v4328, %v4329
        %v4331 = vrot.slane %v3991, 4
        %v4332 = vrot.slane %v3992, 4
        %v4333 = vsel %vm1200, %v4331, %v4332
        %v4352 = vunpack.c.l.b16 %v4026
        %v4353 = vunpack.c.h.b16 %v4026
        %v4354 = vunpack.c.l.b16 %v4027
        %v4355 = vunpack.c.h.b16 %v4027
        %v4356 = vunpack.c.l.b16 %v4028
        %v4357 = vunpack.c.h.b16 %v4028
        %v4358 = vunpack.c.l.b16 %v4029
        %v4359 = vunpack.c.h.b16 %v4029
        %v4360 = vunpack.c.l.b16 %v4030
        %v4361 = vunpack.c.h.b16 %v4030
        %v4362 = vunpack.c.l.b16 %v4031
        %v4363 = vunpack.c.h.b16 %v4031
        %v4364 = vunpack.c.l.b16 %v4032
        %v4365 = vunpack.c.h.b16 %v4032
        %v4366 = vunpack.c.l.b16 %v4033
        %v4367 = vunpack.c.h.b16 %v4033
        %v4368 = vunpack.c.l.b16 %v4034
        %v4369 = vunpack.c.h.b16 %v4034
        %v4370 = vunpack.c.l.b16 %v4035
        %v4371 = vunpack.c.h.b16 %v4035
        %v4372 = vunpack.c.l.b16 %v4036
        %v4373 = vunpack.c.h.b16 %v4036
        %v4374 = vunpack.c.l.b16 %v4037
        %v4375 = vunpack.c.h.b16 %v4037
        %v4376 = vunpack.c.l.b16 %v4038
        %v4377 = vunpack.c.h.b16 %v4038
        %v4378 = vunpack.c.l.b16 %v4039
        %v4379 = vunpack.c.h.b16 %v4039
        %v4380 = vunpack.c.l.b16 %v4040
        %v4381 = vunpack.c.h.b16 %v4040
        %v4382 = vunpack.c.l.b16 %v4041
        %v4383 = vunpack.c.h.b16 %v4041
        %v4384 = vpack.c.b16 %v4354, %v4352
        %v4385 = vpack.c.b16 %v4355, %v4353
        %v4386 = vpack.c.b16 %v4358, %v4356
        %v4387 = vpack.c.b16 %v4359, %v4357
        %v4388 = vpack.c.b16 %v4362, %v4360
        %v4389 = vpack.c.b16 %v4363, %v4361
        %v4390 = vpack.c.b16 %v4366, %v4364
        %v4391 = vpack.c.b16 %v4367, %v4365
        %v4392 = vpack.c.b16 %v4370, %v4368
        %v4393 = vpack.c.b16 %v4371, %v4369
        %v4394 = vpack.c.b16 %v4374, %v4372
        %v4395 = vpack.c.b16 %v4375, %v4373
        %v4396 = vpack.c.b16 %v4378, %v4376
        %v4397 = vpack.c.b16 %v4379, %v4377
        %v4398 = vpack.c.b16 %v4382, %v4380
        %v4399 = vpack.c.b16 %v4383, %v4381
        %4416 = vmatprep.subr.bf16.mxu0 %v4399
        %4417 = vmatpush1.bf16.msra.mxu0 %v4398
        %4418 = vmatprep.subr.bf16.mxu0 %v4397
        %4419 = vmatpush1.bf16.msra.mxu0 %v4396
        %4420 = vmatprep.subr.bf16.mxu0 %v4395
        %4421 = vmatpush1.bf16.msra.mxu0 %v4394
        %4422 = vmatprep.subr.bf16.mxu0 %v4393
        %4423 = vmatpush1.bf16.msra.mxu0 %v4392
        %4424 = vmatprep.subr.bf16.mxu0 %v4391
        %4425 = vmatpush1.bf16.msra.mxu0 %v4390
        %4426 = vmatprep.subr.bf16.mxu0 %v4389
        %4427 = vmatpush1.bf16.msra.mxu0 %v4388
        %4428 = vmatprep.subr.bf16.mxu0 %v4387
        %4429 = vmatpush1.bf16.msra.mxu0 %v4386
        %4430 = vmatprep.subr.bf16.mxu0 %v4385
        %4431 = vmatpush1.bf16.msra.mxu0 %v4384
        %4432 = vmatprep.subr.bf16.mxu0 0
        %4433 = vmatpush2.bf16.msra.mxu0 0
        %4434 = vmatprep.subr.bf16.mxu0 0
        %4435 = vmatpush2.bf16.msra.mxu0 0
        %4436 = vmatprep.subr.bf16.mxu0 0
        %4437 = vmatpush2.bf16.msra.mxu0 0
        %4438 = vmatprep.subr.bf16.mxu0 0
        %4439 = vmatpush2.bf16.msra.mxu0 0
        %4440 = vmatprep.subr.bf16.mxu0 0
        %4441 = vmatpush2.bf16.msra.mxu0 0
        %4442 = vmatprep.subr.bf16.mxu0 0
        %4443 = vmatpush2.bf16.msra.mxu0 0
        %4444 = vmatprep.subr.bf16.mxu0 0
        %4445 = vmatpush2.bf16.msra.mxu0 0
        %4446 = vmatprep.subr.bf16.mxu0 0
        %4447 = vmatpush2.bf16.msra.mxu0 0
        %4448 = vmatprep.mubr.bf16.mxu0 0
        %4449 = vmatmul.mubr.bf16.gmra.mxu0 %v4330
        %v4450 = vpop.f32.mrf.mxu0
        %v4451 = vadd.f32 0.0, %v4450
        %v4452 = vpop.f32.mrf.mxu0
        %v4453 = vadd.f32 0.0, %v4452
        %v4454 = vpop.f32.mrf.mxu0
        %v4455 = vadd.f32 0.0, %v4454
        %v4456 = vpop.f32.mrf.mxu0
        %v4457 = vadd.f32 0.0, %v4456
        %4458 = vmatprep.mubr.bf16.mxu0 0
        %4459 = vmatmul.mubr.bf16.gmra.mxu0 %v4333
        %v4460 = vpop.f32.mrf.mxu0
        %v4461 = vadd.f32 0.0, %v4460
        %v4462 = vpop.f32.mrf.mxu0
        %v4463 = vadd.f32 0.0, %v4462
        %v4464 = vpop.f32.mrf.mxu0
        %v4465 = vadd.f32 0.0, %v4464
        %v4466 = vpop.f32.mrf.mxu0
        %v4467 = vadd.f32 0.0, %v4466
        %4468 = vdwg.mxu0
        %v4469 = vadd.f32 %v4310, %v4451
        %v4470 = vadd.f32 %v4312, %v4453
        %v4471 = vadd.f32 %v4314, %v4455
        %v4472 = vadd.f32 %v4316, %v4457
        %v4473 = vadd.f32 %v4320, %v4461
        %v4474 = vadd.f32 %v4322, %v4463
        %v4475 = vadd.f32 %v4324, %v4465
        %v4476 = vadd.f32 %v4326, %v4467
        %v4477 = vadd.f32 %v4469, %v4471
        %v4478 = vadd.f32 %v4477, %v4473
        %v4479 = vadd.f32 %v4478, %v4475
        %v4480 = vrot.slane %v4479, 4
        %v4481 = vadd.f32 %v4479, %v4480
        %v4482 = vrot.slane %v4481, 2
        %v4483 = vadd.f32 %v4481, %v4482
        %v4484 = vrot.slane %v4483, 1
        %v4485 = vadd.f32 %v4483, %v4484
        %v4486 = vadd.f32 %v4470, %v4472
        %v4487 = vadd.f32 %v4486, %v4474
        %v4488 = vadd.f32 %v4487, %v4476
        %v4489 = vrot.slane %v4488, 4
        %v4490 = vadd.f32 %v4488, %v4489
        %v4491 = vrot.slane %v4490, 2
        %v4492 = vadd.f32 %v4490, %v4491
        %v4493 = vrot.slane %v4492, 1
        %v4494 = vadd.f32 %v4492, %v4493
        %v4495 = vmul.f32 %v4485, 0.03125
        %v4496 = vmul.f32 %v4494, 0.03125
        %v4497 = vmul.f32 %v4469, %v4469
        %v4498 = vmul.f32 %v4470, %v4470
        %v4499 = vmul.f32 %v4471, %v4471
        %v4500 = vmul.f32 %v4472, %v4472
        %v4501 = vmul.f32 %v4473, %v4473
        %v4502 = vmul.f32 %v4474, %v4474
        %v4503 = vmul.f32 %v4475, %v4475
        %v4504 = vmul.f32 %v4476, %v4476
        %v4505 = vadd.f32 %v4497, %v4499
        %v4506 = vadd.f32 %v4505, %v4501
        %v4507 = vadd.f32 %v4506, %v4503
        %v4508 = vrot.slane %v4507, 4
        %v4509 = vadd.f32 %v4507, %v4508
        %v4510 = vrot.slane %v4509, 2
        %v4511 = vadd.f32 %v4509, %v4510
        %v4512 = vrot.slane %v4511, 1
        %v4513 = vadd.f32 %v4511, %v4512
        %v4514 = vadd.f32 %v4498, %v4500
        %v4515 = vadd.f32 %v4514, %v4502
        %v4516 = vadd.f32 %v4515, %v4504
        %v4517 = vrot.slane %v4516, 4
        %v4518 = vadd.f32 %v4516, %v4517
        %v4519 = vrot.slane %v4518, 2
        %v4520 = vadd.f32 %v4518, %v4519
        %v4521 = vrot.slane %v4520, 1
        %v4522 = vadd.f32 %v4520, %v4521
        %v4523 = vmul.f32 %v4513, 0.03125
        %v4524 = vmul.f32 %v4522, 0.03125
        %v4525 = vmul.f32 %v4495, %v4495
        %v4526 = vmul.f32 %v4496, %v4496
        %v4527 = vsub.f32 %v4523, %v4525
        %v4528 = vsub.f32 %v4524, %v4526
        %v4529 = vmax.f32 %v4527, 0.0
        %v4530 = vmax.f32 %v4528, 0.0
        %v4531 = vsub.f32 %v4469, %v4495
        %v4532 = vsub.f32 %v4470, %v4496
        %v4533 = vsub.f32 %v4471, %v4495
        %v4534 = vsub.f32 %v4472, %v4496
        %v4535 = vsub.f32 %v4473, %v4495
        %v4536 = vsub.f32 %v4474, %v4496
        %v4537 = vsub.f32 %v4475, %v4495
        %v4538 = vsub.f32 %v4476, %v4496
        %v4539 = vadd.f32 %v4529, 1e-05
        %v4540 = vadd.f32 %v4530, 1e-05
        %v4541 = vrsqrt.pop %v4539
        %v4542 = vrsqrt.pop %v4540
        %v4543 = vmul.f32 %v4531, %v4541
        %v4544 = vmul.f32 %v4532, %v4542
        %v4545 = vmul.f32 %v4533, %v4541
        %v4546 = vmul.f32 %v4534, %v4542
        %v4547 = vmul.f32 %v4535, %v4541
        %v4548 = vmul.f32 %v4536, %v4542
        %v4549 = vmul.f32 %v4537, %v4541
        %v4550 = vmul.f32 %v4538, %v4542
        %v4551 = vtanh.pop %v4543
        %v4552 = vtanh.pop %v4545
        %v4553 = vtanh.pop %v4547
        %v4554 = vtanh.pop %v4549
        %v4555 = vxor.u32 %v4544, 2147483648
        %v4556 = vxor.u32 %v4546, 2147483648
        %v4557 = vxor.u32 %v4548, 2147483648
        %v4558 = vxor.u32 %v4550, 2147483648
        %v4559 = vmul.f32 %v4555, 1.442695
        %v4560 = vpow.pop %v4559
        %v4561 = vmul.f32 %v4556, 1.442695
        %v4562 = vpow.pop %v4561
        %v4563 = vmul.f32 %v4557, 1.442695
        %v4564 = vpow.pop %v4563
        %v4565 = vmul.f32 %v4558, 1.442695
        %v4566 = vpow.pop %v4565
        %v4567 = vadd.f32 %v4560, 1.0
        %v4568 = vadd.f32 %v4562, 1.0
        %v4569 = vadd.f32 %v4564, 1.0
        %v4570 = vadd.f32 %v4566, 1.0
        %v4571 = vrcp.pop %v4567
        %v4572 = vmul.f32 1.0, %v4571
        %v4573 = vrcp.pop %v4568
        %v4574 = vmul.f32 1.0, %v4573
        %v4575 = vrcp.pop %v4569
        %v4576 = vmul.f32 1.0, %v4575
        %v4577 = vrcp.pop %v4570
        %v4578 = vmul.f32 1.0, %v4577
        %v4579 = vmul.f32 %v4551, %v4572
        %v4580 = vmul.f32 %v4552, %v4574
        %v4581 = vmul.f32 %v4553, %v4576
        %v4582 = vmul.f32 %v4554, %v4578
        %v4583 = vpack.c.bf16 %v4580, %v4579
        %v4584 = vpack.c.bf16 %v4582, %v4581
        %s4585 = scalar_lea.vmem %s490, 512 [#allocation7]
        %v4586 = vld [vmem:[%s4585] sm:$0xff]
        %v4587 = vld [vmem:[%s4585 + $0x8] sm:$0xff]
        %v4588 = vld [vmem:[%s4585 + $0x10] sm:$0xff]
        %v4589 = vld [vmem:[%s4585 + $0x18] sm:$0xff]
        %v4590 = vld [vmem:[%s4585 + $0x20] sm:$0xff]
        %v4591 = vld [vmem:[%s4585 + $0x28] sm:$0xff]
        %v4592 = vld [vmem:[%s4585 + $0x30] sm:$0xff]
        %v4593 = vld [vmem:[%s4585 + $0x38] sm:$0xff]
        %v4594 = vld [vmem:[%s4585 + $0x40] sm:$0xff]
        %v4595 = vld [vmem:[%s4585 + $0x48] sm:$0xff]
        %v4596 = vld [vmem:[%s4585 + $0x50] sm:$0xff]
        %v4597 = vld [vmem:[%s4585 + $0x58] sm:$0xff]
        %v4598 = vld [vmem:[%s4585 + $0x60] sm:$0xff]
        %v4599 = vld [vmem:[%s4585 + $0x68] sm:$0xff]
        %v4600 = vld [vmem:[%s4585 + $0x70] sm:$0xff]
        %v4601 = vld [vmem:[%s4585 + $0x78] sm:$0xff]
        %s4602 = scalar_lea.vmem %s499, 8 [#allocation8]
        %v4603 = vld [vmem:[%s4602] sm:$0x3]
        %v4605 = vlaneseq
        %v4606 = vshrl.u32 %v4605, 7
        %v4607 = vsub.s32 0, %v4606
        %v4608 = vrot.slane %v4603, %v4607
        %v4609 = vlaneseq
        %v4610 = vshrl.u32 %v4609, 7
        %v4611 = vsub.s32 1, %v4610
        %v4612 = vrot.slane %v4603, %v4611
        %v4631 = vunpack.c.l.b16 %v4586
        %v4632 = vunpack.c.h.b16 %v4586
        %v4633 = vunpack.c.l.b16 %v4587
        %v4634 = vunpack.c.h.b16 %v4587
        %v4635 = vunpack.c.l.b16 %v4588
        %v4636 = vunpack.c.h.b16 %v4588
        %v4637 = vunpack.c.l.b16 %v4589
        %v4638 = vunpack.c.h.b16 %v4589
        %v4639 = vunpack.c.l.b16 %v4590
        %v4640 = vunpack.c.h.b16 %v4590
        %v4641 = vunpack.c.l.b16 %v4591
        %v4642 = vunpack.c.h.b16 %v4591
        %v4643 = vunpack.c.l.b16 %v4592
        %v4644 = vunpack.c.h.b16 %v4592
        %v4645 = vunpack.c.l.b16 %v4593
        %v4646 = vunpack.c.h.b16 %v4593
        %v4647 = vunpack.c.l.b16 %v4594
        %v4648 = vunpack.c.h.b16 %v4594
        %v4649 = vunpack.c.l.b16 %v4595
        %v4650 = vunpack.c.h.b16 %v4595
        %v4651 = vunpack.c.l.b16 %v4596
        %v4652 = vunpack.c.h.b16 %v4596
        %v4653 = vunpack.c.l.b16 %v4597
        %v4654 = vunpack.c.h.b16 %v4597
        %v4655 = vunpack.c.l.b16 %v4598
        %v4656 = vunpack.c.h.b16 %v4598
        %v4657 = vunpack.c.l.b16 %v4599
        %v4658 = vunpack.c.h.b16 %v4599
        %v4659 = vunpack.c.l.b16 %v4600
        %v4660 = vunpack.c.h.b16 %v4600
        %v4661 = vunpack.c.l.b16 %v4601
        %v4662 = vunpack.c.h.b16 %v4601
        %v4663 = vpack.c.b16 %v4633, %v4631
        %v4664 = vpack.c.b16 %v4634, %v4632
        %v4665 = vpack.c.b16 %v4637, %v4635
        %v4666 = vpack.c.b16 %v4638, %v4636
        %v4667 = vpack.c.b16 %v4641, %v4639
        %v4668 = vpack.c.b16 %v4642, %v4640
        %v4669 = vpack.c.b16 %v4645, %v4643
        %v4670 = vpack.c.b16 %v4646, %v4644
        %v4671 = vpack.c.b16 %v4649, %v4647
        %v4672 = vpack.c.b16 %v4650, %v4648
        %v4673 = vpack.c.b16 %v4653, %v4651
        %v4674 = vpack.c.b16 %v4654, %v4652
        %v4675 = vpack.c.b16 %v4657, %v4655
        %v4676 = vpack.c.b16 %v4658, %v4656
        %v4677 = vpack.c.b16 %v4661, %v4659
        %v4678 = vpack.c.b16 %v4662, %v4660
        %4695 = vmatprep.subr.bf16.mxu0 %v4678
        %4696 = vmatpush1.bf16.msra.mxu0 %v4677
        %4697 = vmatprep.subr.bf16.mxu0 %v4676
        %4698 = vmatpush1.bf16.msra.mxu0 %v4675
        %4699 = vmatprep.subr.bf16.mxu0 %v4674
        %4700 = vmatpush1.bf16.msra.mxu0 %v4673
        %4701 = vmatprep.subr.bf16.mxu0 %v4672
        %4702 = vmatpush1.bf16.msra.mxu0 %v4671
        %4703 = vmatprep.subr.bf16.mxu0 %v4670
        %4704 = vmatpush1.bf16.msra.mxu0 %v4669
        %4705 = vmatprep.subr.bf16.mxu0 %v4668
        %4706 = vmatpush1.bf16.msra.mxu0 %v4667
        %4707 = vmatprep.subr.bf16.mxu0 %v4666
        %4708 = vmatpush1.bf16.msra.mxu0 %v4665
        %4709 = vmatprep.subr.bf16.mxu0 %v4664
        %4710 = vmatpush1.bf16.msra.mxu0 %v4663
        %4711 = vmatprep.subr.bf16.mxu0 0
        %4712 = vmatpush2.bf16.msra.mxu0 0
        %4713 = vmatprep.subr.bf16.mxu0 0
        %4714 = vmatpush2.bf16.msra.mxu0 0
        %4715 = vmatprep.subr.bf16.mxu0 0
        %4716 = vmatpush2.bf16.msra.mxu0 0
        %4717 = vmatprep.subr.bf16.mxu0 0
        %4718 = vmatpush2.bf16.msra.mxu0 0
        %4719 = vmatprep.subr.bf16.mxu0 0
        %4720 = vmatpush2.bf16.msra.mxu0 0
        %4721 = vmatprep.subr.bf16.mxu0 0
        %4722 = vmatpush2.bf16.msra.mxu0 0
        %4723 = vmatprep.subr.bf16.mxu0 0
        %4724 = vmatpush2.bf16.msra.mxu0 0
        %4725 = vmatprep.subr.bf16.mxu0 0
        %4726 = vmatpush2.bf16.msra.mxu0 0
        %4727 = vmatprep.mubr.bf16.mxu0 0
        %4728 = vmatmul.mubr.bf16.gmra.mxu0 %v4583
        %v4729 = vpop.f32.mrf.mxu0
        %v4730 = vadd.f32 %v4608, %v4729
        %v4731 = vpop.f32.mrf.mxu0
        %v4732 = vadd.f32 %v4612, %v4731
        %v4733 = vpop.f32.mrf.mxu0
        %v4734 = vadd.f32 %v4608, %v4733
        %v4735 = vpop.f32.mrf.mxu0
        %v4736 = vadd.f32 %v4612, %v4735
        %4737 = vmatprep.mubr.bf16.mxu0 0
        %4738 = vmatmul.mubr.bf16.gmra.mxu0 %v4584
        %v4739 = vpop.f32.mrf.mxu0
        %v4740 = vadd.f32 %v4608, %v4739
        %v4741 = vpop.f32.mrf.mxu0
        %v4742 = vadd.f32 %v4612, %v4741
        %v4743 = vpop.f32.mrf.mxu0
        %v4744 = vadd.f32 %v4608, %v4743
        %v4745 = vpop.f32.mrf.mxu0
        %v4746 = vadd.f32 %v4612, %v4745
        %4747 = vdwg.mxu0
        %v4748 = vadd.f32 %v3971, %v4732
        %v4749 = vadd.f32 %v3972, %v4736
        %v4750 = vadd.f32 %v3973, %v4742
        %v4751 = vadd.f32 %v3974, %v4746
        %v4752 = vadd.f32 %v4730, %v3984
        %v4753 = vadd.f32 %v4734, %v3985
        %v4754 = vadd.f32 %v4740, %v3987
        %v4755 = vadd.f32 %v4744, %v3988
        %4756 = vst [vmem:[#allocation2 + $0x8] sm:$0xff] %v4752
        %4757 = vst [vmem:[#allocation2 + $0x10] sm:$0xff] %v4753
        %4758 = vst [vmem:[#allocation2 + $0x20] sm:$0xff] %v4754
        %4759 = vst [vmem:[#allocation2 + $0x28] sm:$0xff] %v4755
        %v4760 = vld [vmem:[#allocation2] sm:$0xff]
        %v4761 = vld [vmem:[#allocation2 + $0x8] sm:$0xff]
        %v4762 = vld [vmem:[#allocation2 + $0x10] sm:$0xff]
        %v4763 = vld [vmem:[#allocation2 + $0x18] sm:$0xff]
        %v4764 = vld [vmem:[#allocation2 + $0x20] sm:$0xff]
        %v4765 = vld [vmem:[#allocation2 + $0x28] sm:$0xff]
        %v4766 = vpack.c.bf16 %v4761, %v4760
        %v4767 = vpack.c.bf16 %v4762, %v4762
        %v4768 = vpack.c.bf16 %v4764, %v4763
        %v4769 = vpack.c.bf16 %v4765, %v4765
        %s4770 = scalar_lea.vmem %s481, 1920 [#allocation5]
        %v4771 = vld [vmem:[%s4770] sm:$0xff]
        %v4772 = vld [vmem:[%s4770 + $0x8] sm:$0xff]
        %v4773 = vld [vmem:[%s4770 + $0x10] sm:$0xff]
        %v4774 = vld [vmem:[%s4770 + $0x18] sm:$0xff]
        %v4775 = vld [vmem:[%s4770 + $0x20] sm:$0xff]
        %v4776 = vld [vmem:[%s4770 + $0x28] sm:$0xff]
        %v4777 = vld [vmem:[%s4770 + $0x30] sm:$0xff]
        %v4778 = vld [vmem:[%s4770 + $0x38] sm:$0xff]
        %v4779 = vld [vmem:[%s4770 + $0x40] sm:$0xff]
        %v4780 = vld [vmem:[%s4770 + $0x48] sm:$0xff]
        %v4781 = vld [vmem:[%s4770 + $0x50] sm:$0xff]
        %v4782 = vld [vmem:[%s4770 + $0x58] sm:$0xff]
        %v4783 = vld [vmem:[%s4770 + $0x60] sm:$0xff]
        %v4784 = vld [vmem:[%s4770 + $0x68] sm:$0xff]
        %v4785 = vld [vmem:[%s4770 + $0x70] sm:$0xff]
        %v4786 = vld [vmem:[%s4770 + $0x78] sm:$0xff]
        %v4787 = vld [vmem:[%s4770 + $0x80] sm:$0xff]
        %v4788 = vld [vmem:[%s4770 + $0x88] sm:$0xff]
        %v4789 = vld [vmem:[%s4770 + $0x90] sm:$0xff]
        %v4790 = vld [vmem:[%s4770 + $0x98] sm:$0xff]
        %v4791 = vld [vmem:[%s4770 + $0xa0] sm:$0xff]
        %v4792 = vld [vmem:[%s4770 + $0xa8] sm:$0xff]
        %v4793 = vld [vmem:[%s4770 + $0xb0] sm:$0xff]
        %v4794 = vld [vmem:[%s4770 + $0xb8] sm:$0xff]
        %v4795 = vld [vmem:[%s4770 + $0xc0] sm:$0xff]
        %v4796 = vld [vmem:[%s4770 + $0xc8] sm:$0xff]
        %v4797 = vld [vmem:[%s4770 + $0xd0] sm:$0xff]
        %v4798 = vld [vmem:[%s4770 + $0xd8] sm:$0xff]
        %v4799 = vld [vmem:[%s4770 + $0xe0] sm:$0xff]
        %v4800 = vld [vmem:[%s4770 + $0xe8] sm:$0xff]
        %v4801 = vld [vmem:[%s4770 + $0xf0] sm:$0xff]
        %v4802 = vld [vmem:[%s4770 + $0xf8] sm:$0xff]
        %v4803 = vld [vmem:[%s4770 + $0x100] sm:$0xff]
        %v4804 = vld [vmem:[%s4770 + $0x108] sm:$0xff]
        %v4805 = vld [vmem:[%s4770 + $0x110] sm:$0xff]
        %v4806 = vld [vmem:[%s4770 + $0x118] sm:$0xff]
        %v4807 = vld [vmem:[%s4770 + $0x120] sm:$0xff]
        %v4808 = vld [vmem:[%s4770 + $0x128] sm:$0xff]
        %v4809 = vld [vmem:[%s4770 + $0x130] sm:$0xff]
        %v4810 = vld [vmem:[%s4770 + $0x138] sm:$0xff]
        %v4811 = vld [vmem:[%s4770 + $0x140] sm:$0xff]
        %v4812 = vld [vmem:[%s4770 + $0x148] sm:$0xff]
        %v4813 = vld [vmem:[%s4770 + $0x150] sm:$0xff]
        %v4814 = vld [vmem:[%s4770 + $0x158] sm:$0xff]
        %v4815 = vld [vmem:[%s4770 + $0x160] sm:$0xff]
        %v4816 = vld [vmem:[%s4770 + $0x168] sm:$0xff]
        %v4817 = vld [vmem:[%s4770 + $0x170] sm:$0xff]
        %v4818 = vld [vmem:[%s4770 + $0x178] sm:$0xff]
        %v4823 = vrot.slane %v4766, 2
        %v4824 = vrot.slane %v4767, 2
        %v4825 = vsel %vm1694, %v4823, %v4824
        %v4826 = vrot.slane %v4768, 2
        %v4827 = vrot.slane %v4769, 2
        %v4828 = vsel %vm1694, %v4826, %v4827
        %v4847 = vunpack.c.l.b16 %v4787
        %v4848 = vunpack.c.h.b16 %v4787
        %v4849 = vunpack.c.l.b16 %v4788
        %v4850 = vunpack.c.h.b16 %v4788
        %v4851 = vunpack.c.l.b16 %v4789
        %v4852 = vunpack.c.h.b16 %v4789
        %v4853 = vunpack.c.l.b16 %v4790
        %v4854 = vunpack.c.h.b16 %v4790
        %v4855 = vunpack.c.l.b16 %v4791
        %v4856 = vunpack.c.h.b16 %v4791
        %v4857 = vunpack.c.l.b16 %v4792
        %v4858 = vunpack.c.h.b16 %v4792
        %v4859 = vunpack.c.l.b16 %v4793
        %v4860 = vunpack.c.h.b16 %v4793
        %v4861 = vunpack.c.l.b16 %v4794
        %v4862 = vunpack.c.h.b16 %v4794
        %v4863 = vunpack.c.l.b16 %v4795
        %v4864 = vunpack.c.h.b16 %v4795
        %v4865 = vunpack.c.l.b16 %v4796
        %v4866 = vunpack.c.h.b16 %v4796
        %v4867 = vunpack.c.l.b16 %v4797
        %v4868 = vunpack.c.h.b16 %v4797
        %v4869 = vunpack.c.l.b16 %v4798
        %v4870 = vunpack.c.h.b16 %v4798
        %v4871 = vunpack.c.l.b16 %v4799
        %v4872 = vunpack.c.h.b16 %v4799
        %v4873 = vunpack.c.l.b16 %v4800
        %v4874 = vunpack.c.h.b16 %v4800
        %v4875 = vunpack.c.l.b16 %v4801
        %v4876 = vunpack.c.h.b16 %v4801
        %v4877 = vunpack.c.l.b16 %v4802
        %v4878 = vunpack.c.h.b16 %v4802
        %v4879 = vpack.c.b16 %v4849, %v4847
        %v4880 = vpack.c.b16 %v4850, %v4848
        %v4881 = vpack.c.b16 %v4853, %v4851
        %v4882 = vpack.c.b16 %v4854, %v4852
        %v4883 = vpack.c.b16 %v4857, %v4855
        %v4884 = vpack.c.b16 %v4858, %v4856
        %v4885 = vpack.c.b16 %v4861, %v4859
        %v4886 = vpack.c.b16 %v4862, %v4860
        %v4887 = vpack.c.b16 %v4865, %v4863
        %v4888 = vpack.c.b16 %v4866, %v4864
        %v4889 = vpack.c.b16 %v4869, %v4867
        %v4890 = vpack.c.b16 %v4870, %v4868
        %v4891 = vpack.c.b16 %v4873, %v4871
        %v4892 = vpack.c.b16 %v4874, %v4872
        %v4893 = vpack.c.b16 %v4877, %v4875
        %v4894 = vpack.c.b16 %v4878, %v4876
        %4911 = vmatprep.subr.bf16.mxu0 %v4894
        %4912 = vmatpush1.bf16.msra.mxu0 %v4893
        %4913 = vmatprep.subr.bf16.mxu0 %v4892
        %4914 = vmatpush1.bf16.msra.mxu0 %v4891
        %4915 = vmatprep.subr.bf16.mxu0 %v4890
        %4916 = vmatpush1.bf16.msra.mxu0 %v4889
        %4917 = vmatprep.subr.bf16.mxu0 %v4888
        %4918 = vmatpush1.bf16.msra.mxu0 %v4887
        %4919 = vmatprep.subr.bf16.mxu0 %v4886
        %4920 = vmatpush1.bf16.msra.mxu0 %v4885
        %4921 = vmatprep.subr.bf16.mxu0 %v4884
        %4922 = vmatpush1.bf16.msra.mxu0 %v4883
        %4923 = vmatprep.subr.bf16.mxu0 %v4882
        %4924 = vmatpush1.bf16.msra.mxu0 %v4881
        %4925 = vmatprep.subr.bf16.mxu0 %v4880
        %4926 = vmatpush1.bf16.msra.mxu0 %v4879
        %4927 = vmatprep.subr.bf16.mxu0 0
        %4928 = vmatpush2.bf16.msra.mxu0 0
        %4929 = vmatprep.subr.bf16.mxu0 0
        %4930 = vmatpush2.bf16.msra.mxu0 0
        %4931 = vmatprep.subr.bf16.mxu0 0
        %4932 = vmatpush2.bf16.msra.mxu0 0
        %4933 = vmatprep.subr.bf16.mxu0 0
        %4934 = vmatpush2.bf16.msra.mxu0 0
        %4935 = vmatprep.subr.bf16.mxu0 0
        %4936 = vmatpush2.bf16.msra.mxu0 0
        %4937 = vmatprep.subr.bf16.mxu0 0
        %4938 = vmatpush2.bf16.msra.mxu0 0
        %4939 = vmatprep.subr.bf16.mxu0 0
        %4940 = vmatpush2.bf16.msra.mxu0 0
        %4941 = vmatprep.subr.bf16.mxu0 0
        %4942 = vmatpush2.bf16.msra.mxu0 0
        %4943 = vmatprep.mubr.bf16.mxu0 0
        %4944 = vmatmul.mubr.bf16.gmra.mxu0 %v4825
        %v4945 = vpop.f32.mrf.mxu0
        %v4946 = vadd.f32 0.0, %v4945
        %v4947 = vpop.f32.mrf.mxu0
        %v4948 = vadd.f32 0.0, %v4947
        %v4949 = vpop.f32.mrf.mxu0
        %v4950 = vadd.f32 0.0, %v4949
        %v4951 = vpop.f32.mrf.mxu0
        %v4952 = vadd.f32 0.0, %v4951
        %4953 = vmatprep.mubr.bf16.mxu0 0
        %4954 = vmatmul.mubr.bf16.gmra.mxu0 %v4828
        %v4955 = vpop.f32.mrf.mxu0
        %v4956 = vadd.f32 0.0, %v4955
        %v4957 = vpop.f32.mrf.mxu0
        %v4958 = vadd.f32 0.0, %v4957
        %v4959 = vpop.f32.mrf.mxu0
        %v4960 = vadd.f32 0.0, %v4959
        %v4961 = vpop.f32.mrf.mxu0
        %v4962 = vadd.f32 0.0, %v4961
        %4963 = vdwg.mxu0
        %v4980 = vunpack.c.l.b16 %v4771
        %v4981 = vunpack.c.h.b16 %v4771
        %v4982 = vunpack.c.l.b16 %v4772
        %v4983 = vunpack.c.h.b16 %v4772
        %v4984 = vunpack.c.l.b16 %v4773
        %v4985 = vunpack.c.h.b16 %v4773
        %v4986 = vunpack.c.l.b16 %v4774
        %v4987 = vunpack.c.h.b16 %v4774
        %v4988 = vunpack.c.l.b16 %v4775
        %v4989 = vunpack.c.h.b16 %v4775
        %v4990 = vunpack.c.l.b16 %v4776
        %v4991 = vunpack.c.h.b16 %v4776
        %v4992 = vunpack.c.l.b16 %v4777
        %v4993 = vunpack.c.h.b16 %v4777
        %v4994 = vunpack.c.l.b16 %v4778
        %v4995 = vunpack.c.h.b16 %v4778
        %v4996 = vunpack.c.l.b16 %v4779
        %v4997 = vunpack.c.h.b16 %v4779
        %v4998 = vunpack.c.l.b16 %v4780
        %v4999 = vunpack.c.h.b16 %v4780
        %v5000 = vunpack.c.l.b16 %v4781
        %v5001 = vunpack.c.h.b16 %v4781
        %v5002 = vunpack.c.l.b16 %v4782
        %v5003 = vunpack.c.h.b16 %v4782
        %v5004 = vunpack.c.l.b16 %v4783
        %v5005 = vunpack.c.h.b16 %v4783
        %v5006 = vunpack.c.l.b16 %v4784
        %v5007 = vunpack.c.h.b16 %v4784
        %v5008 = vunpack.c.l.b16 %v4785
        %v5009 = vunpack.c.h.b16 %v4785
        %v5010 = vunpack.c.l.b16 %v4786
        %v5011 = vunpack.c.h.b16 %v4786
        %v5012 = vpack.c.b16 %v4982, %v4980
        %v5013 = vpack.c.b16 %v4983, %v4981
        %v5014 = vpack.c.b16 %v4986, %v4984
        %v5015 = vpack.c.b16 %v4987, %v4985
        %v5016 = vpack.c.b16 %v4990, %v4988
        %v5017 = vpack.c.b16 %v4991, %v4989
        %v5018 = vpack.c.b16 %v4994, %v4992
        %v5019 = vpack.c.b16 %v4995, %v4993
        %v5020 = vpack.c.b16 %v4998, %v4996
        %v5021 = vpack.c.b16 %v4999, %v4997
        %v5022 = vpack.c.b16 %v5002, %v5000
        %v5023 = vpack.c.b16 %v5003, %v5001
        %v5024 = vpack.c.b16 %v5006, %v5004
        %v5025 = vpack.c.b16 %v5007, %v5005
        %v5026 = vpack.c.b16 %v5010, %v5008
        %v5027 = vpack.c.b16 %v5011, %v5009
        %5044 = vmatprep.subr.bf16.mxu0 %v5027
        %5045 = vmatpush1.bf16.msra.mxu0 %v5026
        %5046 = vmatprep.subr.bf16.mxu0 %v5025
        %5047 = vmatpush1.bf16.msra.mxu0 %v5024
        %5048 = vmatprep.subr.bf16.mxu0 %v5023
        %5049 = vmatpush1.bf16.msra.mxu0 %v5022
        %5050 = vmatprep.subr.bf16.mxu0 %v5021
        %5051 = vmatpush1.bf16.msra.mxu0 %v5020
        %5052 = vmatprep.subr.bf16.mxu0 %v5019
        %5053 = vmatpush1.bf16.msra.mxu0 %v5018
        %5054 = vmatprep.subr.bf16.mxu0 %v5017
        %5055 = vmatpush1.bf16.msra.mxu0 %v5016
        %5056 = vmatprep.subr.bf16.mxu0 %v5015
        %5057 = vmatpush1.bf16.msra.mxu0 %v5014
        %5058 = vmatprep.subr.bf16.mxu0 %v5013
        %5059 = vmatpush1.bf16.msra.mxu0 %v5012
        %5060 = vmatprep.subr.bf16.mxu0 0
        %5061 = vmatpush2.bf16.msra.mxu0 0
        %5062 = vmatprep.subr.bf16.mxu0 0
        %5063 = vmatpush2.bf16.msra.mxu0 0
        %5064 = vmatprep.subr.bf16.mxu0 0
        %5065 = vmatpush2.bf16.msra.mxu0 0
        %5066 = vmatprep.subr.bf16.mxu0 0
        %5067 = vmatpush2.bf16.msra.mxu0 0
        %5068 = vmatprep.subr.bf16.mxu0 0
        %5069 = vmatpush2.bf16.msra.mxu0 0
        %5070 = vmatprep.subr.bf16.mxu0 0
        %5071 = vmatpush2.bf16.msra.mxu0 0
        %5072 = vmatprep.subr.bf16.mxu0 0
        %5073 = vmatpush2.bf16.msra.mxu0 0
        %5074 = vmatprep.subr.bf16.mxu0 0
        %5075 = vmatpush2.bf16.msra.mxu0 0
        %5076 = vmatprep.mubr.bf16.mxu0 0
        %5077 = vmatmul.mubr.bf16.gmra.mxu0 %v4766
        %v5078 = vpop.f32.mrf.mxu0
        %v5079 = vadd.f32 %v4946, %v5078
        %v5080 = vpop.f32.mrf.mxu0
        %v5081 = vadd.f32 %v4948, %v5080
        %v5082 = vpop.f32.mrf.mxu0
        %v5083 = vadd.f32 %v4950, %v5082
        %v5084 = vpop.f32.mrf.mxu0
        %v5085 = vadd.f32 %v4952, %v5084
        %5086 = vmatprep.mubr.bf16.mxu0 0
        %5087 = vmatmul.mubr.bf16.gmra.mxu0 %v4768
        %v5088 = vpop.f32.mrf.mxu0
        %v5089 = vadd.f32 %v4956, %v5088
        %v5090 = vpop.f32.mrf.mxu0
        %v5091 = vadd.f32 %v4958, %v5090
        %v5092 = vpop.f32.mrf.mxu0
        %v5093 = vadd.f32 %v4960, %v5092
        %v5094 = vpop.f32.mrf.mxu0
        %v5095 = vadd.f32 %v4962, %v5094
        %5096 = vdwg.mxu0
        %v5097 = vrot.slane %v4766, 4
        %v5098 = vrot.slane %v4767, 4
        %v5099 = vsel %vm1200, %v5097, %v5098
        %v5100 = vrot.slane %v4768, 4
        %v5101 = vrot.slane %v4769, 4
        %v5102 = vsel %vm1200, %v5100, %v5101
        %v5121 = vunpack.c.l.b16 %v4803
        %v5122 = vunpack.c.h.b16 %v4803
        %v5123 = vunpack.c.l.b16 %v4804
        %v5124 = vunpack.c.h.b16 %v4804
        %v5125 = vunpack.c.l.b16 %v4805
        %v5126 = vunpack.c.h.b16 %v4805
        %v5127 = vunpack.c.l.b16 %v4806
        %v5128 = vunpack.c.h.b16 %v4806
        %v5129 = vunpack.c.l.b16 %v4807
        %v5130 = vunpack.c.h.b16 %v4807
        %v5131 = vunpack.c.l.b16 %v4808
        %v5132 = vunpack.c.h.b16 %v4808
        %v5133 = vunpack.c.l.b16 %v4809
        %v5134 = vunpack.c.h.b16 %v4809
        %v5135 = vunpack.c.l.b16 %v4810
        %v5136 = vunpack.c.h.b16 %v4810
        %v5137 = vunpack.c.l.b16 %v4811
        %v5138 = vunpack.c.h.b16 %v4811
        %v5139 = vunpack.c.l.b16 %v4812
        %v5140 = vunpack.c.h.b16 %v4812
        %v5141 = vunpack.c.l.b16 %v4813
        %v5142 = vunpack.c.h.b16 %v4813
        %v5143 = vunpack.c.l.b16 %v4814
        %v5144 = vunpack.c.h.b16 %v4814
        %v5145 = vunpack.c.l.b16 %v4815
        %v5146 = vunpack.c.h.b16 %v4815
        %v5147 = vunpack.c.l.b16 %v4816
        %v5148 = vunpack.c.h.b16 %v4816
        %v5149 = vunpack.c.l.b16 %v4817
        %v5150 = vunpack.c.h.b16 %v4817
        %v5151 = vunpack.c.l.b16 %v4818
        %v5152 = vunpack.c.h.b16 %v4818
        %v5153 = vpack.c.b16 %v5123, %v5121
        %v5154 = vpack.c.b16 %v5124, %v5122
        %v5155 = vpack.c.b16 %v5127, %v5125
        %v5156 = vpack.c.b16 %v5128, %v5126
        %v5157 = vpack.c.b16 %v5131, %v5129
        %v5158 = vpack.c.b16 %v5132, %v5130
        %v5159 = vpack.c.b16 %v5135, %v5133
        %v5160 = vpack.c.b16 %v5136, %v5134
        %v5161 = vpack.c.b16 %v5139, %v5137
        %v5162 = vpack.c.b16 %v5140, %v5138
        %v5163 = vpack.c.b16 %v5143, %v5141
        %v5164 = vpack.c.b16 %v5144, %v5142
        %v5165 = vpack.c.b16 %v5147, %v5145
        %v5166 = vpack.c.b16 %v5148, %v5146
        %v5167 = vpack.c.b16 %v5151, %v5149
        %v5168 = vpack.c.b16 %v5152, %v5150
        %5185 = vmatprep.subr.bf16.mxu0 %v5168
        %5186 = vmatpush1.bf16.msra.mxu0 %v5167
        %5187 = vmatprep.subr.bf16.mxu0 %v5166
        %5188 = vmatpush1.bf16.msra.mxu0 %v5165
        %5189 = vmatprep.subr.bf16.mxu0 %v5164
        %5190 = vmatpush1.bf16.msra.mxu0 %v5163
        %5191 = vmatprep.subr.bf16.mxu0 %v5162
        %5192 = vmatpush1.bf16.msra.mxu0 %v5161
        %5193 = vmatprep.subr.bf16.mxu0 %v5160
        %5194 = vmatpush1.bf16.msra.mxu0 %v5159
        %5195 = vmatprep.subr.bf16.mxu0 %v5158
        %5196 = vmatpush1.bf16.msra.mxu0 %v5157
        %5197 = vmatprep.subr.bf16.mxu0 %v5156
        %5198 = vmatpush1.bf16.msra.mxu0 %v5155
        %5199 = vmatprep.subr.bf16.mxu0 %v5154
        %5200 = vmatpush1.bf16.msra.mxu0 %v5153
        %5201 = vmatprep.subr.bf16.mxu0 0
        %5202 = vmatpush2.bf16.msra.mxu0 0
        %5203 = vmatprep.subr.bf16.mxu0 0
        %5204 = vmatpush2.bf16.msra.mxu0 0
        %5205 = vmatprep.subr.bf16.mxu0 0
        %5206 = vmatpush2.bf16.msra.mxu0 0
        %5207 = vmatprep.subr.bf16.mxu0 0
        %5208 = vmatpush2.bf16.msra.mxu0 0
        %5209 = vmatprep.subr.bf16.mxu0 0
        %5210 = vmatpush2.bf16.msra.mxu0 0
        %5211 = vmatprep.subr.bf16.mxu0 0
        %5212 = vmatpush2.bf16.msra.mxu0 0
        %5213 = vmatprep.subr.bf16.mxu0 0
        %5214 = vmatpush2.bf16.msra.mxu0 0
        %5215 = vmatprep.subr.bf16.mxu0 0
        %5216 = vmatpush2.bf16.msra.mxu0 0
        %5217 = vmatprep.mubr.bf16.mxu0 0
        %5218 = vmatmul.mubr.bf16.gmra.mxu0 %v5099
        %v5219 = vpop.f32.mrf.mxu0
        %v5220 = vadd.f32 0.0, %v5219
        %v5221 = vpop.f32.mrf.mxu0
        %v5222 = vadd.f32 0.0, %v5221
        %v5223 = vpop.f32.mrf.mxu0
        %v5224 = vadd.f32 0.0, %v5223
        %v5225 = vpop.f32.mrf.mxu0
        %v5226 = vadd.f32 0.0, %v5225
        %5227 = vmatprep.mubr.bf16.mxu0 0
        %5228 = vmatmul.mubr.bf16.gmra.mxu0 %v5102
        %v5229 = vpop.f32.mrf.mxu0
        %v5230 = vadd.f32 0.0, %v5229
        %v5231 = vpop.f32.mrf.mxu0
        %v5232 = vadd.f32 0.0, %v5231
        %v5233 = vpop.f32.mrf.mxu0
        %v5234 = vadd.f32 0.0, %v5233
        %v5235 = vpop.f32.mrf.mxu0
        %v5236 = vadd.f32 0.0, %v5235
        %5237 = vdwg.mxu0
        %v5238 = vadd.f32 %v5079, %v5220
        %v5239 = vadd.f32 %v5081, %v5222
        %v5240 = vadd.f32 %v5083, %v5224
        %v5241 = vadd.f32 %v5085, %v5226
        %v5242 = vadd.f32 %v5089, %v5230
        %v5243 = vadd.f32 %v5091, %v5232
        %v5244 = vadd.f32 %v5093, %v5234
        %v5245 = vadd.f32 %v5095, %v5236
        %v5246 = vadd.f32 %v5238, %v5240
        %v5247 = vadd.f32 %v5246, %v5242
        %v5248 = vadd.f32 %v5247, %v5244
        %v5249 = vrot.slane %v5248, 4
        %v5250 = vadd.f32 %v5248, %v5249
        %v5251 = vrot.slane %v5250, 2
        %v5252 = vadd.f32 %v5250, %v5251
        %v5253 = vrot.slane %v5252, 1
        %v5254 = vadd.f32 %v5252, %v5253
        %v5255 = vadd.f32 %v5239, %v5241
        %v5256 = vadd.f32 %v5255, %v5243
        %v5257 = vadd.f32 %v5256, %v5245
        %v5258 = vrot.slane %v5257, 4
        %v5259 = vadd.f32 %v5257, %v5258
        %v5260 = vrot.slane %v5259, 2
        %v5261 = vadd.f32 %v5259, %v5260
        %v5262 = vrot.slane %v5261, 1
        %v5263 = vadd.f32 %v5261, %v5262
        %v5264 = vmul.f32 %v5254, 0.03125
        %v5265 = vmul.f32 %v5263, 0.03125
        %v5266 = vmul.f32 %v5238, %v5238
        %v5267 = vmul.f32 %v5239, %v5239
        %v5268 = vmul.f32 %v5240, %v5240
        %v5269 = vmul.f32 %v5241, %v5241
        %v5270 = vmul.f32 %v5242, %v5242
        %v5271 = vmul.f32 %v5243, %v5243
        %v5272 = vmul.f32 %v5244, %v5244
        %v5273 = vmul.f32 %v5245, %v5245
        %v5274 = vadd.f32 %v5266, %v5268
        %v5275 = vadd.f32 %v5274, %v5270
        %v5276 = vadd.f32 %v5275, %v5272
        %v5277 = vrot.slane %v5276, 4
        %v5278 = vadd.f32 %v5276, %v5277
        %v5279 = vrot.slane %v5278, 2
        %v5280 = vadd.f32 %v5278, %v5279
        %v5281 = vrot.slane %v5280, 1
        %v5282 = vadd.f32 %v5280, %v5281
        %v5283 = vadd.f32 %v5267, %v5269
        %v5284 = vadd.f32 %v5283, %v5271
        %v5285 = vadd.f32 %v5284, %v5273
        %v5286 = vrot.slane %v5285, 4
        %v5287 = vadd.f32 %v5285, %v5286
        %v5288 = vrot.slane %v5287, 2
        %v5289 = vadd.f32 %v5287, %v5288
        %v5290 = vrot.slane %v5289, 1
        %v5291 = vadd.f32 %v5289, %v5290
        %v5292 = vmul.f32 %v5282, 0.03125
        %v5293 = vmul.f32 %v5291, 0.03125
        %v5294 = vmul.f32 %v5264, %v5264
        %v5295 = vmul.f32 %v5265, %v5265
        %v5296 = vsub.f32 %v5292, %v5294
        %v5297 = vsub.f32 %v5293, %v5295
        %v5298 = vmax.f32 %v5296, 0.0
        %v5299 = vmax.f32 %v5297, 0.0
        %v5300 = vsub.f32 %v5238, %v5264
        %v5301 = vsub.f32 %v5239, %v5265
        %v5302 = vsub.f32 %v5240, %v5264
        %v5303 = vsub.f32 %v5241, %v5265
        %v5304 = vsub.f32 %v5242, %v5264
        %v5305 = vsub.f32 %v5243, %v5265
        %v5306 = vsub.f32 %v5244, %v5264
        %v5307 = vsub.f32 %v5245, %v5265
        %v5308 = vadd.f32 %v5298, 1e-05
        %v5309 = vadd.f32 %v5299, 1e-05
        %v5310 = vrsqrt.pop %v5308
        %v5311 = vrsqrt.pop %v5309
        %v5312 = vmul.f32 %v5300, %v5310
        %v5313 = vmul.f32 %v5301, %v5311
        %v5314 = vmul.f32 %v5302, %v5310
        %v5315 = vmul.f32 %v5303, %v5311
        %v5316 = vmul.f32 %v5304, %v5310
        %v5317 = vmul.f32 %v5305, %v5311
        %v5318 = vmul.f32 %v5306, %v5310
        %v5319 = vmul.f32 %v5307, %v5311
        %v5320 = vtanh.pop %v5312
        %v5321 = vtanh.pop %v5314
        %v5322 = vtanh.pop %v5316
        %v5323 = vtanh.pop %v5318
        %v5324 = vxor.u32 %v5313, 2147483648
        %v5325 = vxor.u32 %v5315, 2147483648
        %v5326 = vxor.u32 %v5317, 2147483648
        %v5327 = vxor.u32 %v5319, 2147483648
        %v5328 = vmul.f32 %v5324, 1.442695
        %v5329 = vpow.pop %v5328
        %v5330 = vmul.f32 %v5325, 1.442695
        %v5331 = vpow.pop %v5330
        %v5332 = vmul.f32 %v5326, 1.442695
        %v5333 = vpow.pop %v5332
        %v5334 = vmul.f32 %v5327, 1.442695
        %v5335 = vpow.pop %v5334
        %v5336 = vadd.f32 %v5329, 1.0
        %v5337 = vadd.f32 %v5331, 1.0
        %v5338 = vadd.f32 %v5333, 1.0
        %v5339 = vadd.f32 %v5335, 1.0
        %v5340 = vrcp.pop %v5336
        %v5341 = vmul.f32 1.0, %v5340
        %v5342 = vrcp.pop %v5337
        %v5343 = vmul.f32 1.0, %v5342
        %v5344 = vrcp.pop %v5338
        %v5345 = vmul.f32 1.0, %v5344
        %v5346 = vrcp.pop %v5339
        %v5347 = vmul.f32 1.0, %v5346
        %v5348 = vmul.f32 %v5320, %v5341
        %v5349 = vmul.f32 %v5321, %v5343
        %v5350 = vmul.f32 %v5322, %v5345
        %v5351 = vmul.f32 %v5323, %v5347
        %v5352 = vpack.c.bf16 %v5349, %v5348
        %v5353 = vpack.c.bf16 %v5351, %v5350
        %s5354 = scalar_lea.vmem %s490, 640 [#allocation7]
        %v5355 = vld [vmem:[%s5354] sm:$0xff]
        %v5356 = vld [vmem:[%s5354 + $0x8] sm:$0xff]
        %v5357 = vld [vmem:[%s5354 + $0x10] sm:$0xff]
        %v5358 = vld [vmem:[%s5354 + $0x18] sm:$0xff]
        %v5359 = vld [vmem:[%s5354 + $0x20] sm:$0xff]
        %v5360 = vld [vmem:[%s5354 + $0x28] sm:$0xff]
        %v5361 = vld [vmem:[%s5354 + $0x30] sm:$0xff]
        %v5362 = vld [vmem:[%s5354 + $0x38] sm:$0xff]
        %v5363 = vld [vmem:[%s5354 + $0x40] sm:$0xff]
        %v5364 = vld [vmem:[%s5354 + $0x48] sm:$0xff]
        %v5365 = vld [vmem:[%s5354 + $0x50] sm:$0xff]
        %v5366 = vld [vmem:[%s5354 + $0x58] sm:$0xff]
        %v5367 = vld [vmem:[%s5354 + $0x60] sm:$0xff]
        %v5368 = vld [vmem:[%s5354 + $0x68] sm:$0xff]
        %v5369 = vld [vmem:[%s5354 + $0x70] sm:$0xff]
        %v5370 = vld [vmem:[%s5354 + $0x78] sm:$0xff]
        %s5371 = scalar_lea.vmem %s499, 10 [#allocation8]
        %v5372 = vld [vmem:[%s5371] sm:$0x3]
        %v5374 = vlaneseq
        %v5375 = vshrl.u32 %v5374, 7
        %v5376 = vsub.s32 0, %v5375
        %v5377 = vrot.slane %v5372, %v5376
        %v5378 = vlaneseq
        %v5379 = vshrl.u32 %v5378, 7
        %v5380 = vsub.s32 1, %v5379
        %v5381 = vrot.slane %v5372, %v5380
        %v5400 = vunpack.c.l.b16 %v5355
        %v5401 = vunpack.c.h.b16 %v5355
        %v5402 = vunpack.c.l.b16 %v5356
        %v5403 = vunpack.c.h.b16 %v5356
        %v5404 = vunpack.c.l.b16 %v5357
        %v5405 = vunpack.c.h.b16 %v5357
        %v5406 = vunpack.c.l.b16 %v5358
        %v5407 = vunpack.c.h.b16 %v5358
        %v5408 = vunpack.c.l.b16 %v5359
        %v5409 = vunpack.c.h.b16 %v5359
        %v5410 = vunpack.c.l.b16 %v5360
        %v5411 = vunpack.c.h.b16 %v5360
        %v5412 = vunpack.c.l.b16 %v5361
        %v5413 = vunpack.c.h.b16 %v5361
        %v5414 = vunpack.c.l.b16 %v5362
        %v5415 = vunpack.c.h.b16 %v5362
        %v5416 = vunpack.c.l.b16 %v5363
        %v5417 = vunpack.c.h.b16 %v5363
        %v5418 = vunpack.c.l.b16 %v5364
        %v5419 = vunpack.c.h.b16 %v5364
        %v5420 = vunpack.c.l.b16 %v5365
        %v5421 = vunpack.c.h.b16 %v5365
        %v5422 = vunpack.c.l.b16 %v5366
        %v5423 = vunpack.c.h.b16 %v5366
        %v5424 = vunpack.c.l.b16 %v5367
        %v5425 = vunpack.c.h.b16 %v5367
        %v5426 = vunpack.c.l.b16 %v5368
        %v5427 = vunpack.c.h.b16 %v5368
        %v5428 = vunpack.c.l.b16 %v5369
        %v5429 = vunpack.c.h.b16 %v5369
        %v5430 = vunpack.c.l.b16 %v5370
        %v5431 = vunpack.c.h.b16 %v5370
        %v5432 = vpack.c.b16 %v5402, %v5400
        %v5433 = vpack.c.b16 %v5403, %v5401
        %v5434 = vpack.c.b16 %v5406, %v5404
        %v5435 = vpack.c.b16 %v5407, %v5405
        %v5436 = vpack.c.b16 %v5410, %v5408
        %v5437 = vpack.c.b16 %v5411, %v5409
        %v5438 = vpack.c.b16 %v5414, %v5412
        %v5439 = vpack.c.b16 %v5415, %v5413
        %v5440 = vpack.c.b16 %v5418, %v5416
        %v5441 = vpack.c.b16 %v5419, %v5417
        %v5442 = vpack.c.b16 %v5422, %v5420
        %v5443 = vpack.c.b16 %v5423, %v5421
        %v5444 = vpack.c.b16 %v5426, %v5424
        %v5445 = vpack.c.b16 %v5427, %v5425
        %v5446 = vpack.c.b16 %v5430, %v5428
        %v5447 = vpack.c.b16 %v5431, %v5429
        %5464 = vmatprep.subr.bf16.mxu0 %v5447
        %5465 = vmatpush1.bf16.msra.mxu0 %v5446
        %5466 = vmatprep.subr.bf16.mxu0 %v5445
        %5467 = vmatpush1.bf16.msra.mxu0 %v5444
        %5468 = vmatprep.subr.bf16.mxu0 %v5443
        %5469 = vmatpush1.bf16.msra.mxu0 %v5442
        %5470 = vmatprep.subr.bf16.mxu0 %v5441
        %5471 = vmatpush1.bf16.msra.mxu0 %v5440
        %5472 = vmatprep.subr.bf16.mxu0 %v5439
        %5473 = vmatpush1.bf16.msra.mxu0 %v5438
        %5474 = vmatprep.subr.bf16.mxu0 %v5437
        %5475 = vmatpush1.bf16.msra.mxu0 %v5436
        %5476 = vmatprep.subr.bf16.mxu0 %v5435
        %5477 = vmatpush1.bf16.msra.mxu0 %v5434
        %5478 = vmatprep.subr.bf16.mxu0 %v5433
        %5479 = vmatpush1.bf16.msra.mxu0 %v5432
        %5480 = vmatprep.subr.bf16.mxu0 0
        %5481 = vmatpush2.bf16.msra.mxu0 0
        %5482 = vmatprep.subr.bf16.mxu0 0
        %5483 = vmatpush2.bf16.msra.mxu0 0
        %5484 = vmatprep.subr.bf16.mxu0 0
        %5485 = vmatpush2.bf16.msra.mxu0 0
        %5486 = vmatprep.subr.bf16.mxu0 0
        %5487 = vmatpush2.bf16.msra.mxu0 0
        %5488 = vmatprep.subr.bf16.mxu0 0
        %5489 = vmatpush2.bf16.msra.mxu0 0
        %5490 = vmatprep.subr.bf16.mxu0 0
        %5491 = vmatpush2.bf16.msra.mxu0 0
        %5492 = vmatprep.subr.bf16.mxu0 0
        %5493 = vmatpush2.bf16.msra.mxu0 0
        %5494 = vmatprep.subr.bf16.mxu0 0
        %5495 = vmatpush2.bf16.msra.mxu0 0
        %5496 = vmatprep.mubr.bf16.mxu0 0
        %5497 = vmatmul.mubr.bf16.gmra.mxu0 %v5352
        %v5498 = vpop.f32.mrf.mxu0
        %v5499 = vadd.f32 %v5377, %v5498
        %v5500 = vpop.f32.mrf.mxu0
        %v5501 = vadd.f32 %v5381, %v5500
        %v5502 = vpop.f32.mrf.mxu0
        %v5503 = vadd.f32 %v5377, %v5502
        %v5504 = vpop.f32.mrf.mxu0
        %v5505 = vadd.f32 %v5381, %v5504
        %5506 = vmatprep.mubr.bf16.mxu0 0
        %5507 = vmatmul.mubr.bf16.gmra.mxu0 %v5353
        %v5508 = vpop.f32.mrf.mxu0
        %v5509 = vadd.f32 %v5377, %v5508
        %v5510 = vpop.f32.mrf.mxu0
        %v5511 = vadd.f32 %v5381, %v5510
        %v5512 = vpop.f32.mrf.mxu0
        %v5513 = vadd.f32 %v5377, %v5512
        %v5514 = vpop.f32.mrf.mxu0
        %v5515 = vadd.f32 %v5381, %v5514
        %5516 = vdwg.mxu0
        %v5517 = vadd.f32 %v4748, %v5501
        %v5518 = vadd.f32 %v4749, %v5505
        %v5519 = vadd.f32 %v4750, %v5511
        %v5520 = vadd.f32 %v4751, %v5515
        %v5521 = vadd.f32 %v5499, %v4761
        %v5522 = vadd.f32 %v5503, %v4762
        %v5523 = vadd.f32 %v5509, %v4764
        %v5524 = vadd.f32 %v5513, %v4765
        %5525 = vst [vmem:[#allocation2 + $0x8] sm:$0xff] %v5521
        %5526 = vst [vmem:[#allocation2 + $0x10] sm:$0xff] %v5522
        %5527 = vst [vmem:[#allocation2 + $0x20] sm:$0xff] %v5523
        %5528 = vst [vmem:[#allocation2 + $0x28] sm:$0xff] %v5524
        %v5529 = vadd.f32 %v5517, %v5518
        %v5530 = vadd.f32 %v5529, %v5519
        %v5531 = vadd.f32 %v5530, %v5520
        %v5532 = vrot.slane %v5531, 4
        %v5533 = vadd.f32 %v5531, %v5532
        %v5534 = vrot.slane %v5533, 2
        %v5535 = vadd.f32 %v5533, %v5534
        %v5536 = vrot.slane %v5535, 1
        %v5537 = vadd.f32 %v5535, %v5536
        %v5538 = vmul.f32 %v5537, 0.03125
        %v5539 = vmul.f32 %v5517, %v5517
        %v5540 = vmul.f32 %v5518, %v5518
        %v5541 = vmul.f32 %v5519, %v5519
        %v5542 = vmul.f32 %v5520, %v5520
        %v5543 = vadd.f32 %v5539, %v5540
        %v5544 = vadd.f32 %v5543, %v5541
        %v5545 = vadd.f32 %v5544, %v5542
        %v5546 = vrot.slane %v5545, 4
        %v5547 = vadd.f32 %v5545, %v5546
        %v5548 = vrot.slane %v5547, 2
        %v5549 = vadd.f32 %v5547, %v5548
        %v5550 = vrot.slane %v5549, 1
        %v5551 = vadd.f32 %v5549, %v5550
        %v5552 = vmul.f32 %v5551, 0.03125
        %v5553 = vmul.f32 %v5538, %v5538
        %v5554 = vsub.f32 %v5552, %v5553
        %v5555 = vmax.f32 %v5554, 0.0
        %v5556 = vsub.f32 %v5517, %v5538
        %v5557 = vsub.f32 %v5518, %v5538
        %v5558 = vsub.f32 %v5519, %v5538
        %v5559 = vsub.f32 %v5520, %v5538
        %v5560 = vadd.f32 %v5555, 1e-05
        %v5561 = vrsqrt.pop %v5560
        %v5562 = vmul.f32 %v5556, %v5561
        %v5563 = vmul.f32 %v5557, %v5561
        %v5564 = vmul.f32 %v5558, %v5561
        %v5565 = vmul.f32 %v5559, %v5561
        %v5566 = vmax.f32 %v5562, 0.0
        %v5567 = vmax.f32 %v5563, 0.0
        %v5568 = vmax.f32 %v5564, 0.0
        %v5569 = vmax.f32 %v5565, 0.0
        %v5570 = vld [vmem:[%s508] sm:$0xff]
        %v5571 = vld [vmem:[%s508 + $0x8] sm:$0xff]
        %v5572 = vmul.f32 %v5566, %v5570
        %v5573 = vmul.f32 %v5567, %v5571
        %v5574 = vmul.f32 %v5568, %v5570
        %v5575 = vmul.f32 %v5569, %v5571
        %v5576 = vadd.f32 %v5572, %v5573
        %v5577 = vrot.slane %v5576, 4
        %v5578 = vadd.f32 %v5576, %v5577
        %v5579 = vrot.slane %v5578, 2
        %v5580 = vadd.f32 %v5578, %v5579
        %v5581 = vrot.slane %v5580, 1
        %v5582 = vadd.f32 %v5580, %v5581
        %v5583 = vadd.f32 %v5574, %v5575
        %v5584 = vrot.slane %v5583, 4
        %v5585 = vadd.f32 %v5583, %v5584
        %v5586 = vrot.slane %v5585, 2
        %v5587 = vadd.f32 %v5585, %v5586
        %v5588 = vrot.slane %v5587, 1
        %v5589 = vadd.f32 %v5587, %v5588
        %v5590 = vld [vmem:[%s516] sm:$0x1]
        %v5592 = vlaneseq
        %v5593 = vshrl.u32 %v5592, 7
        %v5594 = vsub.s32 0, %v5593
        %v5595 = vrot.slane %v5590, %v5594
        %v5597 = vadd.f32 %v5582, %v5595
        %v5598 = vadd.f32 %v5589, %v5595
        %v5601 = vrot.slane %v5598, 7
        %vm5602 = vcmask 1041409
        %v5603 = vsel %vm5602, %v5601, %v5597
        %vm5605 = vcmask 1041408
        %v5606 = vsel %vm5605, %v5603, 0.0
        %v5607 = vrot.slane %v5606, 4
        %v5608 = vadd.f32 %v5606, %v5607
        %v5609 = vrot.slane %v5608, 2
        %v5610 = vadd.f32 %v5608, %v5609
        %v5611 = vrot.slane %v5610, 1
        %v5612 = vadd.f32 %v5610, %v5611
        %v5613 = vmul.f32 %v5612, 0.5
        %v5614 = vmul.f32 %v5597, %v5597
        %v5615 = vmul.f32 %v5598, %v5598
        %v5618 = vrot.slane %v5615, 7
        %v5619 = vsel %vm5602, %v5618, %v5614
        %v5621 = vsel %vm5605, %v5619, 0.0
        %v5622 = vrot.slane %v5621, 4
        %v5623 = vadd.f32 %v5621, %v5622
        %v5624 = vrot.slane %v5623, 2
        %v5625 = vadd.f32 %v5623, %v5624
        %v5626 = vrot.slane %v5625, 1
        %v5627 = vadd.f32 %v5625, %v5626
        %v5628 = vmul.f32 %v5627, 0.5
        %v5629 = vmul.f32 %v5613, %v5613
        %v5630 = vsub.f32 %v5628, %v5629
        %v5631 = vmax.f32 %v5630, 0.0
        %v5632 = vlaneseq
        %v5633 = vshrl.u32 %v5632, 7
        %v5634 = vsub.s32 0, %v5633
        %v5635 = vrot.slane %v5613, %v5634
        %v5636 = vsub.f32 %v5597, %v5635
        %v5637 = vsub.f32 %v5598, %v5635
        %v5638 = vadd.f32 %v5631, 1e-05
        %v5639 = vrsqrt.pop %v5638
        %v5640 = vlaneseq
        %v5641 = vshrl.u32 %v5640, 7
        %v5642 = vsub.s32 0, %v5641
        %v5643 = vrot.slane %v5639, %v5642
        %v5644 = vmul.f32 %v5636, %v5643
        %v5645 = vmul.f32 %v5637, %v5643
        %v5646 = vpack.c.bf16 %v5644, %v5644
        %v5647 = vpack.c.bf16 %v5645, %v5645
        %v5648 = vld [vmem:[%s605] sm:$0xf]
        %v5649 = vld [vmem:[%s605 + $0x4] sm:$0xf]
        %v5650 = vld [vmem:[%s605 + $0x8] sm:$0xf]
        %v5651 = vld [vmem:[%s605 + $0xc] sm:$0xf]
        %v5652 = vld [vmem:[%s605 + $0x10] sm:$0xf]
        %v5653 = vld [vmem:[%s605 + $0x14] sm:$0xf]
        %v5654 = vld [vmem:[%s605 + $0x18] sm:$0xf]
        %v5655 = vld [vmem:[%s605 + $0x1c] sm:$0xf]
        %v5656 = vld [vmem:[%s605 + $0x20] sm:$0xf]
        %v5657 = vld [vmem:[%s605 + $0x24] sm:$0xf]
        %v5658 = vld [vmem:[%s605 + $0x28] sm:$0xf]
        %v5659 = vld [vmem:[%s605 + $0x2c] sm:$0xf]
        %v5660 = vld [vmem:[%s605 + $0x30] sm:$0xf]
        %v5661 = vld [vmem:[%s605 + $0x34] sm:$0xf]
        %v5662 = vld [vmem:[%s605 + $0x38] sm:$0xf]
        %v5663 = vld [vmem:[%s605 + $0x3c] sm:$0xf]
        %v5664 = vld [vmem:[%s524] sm:$0x1]
        %v5666 = vlaneseq
        %v5667 = vshrl.u32 %v5666, 7
        %v5668 = vsub.s32 0, %v5667
        %v5669 = vrot.slane %v5664, %v5668
        %v5673 = vunpack.c.l.b16 %v5646
        %v5674 = vunpack.c.l.b16 %v5647
        %v5675 = vrot.slane %v5674, 7
        %v5676 = vsel %vm5602, %v5675, %v5673
        %v5677 = vpack.c.b16 %v5676, %v5676
        %v5695 = vunpack.c.l.b16 %v5648
        %v5696 = vunpack.c.l.b16 %v5649
        %v5697 = vunpack.c.l.b16 %v5650
        %v5698 = vunpack.c.l.b16 %v5651
        %v5699 = vunpack.c.l.b16 %v5652
        %v5700 = vunpack.c.l.b16 %v5653
        %v5701 = vunpack.c.l.b16 %v5654
        %v5702 = vunpack.c.l.b16 %v5655
        %v5703 = vunpack.c.l.b16 %v5656
        %v5704 = vunpack.c.l.b16 %v5657
        %v5705 = vunpack.c.l.b16 %v5658
        %v5706 = vunpack.c.l.b16 %v5659
        %v5707 = vunpack.c.l.b16 %v5660
        %v5708 = vunpack.c.l.b16 %v5661
        %v5709 = vunpack.c.l.b16 %v5662
        %v5710 = vunpack.c.l.b16 %v5663
        %v5711 = vpack.c.b16 %v5696, %v5695
        %v5712 = vpack.c.b16 %v5698, %v5697
        %v5713 = vpack.c.b16 %v5700, %v5699
        %v5714 = vpack.c.b16 %v5702, %v5701
        %v5715 = vpack.c.b16 %v5704, %v5703
        %v5716 = vpack.c.b16 %v5706, %v5705
        %v5717 = vpack.c.b16 %v5708, %v5707
        %v5718 = vpack.c.b16 %v5710, %v5709
        %5727 = vmatprep.subr.bf16.mxu0 0
        %5728 = vmatpush1.bf16.msra.mxu0 %v5718
        %5729 = vmatprep.subr.bf16.mxu0 0
        %5730 = vmatpush1.bf16.msra.mxu0 %v5717
        %5731 = vmatprep.subr.bf16.mxu0 0
        %5732 = vmatpush1.bf16.msra.mxu0 %v5716
        %5733 = vmatprep.subr.bf16.mxu0 0
        %5734 = vmatpush1.bf16.msra.mxu0 %v5715
        %5735 = vmatprep.subr.bf16.mxu0 0
        %5736 = vmatpush1.bf16.msra.mxu0 %v5714
        %5737 = vmatprep.subr.bf16.mxu0 0
        %5738 = vmatpush1.bf16.msra.mxu0 %v5713
        %5739 = vmatprep.subr.bf16.mxu0 0
        %5740 = vmatpush1.bf16.msra.mxu0 %v5712
        %5741 = vmatprep.subr.bf16.mxu0 0
        %5742 = vmatpush1.bf16.msra.mxu0 %v5711
        %5743 = vmatprep.subr.bf16.mxu0 0
        %5744 = vmatpush2.bf16.msra.mxu0 0
        %5745 = vmatprep.subr.bf16.mxu0 0
        %5746 = vmatpush2.bf16.msra.mxu0 0
        %5747 = vmatprep.subr.bf16.mxu0 0
        %5748 = vmatpush2.bf16.msra.mxu0 0
        %5749 = vmatprep.subr.bf16.mxu0 0
        %5750 = vmatpush2.bf16.msra.mxu0 0
        %5751 = vmatprep.subr.bf16.mxu0 0
        %5752 = vmatpush2.bf16.msra.mxu0 0
        %5753 = vmatprep.subr.bf16.mxu0 0
        %5754 = vmatpush2.bf16.msra.mxu0 0
        %5755 = vmatprep.subr.bf16.mxu0 0
        %5756 = vmatpush2.bf16.msra.mxu0 0
        %5757 = vmatprep.subr.bf16.mxu0 0
        %5758 = vmatpush2.bf16.msra.mxu0 0
        %5759 = vmatprep.mubr.bf16.mxu0 0
        %5760 = vmatmul.mubr.bf16.gmra.mxu0 %v5677
        %v5761 = vpop.f32.mrf.mxu0
        %v5762 = vadd.f32 %v5669, %v5761
        %v5763 = vpop.f32.mrf.mxu0
        %v5764 = vpop.f32.mrf.mxu0
        %v5765 = vpop.f32.mrf.mxu0
        %5766 = vdwg.mxu0
        %vm5767 = vcmask 517120
        %5768 = vst.msk [vmem:[%s609] sm:$0x3] %vm5767, %v5762
        %p5769 = scmp.lt.s32.totalorder %s32, 1
        %s5770 = scalar_select %p5769, %s32, 1
        %s5771 = smul.addr %s5770, 2
        %s5772 = scalar_lea.vmem %s9, %s5771
        // Predicated region
        $region85: #{_lambda_.4} parent=55 // pred_check
          %p5773 = pneg %p284
        $region86: #{_lambda_.4} parent=55 // pred_check_branch
          %5775 = sbr.rel (%p5773) target = $region88
        $region87: #{_lambda_.4} parent=55 // pred_region
          _
        $region88: #{_lambda_.4} parent=55 // pred_fallthru
          _
      $region56: #{_lambda_.4} parent=5 // pred_fallthru
        _
      %p5776 = scmp.le.s32.totalorder 2, %s27
      // Predicated region
      $region89: #{_lambda_.4} parent=5 // pred_check
        %p5777 = pneg %p5776
      $region90: #{_lambda_.4} parent=5 // pred_check_branch
        %5779 = sbr.rel (%p5777) target = $region92
      $region91: #{_lambda_.4} parent=5 // pred_region
        %s5780 = ssub.s32 %s27, 2
        // Predicated region
        $region93: #{_lambda_.4} parent=91 // pred_check
          %p5781 = pneg %p290
        $region94: #{_lambda_.4} parent=91 // pred_check_branch
          %5783 = sbr.rel (%p5781) target = $region96
        $region95: #{_lambda_.4} parent=91 // pred_region
          %p5784 = scmp.lt.s32.totalorder %s33, 1
          %s5785 = scalar_select %p5784, %s33, 1
          %s5786 = smul.addr %s5785, 2
          %s5787 = scalar_lea.vmem %s9, %s5786
        $region96: #{_lambda_.4} parent=91 // pred_fallthru
          _
      $region92: #{_lambda_.4} parent=5 // pred_fallthru
        _
    $region6: #{_lambda_.4} parent=1 // loop_footer
      %s31 = sadd.s32 1, %s27
    $region7: #{_lambda_.4} parent=1 // loop_footer_branch
      %26 = sbr.rel target = $region3
    $region8: #{_lambda_.4} parent=1 // loop_exit
      _
    %5788 = vsyncpa [#allocation4], 1
    %s5789 = scalar_lea.sflag [#allocation4], 1
    %5790 = vsyncpa %s5789, 1
    %5791 = vsyncpa [#allocation6], 1
    %s5792 = scalar_lea.sflag [#allocation6], 1
    %5793 = vsyncpa %s5792, 1
    %5794 = vsyncpa [#allocation9], 1
    %s5795 = scalar_lea.sflag [#allocation9], 1
    %5796 = vsyncpa %s5795, 1
    %5797 = vsyncpa [#allocation12], 1
    %s5798 = scalar_lea.sflag [#allocation12], 1
    %5799 = vsyncpa %s5798, 1

</llo_original>
